<compile_context>
chip_gen: v7x
topology: tpu7x:2x2x1
jax: 0.10.0
libtpu: 0.0.40
codegen_flags: <defaults>
</compile_context>

<pallas_src>
import functools
import math

import jax
import jax.numpy as jnp
from jax.experimental import pallas as pl
from jax.experimental.pallas import tpu as pltpu

_BN_EPS = 1e-5
_VMEM_LIMIT = 48 * 1024 * 1024   # < v7x 64 MiB physical; >> worst-case working set


def _round_up(x, m):
    return (x + m - 1) // m * m


def _cdiv(a, b):
    return -(-a // b)


# ----------------------------- Pallas kernels --------------------------------

def _gemm_kernel_1k(a_ref, b_ref, scale_ref, shift_ref, o_ref, *, relu):
    """Single-K-step GEMM: no accumulator scratch, straight store.

    o = act((A @ B) * scale + shift), acc in f32, store in o_ref.dtype."""
    out = jnp.dot(a_ref[...], b_ref[...], preferred_element_type=jnp.float32)
    out = out * scale_ref[...] + shift_ref[...]
    if relu:
        out = jnp.maximum(out, 0.0)
    o_ref[...] = out.astype(o_ref.dtype)


def _gemm_kernel_multik(a_ref, b_ref, scale_ref, shift_ref, o_ref, acc_ref, *, relu):
    """K-streamed GEMM with f32 VMEM accumulator (K is innermost grid axis)."""
    k = pl.program_id(2)

    @pl.when(k == 0)
    def _():
        acc_ref[...] = jnp.zeros_like(acc_ref)

    acc_ref[...] += jnp.dot(a_ref[...], b_ref[...],
                            preferred_element_type=jnp.float32)

    @pl.when(k == pl.num_programs(2) - 1)
    def _():
        out = acc_ref[...] * scale_ref[...] + shift_ref[...]
        if relu:
            out = jnp.maximum(out, 0.0)
        o_ref[...] = out.astype(o_ref.dtype)


# ----------------------------- kernel wrapper --------------------------------

def gemm_affine(a, b, scale, shift, *, relu=False, out_dtype=jnp.bfloat16):
    """bf16 MXU GEMM with fused per-column affine (+ optional ReLU) epilogue."""
    m, k = a.shape
    k2, n = b.shape
    assert k == k2

    # M: >=2 tiles when M > 256 (gives the second v7x TensorCore work via the
    #    "parallel" axis); 16-row alignment for bf16 sublane packing.
    n_m = max(1, _cdiv(m, 256))
    tm = _round_up(_cdiv(m, n_m), 16)
    # N: keep the whole lane-padded N in one tile when it is small.
    np128 = _round_up(n, 128)
    tn = np128 if np128 <= 512 else 256
    # K: large K tiles (single reduction step for every layer of this net).
    kp128 = _round_up(k, 128)
    tk = kp128 if kp128 <= 2048 else 2048

    mp, np_, kp = _round_up(m, tm), _round_up(n, tn), _round_up(k, tk)

    a_p = a.astype(jnp.bfloat16)
    if (mp, kp) != (m, k):
        a_p = jnp.pad(a_p, ((0, mp - m), (0, kp - k)))
    b_p = b.astype(jnp.bfloat16)
    if (kp, np_) != (k, n):
        b_p = jnp.pad(b_p, ((0, kp - k), (0, np_ - n)))
    s_p = scale.reshape(1, n).astype(jnp.float32)
    t_p = shift.reshape(1, n).astype(jnp.float32)
    if np_ != n:
        s_p = jnp.pad(s_p, ((0, 0), (0, np_ - n)))
        t_p = jnp.pad(t_p, ((0, 0), (0, np_ - n)))

    k_steps = kp // tk
    cost = pl.CostEstimate(
        flops=2 * mp * kp * np_, transcendentals=0,
        bytes_accessed=mp * kp * 2 + kp * np_ * 2
        + mp * np_ * jnp.dtype(out_dtype).itemsize)

    if k_steps == 1:
        out = pl.pallas_call(
            functools.partial(_gemm_kernel_1k, relu=relu),
            out_shape=jax.ShapeDtypeStruct((mp, np_), out_dtype),
            grid_spec=pltpu.PrefetchScalarGridSpec(
                num_scalar_prefetch=0,
                grid=(mp // tm, np_ // tn),
                in_specs=[
                    pl.BlockSpec((tm, kp), lambda i, j: (i, 0)),
                    pl.BlockSpec((kp, tn), lambda i, j: (0, j)),
                    pl.BlockSpec((1, tn), lambda i, j: (0, j)),
                    pl.BlockSpec((1, tn), lambda i, j: (0, j)),
                ],
                out_specs=pl.BlockSpec((tm, tn), lambda i, j: (i, j)),
            ),
            compiler_params=pltpu.CompilerParams(
                dimension_semantics=("parallel", "parallel"),
                vmem_limit_bytes=_VMEM_LIMIT),
            cost_estimate=cost,
        )(a_p, b_p, s_p, t_p)
    else:
        out = pl.pallas_call(
            functools.partial(_gemm_kernel_multik, relu=relu),
            out_shape=jax.ShapeDtypeStruct((mp, np_), out_dtype),
            grid_spec=pltpu.PrefetchScalarGridSpec(
                num_scalar_prefetch=0,
                grid=(mp // tm, np_ // tn, k_steps),
                in_specs=[
                    pl.BlockSpec((tm, tk), lambda i, j, kk: (i, kk)),
                    pl.BlockSpec((tk, tn), lambda i, j, kk: (kk, j)),
                    pl.BlockSpec((1, tn), lambda i, j, kk: (0, j)),
                    pl.BlockSpec((1, tn), lambda i, j, kk: (0, j)),
                ],
                out_specs=pl.BlockSpec((tm, tn), lambda i, j, kk: (i, j)),
                scratch_shapes=[pltpu.VMEM((tm, tn), jnp.float32)],
            ),
            compiler_params=pltpu.CompilerParams(
                dimension_semantics=("parallel", "parallel", "arbitrary"),
                vmem_limit_bytes=_VMEM_LIMIT),
            cost_estimate=cost,
        )(a_p, b_p, s_p, t_p)

    if (mp, np_) != (m, n):
        out = out[:m, :n]
    return out


# ------------------------------- conv glue ----------------------------------

def _im2col(x, kh, kw, stride, pads):
    """x: [N,H,W,C] -> patches [N*OH*OW, KH*KW*C] ordered (kh, kw, c)."""
    # TODO(synk): fold im2col into the Pallas kernel (kh/kw as extra grid axes
    # indexing a once-padded NHWC input) to avoid the KH*KW HBM expansion.
    pt, pb, pl_, pr = pads
    x = jnp.pad(x, ((0, 0), (pt, pb), (pl_, pr), (0, 0)))
    n, h, w, c = x.shape
    oh = (h - kh) // stride + 1
    ow = (w - kw) // stride + 1
    cols = []
    for i in range(kh):
        for j in range(kw):
            cols.append(x[:, i:i + (oh - 1) * stride + 1:stride,
                            j:j + (ow - 1) * stride + 1:stride, :])
    patches = jnp.stack(cols, axis=3)                 # [n, oh, ow, kh*kw, c]
    return patches.reshape(n * oh * ow, kh * kw * c), (n, oh, ow)


def conv2d(x, w_oihw, bias, stride, pads, post_scale=None, post_shift=None,
           relu=False, out_dtype=jnp.bfloat16):
    """Conv2d as a Pallas GEMM with fused bias/BN/ReLU epilogue."""
    co, ci, kh, kw = w_oihw.shape
    if kh == 1 and kw == 1 and stride == 1 and all(p == 0 for p in pads):
        n, oh, ow, c = x.shape
        assert c == ci
        a = x.reshape(n * oh * ow, c)
        b = jnp.transpose(w_oihw.reshape(co, ci), (1, 0))
    else:
        a, (n, oh, ow) = _im2col(x, kh, kw, stride, pads)
        b = jnp.transpose(w_oihw, (2, 3, 1, 0)).reshape(kh * kw * ci, co)

    bias = jnp.zeros((co,), jnp.float32) if bias is None else bias
    if post_scale is None:
        post_scale = jnp.ones((co,), jnp.float32)
    if post_shift is None:
        post_shift = jnp.zeros((co,), jnp.float32)
    scale = post_scale
    shift = bias * post_scale + post_shift
    out = gemm_affine(a, b, scale, shift, relu=relu, out_dtype=out_dtype)
    return out.reshape(n, oh, ow, co)


def _subpixel_plan(ksize, stride, padding):
    """Per spatial dim: group kernel taps by output residue (o mod stride).

    Returns (window_size, pad_lo, residues) where residues[r] = (taps, d) and
    tap t (kernel index taps[t]) reads input position q + d - t; within the
    shared window of size `window_size` starting at q - pad_lo the tap sits at
    offset pad_lo + d - t."""
    residues = []
    for r in range(stride):
        k0 = (r + padding) % stride
        taps = list(range(k0, ksize, stride))
        d = (r + padding) // stride
        residues.append((taps, d))
    t_max = max(len(t) for t, _ in residues)
    pad_lo = max(0, max(len(t) - 1 - d for t, d in residues))
    for taps, d in residues:
        if taps:
            assert d + pad_lo <= t_max - 1, "sub-pixel window overflow"
    return t_max, pad_lo, residues


def conv_transpose2d(x, w_iohw, bias, stride, padding, output_padding,
                     post_scale=None, post_shift=None, relu=False,
                     out_dtype=jnp.bfloat16):
    """ConvTranspose2d as ONE sub-pixel GEMM + depth-to-space.

    All stride^2 residue sub-convs act on the *un-dilated* input and share a
    single im2col window (Th x Tw ~ ceil(K/stride)^2), so they fuse into one
    GEMM with stride^2*Cout output columns (bias/BN/ReLU fused per column);
    the result is pixel-shuffled back to (OH, OW, Cout).  No zero-multiplies
    from input dilation reach the MXU."""
    ci, co, kh, kw = w_iohw.shape
    n, h, w_, c = x.shape
    assert c == ci
    s = stride
    oh = (h - 1) * s - 2 * padding + kh + output_padding
    ow = (w_ - 1) * s - 2 * padding + kw + output_padding

    th, pad_t, res_h = _subpixel_plan(kh, s, padding)
    tw, pad_l, res_w = _subpixel_plan(kw, s, padding)
    qh, qw = _cdiv(oh, s), _cdiv(ow, s)
    pad_b = max(0, qh + th - 1 - pad_t - h)
    pad_r = max(0, qw + tw - 1 - pad_l - w_)

    # Fused sub-pixel weight: [th, tw, ci, s, s, co] -> [th*tw*ci, s*s*co].
    wb = jnp.zeros((th, tw, ci, s, s, co), w_iohw.dtype)
    for rh, (taps_h, dh) in enumerate(res_h):
        for ih, k_h in enumerate(taps_h):
            uh = pad_t + dh - ih
            for rw, (taps_w, dw) in enumerate(res_w):
                for iw, k_w in enumerate(taps_w):
                    uw = pad_l + dw - iw
                    wb = wb.at[uh, uw, :, rh, rw, :].set(w_iohw[:, :, k_h, k_w])
    b_mat = wb.reshape(th * tw * ci, s * s * co)

    a, (_, qh2, qw2) = _im2col(x, th, tw, 1, (pad_t, pad_b, pad_l, pad_r))
    assert qh2 >= qh and qw2 >= qw

    bias = jnp.zeros((co,), jnp.float32) if bias is None else bias
    scale = jnp.ones((co,), jnp.float32) if post_scale is None else post_scale
    shift = jnp.zeros((co,), jnp.float32) if post_shift is None else post_shift
    scale_t = jnp.tile(scale, s * s)
    shift_t = jnp.tile(bias * scale + shift, s * s)

    y = gemm_affine(a, b_mat, scale_t, shift_t, relu=relu, out_dtype=out_dtype)
    y = y.reshape(n, qh2, qw2, s, s, co)
    y = jnp.transpose(y, (0, 1, 3, 2, 4, 5)).reshape(n, qh2 * s, qw2 * s, co)
    return y[:, :oh, :ow, :]                           # depth-to-space + crop


def _bn_scale(c):
    """Freshly-initialized BatchNorm2d (eval): per-channel scale 1/sqrt(1+eps)."""
    return jnp.full((c,), 1.0 / math.sqrt(1.0 + _BN_EPS), jnp.float32)


def bottleneck_block(buf, w1, w2):
    """One DenseNet bottleneck on the (ReLU'd) running channel buffer.

    relu(bn1(x)) == bn1_scale * relu(x) for fresh eval BN stats (positive
    scale); the buffer already stores ReLU'd activations (producer-epilogue
    ReLU fold), so bn1 folds into w1 and no prologue pass is needed.  bn2+ReLU
    fuse into the 1x1 GEMM epilogue; the downstream ReLU (next block's / final
    F.relu) fuses into the 3x3 GEMM epilogue (ReLU is idempotent)."""
    inter, c_in = w1.shape[0], w1.shape[1]
    n, h, w_, c_total = buf.shape
    bn1_s = 1.0 / math.sqrt(1.0 + _BN_EPS)
    # Unwritten buffer channels are exactly zero -> zero-pad w1 to full width.
    w1f = jnp.pad(w1.reshape(inter, c_in) * bn1_s,
                  ((0, 0), (0, c_total - c_in)))
    a = buf.reshape(n * h * w_, c_total)
    y = gemm_affine(a, jnp.transpose(w1f, (1, 0)),
                    _bn_scale(inter), jnp.zeros((inter,), jnp.float32),
                    relu=True)                          # 1x1 (no im2col)
    y = y.reshape(n, h, w_, inter)
    # TODO(synk): fuse this 3x3 GEMM with the 1x1 above into a single
    # pallas_call (keep y in VMEM) to halve dense-block dispatch overhead.
    return conv2d(y, w2, None, 1, (1, 1, 1, 1), relu=True)   # 3x3


# ------------------------------- parameters ---------------------------------

def init_params(key):
    keys = iter(jax.random.split(key, 64))

    def xavier(shape, fan_in, fan_out):
        bound = math.sqrt(6.0 / (fan_in + fan_out))
        return jax.random.uniform(next(keys), shape, jnp.float32, -bound, bound)

    def conv_w(co, ci, k):
        return xavier((co, ci, k, k), ci * k * k, co * k * k)

    def convT_w(ci, co, k):  # PyTorch ConvTranspose2d weight shape (ci, co, k, k)
        return xavier((ci, co, k, k), co * k * k, ci * k * k)

    def bias(c, fan_in):
        bound = 1.0 / math.sqrt(fan_in)
        return jax.random.uniform(next(keys), (c,), jnp.float32, -bound, bound)

    p = {}
    p['conv1_w'] = conv_w(32, 1, 9);    p['conv1_b'] = bias(32, 1 * 81)
    p['conv2_w'] = conv_w(64, 32, 5);   p['conv2_b'] = bias(64, 32 * 25)
    p['conv3_w'] = conv_w(128, 64, 3);  p['conv3_b'] = bias(128, 64 * 9)

    block, c_in, growth, inter = [], 128, 24, 96
    for _ in range(16):
        w1 = conv_w(inter, c_in, 1)     # bias=False
        w2 = conv_w(growth, inter, 3)   # bias=False
        block.append((w1, w2))
        c_in += growth
    p['block'] = block

    p['conv4_w'] = convT_w(512, 64, 3); p['conv4_b'] = bias(64, 64 * 9)
    p['conv5_w'] = convT_w(64, 32, 5);  p['conv5_b'] = bias(32, 32 * 25)
    p['conv6_w'] = convT_w(32, 32, 9);  p['conv6_b'] = bias(32, 32 * 81)

    for name in ('pos', 'cos', 'sin', 'width'):
        p[f'{name}_w'] = conv_w(1, 32, 2)
        p[f'{name}_b'] = bias(1, 32 * 4)
    return p


# -------------------------------- forward -----------------------------------

def dense_grasp_forward(params, x_nchw):
    x = jnp.transpose(x_nchw, (0, 2, 3, 1)).astype(jnp.float32)  # NCHW -> NHWC

    x = conv2d(x, params['conv1_w'], params['conv1_b'], 3, (3, 3, 3, 3),
               post_scale=_bn_scale(32), relu=True)
    x = conv2d(x, params['conv2_w'], params['conv2_b'], 2, (2, 2, 2, 2),
               post_scale=_bn_scale(64), relu=True)
    x = conv2d(x, params['conv3_w'], params['conv3_b'], 2, (1, 1, 1, 1),
               post_scale=_bn_scale(128), relu=True)

    # Dense block: one preallocated bf16 channel buffer (512 = 4*128 lanes).
    # Every stored activation is ReLU'd in its producer's epilogue, so the
    # per-block relu(bn1(.)) and the final F.relu are already folded in.
    n, h, w_, c0 = x.shape
    growth = params['block'][0][1].shape[0]
    c_final = c0 + growth * len(params['block'])
    buf = jnp.zeros((n, h, w_, c_final), jnp.bfloat16)
    buf = buf.at[..., :c0].set(x)
    # TODO(synk): write block outputs in place via input_output_aliases instead
    # of .at[].set (would need 128-aligned channel slices).
    c_in = c0
    for (w1, w2) in params['block']:
        out = bottleneck_block(buf, w1, w2)
        buf = buf.at[..., c_in:c_in + growth].set(out)
        c_in += growth

    x = conv_transpose2d(buf, params['conv4_w'], params['conv4_b'], 2, 1, 1,
                         post_scale=_bn_scale(64), relu=True)
    x = conv_transpose2d(x, params['conv5_w'], params['conv5_b'], 2, 2, 1,
                         post_scale=_bn_scale(32), relu=True)
    x = conv_transpose2d(x, params['conv6_w'], params['conv6_b'], 3, 3, 1)

    # dropout1 has p=0.0 -> identity.  The four 2x2 heads fuse into one GEMM.
    wh = jnp.concatenate([params['pos_w'], params['cos_w'],
                          params['sin_w'], params['width_w']], axis=0)
    bh = jnp.concatenate([params['pos_b'], params['cos_b'],
                          params['sin_b'], params['width_b']], axis=0)
    heads = conv2d(x, wh, bh, 1, (0, 0, 0, 0), out_dtype=jnp.float32)
    heads = jnp.transpose(heads, (0, 3, 1, 2))          # NCHW [N, 4, H-1, W-1]
    return heads[:, 0:1], heads[:, 1:2], heads[:, 2:3], heads[:, 3:4]


# --------------------------------- main --------------------------------------

if __name__ == "__main__":
    key = jax.random.PRNGKey(0)
    pkey, xkey = jax.random.split(key)
    params = init_params(pkey)

    # Small but size-consistent input: 24x24 -> (8,4,2) down -> (4,8,25) up -> 24x24 heads.
    x_in = jax.random.normal(xkey, (2, 1, 24, 24), jnp.float32)

    fwd = jax.jit(dense_grasp_forward)
    pos, cos, sin, width = fwd(params, x_in)
    jax.block_until_ready((pos, cos, sin, width))

    assert pos.shape == (2, 1, 24, 24)
    assert cos.shape == (2, 1, 24, 24)
    assert sin.shape == (2, 1, 24, 24)
    assert width.shape == (2, 1, 24, 24)
    for t in (pos, cos, sin, width):
        assert bool(jnp.all(jnp.isfinite(t)))
    print("KERNEL_OK")
</pallas_src>

<mosaic_0001>
module attributes {stable_mosaic.version = 11 : i64} {
  func.func @_gemm_kernel_1k(%arg0: i32, %arg1: i32, %arg2: memref<128x128xbf16, #tpu.memory_space<vmem>>, %arg3: memref<128x128xbf16, #tpu.memory_space<vmem>>, %arg4: memref<1x128xf32, #tpu.memory_space<vmem>>, %arg5: memref<1x128xf32, #tpu.memory_space<vmem>>, %arg6: memref<128x128xbf16, #tpu.memory_space<vmem>>) attributes {dimension_semantics = [#tpu.dimension_semantics<parallel>, #tpu.dimension_semantics<parallel>], iteration_bounds = array<i64: 1, 1>, scalar_prefetch = 0 : i64, scratch_operands = 0 : i64, tpu.core_type = #tpu.core_type<tc>, window_params = [{transform_indices = @transform_0, window_bounds = array<i64: 128, 128>}, {transform_indices = @transform_1, window_bounds = array<i64: 128, 128>}, {transform_indices = @transform_2, window_bounds = array<i64: 1, 128>}, {transform_indices = @transform_3, window_bounds = array<i64: 1, 128>}, {transform_indices = @transform_4, window_bounds = array<i64: 128, 128>}]} {
    %c0 = arith.constant 0 : index
    %c0_0 = arith.constant 0 : index
    %0 = vector.load %arg2[%c0, %c0_0] : memref<128x128xbf16, #tpu.memory_space<vmem>>, vector<128x128xbf16>
    %c0_1 = arith.constant 0 : index
    %c0_2 = arith.constant 0 : index
    %1 = vector.load %arg3[%c0_1, %c0_2] : memref<128x128xbf16, #tpu.memory_space<vmem>>, vector<128x128xbf16>
    %cst = arith.constant dense<0.000000e+00> : vector<128x128xf32>
    %2 = tpu.matmul %0, %1, %cst {dimension_numbers = #tpu.dot_dimension_numbers<[1], [0], [0], [1], [0, 0, 1, 1], [], []>} : vector<128x128xbf16>, vector<128x128xbf16>, vector<128x128xf32> -> vector<128x128xf32>
    %c0_3 = arith.constant 0 : index
    %c0_4 = arith.constant 0 : index
    %3 = vector.load %arg4[%c0_3, %c0_4] : memref<1x128xf32, #tpu.memory_space<vmem>>, vector<1x128xf32>
    %4 = vector.broadcast %3 : vector<1x128xf32> to vector<128x128xf32>
    %5 = arith.mulf %2, %4 : vector<128x128xf32>
    %c0_5 = arith.constant 0 : index
    %c0_6 = arith.constant 0 : index
    %6 = vector.load %arg5[%c0_5, %c0_6] : memref<1x128xf32, #tpu.memory_space<vmem>>, vector<1x128xf32>
    %7 = vector.broadcast %6 : vector<1x128xf32> to vector<128x128xf32>
    %8 = arith.addf %5, %7 : vector<128x128xf32>
    %cst_7 = arith.constant 0.000000e+00 : f32
    %9 = vector.broadcast %cst_7 : f32 to vector<128x128xf32>
    %10 = arith.maximumf %8, %9 : vector<128x128xf32>
    %11 = arith.truncf %10 : vector<128x128xf32> to vector<128x128xbf16>
    %c0_8 = arith.constant 0 : index
    %c0_9 = arith.constant 0 : index
    %12 = vector.load %arg6[%c0_8, %c0_9] : memref<128x128xbf16, #tpu.memory_space<vmem>>, vector<128x128xbf16>
    tpu.vector_store %arg6[%c0_8, %c0_9], %11 {strides = array<i32>} : memref<128x128xbf16, #tpu.memory_space<vmem>>, vector<128x128xbf16>,
    return
  }
  func.func @transform_0(%arg0: i32, %arg1: i32) -> (i32, i32) {
    %c0_i32 = arith.constant 0 : i32
    %c0_i32_0 = arith.constant 0 : i32
    return %arg0, %c0_i32 : i32, i32
  }
  func.func @transform_1(%arg0: i32, %arg1: i32) -> (i32, i32) {
    %c0_i32 = arith.constant 0 : i32
    %c0_i32_0 = arith.constant 0 : i32
    return %c0_i32, %arg1 : i32, i32
  }
  func.func @transform_2(%arg0: i32, %arg1: i32) -> (i32, i32) {
    %c0_i32 = arith.constant 0 : i32
    %c0_i32_0 = arith.constant 0 : i32
    return %c0_i32, %arg1 : i32, i32
  }
  func.func @transform_3(%arg0: i32, %arg1: i32) -> (i32, i32) {
    %c0_i32 = arith.constant 0 : i32
    %c0_i32_0 = arith.constant 0 : i32
    return %c0_i32, %arg1 : i32, i32
  }
  func.func @transform_4(%arg0: i32, %arg1: i32) -> (i32, i32) {
    %c0_i32 = arith.constant 0 : i32
    return %arg0, %arg1 : i32, i32
  }
}

module attributes {stable_mosaic.version = 11 : i64} {
  func.func @_gemm_kernel_1k(%arg0: i32, %arg1: i32, %arg2: memref<32x896xbf16, #tpu.memory_space<vmem>>, %arg3: memref<896x128xbf16, #tpu.memory_space<vmem>>, %arg4: memref<1x128xf32, #tpu.memory_space<vmem>>, %arg5: memref<1x128xf32, #tpu.memory_space<vmem>>, %arg6: memref<32x128xbf16, #tpu.memory_space<vmem>>) attributes {dimension_semantics = [#tpu.dimension_semantics<parallel>, #tpu.dimension_semantics<parallel>], iteration_bounds = array<i64: 1, 1>, scalar_prefetch = 0 : i64, scratch_operands = 0 : i64, tpu.core_type = #tpu.core_type<tc>, window_params = [{transform_indices = @transform_0, window_bounds = array<i64: 32, 896>}, {transform_indices = @transform_1, window_bounds = array<i64: 896, 128>}, {transform_indices = @transform_2, window_bounds = array<i64: 1, 128>}, {transform_indices = @transform_3, window_bounds = array<i64: 1, 128>}, {transform_indices = @transform_4, window_bounds = array<i64: 32, 128>}]} {
    %c0 = arith.constant 0 : index
    %c0_0 = arith.constant 0 : index
    %0 = vector.load %arg2[%c0, %c0_0] : memref<32x896xbf16, #tpu.memory_space<vmem>>, vector<32x896xbf16>
    %c0_1 = arith.constant 0 : index
    %c0_2 = arith.constant 0 : index
    %1 = vector.load %arg3[%c0_1, %c0_2] : memref<896x128xbf16, #tpu.memory_space<vmem>>, vector<896x128xbf16>
    %cst = arith.constant dense<0.000000e+00> : vector<32x128xf32>
    %2 = tpu.matmul %0, %1, %cst {dimension_numbers = #tpu.dot_dimension_numbers<[1], [0], [0], [1], [0, 0, 1, 1], [], []>} : vector<32x896xbf16>, vector<896x128xbf16>, vector<32x128xf32> -> vector<32x128xf32>
    %c0_3 = arith.constant 0 : index
    %c0_4 = arith.constant 0 : index
    %3 = vector.load %arg4[%c0_3, %c0_4] : memref<1x128xf32, #tpu.memory_space<vmem>>, vector<1x128xf32>
    %4 = vector.broadcast %3 : vector<1x128xf32> to vector<32x128xf32>
    %5 = arith.mulf %2, %4 : vector<32x128xf32>
    %c0_5 = arith.constant 0 : index
    %c0_6 = arith.constant 0 : index
    %6 = vector.load %arg5[%c0_5, %c0_6] : memref<1x128xf32, #tpu.memory_space<vmem>>, vector<1x128xf32>
    %7 = vector.broadcast %6 : vector<1x128xf32> to vector<32x128xf32>
    %8 = arith.addf %5, %7 : vector<32x128xf32>
    %cst_7 = arith.constant 0.000000e+00 : f32
    %9 = vector.broadcast %cst_7 : f32 to vector<32x128xf32>
    %10 = arith.maximumf %8, %9 : vector<32x128xf32>
    %11 = arith.truncf %10 : vector<32x128xf32> to vector<32x128xbf16>
    %c0_8 = arith.constant 0 : index
    %c0_9 = arith.constant 0 : index
    %12 = vector.load %arg6[%c0_8, %c0_9] : memref<32x128xbf16, #tpu.memory_space<vmem>>, vector<32x128xbf16>
    tpu.vector_store %arg6[%c0_8, %c0_9], %11 {strides = array<i32>} : memref<32x128xbf16, #tpu.memory_space<vmem>>, vector<32x128xbf16>,
    return
  }
  func.func @transform_0(%arg0: i32, %arg1: i32) -> (i32, i32) {
    %c0_i32 = arith.constant 0 : i32
    %c0_i32_0 = arith.constant 0 : i32
    return %arg0, %c0_i32 : i32, i32
  }
  func.func @transform_1(%arg0: i32, %arg1: i32) -> (i32, i32) {
    %c0_i32 = arith.constant 0 : i32
    %c0_i32_0 = arith.constant 0 : i32
    return %c0_i32, %arg1 : i32, i32
  }
  func.func @transform_2(%arg0: i32, %arg1: i32) -> (i32, i32) {
    %c0_i32 = arith.constant 0 : i32
    %c0_i32_0 = arith.constant 0 : i32
    return %c0_i32, %arg1 : i32, i32
  }
  func.func @transform_3(%arg0: i32, %arg1: i32) -> (i32, i32) {
    %c0_i32 = arith.constant 0 : i32
    %c0_i32_0 = arith.constant 0 : i32
    return %c0_i32, %arg1 : i32, i32
  }
  func.func @transform_4(%arg0: i32, %arg1: i32) -> (i32, i32) {
    %c0_i32 = arith.constant 0 : i32
    return %arg0, %arg1 : i32, i32
  }
}

module attributes {stable_mosaic.version = 11 : i64} {
  func.func @_gemm_kernel_1k(%arg0: i32, %arg1: i32, %arg2: memref<16x512xbf16, #tpu.memory_space<vmem>>, %arg3: memref<512x128xbf16, #tpu.memory_space<vmem>>, %arg4: memref<1x128xf32, #tpu.memory_space<vmem>>, %arg5: memref<1x128xf32, #tpu.memory_space<vmem>>, %arg6: memref<16x128xbf16, #tpu.memory_space<vmem>>) attributes {dimension_semantics = [#tpu.dimension_semantics<parallel>, #tpu.dimension_semantics<parallel>], iteration_bounds = array<i64: 1, 1>, scalar_prefetch = 0 : i64, scratch_operands = 0 : i64, tpu.core_type = #tpu.core_type<tc>, window_params = [{transform_indices = @transform_0, window_bounds = array<i64: 16, 512>}, {transform_indices = @transform_1, window_bounds = array<i64: 512, 128>}, {transform_indices = @transform_2, window_bounds = array<i64: 1, 128>}, {transform_indices = @transform_3, window_bounds = array<i64: 1, 128>}, {transform_indices = @transform_4, window_bounds = array<i64: 16, 128>}]} {
    %c0 = arith.constant 0 : index
    %c0_0 = arith.constant 0 : index
    %0 = vector.load %arg2[%c0, %c0_0] : memref<16x512xbf16, #tpu.memory_space<vmem>>, vector<16x512xbf16>
    %c0_1 = arith.constant 0 : index
    %c0_2 = arith.constant 0 : index
    %1 = vector.load %arg3[%c0_1, %c0_2] : memref<512x128xbf16, #tpu.memory_space<vmem>>, vector<512x128xbf16>
    %cst = arith.constant dense<0.000000e+00> : vector<16x128xf32>
    %2 = tpu.matmul %0, %1, %cst {dimension_numbers = #tpu.dot_dimension_numbers<[1], [0], [0], [1], [0, 0, 1, 1], [], []>} : vector<16x512xbf16>, vector<512x128xbf16>, vector<16x128xf32> -> vector<16x128xf32>
    %c0_3 = arith.constant 0 : index
    %c0_4 = arith.constant 0 : index
    %3 = vector.load %arg4[%c0_3, %c0_4] : memref<1x128xf32, #tpu.memory_space<vmem>>, vector<1x128xf32>
    %4 = vector.broadcast %3 : vector<1x128xf32> to vector<16x128xf32>
    %5 = arith.mulf %2, %4 : vector<16x128xf32>
    %c0_5 = arith.constant 0 : index
    %c0_6 = arith.constant 0 : index
    %6 = vector.load %arg5[%c0_5, %c0_6] : memref<1x128xf32, #tpu.memory_space<vmem>>, vector<1x128xf32>
    %7 = vector.broadcast %6 : vector<1x128xf32> to vector<16x128xf32>
    %8 = arith.addf %5, %7 : vector<16x128xf32>
    %cst_7 = arith.constant 0.000000e+00 : f32
    %9 = vector.broadcast %cst_7 : f32 to vector<16x128xf32>
    %10 = arith.maximumf %8, %9 : vector<16x128xf32>
    %11 = arith.truncf %10 : vector<16x128xf32> to vector<16x128xbf16>
    %c0_8 = arith.constant 0 : index
    %c0_9 = arith.constant 0 : index
    %12 = vector.load %arg6[%c0_8, %c0_9] : memref<16x128xbf16, #tpu.memory_space<vmem>>, vector<16x128xbf16>
    tpu.vector_store %arg6[%c0_8, %c0_9], %11 {strides = array<i32>} : memref<16x128xbf16, #tpu.memory_space<vmem>>, vector<16x128xbf16>,
    return
  }
  func.func @transform_0(%arg0: i32, %arg1: i32) -> (i32, i32) {
    %c0_i32 = arith.constant 0 : i32
    %c0_i32_0 = arith.constant 0 : i32
    return %arg0, %c0_i32 : i32, i32
  }
  func.func @transform_1(%arg0: i32, %arg1: i32) -> (i32, i32) {
    %c0_i32 = arith.constant 0 : i32
    %c0_i32_0 = arith.constant 0 : i32
    return %c0_i32, %arg1 : i32, i32
  }
  func.func @transform_2(%arg0: i32, %arg1: i32) -> (i32, i32) {
    %c0_i32 = arith.constant 0 : i32
    %c0_i32_0 = arith.constant 0 : i32
    return %c0_i32, %arg1 : i32, i32
  }
  func.func @transform_3(%arg0: i32, %arg1: i32) -> (i32, i32) {
    %c0_i32 = arith.constant 0 : i32
    %c0_i32_0 = arith.constant 0 : i32
    return %c0_i32, %arg1 : i32, i32
  }
  func.func @transform_4(%arg0: i32, %arg1: i32) -> (i32, i32) {
    %c0_i32 = arith.constant 0 : i32
    return %arg0, %arg1 : i32, i32
  }
}

module attributes {stable_mosaic.version = 11 : i64} {
  func.func @_gemm_kernel_1k(%arg0: i32, %arg1: i32, %arg2: memref<16x640xbf16, #tpu.memory_space<vmem>>, %arg3: memref<640x128xbf16, #tpu.memory_space<vmem>>, %arg4: memref<1x128xf32, #tpu.memory_space<vmem>>, %arg5: memref<1x128xf32, #tpu.memory_space<vmem>>, %arg6: memref<16x128xbf16, #tpu.memory_space<vmem>>) attributes {dimension_semantics = [#tpu.dimension_semantics<parallel>, #tpu.dimension_semantics<parallel>], iteration_bounds = array<i64: 1, 1>, scalar_prefetch = 0 : i64, scratch_operands = 0 : i64, tpu.core_type = #tpu.core_type<tc>, window_params = [{transform_indices = @transform_0, window_bounds = array<i64: 16, 640>}, {transform_indices = @transform_1, window_bounds = array<i64: 640, 128>}, {transform_indices = @transform_2, window_bounds = array<i64: 1, 128>}, {transform_indices = @transform_3, window_bounds = array<i64: 1, 128>}, {transform_indices = @transform_4, window_bounds = array<i64: 16, 128>}]} {
    %c0 = arith.constant 0 : index
    %c0_0 = arith.constant 0 : index
    %0 = vector.load %arg2[%c0, %c0_0] : memref<16x640xbf16, #tpu.memory_space<vmem>>, vector<16x640xbf16>
    %c0_1 = arith.constant 0 : index
    %c0_2 = arith.constant 0 : index
    %1 = vector.load %arg3[%c0_1, %c0_2] : memref<640x128xbf16, #tpu.memory_space<vmem>>, vector<640x128xbf16>
    %cst = arith.constant dense<0.000000e+00> : vector<16x128xf32>
    %2 = tpu.matmul %0, %1, %cst {dimension_numbers = #tpu.dot_dimension_numbers<[1], [0], [0], [1], [0, 0, 1, 1], [], []>} : vector<16x640xbf16>, vector<640x128xbf16>, vector<16x128xf32> -> vector<16x128xf32>
    %c0_3 = arith.constant 0 : index
    %c0_4 = arith.constant 0 : index
    %3 = vector.load %arg4[%c0_3, %c0_4] : memref<1x128xf32, #tpu.memory_space<vmem>>, vector<1x128xf32>
    %4 = vector.broadcast %3 : vector<1x128xf32> to vector<16x128xf32>
    %5 = arith.mulf %2, %4 : vector<16x128xf32>
    %c0_5 = arith.constant 0 : index
    %c0_6 = arith.constant 0 : index
    %6 = vector.load %arg5[%c0_5, %c0_6] : memref<1x128xf32, #tpu.memory_space<vmem>>, vector<1x128xf32>
    %7 = vector.broadcast %6 : vector<1x128xf32> to vector<16x128xf32>
    %8 = arith.addf %5, %7 : vector<16x128xf32>
    %cst_7 = arith.constant 0.000000e+00 : f32
    %9 = vector.broadcast %cst_7 : f32 to vector<16x128xf32>
    %10 = arith.maximumf %8, %9 : vector<16x128xf32>
    %11 = arith.truncf %10 : vector<16x128xf32> to vector<16x128xbf16>
    %c0_8 = arith.constant 0 : index
    %c0_9 = arith.constant 0 : index
    %12 = vector.load %arg6[%c0_8, %c0_9] : memref<16x128xbf16, #tpu.memory_space<vmem>>, vector<16x128xbf16>
    tpu.vector_store %arg6[%c0_8, %c0_9], %11 {strides = array<i32>} : memref<16x128xbf16, #tpu.memory_space<vmem>>, vector<16x128xbf16>,
    return
  }
  func.func @transform_0(%arg0: i32, %arg1: i32) -> (i32, i32) {
    %c0_i32 = arith.constant 0 : i32
    %c0_i32_0 = arith.constant 0 : i32
    return %arg0, %c0_i32 : i32, i32
  }
  func.func @transform_1(%arg0: i32, %arg1: i32) -> (i32, i32) {
    %c0_i32 = arith.constant 0 : i32
    %c0_i32_0 = arith.constant 0 : i32
    return %c0_i32, %arg1 : i32, i32
  }
  func.func @transform_2(%arg0: i32, %arg1: i32) -> (i32, i32) {
    %c0_i32 = arith.constant 0 : i32
    %c0_i32_0 = arith.constant 0 : i32
    return %c0_i32, %arg1 : i32, i32
  }
  func.func @transform_3(%arg0: i32, %arg1: i32) -> (i32, i32) {
    %c0_i32 = arith.constant 0 : i32
    %c0_i32_0 = arith.constant 0 : i32
    return %c0_i32, %arg1 : i32, i32
  }
  func.func @transform_4(%arg0: i32, %arg1: i32) -> (i32, i32) {
    %c0_i32 = arith.constant 0 : i32
    return %arg0, %arg1 : i32, i32
  }
}

module attributes {stable_mosaic.version = 11 : i64} {
  func.func @_gemm_kernel_1k(%arg0: i32, %arg1: i32, %arg2: memref<16x896xbf16, #tpu.memory_space<vmem>>, %arg3: memref<896x128xbf16, #tpu.memory_space<vmem>>, %arg4: memref<1x128xf32, #tpu.memory_space<vmem>>, %arg5: memref<1x128xf32, #tpu.memory_space<vmem>>, %arg6: memref<16x128xbf16, #tpu.memory_space<vmem>>) attributes {dimension_semantics = [#tpu.dimension_semantics<parallel>, #tpu.dimension_semantics<parallel>], iteration_bounds = array<i64: 1, 1>, scalar_prefetch = 0 : i64, scratch_operands = 0 : i64, tpu.core_type = #tpu.core_type<tc>, window_params = [{transform_indices = @transform_0, window_bounds = array<i64: 16, 896>}, {transform_indices = @transform_1, window_bounds = array<i64: 896, 128>}, {transform_indices = @transform_2, window_bounds = array<i64: 1, 128>}, {transform_indices = @transform_3, window_bounds = array<i64: 1, 128>}, {transform_indices = @transform_4, window_bounds = array<i64: 16, 128>}]} {
    %c0 = arith.constant 0 : index
    %c0_0 = arith.constant 0 : index
    %0 = vector.load %arg2[%c0, %c0_0] : memref<16x896xbf16, #tpu.memory_space<vmem>>, vector<16x896xbf16>
    %c0_1 = arith.constant 0 : index
    %c0_2 = arith.constant 0 : index
    %1 = vector.load %arg3[%c0_1, %c0_2] : memref<896x128xbf16, #tpu.memory_space<vmem>>, vector<896x128xbf16>
    %cst = arith.constant dense<0.000000e+00> : vector<16x128xf32>
    %2 = tpu.matmul %0, %1, %cst {dimension_numbers = #tpu.dot_dimension_numbers<[1], [0], [0], [1], [0, 0, 1, 1], [], []>} : vector<16x896xbf16>, vector<896x128xbf16>, vector<16x128xf32> -> vector<16x128xf32>
    %c0_3 = arith.constant 0 : index
    %c0_4 = arith.constant 0 : index
    %3 = vector.load %arg4[%c0_3, %c0_4] : memref<1x128xf32, #tpu.memory_space<vmem>>, vector<1x128xf32>
    %4 = vector.broadcast %3 : vector<1x128xf32> to vector<16x128xf32>
    %5 = arith.mulf %2, %4 : vector<16x128xf32>
    %c0_5 = arith.constant 0 : index
    %c0_6 = arith.constant 0 : index
    %6 = vector.load %arg5[%c0_5, %c0_6] : memref<1x128xf32, #tpu.memory_space<vmem>>, vector<1x128xf32>
    %7 = vector.broadcast %6 : vector<1x128xf32> to vector<16x128xf32>
    %8 = arith.addf %5, %7 : vector<16x128xf32>
    %cst_7 = arith.constant 0.000000e+00 : f32
    %9 = vector.broadcast %cst_7 : f32 to vector<16x128xf32>
    %10 = arith.maximumf %8, %9 : vector<16x128xf32>
    %11 = arith.truncf %10 : vector<16x128xf32> to vector<16x128xbf16>
    %c0_8 = arith.constant 0 : index
    %c0_9 = arith.constant 0 : index
    %12 = vector.load %arg6[%c0_8, %c0_9] : memref<16x128xbf16, #tpu.memory_space<vmem>>, vector<16x128xbf16>
    tpu.vector_store %arg6[%c0_8, %c0_9], %11 {strides = array<i32>} : memref<16x128xbf16, #tpu.memory_space<vmem>>, vector<16x128xbf16>,
    return
  }
  func.func @transform_0(%arg0: i32, %arg1: i32) -> (i32, i32) {
    %c0_i32 = arith.constant 0 : i32
    %c0_i32_0 = arith.constant 0 : i32
    return %arg0, %c0_i32 : i32, i32
  }
  func.func @transform_1(%arg0: i32, %arg1: i32) -> (i32, i32) {
    %c0_i32 = arith.constant 0 : i32
    %c0_i32_0 = arith.constant 0 : i32
    return %c0_i32, %arg1 : i32, i32
  }
  func.func @transform_2(%arg0: i32, %arg1: i32) -> (i32, i32) {
    %c0_i32 = arith.constant 0 : i32
    %c0_i32_0 = arith.constant 0 : i32
    return %c0_i32, %arg1 : i32, i32
  }
  func.func @transform_3(%arg0: i32, %arg1: i32) -> (i32, i32) {
    %c0_i32 = arith.constant 0 : i32
    %c0_i32_0 = arith.constant 0 : i32
    return %c0_i32, %arg1 : i32, i32
  }
  func.func @transform_4(%arg0: i32, %arg1: i32) -> (i32, i32) {
    %c0_i32 = arith.constant 0 : i32
    return %arg0, %arg1 : i32, i32
  }
}

module attributes {stable_mosaic.version = 11 : i64} {
  func.func @_gemm_kernel_1k(%arg0: i32, %arg1: i32, %arg2: memref<16x2048xbf16, #tpu.memory_space<vmem>>, %arg3: memref<2048x256xbf16, #tpu.memory_space<vmem>>, %arg4: memref<1x256xf32, #tpu.memory_space<vmem>>, %arg5: memref<1x256xf32, #tpu.memory_space<vmem>>, %arg6: memref<16x256xbf16, #tpu.memory_space<vmem>>) attributes {dimension_semantics = [#tpu.dimension_semantics<parallel>, #tpu.dimension_semantics<parallel>], iteration_bounds = array<i64: 1, 1>, scalar_prefetch = 0 : i64, scratch_operands = 0 : i64, tpu.core_type = #tpu.core_type<tc>, window_params = [{transform_indices = @transform_0, window_bounds = array<i64: 16, 2048>}, {transform_indices = @transform_1, window_bounds = array<i64: 2048, 256>}, {transform_indices = @transform_2, window_bounds = array<i64: 1, 256>}, {transform_indices = @transform_3, window_bounds = array<i64: 1, 256>}, {transform_indices = @transform_4, window_bounds = array<i64: 16, 256>}]} {
    %c0 = arith.constant 0 : index
    %c0_0 = arith.constant 0 : index
    %0 = vector.load %arg2[%c0, %c0_0] : memref<16x2048xbf16, #tpu.memory_space<vmem>>, vector<16x2048xbf16>
    %c0_1 = arith.constant 0 : index
    %c0_2 = arith.constant 0 : index
    %1 = vector.load %arg3[%c0_1, %c0_2] : memref<2048x256xbf16, #tpu.memory_space<vmem>>, vector<2048x256xbf16>
    %cst = arith.constant dense<0.000000e+00> : vector<16x256xf32>
    %2 = tpu.matmul %0, %1, %cst {dimension_numbers = #tpu.dot_dimension_numbers<[1], [0], [0], [1], [0, 0, 1, 1], [], []>} : vector<16x2048xbf16>, vector<2048x256xbf16>, vector<16x256xf32> -> vector<16x256xf32>
    %c0_3 = arith.constant 0 : index
    %c0_4 = arith.constant 0 : index
    %3 = vector.load %arg4[%c0_3, %c0_4] : memref<1x256xf32, #tpu.memory_space<vmem>>, vector<1x256xf32>
    %4 = vector.broadcast %3 : vector<1x256xf32> to vector<16x256xf32>
    %5 = arith.mulf %2, %4 : vector<16x256xf32>
    %c0_5 = arith.constant 0 : index
    %c0_6 = arith.constant 0 : index
    %6 = vector.load %arg5[%c0_5, %c0_6] : memref<1x256xf32, #tpu.memory_space<vmem>>, vector<1x256xf32>
    %7 = vector.broadcast %6 : vector<1x256xf32> to vector<16x256xf32>
    %8 = arith.addf %5, %7 : vector<16x256xf32>
    %cst_7 = arith.constant 0.000000e+00 : f32
    %9 = vector.broadcast %cst_7 : f32 to vector<16x256xf32>
    %10 = arith.maximumf %8, %9 : vector<16x256xf32>
    %11 = arith.truncf %10 : vector<16x256xf32> to vector<16x256xbf16>
    %c0_8 = arith.constant 0 : index
    %c0_9 = arith.constant 0 : index
    %12 = vector.load %arg6[%c0_8, %c0_9] : memref<16x256xbf16, #tpu.memory_space<vmem>>, vector<16x256xbf16>
    tpu.vector_store %arg6[%c0_8, %c0_9], %11 {strides = array<i32>} : memref<16x256xbf16, #tpu.memory_space<vmem>>, vector<16x256xbf16>,
    return
  }
  func.func @transform_0(%arg0: i32, %arg1: i32) -> (i32, i32) {
    %c0_i32 = arith.constant 0 : i32
    %c0_i32_0 = arith.constant 0 : i32
    return %arg0, %c0_i32 : i32, i32
  }
  func.func @transform_1(%arg0: i32, %arg1: i32) -> (i32, i32) {
    %c0_i32 = arith.constant 0 : i32
    %c0_i32_0 = arith.constant 0 : i32
    return %c0_i32, %arg1 : i32, i32
  }
  func.func @transform_2(%arg0: i32, %arg1: i32) -> (i32, i32) {
    %c0_i32 = arith.constant 0 : i32
    %c0_i32_0 = arith.constant 0 : i32
    return %c0_i32, %arg1 : i32, i32
  }
  func.func @transform_3(%arg0: i32, %arg1: i32) -> (i32, i32) {
    %c0_i32 = arith.constant 0 : i32
    %c0_i32_0 = arith.constant 0 : i32
    return %c0_i32, %arg1 : i32, i32
  }
  func.func @transform_4(%arg0: i32, %arg1: i32) -> (i32, i32) {
    %c0_i32 = arith.constant 0 : i32
    return %arg0, %arg1 : i32, i32
  }
}

module attributes {stable_mosaic.version = 11 : i64} {
  func.func @_gemm_kernel_1k(%arg0: i32, %arg1: i32, %arg2: memref<32x640xbf16, #tpu.memory_space<vmem>>, %arg3: memref<640x128xbf16, #tpu.memory_space<vmem>>, %arg4: memref<1x128xf32, #tpu.memory_space<vmem>>, %arg5: memref<1x128xf32, #tpu.memory_space<vmem>>, %arg6: memref<32x128xbf16, #tpu.memory_space<vmem>>) attributes {dimension_semantics = [#tpu.dimension_semantics<parallel>, #tpu.dimension_semantics<parallel>], iteration_bounds = array<i64: 1, 1>, scalar_prefetch = 0 : i64, scratch_operands = 0 : i64, tpu.core_type = #tpu.core_type<tc>, window_params = [{transform_indices = @transform_0, window_bounds = array<i64: 32, 640>}, {transform_indices = @transform_1, window_bounds = array<i64: 640, 128>}, {transform_indices = @transform_2, window_bounds = array<i64: 1, 128>}, {transform_indices = @transform_3, window_bounds = array<i64: 1, 128>}, {transform_indices = @transform_4, window_bounds = array<i64: 32, 128>}]} {
    %c0 = arith.constant 0 : index
    %c0_0 = arith.constant 0 : index
    %0 = vector.load %arg2[%c0, %c0_0] : memref<32x640xbf16, #tpu.memory_space<vmem>>, vector<32x640xbf16>
    %c0_1 = arith.constant 0 : index
    %c0_2 = arith.constant 0 : index
    %1 = vector.load %arg3[%c0_1, %c0_2] : memref<640x128xbf16, #tpu.memory_space<vmem>>, vector<640x128xbf16>
    %cst = arith.constant dense<0.000000e+00> : vector<32x128xf32>
    %2 = tpu.matmul %0, %1, %cst {dimension_numbers = #tpu.dot_dimension_numbers<[1], [0], [0], [1], [0, 0, 1, 1], [], []>} : vector<32x640xbf16>, vector<640x128xbf16>, vector<32x128xf32> -> vector<32x128xf32>
    %c0_3 = arith.constant 0 : index
    %c0_4 = arith.constant 0 : index
    %3 = vector.load %arg4[%c0_3, %c0_4] : memref<1x128xf32, #tpu.memory_space<vmem>>, vector<1x128xf32>
    %4 = vector.broadcast %3 : vector<1x128xf32> to vector<32x128xf32>
    %5 = arith.mulf %2, %4 : vector<32x128xf32>
    %c0_5 = arith.constant 0 : index
    %c0_6 = arith.constant 0 : index
    %6 = vector.load %arg5[%c0_5, %c0_6] : memref<1x128xf32, #tpu.memory_space<vmem>>, vector<1x128xf32>
    %7 = vector.broadcast %6 : vector<1x128xf32> to vector<32x128xf32>
    %8 = arith.addf %5, %7 : vector<32x128xf32>
    %cst_7 = arith.constant 0.000000e+00 : f32
    %9 = vector.broadcast %cst_7 : f32 to vector<32x128xf32>
    %10 = arith.maximumf %8, %9 : vector<32x128xf32>
    %11 = arith.truncf %10 : vector<32x128xf32> to vector<32x128xbf16>
    %c0_8 = arith.constant 0 : index
    %c0_9 = arith.constant 0 : index
    %12 = vector.load %arg6[%c0_8, %c0_9] : memref<32x128xbf16, #tpu.memory_space<vmem>>, vector<32x128xbf16>
    tpu.vector_store %arg6[%c0_8, %c0_9], %11 {strides = array<i32>} : memref<32x128xbf16, #tpu.memory_space<vmem>>, vector<32x128xbf16>,
    return
  }
  func.func @transform_0(%arg0: i32, %arg1: i32) -> (i32, i32) {
    %c0_i32 = arith.constant 0 : i32
    %c0_i32_0 = arith.constant 0 : i32
    return %arg0, %c0_i32 : i32, i32
  }
  func.func @transform_1(%arg0: i32, %arg1: i32) -> (i32, i32) {
    %c0_i32 = arith.constant 0 : i32
    %c0_i32_0 = arith.constant 0 : i32
    return %c0_i32, %arg1 : i32, i32
  }
  func.func @transform_2(%arg0: i32, %arg1: i32) -> (i32, i32) {
    %c0_i32 = arith.constant 0 : i32
    %c0_i32_0 = arith.constant 0 : i32
    return %c0_i32, %arg1 : i32, i32
  }
  func.func @transform_3(%arg0: i32, %arg1: i32) -> (i32, i32) {
    %c0_i32 = arith.constant 0 : i32
    %c0_i32_0 = arith.constant 0 : i32
    return %c0_i32, %arg1 : i32, i32
  }
  func.func @transform_4(%arg0: i32, %arg1: i32) -> (i32, i32) {
    %c0_i32 = arith.constant 0 : i32
    return %arg0, %arg1 : i32, i32
  }
}

module attributes {stable_mosaic.version = 11 : i64} {
  func.func @_gemm_kernel_1k(%arg0: i32, %arg1: i32, %arg2: memref<176x384xbf16, #tpu.memory_space<vmem>>, %arg3: memref<384x384xbf16, #tpu.memory_space<vmem>>, %arg4: memref<1x384xf32, #tpu.memory_space<vmem>>, %arg5: memref<1x384xf32, #tpu.memory_space<vmem>>, %arg6: memref<176x384xbf16, #tpu.memory_space<vmem>>) attributes {dimension_semantics = [#tpu.dimension_semantics<parallel>, #tpu.dimension_semantics<parallel>], iteration_bounds = array<i64: 1, 1>, scalar_prefetch = 0 : i64, scratch_operands = 0 : i64, tpu.core_type = #tpu.core_type<tc>, window_params = [{transform_indices = @transform_0, window_bounds = array<i64: 176, 384>}, {transform_indices = @transform_1, window_bounds = array<i64: 384, 384>}, {transform_indices = @transform_2, window_bounds = array<i64: 1, 384>}, {transform_indices = @transform_3, window_bounds = array<i64: 1, 384>}, {transform_indices = @transform_4, window_bounds = array<i64: 176, 384>}]} {
    %c0 = arith.constant 0 : index
    %c0_0 = arith.constant 0 : index
    %0 = vector.load %arg2[%c0, %c0_0] : memref<176x384xbf16, #tpu.memory_space<vmem>>, vector<176x384xbf16>
    %c0_1 = arith.constant 0 : index
    %c0_2 = arith.constant 0 : index
    %1 = vector.load %arg3[%c0_1, %c0_2] : memref<384x384xbf16, #tpu.memory_space<vmem>>, vector<384x384xbf16>
    %cst = arith.constant dense<0.000000e+00> : vector<176x384xf32>
    %2 = tpu.matmul %0, %1, %cst {dimension_numbers = #tpu.dot_dimension_numbers<[1], [0], [0], [1], [0, 0, 1, 1], [], []>} : vector<176x384xbf16>, vector<384x384xbf16>, vector<176x384xf32> -> vector<176x384xf32>
    %c0_3 = arith.constant 0 : index
    %c0_4 = arith.constant 0 : index
    %3 = vector.load %arg4[%c0_3, %c0_4] : memref<1x384xf32, #tpu.memory_space<vmem>>, vector<1x384xf32>
    %4 = vector.broadcast %3 : vector<1x384xf32> to vector<176x384xf32>
    %5 = arith.mulf %2, %4 : vector<176x384xf32>
    %c0_5 = arith.constant 0 : index
    %c0_6 = arith.constant 0 : index
    %6 = vector.load %arg5[%c0_5, %c0_6] : memref<1x384xf32, #tpu.memory_space<vmem>>, vector<1x384xf32>
    %7 = vector.broadcast %6 : vector<1x384xf32> to vector<176x384xf32>
    %8 = arith.addf %5, %7 : vector<176x384xf32>
    %9 = arith.truncf %8 : vector<176x384xf32> to vector<176x384xbf16>
    %c0_7 = arith.constant 0 : index
    %c0_8 = arith.constant 0 : index
    %10 = vector.load %arg6[%c0_7, %c0_8] : memref<176x384xbf16, #tpu.memory_space<vmem>>, vector<176x384xbf16>
    tpu.vector_store %arg6[%c0_7, %c0_8], %9 {strides = array<i32>} : memref<176x384xbf16, #tpu.memory_space<vmem>>, vector<176x384xbf16>,
    return
  }
  func.func @transform_0(%arg0: i32, %arg1: i32) -> (i32, i32) {
    %c0_i32 = arith.constant 0 : i32
    %c0_i32_0 = arith.constant 0 : i32
    return %arg0, %c0_i32 : i32, i32
  }
  func.func @transform_1(%arg0: i32, %arg1: i32) -> (i32, i32) {
    %c0_i32 = arith.constant 0 : i32
    %c0_i32_0 = arith.constant 0 : i32
    return %c0_i32, %arg1 : i32, i32
  }
  func.func @transform_2(%arg0: i32, %arg1: i32) -> (i32, i32) {
    %c0_i32 = arith.constant 0 : i32
    %c0_i32_0 = arith.constant 0 : i32
    return %c0_i32, %arg1 : i32, i32
  }
  func.func @transform_3(%arg0: i32, %arg1: i32) -> (i32, i32) {
    %c0_i32 = arith.constant 0 : i32
    %c0_i32_0 = arith.constant 0 : i32
    return %c0_i32, %arg1 : i32, i32
  }
  func.func @transform_4(%arg0: i32, %arg1: i32) -> (i32, i32) {
    %c0_i32 = arith.constant 0 : i32
    return %arg0, %arg1 : i32, i32
  }
}

module attributes {stable_mosaic.version = 11 : i64} {
  func.func @_gemm_kernel_1k(%arg0: i32, %arg1: i32, %arg2: memref<240x128xbf16, #tpu.memory_space<vmem>>, %arg3: memref<128x128xbf16, #tpu.memory_space<vmem>>, %arg4: memref<1x128xf32, #tpu.memory_space<vmem>>, %arg5: memref<1x128xf32, #tpu.memory_space<vmem>>, %arg6: memref<240x128xf32, #tpu.memory_space<vmem>>) attributes {dimension_semantics = [#tpu.dimension_semantics<parallel>, #tpu.dimension_semantics<parallel>], iteration_bounds = array<i64: 5, 1>, scalar_prefetch = 0 : i64, scratch_operands = 0 : i64, tpu.core_type = #tpu.core_type<tc>, window_params = [{transform_indices = @transform_0, window_bounds = array<i64: 240, 128>}, {transform_indices = @transform_1, window_bounds = array<i64: 128, 128>}, {transform_indices = @transform_2, window_bounds = array<i64: 1, 128>}, {transform_indices = @transform_3, window_bounds = array<i64: 1, 128>}, {transform_indices = @transform_4, window_bounds = array<i64: 240, 128>}]} {
    %c0 = arith.constant 0 : index
    %c0_0 = arith.constant 0 : index
    %0 = vector.load %arg2[%c0, %c0_0] : memref<240x128xbf16, #tpu.memory_space<vmem>>, vector<240x128xbf16>
    %c0_1 = arith.constant 0 : index
    %c0_2 = arith.constant 0 : index
    %1 = vector.load %arg3[%c0_1, %c0_2] : memref<128x128xbf16, #tpu.memory_space<vmem>>, vector<128x128xbf16>
    %cst = arith.constant dense<0.000000e+00> : vector<240x128xf32>
    %2 = tpu.matmul %0, %1, %cst {dimension_numbers = #tpu.dot_dimension_numbers<[1], [0], [0], [1], [0, 0, 1, 1], [], []>} : vector<240x128xbf16>, vector<128x128xbf16>, vector<240x128xf32> -> vector<240x128xf32>
    %c0_3 = arith.constant 0 : index
    %c0_4 = arith.constant 0 : index
    %3 = vector.load %arg4[%c0_3, %c0_4] : memref<1x128xf32, #tpu.memory_space<vmem>>, vector<1x128xf32>
    %4 = vector.broadcast %3 : vector<1x128xf32> to vector<240x128xf32>
    %5 = arith.mulf %2, %4 : vector<240x128xf32>
    %c0_5 = arith.constant 0 : index
    %c0_6 = arith.constant 0 : index
    %6 = vector.load %arg5[%c0_5, %c0_6] : memref<1x128xf32, #tpu.memory_space<vmem>>, vector<1x128xf32>
    %7 = vector.broadcast %6 : vector<1x128xf32> to vector<240x128xf32>
    %8 = arith.addf %5, %7 : vector<240x128xf32>
    %c0_7 = arith.constant 0 : index
    %c0_8 = arith.constant 0 : index
    %9 = vector.load %arg6[%c0_7, %c0_8] : memref<240x128xf32, #tpu.memory_space<vmem>>, vector<240x128xf32>
    tpu.vector_store %arg6[%c0_7, %c0_8], %8 {strides = array<i32>} : memref<240x128xf32, #tpu.memory_space<vmem>>, vector<240x128xf32>,
    return
  }
  func.func @transform_0(%arg0: i32, %arg1: i32) -> (i32, i32) {
    %c0_i32 = arith.constant 0 : i32
    %c0_i32_0 = arith.constant 0 : i32
    return %arg0, %c0_i32 : i32, i32
  }
  func.func @transform_1(%arg0: i32, %arg1: i32) -> (i32, i32) {
    %c0_i32 = arith.constant 0 : i32
    %c0_i32_0 = arith.constant 0 : i32
    return %c0_i32, %arg1 : i32, i32
  }
  func.func @transform_2(%arg0: i32, %arg1: i32) -> (i32, i32) {
    %c0_i32 = arith.constant 0 : i32
    %c0_i32_0 = arith.constant 0 : i32
    return %c0_i32, %arg1 : i32, i32
  }
  func.func @transform_3(%arg0: i32, %arg1: i32) -> (i32, i32) {
    %c0_i32 = arith.constant 0 : i32
    %c0_i32_0 = arith.constant 0 : i32
    return %c0_i32, %arg1 : i32, i32
  }
  func.func @transform_4(%arg0: i32, %arg1: i32) -> (i32, i32) {
    %c0_i32 = arith.constant 0 : i32
    return %arg0, %arg1 : i32, i32
  }
}

</mosaic_0001>

<llo_original>
// kernel: dense_grasp_forward.39
$region0: #{dense_grasp_forward.39}
  #allocation0 [shape = 'u32[]', space=smem, size = 0x4, offset = 0x4, fixed_abs, tag = 'smem constant byte address 0x4 - core index']
  #allocation1 [shape = 'u32[144,128]{1,0:T(1,128)}', space=vmem, size = 0x12000, scoped, tag = 'internal scratch']
  %s0 = inlined_call_operand.vmem [shape: bf16[128,128], index: 0, kind: input, shape index: {}]
  %s1 = inlined_call_operand.vmem [shape: bf16[128,128], index: 1, kind: input, shape index: {}]
  %s2 = inlined_call_operand.vmem [shape: f32[1,128], index: 2, kind: input, shape index: {}]
  %s3 = inlined_call_operand.vmem [shape: f32[1,128], index: 3, kind: input, shape index: {}]
  %s4 = inlined_call_operand.vmem [shape: bf16[128,128], index: 4, kind: output, shape index: {}]
  %s5 = sld [smem:[#allocation0]]
  $region26: #{dense_grasp_forward.39} parent=0
    _
  %s7 = ssub.s32 1, %s5
  %s8 = scalar_select 0, %s7, %s5
  // Predicated region
  $region2: #{dense_grasp_forward.39} parent=0 // pred_check
    _
  $region3: #{dense_grasp_forward.39} parent=0 // pred_check_branch
    %10 = sbr.rel (0) target = $region5
  $region4: #{dense_grasp_forward.39} parent=0 // pred_region
    _
  $region5: #{dense_grasp_forward.39} parent=0 // pred_fallthru
    _
  // Predicated region
  $region6: #{dense_grasp_forward.39} parent=0 // pred_check
    _
  $region7: #{dense_grasp_forward.39} parent=0 // pred_check_branch
    %12 = sbr.rel (0) target = $region9
  $region8: #{dense_grasp_forward.39} parent=0 // pred_region
    _
  $region9: #{dense_grasp_forward.39} parent=0 // pred_fallthru
    _
  // Predicated region
  $region10: #{dense_grasp_forward.39} parent=0 // pred_check
    _
  $region11: #{dense_grasp_forward.39} parent=0 // pred_check_branch
    %14 = sbr.rel (0) target = $region13
  $region12: #{dense_grasp_forward.39} parent=0 // pred_region
    _
  $region13: #{dense_grasp_forward.39} parent=0 // pred_fallthru
    _
  // Predicated region
  $region14: #{dense_grasp_forward.39} parent=0 // pred_check
    _
  $region15: #{dense_grasp_forward.39} parent=0 // pred_check_branch
    %16 = sbr.rel (0) target = $region17
  $region16: #{dense_grasp_forward.39} parent=0 // pred_region
    _
  $region17: #{dense_grasp_forward.39} parent=0 // pred_fallthru
    _
  %v18 = vld [vmem:[%s0] sm:$0xf]
  %v19 = vld [vmem:[%s0 + $0x4] sm:$0xf]
  %v20 = vld [vmem:[%s0 + $0x8] sm:$0xf]
  %v21 = vld [vmem:[%s0 + $0xc] sm:$0xf]
  %v22 = vld [vmem:[%s0 + $0x10] sm:$0xf]
  %v23 = vld [vmem:[%s0 + $0x14] sm:$0xf]
  %v24 = vld [vmem:[%s0 + $0x18] sm:$0xf]
  %v25 = vld [vmem:[%s0 + $0x1c] sm:$0xf]
  %v26 = vld [vmem:[%s0 + $0x20] sm:$0xf]
  %v27 = vld [vmem:[%s0 + $0x24] sm:$0xf]
  %v28 = vld [vmem:[%s0 + $0x28] sm:$0xf]
  %v29 = vld [vmem:[%s0 + $0x2c] sm:$0xf]
  %v30 = vld [vmem:[%s0 + $0x30] sm:$0xf]
  %v31 = vld [vmem:[%s0 + $0x34] sm:$0xf]
  %v32 = vld [vmem:[%s0 + $0x38] sm:$0xf]
  %v33 = vld [vmem:[%s0 + $0x3c] sm:$0xf]
  %v34 = vld [vmem:[%s1] sm:$0xf]
  %v35 = vld [vmem:[%s1 + $0x4] sm:$0xf]
  %v36 = vld [vmem:[%s1 + $0x8] sm:$0xf]
  %v37 = vld [vmem:[%s1 + $0xc] sm:$0xf]
  %v38 = vld [vmem:[%s1 + $0x10] sm:$0xf]
  %v39 = vld [vmem:[%s1 + $0x14] sm:$0xf]
  %v40 = vld [vmem:[%s1 + $0x18] sm:$0xf]
  %v41 = vld [vmem:[%s1 + $0x1c] sm:$0xf]
  %v42 = vld [vmem:[%s1 + $0x20] sm:$0xf]
  %v43 = vld [vmem:[%s1 + $0x24] sm:$0xf]
  %v44 = vld [vmem:[%s1 + $0x28] sm:$0xf]
  %v45 = vld [vmem:[%s1 + $0x2c] sm:$0xf]
  %v46 = vld [vmem:[%s1 + $0x30] sm:$0xf]
  %v47 = vld [vmem:[%s1 + $0x34] sm:$0xf]
  %v48 = vld [vmem:[%s1 + $0x38] sm:$0xf]
  %v49 = vld [vmem:[%s1 + $0x3c] sm:$0xf]
  %v66 = vunpack.c.l.b16 %v18
  %v67 = vunpack.c.l.b16 %v19
  %v68 = vunpack.c.l.b16 %v20
  %v69 = vunpack.c.l.b16 %v21
  %v70 = vunpack.c.l.b16 %v22
  %v71 = vunpack.c.l.b16 %v23
  %v72 = vunpack.c.l.b16 %v24
  %v73 = vunpack.c.l.b16 %v25
  %v74 = vunpack.c.l.b16 %v26
  %v75 = vunpack.c.l.b16 %v27
  %v76 = vunpack.c.l.b16 %v28
  %v77 = vunpack.c.l.b16 %v29
  %v78 = vunpack.c.l.b16 %v30
  %v79 = vunpack.c.l.b16 %v31
  %v80 = vunpack.c.l.b16 %v32
  %v81 = vunpack.c.l.b16 %v33
  %v82 = vpack.c.b16 %v67, %v66
  %v83 = vpack.c.b16 %v69, %v68
  %v84 = vpack.c.b16 %v71, %v70
  %v85 = vpack.c.b16 %v73, %v72
  %v86 = vpack.c.b16 %v75, %v74
  %v87 = vpack.c.b16 %v77, %v76
  %v88 = vpack.c.b16 %v79, %v78
  %v89 = vpack.c.b16 %v81, %v80
  %v114 = vunpack.c.l.b16 %v34
  %v115 = vunpack.c.l.b16 %v35
  %v116 = vunpack.c.l.b16 %v36
  %v117 = vunpack.c.l.b16 %v37
  %v118 = vunpack.c.l.b16 %v38
  %v119 = vunpack.c.l.b16 %v39
  %v120 = vunpack.c.l.b16 %v40
  %v121 = vunpack.c.l.b16 %v41
  %v122 = vunpack.c.l.b16 %v42
  %v123 = vunpack.c.l.b16 %v43
  %v124 = vunpack.c.l.b16 %v44
  %v125 = vunpack.c.l.b16 %v45
  %v126 = vunpack.c.l.b16 %v46
  %v127 = vunpack.c.l.b16 %v47
  %v128 = vunpack.c.l.b16 %v48
  %v129 = vunpack.c.l.b16 %v49
  %v130 = vpack.c.b16 %v115, %v114
  %v131 = vpack.c.b16 %v117, %v116
  %v132 = vpack.c.b16 %v119, %v118
  %v133 = vpack.c.b16 %v121, %v120
  %v134 = vpack.c.b16 %v123, %v122
  %v135 = vpack.c.b16 %v125, %v124
  %v136 = vpack.c.b16 %v127, %v126
  %v137 = vpack.c.b16 %v129, %v128
  %146 = vmatprep.subr.bf16.mxu0 0
  %147 = vmatpush1.bf16.msra.mxu0 %v130
  %148 = vmatprep.subr.bf16.mxu0 0
  %149 = vmatpush1.bf16.msra.mxu0 %v131
  %150 = vmatprep.subr.bf16.mxu0 0
  %151 = vmatpush1.bf16.msra.mxu0 %v132
  %152 = vmatprep.subr.bf16.mxu0 0
  %153 = vmatpush1.bf16.msra.mxu0 %v133
  %154 = vmatprep.subr.bf16.mxu0 0
  %155 = vmatpush1.bf16.msra.mxu0 %v134
  %156 = vmatprep.subr.bf16.mxu0 0
  %157 = vmatpush1.bf16.msra.mxu0 %v135
  %158 = vmatprep.subr.bf16.mxu0 0
  %159 = vmatpush1.bf16.msra.mxu0 %v136
  %160 = vmatprep.subr.bf16.mxu0 0
  %161 = vmatpush1.bf16.msra.mxu0 %v137
  %162 = vmatprep.subr.bf16.mxu0 0
  %163 = vmatpush1.bf16.msra.mxu0 0
  %164 = vmatprep.subr.bf16.mxu0 0
  %165 = vmatpush1.bf16.msra.mxu0 0
  %166 = vmatprep.subr.bf16.mxu0 0
  %167 = vmatpush1.bf16.msra.mxu0 0
  %168 = vmatprep.subr.bf16.mxu0 0
  %169 = vmatpush1.bf16.msra.mxu0 0
  %170 = vmatprep.subr.bf16.mxu0 0
  %171 = vmatpush1.bf16.msra.mxu0 0
  %172 = vmatprep.subr.bf16.mxu0 0
  %173 = vmatpush1.bf16.msra.mxu0 0
  %174 = vmatprep.subr.bf16.mxu0 0
  %175 = vmatpush1.bf16.msra.mxu0 0
  %176 = vmatprep.subr.bf16.mxu0 0
  %177 = vmatpush1.bf16.msra.mxu0 0
  %178 = vmatprep.mubr.bf16.mxu0 0
  %179 = vmatmul.mubr.bf16.gmra.mrb[0].mxu0 %v82
  %v180 = vpop.f32.mrb[0].mxu0
  %v181 = vadd.f32 0.0, %v180
  %v182 = vpop.f32.mrb[0].mxu0
  %v183 = vpop.f32.mrb[0].mxu0
  %v184 = vadd.f32 0.0, %v183
  %v185 = vpop.f32.mrb[0].mxu0
  %186 = vmatprep.mubr.bf16.mxu0 0
  %187 = vmatmul.mubr.bf16.gmra.mrb[0].mxu0 %v83
  %v188 = vpop.f32.mrb[0].mxu0
  %v189 = vadd.f32 0.0, %v188
  %v190 = vpop.f32.mrb[0].mxu0
  %v191 = vpop.f32.mrb[0].mxu0
  %v192 = vadd.f32 0.0, %v191
  %v193 = vpop.f32.mrb[0].mxu0
  %194 = vmatprep.mubr.bf16.mxu0 0
  %195 = vmatmul.mubr.bf16.gmra.mrb[0].mxu0 %v84
  %v196 = vpop.f32.mrb[0].mxu0
  %v197 = vadd.f32 0.0, %v196
  %v198 = vpop.f32.mrb[0].mxu0
  %v199 = vpop.f32.mrb[0].mxu0
  %v200 = vadd.f32 0.0, %v199
  %v201 = vpop.f32.mrb[0].mxu0
  %202 = vmatprep.mubr.bf16.mxu0 0
  %203 = vmatmul.mubr.bf16.gmra.mrb[0].mxu0 %v85
  %v204 = vpop.f32.mrb[0].mxu0
  %v205 = vadd.f32 0.0, %v204
  %v206 = vpop.f32.mrb[0].mxu0
  %v207 = vpop.f32.mrb[0].mxu0
  %v208 = vadd.f32 0.0, %v207
  %v209 = vpop.f32.mrb[0].mxu0
  %210 = vmatprep.mubr.bf16.mxu0 0
  %211 = vmatmul.mubr.bf16.gmra.mrb[0].mxu0 %v86
  %v212 = vpop.f32.mrb[0].mxu0
  %v213 = vadd.f32 0.0, %v212
  %v214 = vpop.f32.mrb[0].mxu0
  %v215 = vpop.f32.mrb[0].mxu0
  %v216 = vadd.f32 0.0, %v215
  %v217 = vpop.f32.mrb[0].mxu0
  %218 = vmatprep.mubr.bf16.mxu0 0
  %219 = vmatmul.mubr.bf16.gmra.mrb[0].mxu0 %v87
  %v220 = vpop.f32.mrb[0].mxu0
  %v221 = vadd.f32 0.0, %v220
  %v222 = vpop.f32.mrb[0].mxu0
  %v223 = vpop.f32.mrb[0].mxu0
  %v224 = vadd.f32 0.0, %v223
  %v225 = vpop.f32.mrb[0].mxu0
  %226 = vmatprep.mubr.bf16.mxu0 0
  %227 = vmatmul.mubr.bf16.gmra.mrb[0].mxu0 %v88
  %v228 = vpop.f32.mrb[0].mxu0
  %v229 = vadd.f32 0.0, %v228
  %v230 = vpop.f32.mrb[0].mxu0
  %v231 = vpop.f32.mrb[0].mxu0
  %v232 = vadd.f32 0.0, %v231
  %v233 = vpop.f32.mrb[0].mxu0
  %234 = vmatprep.mubr.bf16.mxu0 0
  %235 = vmatmul.mubr.bf16.gmra.mrb[0].mxu0 %v89
  %v236 = vpop.f32.mrb[0].mxu0
  %v237 = vadd.f32 0.0, %v236
  %v238 = vpop.f32.mrb[0].mxu0
  %v239 = vpop.f32.mrb[0].mxu0
  %v240 = vadd.f32 0.0, %v239
  %v241 = vpop.f32.mrb[0].mxu0
  %242 = vdwg.mxu0
  %v243 = vld [vmem:[%s2] sm:$0x1]
  %v245 = vlaneseq
  %v246 = vshrl.u32 %v245, 7
  %v247 = vsub.s32 0, %v246
  %v248 = vrot.slane %v243, %v247
  %v250 = vmul.f32 %v181, %v248
  %v251 = vmul.f32 %v184, %v248
  %v252 = vmul.f32 %v189, %v248
  %v253 = vmul.f32 %v192, %v248
  %v254 = vmul.f32 %v197, %v248
  %v255 = vmul.f32 %v200, %v248
  %v256 = vmul.f32 %v205, %v248
  %v257 = vmul.f32 %v208, %v248
  %v258 = vmul.f32 %v213, %v248
  %v259 = vmul.f32 %v216, %v248
  %v260 = vmul.f32 %v221, %v248
  %v261 = vmul.f32 %v224, %v248
  %v262 = vmul.f32 %v229, %v248
  %v263 = vmul.f32 %v232, %v248
  %v264 = vmul.f32 %v237, %v248
  %v265 = vmul.f32 %v240, %v248
  %v266 = vld [vmem:[%s3] sm:$0x1]
  %v268 = vlaneseq
  %v269 = vshrl.u32 %v268, 7
  %v270 = vsub.s32 0, %v269
  %v271 = vrot.slane %v266, %v270
  %v273 = vadd.f32 %v250, %v271
  %v274 = vadd.f32 %v251, %v271
  %v275 = vadd.f32 %v252, %v271
  %v276 = vadd.f32 %v253, %v271
  %v277 = vadd.f32 %v254, %v271
  %v278 = vadd.f32 %v255, %v271
  %v279 = vadd.f32 %v256, %v271
  %v280 = vadd.f32 %v257, %v271
  %v281 = vadd.f32 %v258, %v271
  %v282 = vadd.f32 %v259, %v271
  %v283 = vadd.f32 %v260, %v271
  %v284 = vadd.f32 %v261, %v271
  %v285 = vadd.f32 %v262, %v271
  %v286 = vadd.f32 %v263, %v271
  %v287 = vadd.f32 %v264, %v271
  %v288 = vadd.f32 %v265, %v271
  %v289 = vmax.f32 %v273, 0.0
  %v290 = vmax.f32 %v274, 0.0
  %v291 = vmax.f32 %v275, 0.0
  %v292 = vmax.f32 %v276, 0.0
  %v293 = vmax.f32 %v277, 0.0
  %v294 = vmax.f32 %v278, 0.0
  %v295 = vmax.f32 %v279, 0.0
  %v296 = vmax.f32 %v280, 0.0
  %v297 = vmax.f32 %v281, 0.0
  %v298 = vmax.f32 %v282, 0.0
  %v299 = vmax.f32 %v283, 0.0
  %v300 = vmax.f32 %v284, 0.0
  %v301 = vmax.f32 %v285, 0.0
  %v302 = vmax.f32 %v286, 0.0
  %v303 = vmax.f32 %v287, 0.0
  %v304 = vmax.f32 %v288, 0.0
  %v305 = vpack.c.bf16 %v290, %v289
  %v306 = vpack.c.bf16 %v292, %v291
  %v307 = vpack.c.bf16 %v294, %v293
  %v308 = vpack.c.bf16 %v296, %v295
  %v309 = vpack.c.bf16 %v298, %v297
  %v310 = vpack.c.bf16 %v300, %v299
  %v311 = vpack.c.bf16 %v302, %v301
  %v312 = vpack.c.bf16 %v304, %v303
  %v321 = vunpack.c.l.b16 %v305
  %v322 = vunpack.c.h.b16 %v305
  %v323 = vunpack.c.l.b16 %v306
  %v324 = vunpack.c.h.b16 %v306
  %v325 = vunpack.c.l.b16 %v307
  %v326 = vunpack.c.h.b16 %v307
  %v327 = vunpack.c.l.b16 %v308
  %v328 = vunpack.c.h.b16 %v308
  %v329 = vunpack.c.l.b16 %v309
  %v330 = vunpack.c.h.b16 %v309
  %v331 = vunpack.c.l.b16 %v310
  %v332 = vunpack.c.h.b16 %v310
  %v333 = vunpack.c.l.b16 %v311
  %v334 = vunpack.c.h.b16 %v311
  %v335 = vunpack.c.l.b16 %v312
  %v336 = vunpack.c.h.b16 %v312
  %v337 = vpack.c.b16 %v321, %v321
  %v338 = vpack.c.b16 %v322, %v322
  %v339 = vpack.c.b16 %v323, %v323
  %v340 = vpack.c.b16 %v324, %v324
  %v341 = vpack.c.b16 %v325, %v325
  %v342 = vpack.c.b16 %v326, %v326
  %v343 = vpack.c.b16 %v327, %v327
  %v344 = vpack.c.b16 %v328, %v328
  %v345 = vpack.c.b16 %v329, %v329
  %v346 = vpack.c.b16 %v330, %v330
  %v347 = vpack.c.b16 %v331, %v331
  %v348 = vpack.c.b16 %v332, %v332
  %v349 = vpack.c.b16 %v333, %v333
  %v350 = vpack.c.b16 %v334, %v334
  %v351 = vpack.c.b16 %v335, %v335
  %v352 = vpack.c.b16 %v336, %v336
  %369 = vst [vmem:[%s4] sm:$0xf] %v337
  %370 = vst [vmem:[%s4 + $0x4] sm:$0xf] %v338
  %371 = vst [vmem:[%s4 + $0x8] sm:$0xf] %v339
  %372 = vst [vmem:[%s4 + $0xc] sm:$0xf] %v340
  %373 = vst [vmem:[%s4 + $0x10] sm:$0xf] %v341
  %374 = vst [vmem:[%s4 + $0x14] sm:$0xf] %v342
  %375 = vst [vmem:[%s4 + $0x18] sm:$0xf] %v343
  %376 = vst [vmem:[%s4 + $0x1c] sm:$0xf] %v344
  %377 = vst [vmem:[%s4 + $0x20] sm:$0xf] %v345
  %378 = vst [vmem:[%s4 + $0x24] sm:$0xf] %v346
  %379 = vst [vmem:[%s4 + $0x28] sm:$0xf] %v347
  %380 = vst [vmem:[%s4 + $0x2c] sm:$0xf] %v348
  %381 = vst [vmem:[%s4 + $0x30] sm:$0xf] %v349
  %382 = vst [vmem:[%s4 + $0x34] sm:$0xf] %v350
  %383 = vst [vmem:[%s4 + $0x38] sm:$0xf] %v351
  %384 = vst [vmem:[%s4 + $0x3c] sm:$0xf] %v352
  // Predicated region
  $region18: #{dense_grasp_forward.39} parent=0 // pred_check
    _
  $region19: #{dense_grasp_forward.39} parent=0 // pred_check_branch
    %386 = sbr.rel (0) target = $region21
  $region20: #{dense_grasp_forward.39} parent=0 // pred_region
    _
  $region21: #{dense_grasp_forward.39} parent=0 // pred_fallthru
    _
  // Predicated region
  $region22: #{dense_grasp_forward.39} parent=0 // pred_check
    _
  $region23: #{dense_grasp_forward.39} parent=0 // pred_check_branch
    %388 = sbr.rel (0) target = $region25
  $region24: #{dense_grasp_forward.39} parent=0 // pred_region
    _
  $region25: #{dense_grasp_forward.39} parent=0 // pred_fallthru
    _

// kernel: dense_grasp_forward.40
$region0: #{dense_grasp_forward.40}
  #allocation0 [shape = 'u32[]', space=smem, size = 0x4, offset = 0x4, fixed_abs, tag = 'smem constant byte address 0x4 - core index']
  #allocation1 [shape = 'u32[144,128]{1,0:T(1,128)}', space=vmem, size = 0x12000, scoped, tag = 'internal scratch']
  %s0 = inlined_call_operand.vmem [shape: bf16[32,896], index: 0, kind: input, shape index: {}]
  %s1 = inlined_call_operand.vmem [shape: bf16[896,128], index: 1, kind: input, shape index: {}]
  %s2 = inlined_call_operand.vmem [shape: f32[1,128], index: 2, kind: input, shape index: {}]
  %s3 = inlined_call_operand.vmem [shape: f32[1,128], index: 3, kind: input, shape index: {}]
  %s4 = inlined_call_operand.vmem [shape: bf16[32,128], index: 4, kind: output, shape index: {}]
  %s5 = sld [smem:[#allocation0]]
  $region26: #{dense_grasp_forward.40} parent=0
    _
  %s7 = ssub.s32 1, %s5
  %s8 = scalar_select 0, %s7, %s5
  // Predicated region
  $region2: #{dense_grasp_forward.40} parent=0 // pred_check
    _
  $region3: #{dense_grasp_forward.40} parent=0 // pred_check_branch
    %10 = sbr.rel (0) target = $region5
  $region4: #{dense_grasp_forward.40} parent=0 // pred_region
    _
  $region5: #{dense_grasp_forward.40} parent=0 // pred_fallthru
    _
  // Predicated region
  $region6: #{dense_grasp_forward.40} parent=0 // pred_check
    _
  $region7: #{dense_grasp_forward.40} parent=0 // pred_check_branch
    %12 = sbr.rel (0) target = $region9
  $region8: #{dense_grasp_forward.40} parent=0 // pred_region
    _
  $region9: #{dense_grasp_forward.40} parent=0 // pred_fallthru
    _
  // Predicated region
  $region10: #{dense_grasp_forward.40} parent=0 // pred_check
    _
  $region11: #{dense_grasp_forward.40} parent=0 // pred_check_branch
    %14 = sbr.rel (0) target = $region13
  $region12: #{dense_grasp_forward.40} parent=0 // pred_region
    _
  $region13: #{dense_grasp_forward.40} parent=0 // pred_fallthru
    _
  // Predicated region
  $region14: #{dense_grasp_forward.40} parent=0 // pred_check
    _
  $region15: #{dense_grasp_forward.40} parent=0 // pred_check_branch
    %16 = sbr.rel (0) target = $region17
  $region16: #{dense_grasp_forward.40} parent=0 // pred_region
    _
  $region17: #{dense_grasp_forward.40} parent=0 // pred_fallthru
    _
  %v18 = vld [vmem:[%s0] sm:$0xff]
  %v19 = vld [vmem:[%s0 + $0x8] sm:$0xff]
  %v20 = vld [vmem:[%s0 + $0x10] sm:$0xff]
  %v21 = vld [vmem:[%s0 + $0x18] sm:$0xf]
  %v22 = vld [vmem:[%s0 + $0x1c] sm:$0xff]
  %v23 = vld [vmem:[%s0 + $0x24] sm:$0xff]
  %v24 = vld [vmem:[%s0 + $0x2c] sm:$0xff]
  %v25 = vld [vmem:[%s0 + $0x34] sm:$0xf]
  %v26 = vld [vmem:[%s0 + $0x38] sm:$0xff]
  %v27 = vld [vmem:[%s0 + $0x40] sm:$0xff]
  %v28 = vld [vmem:[%s0 + $0x48] sm:$0xff]
  %v29 = vld [vmem:[%s0 + $0x50] sm:$0xf]
  %v30 = vld [vmem:[%s0 + $0x54] sm:$0xff]
  %v31 = vld [vmem:[%s0 + $0x5c] sm:$0xff]
  %v32 = vld [vmem:[%s0 + $0x64] sm:$0xff]
  %v33 = vld [vmem:[%s0 + $0x6c] sm:$0xf]
  %v34 = vld [vmem:[%s1] sm:$0xf]
  %v35 = vld [vmem:[%s1 + $0x4] sm:$0xf]
  %v36 = vld [vmem:[%s1 + $0x8] sm:$0xf]
  %v37 = vld [vmem:[%s1 + $0xc] sm:$0xf]
  %v38 = vld [vmem:[%s1 + $0x10] sm:$0xf]
  %v39 = vld [vmem:[%s1 + $0x14] sm:$0xf]
  %v40 = vld [vmem:[%s1 + $0x18] sm:$0xf]
  %v41 = vld [vmem:[%s1 + $0x1c] sm:$0xf]
  %v42 = vld [vmem:[%s1 + $0x20] sm:$0xf]
  %v43 = vld [vmem:[%s1 + $0x24] sm:$0xf]
  %v44 = vld [vmem:[%s1 + $0x28] sm:$0xf]
  %v45 = vld [vmem:[%s1 + $0x2c] sm:$0xf]
  %v46 = vld [vmem:[%s1 + $0x30] sm:$0xf]
  %v47 = vld [vmem:[%s1 + $0x34] sm:$0xf]
  %v48 = vld [vmem:[%s1 + $0x38] sm:$0xf]
  %v49 = vld [vmem:[%s1 + $0x3c] sm:$0xf]
  %v50 = vld [vmem:[%s1 + $0x40] sm:$0xf]
  %v51 = vld [vmem:[%s1 + $0x44] sm:$0xf]
  %v52 = vld [vmem:[%s1 + $0x48] sm:$0xf]
  %v53 = vld [vmem:[%s1 + $0x4c] sm:$0xf]
  %v54 = vld [vmem:[%s1 + $0x50] sm:$0xf]
  %v55 = vld [vmem:[%s1 + $0x54] sm:$0xf]
  %v56 = vld [vmem:[%s1 + $0x58] sm:$0xf]
  %v57 = vld [vmem:[%s1 + $0x5c] sm:$0xf]
  %v58 = vld [vmem:[%s1 + $0x60] sm:$0xf]
  %v59 = vld [vmem:[%s1 + $0x64] sm:$0xf]
  %v60 = vld [vmem:[%s1 + $0x68] sm:$0xf]
  %v61 = vld [vmem:[%s1 + $0x6c] sm:$0xf]
  %v62 = vld [vmem:[%s1 + $0x70] sm:$0xf]
  %v63 = vld [vmem:[%s1 + $0x74] sm:$0xf]
  %v64 = vld [vmem:[%s1 + $0x78] sm:$0xf]
  %v65 = vld [vmem:[%s1 + $0x7c] sm:$0xf]
  %v66 = vld [vmem:[%s1 + $0x80] sm:$0xf]
  %v67 = vld [vmem:[%s1 + $0x84] sm:$0xf]
  %v68 = vld [vmem:[%s1 + $0x88] sm:$0xf]
  %v69 = vld [vmem:[%s1 + $0x8c] sm:$0xf]
  %v70 = vld [vmem:[%s1 + $0x90] sm:$0xf]
  %v71 = vld [vmem:[%s1 + $0x94] sm:$0xf]
  %v72 = vld [vmem:[%s1 + $0x98] sm:$0xf]
  %v73 = vld [vmem:[%s1 + $0x9c] sm:$0xf]
  %v74 = vld [vmem:[%s1 + $0xa0] sm:$0xf]
  %v75 = vld [vmem:[%s1 + $0xa4] sm:$0xf]
  %v76 = vld [vmem:[%s1 + $0xa8] sm:$0xf]
  %v77 = vld [vmem:[%s1 + $0xac] sm:$0xf]
  %v78 = vld [vmem:[%s1 + $0xb0] sm:$0xf]
  %v79 = vld [vmem:[%s1 + $0xb4] sm:$0xf]
  %v80 = vld [vmem:[%s1 + $0xb8] sm:$0xf]
  %v81 = vld [vmem:[%s1 + $0xbc] sm:$0xf]
  %v82 = vld [vmem:[%s1 + $0xc0] sm:$0xf]
  %v83 = vld [vmem:[%s1 + $0xc4] sm:$0xf]
  %v84 = vld [vmem:[%s1 + $0xc8] sm:$0xf]
  %v85 = vld [vmem:[%s1 + $0xcc] sm:$0xf]
  %v86 = vld [vmem:[%s1 + $0xd0] sm:$0xf]
  %v87 = vld [vmem:[%s1 + $0xd4] sm:$0xf]
  %v88 = vld [vmem:[%s1 + $0xd8] sm:$0xf]
  %v89 = vld [vmem:[%s1 + $0xdc] sm:$0xf]
  %v90 = vld [vmem:[%s1 + $0xe0] sm:$0xf]
  %v91 = vld [vmem:[%s1 + $0xe4] sm:$0xf]
  %v92 = vld [vmem:[%s1 + $0xe8] sm:$0xf]
  %v93 = vld [vmem:[%s1 + $0xec] sm:$0xf]
  %v94 = vld [vmem:[%s1 + $0xf0] sm:$0xf]
  %v95 = vld [vmem:[%s1 + $0xf4] sm:$0xf]
  %v96 = vld [vmem:[%s1 + $0xf8] sm:$0xf]
  %v97 = vld [vmem:[%s1 + $0xfc] sm:$0xf]
  %v98 = vld [vmem:[%s1 + $0x100] sm:$0xf]
  %v99 = vld [vmem:[%s1 + $0x104] sm:$0xf]
  %v100 = vld [vmem:[%s1 + $0x108] sm:$0xf]
  %v101 = vld [vmem:[%s1 + $0x10c] sm:$0xf]
  %v102 = vld [vmem:[%s1 + $0x110] sm:$0xf]
  %v103 = vld [vmem:[%s1 + $0x114] sm:$0xf]
  %v104 = vld [vmem:[%s1 + $0x118] sm:$0xf]
  %v105 = vld [vmem:[%s1 + $0x11c] sm:$0xf]
  %v106 = vld [vmem:[%s1 + $0x120] sm:$0xf]
  %v107 = vld [vmem:[%s1 + $0x124] sm:$0xf]
  %v108 = vld [vmem:[%s1 + $0x128] sm:$0xf]
  %v109 = vld [vmem:[%s1 + $0x12c] sm:$0xf]
  %v110 = vld [vmem:[%s1 + $0x130] sm:$0xf]
  %v111 = vld [vmem:[%s1 + $0x134] sm:$0xf]
  %v112 = vld [vmem:[%s1 + $0x138] sm:$0xf]
  %v113 = vld [vmem:[%s1 + $0x13c] sm:$0xf]
  %v114 = vld [vmem:[%s1 + $0x140] sm:$0xf]
  %v115 = vld [vmem:[%s1 + $0x144] sm:$0xf]
  %v116 = vld [vmem:[%s1 + $0x148] sm:$0xf]
  %v117 = vld [vmem:[%s1 + $0x14c] sm:$0xf]
  %v118 = vld [vmem:[%s1 + $0x150] sm:$0xf]
  %v119 = vld [vmem:[%s1 + $0x154] sm:$0xf]
  %v120 = vld [vmem:[%s1 + $0x158] sm:$0xf]
  %v121 = vld [vmem:[%s1 + $0x15c] sm:$0xf]
  %v122 = vld [vmem:[%s1 + $0x160] sm:$0xf]
  %v123 = vld [vmem:[%s1 + $0x164] sm:$0xf]
  %v124 = vld [vmem:[%s1 + $0x168] sm:$0xf]
  %v125 = vld [vmem:[%s1 + $0x16c] sm:$0xf]
  %v126 = vld [vmem:[%s1 + $0x170] sm:$0xf]
  %v127 = vld [vmem:[%s1 + $0x174] sm:$0xf]
  %v128 = vld [vmem:[%s1 + $0x178] sm:$0xf]
  %v129 = vld [vmem:[%s1 + $0x17c] sm:$0xf]
  %v130 = vld [vmem:[%s1 + $0x180] sm:$0xf]
  %v131 = vld [vmem:[%s1 + $0x184] sm:$0xf]
  %v132 = vld [vmem:[%s1 + $0x188] sm:$0xf]
  %v133 = vld [vmem:[%s1 + $0x18c] sm:$0xf]
  %v134 = vld [vmem:[%s1 + $0x190] sm:$0xf]
  %v135 = vld [vmem:[%s1 + $0x194] sm:$0xf]
  %v136 = vld [vmem:[%s1 + $0x198] sm:$0xf]
  %v137 = vld [vmem:[%s1 + $0x19c] sm:$0xf]
  %v138 = vld [vmem:[%s1 + $0x1a0] sm:$0xf]
  %v139 = vld [vmem:[%s1 + $0x1a4] sm:$0xf]
  %v140 = vld [vmem:[%s1 + $0x1a8] sm:$0xf]
  %v141 = vld [vmem:[%s1 + $0x1ac] sm:$0xf]
  %v142 = vld [vmem:[%s1 + $0x1b0] sm:$0xf]
  %v143 = vld [vmem:[%s1 + $0x1b4] sm:$0xf]
  %v144 = vld [vmem:[%s1 + $0x1b8] sm:$0xf]
  %v145 = vld [vmem:[%s1 + $0x1bc] sm:$0xf]
  %v162 = vunpack.c.l.b16 %v18
  %v163 = vunpack.c.h.b16 %v18
  %v164 = vunpack.c.l.b16 %v19
  %v165 = vunpack.c.h.b16 %v19
  %v166 = vunpack.c.l.b16 %v20
  %v167 = vunpack.c.h.b16 %v20
  %v168 = vunpack.c.l.b16 %v21
  %v169 = vunpack.c.l.b16 %v22
  %v170 = vunpack.c.h.b16 %v22
  %v171 = vunpack.c.l.b16 %v23
  %v172 = vunpack.c.h.b16 %v23
  %v173 = vunpack.c.l.b16 %v24
  %v174 = vunpack.c.h.b16 %v24
  %v175 = vunpack.c.l.b16 %v25
  %v176 = vunpack.c.l.b16 %v26
  %v177 = vunpack.c.h.b16 %v26
  %v178 = vunpack.c.l.b16 %v27
  %v179 = vunpack.c.h.b16 %v27
  %v180 = vunpack.c.l.b16 %v28
  %v181 = vunpack.c.h.b16 %v28
  %v182 = vunpack.c.l.b16 %v29
  %v183 = vunpack.c.l.b16 %v30
  %v184 = vunpack.c.h.b16 %v30
  %v185 = vunpack.c.l.b16 %v31
  %v186 = vunpack.c.h.b16 %v31
  %v187 = vunpack.c.l.b16 %v32
  %v188 = vunpack.c.h.b16 %v32
  %v189 = vunpack.c.l.b16 %v33
  %v190 = vpack.c.b16 %v169, %v162
  %v191 = vpack.c.b16 %v170, %v163
  %v192 = vpack.c.b16 %v171, %v164
  %v193 = vpack.c.b16 %v172, %v165
  %v194 = vpack.c.b16 %v173, %v166
  %v195 = vpack.c.b16 %v174, %v167
  %v196 = vpack.c.b16 %v175, %v168
  %v197 = vpack.c.b16 %v183, %v176
  %v198 = vpack.c.b16 %v184, %v177
  %v199 = vpack.c.b16 %v185, %v178
  %v200 = vpack.c.b16 %v186, %v179
  %v201 = vpack.c.b16 %v187, %v180
  %v202 = vpack.c.b16 %v188, %v181
  %v203 = vpack.c.b16 %v189, %v182
  %v330 = vunpack.c.l.b16 %v34
  %v331 = vunpack.c.l.b16 %v35
  %v332 = vunpack.c.l.b16 %v36
  %v333 = vunpack.c.l.b16 %v37
  %v334 = vunpack.c.l.b16 %v38
  %v335 = vunpack.c.l.b16 %v39
  %v336 = vunpack.c.l.b16 %v40
  %v337 = vunpack.c.l.b16 %v41
  %v338 = vunpack.c.l.b16 %v42
  %v339 = vunpack.c.l.b16 %v43
  %v340 = vunpack.c.l.b16 %v44
  %v341 = vunpack.c.l.b16 %v45
  %v342 = vunpack.c.l.b16 %v46
  %v343 = vunpack.c.l.b16 %v47
  %v344 = vunpack.c.l.b16 %v48
  %v345 = vunpack.c.l.b16 %v49
  %v346 = vunpack.c.l.b16 %v50
  %v347 = vunpack.c.l.b16 %v51
  %v348 = vunpack.c.l.b16 %v52
  %v349 = vunpack.c.l.b16 %v53
  %v350 = vunpack.c.l.b16 %v54
  %v351 = vunpack.c.l.b16 %v55
  %v352 = vunpack.c.l.b16 %v56
  %v353 = vunpack.c.l.b16 %v57
  %v354 = vunpack.c.l.b16 %v58
  %v355 = vunpack.c.l.b16 %v59
  %v356 = vunpack.c.l.b16 %v60
  %v357 = vunpack.c.l.b16 %v61
  %v358 = vunpack.c.l.b16 %v62
  %v359 = vunpack.c.l.b16 %v63
  %v360 = vunpack.c.l.b16 %v64
  %v361 = vunpack.c.l.b16 %v65
  %v362 = vunpack.c.l.b16 %v66
  %v363 = vunpack.c.l.b16 %v67
  %v364 = vunpack.c.l.b16 %v68
  %v365 = vunpack.c.l.b16 %v69
  %v366 = vunpack.c.l.b16 %v70
  %v367 = vunpack.c.l.b16 %v71
  %v368 = vunpack.c.l.b16 %v72
  %v369 = vunpack.c.l.b16 %v73
  %v370 = vunpack.c.l.b16 %v74
  %v371 = vunpack.c.l.b16 %v75
  %v372 = vunpack.c.l.b16 %v76
  %v373 = vunpack.c.l.b16 %v77
  %v374 = vunpack.c.l.b16 %v78
  %v375 = vunpack.c.l.b16 %v79
  %v376 = vunpack.c.l.b16 %v80
  %v377 = vunpack.c.l.b16 %v81
  %v378 = vunpack.c.l.b16 %v82
  %v379 = vunpack.c.l.b16 %v83
  %v380 = vunpack.c.l.b16 %v84
  %v381 = vunpack.c.l.b16 %v85
  %v382 = vunpack.c.l.b16 %v86
  %v383 = vunpack.c.l.b16 %v87
  %v384 = vunpack.c.l.b16 %v88
  %v385 = vunpack.c.l.b16 %v89
  %v386 = vunpack.c.l.b16 %v90
  %v387 = vunpack.c.l.b16 %v91
  %v388 = vunpack.c.l.b16 %v92
  %v389 = vunpack.c.l.b16 %v93
  %v390 = vunpack.c.l.b16 %v94
  %v391 = vunpack.c.l.b16 %v95
  %v392 = vunpack.c.l.b16 %v96
  %v393 = vunpack.c.l.b16 %v97
  %v394 = vunpack.c.l.b16 %v98
  %v395 = vunpack.c.l.b16 %v99
  %v396 = vunpack.c.l.b16 %v100
  %v397 = vunpack.c.l.b16 %v101
  %v398 = vunpack.c.l.b16 %v102
  %v399 = vunpack.c.l.b16 %v103
  %v400 = vunpack.c.l.b16 %v104
  %v401 = vunpack.c.l.b16 %v105
  %v402 = vunpack.c.l.b16 %v106
  %v403 = vunpack.c.l.b16 %v107
  %v404 = vunpack.c.l.b16 %v108
  %v405 = vunpack.c.l.b16 %v109
  %v406 = vunpack.c.l.b16 %v110
  %v407 = vunpack.c.l.b16 %v111
  %v408 = vunpack.c.l.b16 %v112
  %v409 = vunpack.c.l.b16 %v113
  %v410 = vunpack.c.l.b16 %v114
  %v411 = vunpack.c.l.b16 %v115
  %v412 = vunpack.c.l.b16 %v116
  %v413 = vunpack.c.l.b16 %v117
  %v414 = vunpack.c.l.b16 %v118
  %v415 = vunpack.c.l.b16 %v119
  %v416 = vunpack.c.l.b16 %v120
  %v417 = vunpack.c.l.b16 %v121
  %v418 = vunpack.c.l.b16 %v122
  %v419 = vunpack.c.l.b16 %v123
  %v420 = vunpack.c.l.b16 %v124
  %v421 = vunpack.c.l.b16 %v125
  %v422 = vunpack.c.l.b16 %v126
  %v423 = vunpack.c.l.b16 %v127
  %v424 = vunpack.c.l.b16 %v128
  %v425 = vunpack.c.l.b16 %v129
  %v426 = vunpack.c.l.b16 %v130
  %v427 = vunpack.c.l.b16 %v131
  %v428 = vunpack.c.l.b16 %v132
  %v429 = vunpack.c.l.b16 %v133
  %v430 = vunpack.c.l.b16 %v134
  %v431 = vunpack.c.l.b16 %v135
  %v432 = vunpack.c.l.b16 %v136
  %v433 = vunpack.c.l.b16 %v137
  %v434 = vunpack.c.l.b16 %v138
  %v435 = vunpack.c.l.b16 %v139
  %v436 = vunpack.c.l.b16 %v140
  %v437 = vunpack.c.l.b16 %v141
  %v438 = vunpack.c.l.b16 %v142
  %v439 = vunpack.c.l.b16 %v143
  %v440 = vunpack.c.l.b16 %v144
  %v441 = vunpack.c.l.b16 %v145
  %v442 = vpack.c.b16 %v331, %v330
  %v443 = vpack.c.b16 %v333, %v332
  %v444 = vpack.c.b16 %v335, %v334
  %v445 = vpack.c.b16 %v337, %v336
  %v446 = vpack.c.b16 %v339, %v338
  %v447 = vpack.c.b16 %v341, %v340
  %v448 = vpack.c.b16 %v343, %v342
  %v449 = vpack.c.b16 %v345, %v344
  %v450 = vpack.c.b16 %v347, %v346
  %v451 = vpack.c.b16 %v349, %v348
  %v452 = vpack.c.b16 %v351, %v350
  %v453 = vpack.c.b16 %v353, %v352
  %v454 = vpack.c.b16 %v355, %v354
  %v455 = vpack.c.b16 %v357, %v356
  %v456 = vpack.c.b16 %v359, %v358
  %v457 = vpack.c.b16 %v361, %v360
  %v458 = vpack.c.b16 %v363, %v362
  %v459 = vpack.c.b16 %v365, %v364
  %v460 = vpack.c.b16 %v367, %v366
  %v461 = vpack.c.b16 %v369, %v368
  %v462 = vpack.c.b16 %v371, %v370
  %v463 = vpack.c.b16 %v373, %v372
  %v464 = vpack.c.b16 %v375, %v374
  %v465 = vpack.c.b16 %v377, %v376
  %v466 = vpack.c.b16 %v379, %v378
  %v467 = vpack.c.b16 %v381, %v380
  %v468 = vpack.c.b16 %v383, %v382
  %v469 = vpack.c.b16 %v385, %v384
  %v470 = vpack.c.b16 %v387, %v386
  %v471 = vpack.c.b16 %v389, %v388
  %v472 = vpack.c.b16 %v391, %v390
  %v473 = vpack.c.b16 %v393, %v392
  %v474 = vpack.c.b16 %v395, %v394
  %v475 = vpack.c.b16 %v397, %v396
  %v476 = vpack.c.b16 %v399, %v398
  %v477 = vpack.c.b16 %v401, %v400
  %v478 = vpack.c.b16 %v403, %v402
  %v479 = vpack.c.b16 %v405, %v404
  %v480 = vpack.c.b16 %v407, %v406
  %v481 = vpack.c.b16 %v409, %v408
  %v482 = vpack.c.b16 %v411, %v410
  %v483 = vpack.c.b16 %v413, %v412
  %v484 = vpack.c.b16 %v415, %v414
  %v485 = vpack.c.b16 %v417, %v416
  %v486 = vpack.c.b16 %v419, %v418
  %v487 = vpack.c.b16 %v421, %v420
  %v488 = vpack.c.b16 %v423, %v422
  %v489 = vpack.c.b16 %v425, %v424
  %v490 = vpack.c.b16 %v427, %v426
  %v491 = vpack.c.b16 %v429, %v428
  %v492 = vpack.c.b16 %v431, %v430
  %v493 = vpack.c.b16 %v433, %v432
  %v494 = vpack.c.b16 %v435, %v434
  %v495 = vpack.c.b16 %v437, %v436
  %v496 = vpack.c.b16 %v439, %v438
  %v497 = vpack.c.b16 %v441, %v440
  %554 = vmatprep.subr.bf16.mxu0 0
  %555 = vmatpush1.bf16.msra.mxu0 %v442
  %556 = vmatprep.subr.bf16.mxu0 0
  %557 = vmatpush1.bf16.msra.mxu0 %v443
  %558 = vmatprep.subr.bf16.mxu0 0
  %559 = vmatpush1.bf16.msra.mxu0 %v444
  %560 = vmatprep.subr.bf16.mxu0 0
  %561 = vmatpush1.bf16.msra.mxu0 %v445
  %562 = vmatprep.subr.bf16.mxu0 0
  %563 = vmatpush1.bf16.msra.mxu0 %v446
  %564 = vmatprep.subr.bf16.mxu0 0
  %565 = vmatpush1.bf16.msra.mxu0 %v447
  %566 = vmatprep.subr.bf16.mxu0 0
  %567 = vmatpush1.bf16.msra.mxu0 %v448
  %568 = vmatprep.subr.bf16.mxu0 0
  %569 = vmatpush1.bf16.msra.mxu0 %v449
  %570 = vmatprep.subr.bf16.mxu0 0
  %571 = vmatpush1.bf16.msra.mxu0 %v450
  %572 = vmatprep.subr.bf16.mxu0 0
  %573 = vmatpush1.bf16.msra.mxu0 %v451
  %574 = vmatprep.subr.bf16.mxu0 0
  %575 = vmatpush1.bf16.msra.mxu0 %v452
  %576 = vmatprep.subr.bf16.mxu0 0
  %577 = vmatpush1.bf16.msra.mxu0 %v453
  %578 = vmatprep.subr.bf16.mxu0 0
  %579 = vmatpush1.bf16.msra.mxu0 %v454
  %580 = vmatprep.subr.bf16.mxu0 0
  %581 = vmatpush1.bf16.msra.mxu0 %v455
  %582 = vmatprep.subr.bf16.mxu0 0
  %583 = vmatpush1.bf16.msra.mxu0 %v456
  %584 = vmatprep.subr.bf16.mxu0 0
  %585 = vmatpush1.bf16.msra.mxu0 %v457
  %586 = vmatprep.mubr.bf16.mxu0 %v191
  %587 = vmatmul.mubr.bf16.gmra.mrb[0].mxu0 %v190
  %v588 = vpop.f32.mrb[0].mxu0
  %v589 = vadd.f32 0.0, %v588
  %v590 = vpop.f32.mrb[0].mxu0
  %v591 = vpop.f32.mrb[0].mxu0
  %v592 = vadd.f32 0.0, %v591
  %v593 = vpop.f32.mrb[0].mxu0
  %594 = vmatprep.mubr.bf16.mxu0 %v198
  %595 = vmatmul.mubr.bf16.gmra.mrb[0].mxu0 %v197
  %v596 = vpop.f32.mrb[0].mxu0
  %v597 = vadd.f32 0.0, %v596
  %v598 = vpop.f32.mrb[0].mxu0
  %v599 = vpop.f32.mrb[0].mxu0
  %v600 = vadd.f32 0.0, %v599
  %v601 = vpop.f32.mrb[0].mxu0
  %602 = vdwg.mxu0
  %603 = vmatprep.subr.bf16.mxu0 0
  %604 = vmatpush1.bf16.msra.mxu0 %v458
  %605 = vmatprep.subr.bf16.mxu0 0
  %606 = vmatpush1.bf16.msra.mxu0 %v459
  %607 = vmatprep.subr.bf16.mxu0 0
  %608 = vmatpush1.bf16.msra.mxu0 %v460
  %609 = vmatprep.subr.bf16.mxu0 0
  %610 = vmatpush1.bf16.msra.mxu0 %v461
  %611 = vmatprep.subr.bf16.mxu0 0
  %612 = vmatpush1.bf16.msra.mxu0 %v462
  %613 = vmatprep.subr.bf16.mxu0 0
  %614 = vmatpush1.bf16.msra.mxu0 %v463
  %615 = vmatprep.subr.bf16.mxu0 0
  %616 = vmatpush1.bf16.msra.mxu0 %v464
  %617 = vmatprep.subr.bf16.mxu0 0
  %618 = vmatpush1.bf16.msra.mxu0 %v465
  %619 = vmatprep.subr.bf16.mxu0 0
  %620 = vmatpush1.bf16.msra.mxu0 %v466
  %621 = vmatprep.subr.bf16.mxu0 0
  %622 = vmatpush1.bf16.msra.mxu0 %v467
  %623 = vmatprep.subr.bf16.mxu0 0
  %624 = vmatpush1.bf16.msra.mxu0 %v468
  %625 = vmatprep.subr.bf16.mxu0 0
  %626 = vmatpush1.bf16.msra.mxu0 %v469
  %627 = vmatprep.subr.bf16.mxu0 0
  %628 = vmatpush1.bf16.msra.mxu0 %v470
  %629 = vmatprep.subr.bf16.mxu0 0
  %630 = vmatpush1.bf16.msra.mxu0 %v471
  %631 = vmatprep.subr.bf16.mxu0 0
  %632 = vmatpush1.bf16.msra.mxu0 %v472
  %633 = vmatprep.subr.bf16.mxu0 0
  %634 = vmatpush1.bf16.msra.mxu0 %v473
  %635 = vmatprep.mubr.bf16.mxu0 %v193
  %636 = vmatmul.mubr.bf16.gmra.mrb[0].mxu0 %v192
  %v637 = vpop.f32.mrb[0].mxu0
  %v638 = vadd.f32 %v589, %v637
  %v639 = vpop.f32.mrb[0].mxu0
  %v640 = vpop.f32.mrb[0].mxu0
  %v641 = vadd.f32 %v592, %v640
  %v642 = vpop.f32.mrb[0].mxu0
  %643 = vmatprep.mubr.bf16.mxu0 %v200
  %644 = vmatmul.mubr.bf16.gmra.mrb[0].mxu0 %v199
  %v645 = vpop.f32.mrb[0].mxu0
  %v646 = vadd.f32 %v597, %v645
  %v647 = vpop.f32.mrb[0].mxu0
  %v648 = vpop.f32.mrb[0].mxu0
  %v649 = vadd.f32 %v600, %v648
  %v650 = vpop.f32.mrb[0].mxu0
  %651 = vdwg.mxu0
  %652 = vmatprep.subr.bf16.mxu0 0
  %653 = vmatpush1.bf16.msra.mxu0 %v474
  %654 = vmatprep.subr.bf16.mxu0 0
  %655 = vmatpush1.bf16.msra.mxu0 %v475
  %656 = vmatprep.subr.bf16.mxu0 0
  %657 = vmatpush1.bf16.msra.mxu0 %v476
  %658 = vmatprep.subr.bf16.mxu0 0
  %659 = vmatpush1.bf16.msra.mxu0 %v477
  %660 = vmatprep.subr.bf16.mxu0 0
  %661 = vmatpush1.bf16.msra.mxu0 %v478
  %662 = vmatprep.subr.bf16.mxu0 0
  %663 = vmatpush1.bf16.msra.mxu0 %v479
  %664 = vmatprep.subr.bf16.mxu0 0
  %665 = vmatpush1.bf16.msra.mxu0 %v480
  %666 = vmatprep.subr.bf16.mxu0 0
  %667 = vmatpush1.bf16.msra.mxu0 %v481
  %668 = vmatprep.subr.bf16.mxu0 0
  %669 = vmatpush1.bf16.msra.mxu0 %v482
  %670 = vmatprep.subr.bf16.mxu0 0
  %671 = vmatpush1.bf16.msra.mxu0 %v483
  %672 = vmatprep.subr.bf16.mxu0 0
  %673 = vmatpush1.bf16.msra.mxu0 %v484
  %674 = vmatprep.subr.bf16.mxu0 0
  %675 = vmatpush1.bf16.msra.mxu0 %v485
  %676 = vmatprep.subr.bf16.mxu0 0
  %677 = vmatpush1.bf16.msra.mxu0 %v486
  %678 = vmatprep.subr.bf16.mxu0 0
  %679 = vmatpush1.bf16.msra.mxu0 %v487
  %680 = vmatprep.subr.bf16.mxu0 0
  %681 = vmatpush1.bf16.msra.mxu0 %v488
  %682 = vmatprep.subr.bf16.mxu0 0
  %683 = vmatpush1.bf16.msra.mxu0 %v489
  %684 = vmatprep.mubr.bf16.mxu0 %v195
  %685 = vmatmul.mubr.bf16.gmra.mrb[0].mxu0 %v194
  %v686 = vpop.f32.mrb[0].mxu0
  %v687 = vadd.f32 %v638, %v686
  %v688 = vpop.f32.mrb[0].mxu0
  %v689 = vpop.f32.mrb[0].mxu0
  %v690 = vadd.f32 %v641, %v689
  %v691 = vpop.f32.mrb[0].mxu0
  %692 = vmatprep.mubr.bf16.mxu0 %v202
  %693 = vmatmul.mubr.bf16.gmra.mrb[0].mxu0 %v201
  %v694 = vpop.f32.mrb[0].mxu0
  %v695 = vadd.f32 %v646, %v694
  %v696 = vpop.f32.mrb[0].mxu0
  %v697 = vpop.f32.mrb[0].mxu0
  %v698 = vadd.f32 %v649, %v697
  %v699 = vpop.f32.mrb[0].mxu0
  %700 = vdwg.mxu0
  %701 = vmatprep.subr.bf16.mxu0 0
  %702 = vmatpush1.bf16.msra.mxu0 %v490
  %703 = vmatprep.subr.bf16.mxu0 0
  %704 = vmatpush1.bf16.msra.mxu0 %v491
  %705 = vmatprep.subr.bf16.mxu0 0
  %706 = vmatpush1.bf16.msra.mxu0 %v492
  %707 = vmatprep.subr.bf16.mxu0 0
  %708 = vmatpush1.bf16.msra.mxu0 %v493
  %709 = vmatprep.subr.bf16.mxu0 0
  %710 = vmatpush1.bf16.msra.mxu0 %v494
  %711 = vmatprep.subr.bf16.mxu0 0
  %712 = vmatpush1.bf16.msra.mxu0 %v495
  %713 = vmatprep.subr.bf16.mxu0 0
  %714 = vmatpush1.bf16.msra.mxu0 %v496
  %715 = vmatprep.subr.bf16.mxu0 0
  %716 = vmatpush1.bf16.msra.mxu0 %v497
  %717 = vmatprep.subr.bf16.mxu0 0
  %718 = vmatpush1.bf16.msra.mxu0 0
  %719 = vmatprep.subr.bf16.mxu0 0
  %720 = vmatpush1.bf16.msra.mxu0 0
  %721 = vmatprep.subr.bf16.mxu0 0
  %722 = vmatpush1.bf16.msra.mxu0 0
  %723 = vmatprep.subr.bf16.mxu0 0
  %724 = vmatpush1.bf16.msra.mxu0 0
  %725 = vmatprep.subr.bf16.mxu0 0
  %726 = vmatpush1.bf16.msra.mxu0 0
  %727 = vmatprep.subr.bf16.mxu0 0
  %728 = vmatpush1.bf16.msra.mxu0 0
  %729 = vmatprep.subr.bf16.mxu0 0
  %730 = vmatpush1.bf16.msra.mxu0 0
  %731 = vmatprep.subr.bf16.mxu0 0
  %732 = vmatpush1.bf16.msra.mxu0 0
  %733 = vmatprep.mubr.bf16.mxu0 0
  %734 = vmatmul.mubr.bf16.gmra.mrb[0].mxu0 %v196
  %v735 = vpop.f32.mrb[0].mxu0
  %v736 = vadd.f32 %v687, %v735
  %v737 = vpop.f32.mrb[0].mxu0
  %v738 = vpop.f32.mrb[0].mxu0
  %v739 = vadd.f32 %v690, %v738
  %v740 = vpop.f32.mrb[0].mxu0
  %741 = vmatprep.mubr.bf16.mxu0 0
  %742 = vmatmul.mubr.bf16.gmra.mrb[0].mxu0 %v203
  %v743 = vpop.f32.mrb[0].mxu0
  %v744 = vadd.f32 %v695, %v743
  %v745 = vpop.f32.mrb[0].mxu0
  %v746 = vpop.f32.mrb[0].mxu0
  %v747 = vadd.f32 %v698, %v746
  %v748 = vpop.f32.mrb[0].mxu0
  %749 = vdwg.mxu0
  %v750 = vld [vmem:[%s2] sm:$0x1]
  %v752 = vlaneseq
  %v753 = vshrl.u32 %v752, 7
  %v754 = vsub.s32 0, %v753
  %v755 = vrot.slane %v750, %v754
  %v757 = vmul.f32 %v736, %v755
  %v758 = vmul.f32 %v739, %v755
  %v759 = vmul.f32 %v744, %v755
  %v760 = vmul.f32 %v747, %v755
  %v761 = vld [vmem:[%s3] sm:$0x1]
  %v763 = vlaneseq
  %v764 = vshrl.u32 %v763, 7
  %v765 = vsub.s32 0, %v764
  %v766 = vrot.slane %v761, %v765
  %v768 = vadd.f32 %v757, %v766
  %v769 = vadd.f32 %v758, %v766
  %v770 = vadd.f32 %v759, %v766
  %v771 = vadd.f32 %v760, %v766
  %v772 = vmax.f32 %v768, 0.0
  %v773 = vmax.f32 %v769, 0.0
  %v774 = vmax.f32 %v770, 0.0
  %v775 = vmax.f32 %v771, 0.0
  %v776 = vpack.c.bf16 %v773, %v772
  %v777 = vpack.c.bf16 %v775, %v774
  %v780 = vunpack.c.l.b16 %v776
  %v781 = vunpack.c.h.b16 %v776
  %v782 = vunpack.c.l.b16 %v777
  %v783 = vunpack.c.h.b16 %v777
  %v784 = vpack.c.b16 %v780, %v780
  %v785 = vpack.c.b16 %v781, %v781
  %v786 = vpack.c.b16 %v782, %v782
  %v787 = vpack.c.b16 %v783, %v783
  %792 = vst [vmem:[%s4] sm:$0xf] %v784
  %793 = vst [vmem:[%s4 + $0x4] sm:$0xf] %v785
  %794 = vst [vmem:[%s4 + $0x8] sm:$0xf] %v786
  %795 = vst [vmem:[%s4 + $0xc] sm:$0xf] %v787
  // Predicated region
  $region18: #{dense_grasp_forward.40} parent=0 // pred_check
    _
  $region19: #{dense_grasp_forward.40} parent=0 // pred_check_branch
    %797 = sbr.rel (0) target = $region21
  $region20: #{dense_grasp_forward.40} parent=0 // pred_region
    _
  $region21: #{dense_grasp_forward.40} parent=0 // pred_fallthru
    _
  // Predicated region
  $region22: #{dense_grasp_forward.40} parent=0 // pred_check
    _
  $region23: #{dense_grasp_forward.40} parent=0 // pred_check_branch
    %799 = sbr.rel (0) target = $region25
  $region24: #{dense_grasp_forward.40} parent=0 // pred_region
    _
  $region25: #{dense_grasp_forward.40} parent=0 // pred_fallthru
    _

// kernel: dense_grasp_forward.42
$region0: #{dense_grasp_forward.42}
  #allocation0 [shape = 'u32[]', space=smem, size = 0x4, offset = 0x4, fixed_abs, tag = 'smem constant byte address 0x4 - core index']
  #allocation1 [shape = 'u32[144,128]{1,0:T(1,128)}', space=vmem, size = 0x12000, scoped, tag = 'internal scratch']
  %s0 = inlined_call_operand.vmem [shape: bf16[16,512], index: 0, kind: input, shape index: {}]
  %s1 = inlined_call_operand.vmem [shape: bf16[512,128], index: 1, kind: input, shape index: {}]
  %s2 = inlined_call_operand.vmem [shape: f32[1,128], index: 2, kind: input, shape index: {}]
  %s3 = inlined_call_operand.vmem [shape: f32[1,128], index: 3, kind: input, shape index: {}]
  %s4 = inlined_call_operand.vmem [shape: bf16[16,128], index: 4, kind: output, shape index: {}]
  %s5 = sld [smem:[#allocation0]]
  $region26: #{dense_grasp_forward.42} parent=0
    _
  %s7 = ssub.s32 1, %s5
  %s8 = scalar_select 0, %s7, %s5
  // Predicated region
  $region2: #{dense_grasp_forward.42} parent=0 // pred_check
    _
  $region3: #{dense_grasp_forward.42} parent=0 // pred_check_branch
    %10 = sbr.rel (0) target = $region5
  $region4: #{dense_grasp_forward.42} parent=0 // pred_region
    _
  $region5: #{dense_grasp_forward.42} parent=0 // pred_fallthru
    _
  // Predicated region
  $region6: #{dense_grasp_forward.42} parent=0 // pred_check
    _
  $region7: #{dense_grasp_forward.42} parent=0 // pred_check_branch
    %12 = sbr.rel (0) target = $region9
  $region8: #{dense_grasp_forward.42} parent=0 // pred_region
    _
  $region9: #{dense_grasp_forward.42} parent=0 // pred_fallthru
    _
  // Predicated region
  $region10: #{dense_grasp_forward.42} parent=0 // pred_check
    _
  $region11: #{dense_grasp_forward.42} parent=0 // pred_check_branch
    %14 = sbr.rel (0) target = $region13
  $region12: #{dense_grasp_forward.42} parent=0 // pred_region
    _
  $region13: #{dense_grasp_forward.42} parent=0 // pred_fallthru
    _
  // Predicated region
  $region14: #{dense_grasp_forward.42} parent=0 // pred_check
    _
  $region15: #{dense_grasp_forward.42} parent=0 // pred_check_branch
    %16 = sbr.rel (0) target = $region17
  $region16: #{dense_grasp_forward.42} parent=0 // pred_region
    _
  $region17: #{dense_grasp_forward.42} parent=0 // pred_fallthru
    _
  %v18 = vld [vmem:[%s0] sm:$0xff]
  %v19 = vld [vmem:[%s0 + $0x8] sm:$0xff]
  %v20 = vld [vmem:[%s0 + $0x10] sm:$0xff]
  %v21 = vld [vmem:[%s0 + $0x18] sm:$0xff]
  %v22 = vld [vmem:[%s1] sm:$0xf]
  %v23 = vld [vmem:[%s1 + $0x4] sm:$0xf]
  %v24 = vld [vmem:[%s1 + $0x8] sm:$0xf]
  %v25 = vld [vmem:[%s1 + $0xc] sm:$0xf]
  %v26 = vld [vmem:[%s1 + $0x10] sm:$0xf]
  %v27 = vld [vmem:[%s1 + $0x14] sm:$0xf]
  %v28 = vld [vmem:[%s1 + $0x18] sm:$0xf]
  %v29 = vld [vmem:[%s1 + $0x1c] sm:$0xf]
  %v30 = vld [vmem:[%s1 + $0x20] sm:$0xf]
  %v31 = vld [vmem:[%s1 + $0x24] sm:$0xf]
  %v32 = vld [vmem:[%s1 + $0x28] sm:$0xf]
  %v33 = vld [vmem:[%s1 + $0x2c] sm:$0xf]
  %v34 = vld [vmem:[%s1 + $0x30] sm:$0xf]
  %v35 = vld [vmem:[%s1 + $0x34] sm:$0xf]
  %v36 = vld [vmem:[%s1 + $0x38] sm:$0xf]
  %v37 = vld [vmem:[%s1 + $0x3c] sm:$0xf]
  %v38 = vld [vmem:[%s1 + $0x40] sm:$0xf]
  %v39 = vld [vmem:[%s1 + $0x44] sm:$0xf]
  %v40 = vld [vmem:[%s1 + $0x48] sm:$0xf]
  %v41 = vld [vmem:[%s1 + $0x4c] sm:$0xf]
  %v42 = vld [vmem:[%s1 + $0x50] sm:$0xf]
  %v43 = vld [vmem:[%s1 + $0x54] sm:$0xf]
  %v44 = vld [vmem:[%s1 + $0x58] sm:$0xf]
  %v45 = vld [vmem:[%s1 + $0x5c] sm:$0xf]
  %v46 = vld [vmem:[%s1 + $0x60] sm:$0xf]
  %v47 = vld [vmem:[%s1 + $0x64] sm:$0xf]
  %v48 = vld [vmem:[%s1 + $0x68] sm:$0xf]
  %v49 = vld [vmem:[%s1 + $0x6c] sm:$0xf]
  %v50 = vld [vmem:[%s1 + $0x70] sm:$0xf]
  %v51 = vld [vmem:[%s1 + $0x74] sm:$0xf]
  %v52 = vld [vmem:[%s1 + $0x78] sm:$0xf]
  %v53 = vld [vmem:[%s1 + $0x7c] sm:$0xf]
  %v54 = vld [vmem:[%s1 + $0x80] sm:$0xf]
  %v55 = vld [vmem:[%s1 + $0x84] sm:$0xf]
  %v56 = vld [vmem:[%s1 + $0x88] sm:$0xf]
  %v57 = vld [vmem:[%s1 + $0x8c] sm:$0xf]
  %v58 = vld [vmem:[%s1 + $0x90] sm:$0xf]
  %v59 = vld [vmem:[%s1 + $0x94] sm:$0xf]
  %v60 = vld [vmem:[%s1 + $0x98] sm:$0xf]
  %v61 = vld [vmem:[%s1 + $0x9c] sm:$0xf]
  %v62 = vld [vmem:[%s1 + $0xa0] sm:$0xf]
  %v63 = vld [vmem:[%s1 + $0xa4] sm:$0xf]
  %v64 = vld [vmem:[%s1 + $0xa8] sm:$0xf]
  %v65 = vld [vmem:[%s1 + $0xac] sm:$0xf]
  %v66 = vld [vmem:[%s1 + $0xb0] sm:$0xf]
  %v67 = vld [vmem:[%s1 + $0xb4] sm:$0xf]
  %v68 = vld [vmem:[%s1 + $0xb8] sm:$0xf]
  %v69 = vld [vmem:[%s1 + $0xbc] sm:$0xf]
  %v70 = vld [vmem:[%s1 + $0xc0] sm:$0xf]
  %v71 = vld [vmem:[%s1 + $0xc4] sm:$0xf]
  %v72 = vld [vmem:[%s1 + $0xc8] sm:$0xf]
  %v73 = vld [vmem:[%s1 + $0xcc] sm:$0xf]
  %v74 = vld [vmem:[%s1 + $0xd0] sm:$0xf]
  %v75 = vld [vmem:[%s1 + $0xd4] sm:$0xf]
  %v76 = vld [vmem:[%s1 + $0xd8] sm:$0xf]
  %v77 = vld [vmem:[%s1 + $0xdc] sm:$0xf]
  %v78 = vld [vmem:[%s1 + $0xe0] sm:$0xf]
  %v79 = vld [vmem:[%s1 + $0xe4] sm:$0xf]
  %v80 = vld [vmem:[%s1 + $0xe8] sm:$0xf]
  %v81 = vld [vmem:[%s1 + $0xec] sm:$0xf]
  %v82 = vld [vmem:[%s1 + $0xf0] sm:$0xf]
  %v83 = vld [vmem:[%s1 + $0xf4] sm:$0xf]
  %v84 = vld [vmem:[%s1 + $0xf8] sm:$0xf]
  %v85 = vld [vmem:[%s1 + $0xfc] sm:$0xf]
  %v90 = vunpack.c.l.b16 %v18
  %v91 = vunpack.c.h.b16 %v18
  %v92 = vunpack.c.l.b16 %v19
  %v93 = vunpack.c.h.b16 %v19
  %v94 = vunpack.c.l.b16 %v20
  %v95 = vunpack.c.h.b16 %v20
  %v96 = vunpack.c.l.b16 %v21
  %v97 = vunpack.c.h.b16 %v21
  %v98 = vpack.c.b16 %v94, %v90
  %v99 = vpack.c.b16 %v95, %v91
  %v100 = vpack.c.b16 %v96, %v92
  %v101 = vpack.c.b16 %v97, %v93
  %v170 = vunpack.c.l.b16 %v22
  %v171 = vunpack.c.l.b16 %v23
  %v172 = vunpack.c.l.b16 %v24
  %v173 = vunpack.c.l.b16 %v25
  %v174 = vunpack.c.l.b16 %v26
  %v175 = vunpack.c.l.b16 %v27
  %v176 = vunpack.c.l.b16 %v28
  %v177 = vunpack.c.l.b16 %v29
  %v178 = vunpack.c.l.b16 %v30
  %v179 = vunpack.c.l.b16 %v31
  %v180 = vunpack.c.l.b16 %v32
  %v181 = vunpack.c.l.b16 %v33
  %v182 = vunpack.c.l.b16 %v34
  %v183 = vunpack.c.l.b16 %v35
  %v184 = vunpack.c.l.b16 %v36
  %v185 = vunpack.c.l.b16 %v37
  %v186 = vunpack.c.l.b16 %v38
  %v187 = vunpack.c.l.b16 %v39
  %v188 = vunpack.c.l.b16 %v40
  %v189 = vunpack.c.l.b16 %v41
  %v190 = vunpack.c.l.b16 %v42
  %v191 = vunpack.c.l.b16 %v43
  %v192 = vunpack.c.l.b16 %v44
  %v193 = vunpack.c.l.b16 %v45
  %v194 = vunpack.c.l.b16 %v46
  %v195 = vunpack.c.l.b16 %v47
  %v196 = vunpack.c.l.b16 %v48
  %v197 = vunpack.c.l.b16 %v49
  %v198 = vunpack.c.l.b16 %v50
  %v199 = vunpack.c.l.b16 %v51
  %v200 = vunpack.c.l.b16 %v52
  %v201 = vunpack.c.l.b16 %v53
  %v202 = vunpack.c.l.b16 %v54
  %v203 = vunpack.c.l.b16 %v55
  %v204 = vunpack.c.l.b16 %v56
  %v205 = vunpack.c.l.b16 %v57
  %v206 = vunpack.c.l.b16 %v58
  %v207 = vunpack.c.l.b16 %v59
  %v208 = vunpack.c.l.b16 %v60
  %v209 = vunpack.c.l.b16 %v61
  %v210 = vunpack.c.l.b16 %v62
  %v211 = vunpack.c.l.b16 %v63
  %v212 = vunpack.c.l.b16 %v64
  %v213 = vunpack.c.l.b16 %v65
  %v214 = vunpack.c.l.b16 %v66
  %v215 = vunpack.c.l.b16 %v67
  %v216 = vunpack.c.l.b16 %v68
  %v217 = vunpack.c.l.b16 %v69
  %v218 = vunpack.c.l.b16 %v70
  %v219 = vunpack.c.l.b16 %v71
  %v220 = vunpack.c.l.b16 %v72
  %v221 = vunpack.c.l.b16 %v73
  %v222 = vunpack.c.l.b16 %v74
  %v223 = vunpack.c.l.b16 %v75
  %v224 = vunpack.c.l.b16 %v76
  %v225 = vunpack.c.l.b16 %v77
  %v226 = vunpack.c.l.b16 %v78
  %v227 = vunpack.c.l.b16 %v79
  %v228 = vunpack.c.l.b16 %v80
  %v229 = vunpack.c.l.b16 %v81
  %v230 = vunpack.c.l.b16 %v82
  %v231 = vunpack.c.l.b16 %v83
  %v232 = vunpack.c.l.b16 %v84
  %v233 = vunpack.c.l.b16 %v85
  %v234 = vpack.c.b16 %v171, %v170
  %v235 = vpack.c.b16 %v173, %v172
  %v236 = vpack.c.b16 %v175, %v174
  %v237 = vpack.c.b16 %v177, %v176
  %v238 = vpack.c.b16 %v179, %v178
  %v239 = vpack.c.b16 %v181, %v180
  %v240 = vpack.c.b16 %v183, %v182
  %v241 = vpack.c.b16 %v185, %v184
  %v242 = vpack.c.b16 %v187, %v186
  %v243 = vpack.c.b16 %v189, %v188
  %v244 = vpack.c.b16 %v191, %v190
  %v245 = vpack.c.b16 %v193, %v192
  %v246 = vpack.c.b16 %v195, %v194
  %v247 = vpack.c.b16 %v197, %v196
  %v248 = vpack.c.b16 %v199, %v198
  %v249 = vpack.c.b16 %v201, %v200
  %v250 = vpack.c.b16 %v203, %v202
  %v251 = vpack.c.b16 %v205, %v204
  %v252 = vpack.c.b16 %v207, %v206
  %v253 = vpack.c.b16 %v209, %v208
  %v254 = vpack.c.b16 %v211, %v210
  %v255 = vpack.c.b16 %v213, %v212
  %v256 = vpack.c.b16 %v215, %v214
  %v257 = vpack.c.b16 %v217, %v216
  %v258 = vpack.c.b16 %v219, %v218
  %v259 = vpack.c.b16 %v221, %v220
  %v260 = vpack.c.b16 %v223, %v222
  %v261 = vpack.c.b16 %v225, %v224
  %v262 = vpack.c.b16 %v227, %v226
  %v263 = vpack.c.b16 %v229, %v228
  %v264 = vpack.c.b16 %v231, %v230
  %v265 = vpack.c.b16 %v233, %v232
  %298 = vmatprep.subr.bf16.mxu0 0
  %299 = vmatpush1.bf16.msra.mxu0 %v234
  %300 = vmatprep.subr.bf16.mxu0 0
  %301 = vmatpush1.bf16.msra.mxu0 %v235
  %302 = vmatprep.subr.bf16.mxu0 0
  %303 = vmatpush1.bf16.msra.mxu0 %v236
  %304 = vmatprep.subr.bf16.mxu0 0
  %305 = vmatpush1.bf16.msra.mxu0 %v237
  %306 = vmatprep.subr.bf16.mxu0 0
  %307 = vmatpush1.bf16.msra.mxu0 %v238
  %308 = vmatprep.subr.bf16.mxu0 0
  %309 = vmatpush1.bf16.msra.mxu0 %v239
  %310 = vmatprep.subr.bf16.mxu0 0
  %311 = vmatpush1.bf16.msra.mxu0 %v240
  %312 = vmatprep.subr.bf16.mxu0 0
  %313 = vmatpush1.bf16.msra.mxu0 %v241
  %314 = vmatprep.subr.bf16.mxu0 0
  %315 = vmatpush1.bf16.msra.mxu0 %v242
  %316 = vmatprep.subr.bf16.mxu0 0
  %317 = vmatpush1.bf16.msra.mxu0 %v243
  %318 = vmatprep.subr.bf16.mxu0 0
  %319 = vmatpush1.bf16.msra.mxu0 %v244
  %320 = vmatprep.subr.bf16.mxu0 0
  %321 = vmatpush1.bf16.msra.mxu0 %v245
  %322 = vmatprep.subr.bf16.mxu0 0
  %323 = vmatpush1.bf16.msra.mxu0 %v246
  %324 = vmatprep.subr.bf16.mxu0 0
  %325 = vmatpush1.bf16.msra.mxu0 %v247
  %326 = vmatprep.subr.bf16.mxu0 0
  %327 = vmatpush1.bf16.msra.mxu0 %v248
  %328 = vmatprep.subr.bf16.mxu0 0
  %329 = vmatpush1.bf16.msra.mxu0 %v249
  %330 = vmatprep.mubr.bf16.mxu0 %v99
  %331 = vmatmul.mubr.bf16.gmra.mrb[0].mxu0 %v98
  %v332 = vpop.f32.mrb[0].mxu0
  %v333 = vadd.f32 0.0, %v332
  %v334 = vpop.f32.mrb[0].mxu0
  %v335 = vpop.f32.mrb[0].mxu0
  %v336 = vadd.f32 0.0, %v335
  %v337 = vpop.f32.mrb[0].mxu0
  %338 = vdwg.mxu0
  %339 = vmatprep.subr.bf16.mxu0 0
  %340 = vmatpush1.bf16.msra.mxu0 %v250
  %341 = vmatprep.subr.bf16.mxu0 0
  %342 = vmatpush1.bf16.msra.mxu0 %v251
  %343 = vmatprep.subr.bf16.mxu0 0
  %344 = vmatpush1.bf16.msra.mxu0 %v252
  %345 = vmatprep.subr.bf16.mxu0 0
  %346 = vmatpush1.bf16.msra.mxu0 %v253
  %347 = vmatprep.subr.bf16.mxu0 0
  %348 = vmatpush1.bf16.msra.mxu0 %v254
  %349 = vmatprep.subr.bf16.mxu0 0
  %350 = vmatpush1.bf16.msra.mxu0 %v255
  %351 = vmatprep.subr.bf16.mxu0 0
  %352 = vmatpush1.bf16.msra.mxu0 %v256
  %353 = vmatprep.subr.bf16.mxu0 0
  %354 = vmatpush1.bf16.msra.mxu0 %v257
  %355 = vmatprep.subr.bf16.mxu0 0
  %356 = vmatpush1.bf16.msra.mxu0 %v258
  %357 = vmatprep.subr.bf16.mxu0 0
  %358 = vmatpush1.bf16.msra.mxu0 %v259
  %359 = vmatprep.subr.bf16.mxu0 0
  %360 = vmatpush1.bf16.msra.mxu0 %v260
  %361 = vmatprep.subr.bf16.mxu0 0
  %362 = vmatpush1.bf16.msra.mxu0 %v261
  %363 = vmatprep.subr.bf16.mxu0 0
  %364 = vmatpush1.bf16.msra.mxu0 %v262
  %365 = vmatprep.subr.bf16.mxu0 0
  %366 = vmatpush1.bf16.msra.mxu0 %v263
  %367 = vmatprep.subr.bf16.mxu0 0
  %368 = vmatpush1.bf16.msra.mxu0 %v264
  %369 = vmatprep.subr.bf16.mxu0 0
  %370 = vmatpush1.bf16.msra.mxu0 %v265
  %371 = vmatprep.mubr.bf16.mxu0 %v101
  %372 = vmatmul.mubr.bf16.gmra.mrb[0].mxu0 %v100
  %v373 = vpop.f32.mrb[0].mxu0
  %v374 = vadd.f32 %v333, %v373
  %v375 = vpop.f32.mrb[0].mxu0
  %v376 = vpop.f32.mrb[0].mxu0
  %v377 = vadd.f32 %v336, %v376
  %v378 = vpop.f32.mrb[0].mxu0
  %379 = vdwg.mxu0
  %v380 = vld [vmem:[%s2] sm:$0x1]
  %v382 = vlaneseq
  %v383 = vshrl.u32 %v382, 7
  %v384 = vsub.s32 0, %v383
  %v385 = vrot.slane %v380, %v384
  %v387 = vmul.f32 %v374, %v385
  %v388 = vmul.f32 %v377, %v385
  %v389 = vld [vmem:[%s3] sm:$0x1]
  %v391 = vlaneseq
  %v392 = vshrl.u32 %v391, 7
  %v393 = vsub.s32 0, %v392
  %v394 = vrot.slane %v389, %v393
  %v396 = vadd.f32 %v387, %v394
  %v397 = vadd.f32 %v388, %v394
  %v398 = vmax.f32 %v396, 0.0
  %v399 = vmax.f32 %v397, 0.0
  %v400 = vpack.c.bf16 %v399, %v398
  %v402 = vunpack.c.l.b16 %v400
  %v403 = vunpack.c.h.b16 %v400
  %v404 = vpack.c.b16 %v402, %v402
  %v405 = vpack.c.b16 %v403, %v403
  %408 = vst [vmem:[%s4] sm:$0xf] %v404
  %409 = vst [vmem:[%s4 + $0x4] sm:$0xf] %v405
  // Predicated region
  $region18: #{dense_grasp_forward.42} parent=0 // pred_check
    _
  $region19: #{dense_grasp_forward.42} parent=0 // pred_check_branch
    %411 = sbr.rel (0) target = $region21
  $region20: #{dense_grasp_forward.42} parent=0 // pred_region
    _
  $region21: #{dense_grasp_forward.42} parent=0 // pred_fallthru
    _
  // Predicated region
  $region22: #{dense_grasp_forward.42} parent=0 // pred_check
    _
  $region23: #{dense_grasp_forward.42} parent=0 // pred_check_branch
    %413 = sbr.rel (0) target = $region25
  $region24: #{dense_grasp_forward.42} parent=0 // pred_region
    _
  $region25: #{dense_grasp_forward.42} parent=0 // pred_fallthru
    _

// kernel: dense_grasp_forward.41
$region0: #{dense_grasp_forward.41}
  #allocation0 [shape = 'u32[]', space=smem, size = 0x4, offset = 0x4, fixed_abs, tag = 'smem constant byte address 0x4 - core index']
  #allocation1 [shape = 'u32[144,128]{1,0:T(1,128)}', space=vmem, size = 0x12000, scoped, tag = 'internal scratch']
  %s0 = inlined_call_operand.vmem [shape: bf16[16,640], index: 0, kind: input, shape index: {}]
  %s1 = inlined_call_operand.vmem [shape: bf16[640,128], index: 1, kind: input, shape index: {}]
  %s2 = inlined_call_operand.vmem [shape: f32[1,128], index: 2, kind: input, shape index: {}]
  %s3 = inlined_call_operand.vmem [shape: f32[1,128], index: 3, kind: input, shape index: {}]
  %s4 = inlined_call_operand.vmem [shape: bf16[16,128], index: 4, kind: output, shape index: {}]
  %s5 = sld [smem:[#allocation0]]
  $region26: #{dense_grasp_forward.41} parent=0
    _
  %s7 = ssub.s32 1, %s5
  %s8 = scalar_select 0, %s7, %s5
  // Predicated region
  $region2: #{dense_grasp_forward.41} parent=0 // pred_check
    _
  $region3: #{dense_grasp_forward.41} parent=0 // pred_check_branch
    %10 = sbr.rel (0) target = $region5
  $region4: #{dense_grasp_forward.41} parent=0 // pred_region
    _
  $region5: #{dense_grasp_forward.41} parent=0 // pred_fallthru
    _
  // Predicated region
  $region6: #{dense_grasp_forward.41} parent=0 // pred_check
    _
  $region7: #{dense_grasp_forward.41} parent=0 // pred_check_branch
    %12 = sbr.rel (0) target = $region9
  $region8: #{dense_grasp_forward.41} parent=0 // pred_region
    _
  $region9: #{dense_grasp_forward.41} parent=0 // pred_fallthru
    _
  // Predicated region
  $region10: #{dense_grasp_forward.41} parent=0 // pred_check
    _
  $region11: #{dense_grasp_forward.41} parent=0 // pred_check_branch
    %14 = sbr.rel (0) target = $region13
  $region12: #{dense_grasp_forward.41} parent=0 // pred_region
    _
  $region13: #{dense_grasp_forward.41} parent=0 // pred_fallthru
    _
  // Predicated region
  $region14: #{dense_grasp_forward.41} parent=0 // pred_check
    _
  $region15: #{dense_grasp_forward.41} parent=0 // pred_check_branch
    %16 = sbr.rel (0) target = $region17
  $region16: #{dense_grasp_forward.41} parent=0 // pred_region
    _
  $region17: #{dense_grasp_forward.41} parent=0 // pred_fallthru
    _
  %v18 = vld [vmem:[%s0] sm:$0xff]
  %v19 = vld [vmem:[%s0 + $0x8] sm:$0xff]
  %v20 = vld [vmem:[%s0 + $0x10] sm:$0xf]
  %v21 = vld [vmem:[%s0 + $0x14] sm:$0xff]
  %v22 = vld [vmem:[%s0 + $0x1c] sm:$0xff]
  %v23 = vld [vmem:[%s0 + $0x24] sm:$0xf]
  %v24 = vld [vmem:[%s1] sm:$0xf]
  %v25 = vld [vmem:[%s1 + $0x4] sm:$0xf]
  %v26 = vld [vmem:[%s1 + $0x8] sm:$0xf]
  %v27 = vld [vmem:[%s1 + $0xc] sm:$0xf]
  %v28 = vld [vmem:[%s1 + $0x10] sm:$0xf]
  %v29 = vld [vmem:[%s1 + $0x14] sm:$0xf]
  %v30 = vld [vmem:[%s1 + $0x18] sm:$0xf]
  %v31 = vld [vmem:[%s1 + $0x1c] sm:$0xf]
  %v32 = vld [vmem:[%s1 + $0x20] sm:$0xf]
  %v33 = vld [vmem:[%s1 + $0x24] sm:$0xf]
  %v34 = vld [vmem:[%s1 + $0x28] sm:$0xf]
  %v35 = vld [vmem:[%s1 + $0x2c] sm:$0xf]
  %v36 = vld [vmem:[%s1 + $0x30] sm:$0xf]
  %v37 = vld [vmem:[%s1 + $0x34] sm:$0xf]
  %v38 = vld [vmem:[%s1 + $0x38] sm:$0xf]
  %v39 = vld [vmem:[%s1 + $0x3c] sm:$0xf]
  %v40 = vld [vmem:[%s1 + $0x40] sm:$0xf]
  %v41 = vld [vmem:[%s1 + $0x44] sm:$0xf]
  %v42 = vld [vmem:[%s1 + $0x48] sm:$0xf]
  %v43 = vld [vmem:[%s1 + $0x4c] sm:$0xf]
  %v44 = vld [vmem:[%s1 + $0x50] sm:$0xf]
  %v45 = vld [vmem:[%s1 + $0x54] sm:$0xf]
  %v46 = vld [vmem:[%s1 + $0x58] sm:$0xf]
  %v47 = vld [vmem:[%s1 + $0x5c] sm:$0xf]
  %v48 = vld [vmem:[%s1 + $0x60] sm:$0xf]
  %v49 = vld [vmem:[%s1 + $0x64] sm:$0xf]
  %v50 = vld [vmem:[%s1 + $0x68] sm:$0xf]
  %v51 = vld [vmem:[%s1 + $0x6c] sm:$0xf]
  %v52 = vld [vmem:[%s1 + $0x70] sm:$0xf]
  %v53 = vld [vmem:[%s1 + $0x74] sm:$0xf]
  %v54 = vld [vmem:[%s1 + $0x78] sm:$0xf]
  %v55 = vld [vmem:[%s1 + $0x7c] sm:$0xf]
  %v56 = vld [vmem:[%s1 + $0x80] sm:$0xf]
  %v57 = vld [vmem:[%s1 + $0x84] sm:$0xf]
  %v58 = vld [vmem:[%s1 + $0x88] sm:$0xf]
  %v59 = vld [vmem:[%s1 + $0x8c] sm:$0xf]
  %v60 = vld [vmem:[%s1 + $0x90] sm:$0xf]
  %v61 = vld [vmem:[%s1 + $0x94] sm:$0xf]
  %v62 = vld [vmem:[%s1 + $0x98] sm:$0xf]
  %v63 = vld [vmem:[%s1 + $0x9c] sm:$0xf]
  %v64 = vld [vmem:[%s1 + $0xa0] sm:$0xf]
  %v65 = vld [vmem:[%s1 + $0xa4] sm:$0xf]
  %v66 = vld [vmem:[%s1 + $0xa8] sm:$0xf]
  %v67 = vld [vmem:[%s1 + $0xac] sm:$0xf]
  %v68 = vld [vmem:[%s1 + $0xb0] sm:$0xf]
  %v69 = vld [vmem:[%s1 + $0xb4] sm:$0xf]
  %v70 = vld [vmem:[%s1 + $0xb8] sm:$0xf]
  %v71 = vld [vmem:[%s1 + $0xbc] sm:$0xf]
  %v72 = vld [vmem:[%s1 + $0xc0] sm:$0xf]
  %v73 = vld [vmem:[%s1 + $0xc4] sm:$0xf]
  %v74 = vld [vmem:[%s1 + $0xc8] sm:$0xf]
  %v75 = vld [vmem:[%s1 + $0xcc] sm:$0xf]
  %v76 = vld [vmem:[%s1 + $0xd0] sm:$0xf]
  %v77 = vld [vmem:[%s1 + $0xd4] sm:$0xf]
  %v78 = vld [vmem:[%s1 + $0xd8] sm:$0xf]
  %v79 = vld [vmem:[%s1 + $0xdc] sm:$0xf]
  %v80 = vld [vmem:[%s1 + $0xe0] sm:$0xf]
  %v81 = vld [vmem:[%s1 + $0xe4] sm:$0xf]
  %v82 = vld [vmem:[%s1 + $0xe8] sm:$0xf]
  %v83 = vld [vmem:[%s1 + $0xec] sm:$0xf]
  %v84 = vld [vmem:[%s1 + $0xf0] sm:$0xf]
  %v85 = vld [vmem:[%s1 + $0xf4] sm:$0xf]
  %v86 = vld [vmem:[%s1 + $0xf8] sm:$0xf]
  %v87 = vld [vmem:[%s1 + $0xfc] sm:$0xf]
  %v88 = vld [vmem:[%s1 + $0x100] sm:$0xf]
  %v89 = vld [vmem:[%s1 + $0x104] sm:$0xf]
  %v90 = vld [vmem:[%s1 + $0x108] sm:$0xf]
  %v91 = vld [vmem:[%s1 + $0x10c] sm:$0xf]
  %v92 = vld [vmem:[%s1 + $0x110] sm:$0xf]
  %v93 = vld [vmem:[%s1 + $0x114] sm:$0xf]
  %v94 = vld [vmem:[%s1 + $0x118] sm:$0xf]
  %v95 = vld [vmem:[%s1 + $0x11c] sm:$0xf]
  %v96 = vld [vmem:[%s1 + $0x120] sm:$0xf]
  %v97 = vld [vmem:[%s1 + $0x124] sm:$0xf]
  %v98 = vld [vmem:[%s1 + $0x128] sm:$0xf]
  %v99 = vld [vmem:[%s1 + $0x12c] sm:$0xf]
  %v100 = vld [vmem:[%s1 + $0x130] sm:$0xf]
  %v101 = vld [vmem:[%s1 + $0x134] sm:$0xf]
  %v102 = vld [vmem:[%s1 + $0x138] sm:$0xf]
  %v103 = vld [vmem:[%s1 + $0x13c] sm:$0xf]
  %v110 = vunpack.c.l.b16 %v18
  %v111 = vunpack.c.h.b16 %v18
  %v112 = vunpack.c.l.b16 %v19
  %v113 = vunpack.c.h.b16 %v19
  %v114 = vunpack.c.l.b16 %v20
  %v115 = vunpack.c.l.b16 %v21
  %v116 = vunpack.c.h.b16 %v21
  %v117 = vunpack.c.l.b16 %v22
  %v118 = vunpack.c.h.b16 %v22
  %v119 = vunpack.c.l.b16 %v23
  %v120 = vpack.c.b16 %v115, %v110
  %v121 = vpack.c.b16 %v116, %v111
  %v122 = vpack.c.b16 %v117, %v112
  %v123 = vpack.c.b16 %v118, %v113
  %v124 = vpack.c.b16 %v119, %v114
  %v210 = vunpack.c.l.b16 %v24
  %v211 = vunpack.c.l.b16 %v25
  %v212 = vunpack.c.l.b16 %v26
  %v213 = vunpack.c.l.b16 %v27
  %v214 = vunpack.c.l.b16 %v28
  %v215 = vunpack.c.l.b16 %v29
  %v216 = vunpack.c.l.b16 %v30
  %v217 = vunpack.c.l.b16 %v31
  %v218 = vunpack.c.l.b16 %v32
  %v219 = vunpack.c.l.b16 %v33
  %v220 = vunpack.c.l.b16 %v34
  %v221 = vunpack.c.l.b16 %v35
  %v222 = vunpack.c.l.b16 %v36
  %v223 = vunpack.c.l.b16 %v37
  %v224 = vunpack.c.l.b16 %v38
  %v225 = vunpack.c.l.b16 %v39
  %v226 = vunpack.c.l.b16 %v40
  %v227 = vunpack.c.l.b16 %v41
  %v228 = vunpack.c.l.b16 %v42
  %v229 = vunpack.c.l.b16 %v43
  %v230 = vunpack.c.l.b16 %v44
  %v231 = vunpack.c.l.b16 %v45
  %v232 = vunpack.c.l.b16 %v46
  %v233 = vunpack.c.l.b16 %v47
  %v234 = vunpack.c.l.b16 %v48
  %v235 = vunpack.c.l.b16 %v49
  %v236 = vunpack.c.l.b16 %v50
  %v237 = vunpack.c.l.b16 %v51
  %v238 = vunpack.c.l.b16 %v52
  %v239 = vunpack.c.l.b16 %v53
  %v240 = vunpack.c.l.b16 %v54
  %v241 = vunpack.c.l.b16 %v55
  %v242 = vunpack.c.l.b16 %v56
  %v243 = vunpack.c.l.b16 %v57
  %v244 = vunpack.c.l.b16 %v58
  %v245 = vunpack.c.l.b16 %v59
  %v246 = vunpack.c.l.b16 %v60
  %v247 = vunpack.c.l.b16 %v61
  %v248 = vunpack.c.l.b16 %v62
  %v249 = vunpack.c.l.b16 %v63
  %v250 = vunpack.c.l.b16 %v64
  %v251 = vunpack.c.l.b16 %v65
  %v252 = vunpack.c.l.b16 %v66
  %v253 = vunpack.c.l.b16 %v67
  %v254 = vunpack.c.l.b16 %v68
  %v255 = vunpack.c.l.b16 %v69
  %v256 = vunpack.c.l.b16 %v70
  %v257 = vunpack.c.l.b16 %v71
  %v258 = vunpack.c.l.b16 %v72
  %v259 = vunpack.c.l.b16 %v73
  %v260 = vunpack.c.l.b16 %v74
  %v261 = vunpack.c.l.b16 %v75
  %v262 = vunpack.c.l.b16 %v76
  %v263 = vunpack.c.l.b16 %v77
  %v264 = vunpack.c.l.b16 %v78
  %v265 = vunpack.c.l.b16 %v79
  %v266 = vunpack.c.l.b16 %v80
  %v267 = vunpack.c.l.b16 %v81
  %v268 = vunpack.c.l.b16 %v82
  %v269 = vunpack.c.l.b16 %v83
  %v270 = vunpack.c.l.b16 %v84
  %v271 = vunpack.c.l.b16 %v85
  %v272 = vunpack.c.l.b16 %v86
  %v273 = vunpack.c.l.b16 %v87
  %v274 = vunpack.c.l.b16 %v88
  %v275 = vunpack.c.l.b16 %v89
  %v276 = vunpack.c.l.b16 %v90
  %v277 = vunpack.c.l.b16 %v91
  %v278 = vunpack.c.l.b16 %v92
  %v279 = vunpack.c.l.b16 %v93
  %v280 = vunpack.c.l.b16 %v94
  %v281 = vunpack.c.l.b16 %v95
  %v282 = vunpack.c.l.b16 %v96
  %v283 = vunpack.c.l.b16 %v97
  %v284 = vunpack.c.l.b16 %v98
  %v285 = vunpack.c.l.b16 %v99
  %v286 = vunpack.c.l.b16 %v100
  %v287 = vunpack.c.l.b16 %v101
  %v288 = vunpack.c.l.b16 %v102
  %v289 = vunpack.c.l.b16 %v103
  %v290 = vpack.c.b16 %v211, %v210
  %v291 = vpack.c.b16 %v213, %v212
  %v292 = vpack.c.b16 %v215, %v214
  %v293 = vpack.c.b16 %v217, %v216
  %v294 = vpack.c.b16 %v219, %v218
  %v295 = vpack.c.b16 %v221, %v220
  %v296 = vpack.c.b16 %v223, %v222
  %v297 = vpack.c.b16 %v225, %v224
  %v298 = vpack.c.b16 %v227, %v226
  %v299 = vpack.c.b16 %v229, %v228
  %v300 = vpack.c.b16 %v231, %v230
  %v301 = vpack.c.b16 %v233, %v232
  %v302 = vpack.c.b16 %v235, %v234
  %v303 = vpack.c.b16 %v237, %v236
  %v304 = vpack.c.b16 %v239, %v238
  %v305 = vpack.c.b16 %v241, %v240
  %v306 = vpack.c.b16 %v243, %v242
  %v307 = vpack.c.b16 %v245, %v244
  %v308 = vpack.c.b16 %v247, %v246
  %v309 = vpack.c.b16 %v249, %v248
  %v310 = vpack.c.b16 %v251, %v250
  %v311 = vpack.c.b16 %v253, %v252
  %v312 = vpack.c.b16 %v255, %v254
  %v313 = vpack.c.b16 %v257, %v256
  %v314 = vpack.c.b16 %v259, %v258
  %v315 = vpack.c.b16 %v261, %v260
  %v316 = vpack.c.b16 %v263, %v262
  %v317 = vpack.c.b16 %v265, %v264
  %v318 = vpack.c.b16 %v267, %v266
  %v319 = vpack.c.b16 %v269, %v268
  %v320 = vpack.c.b16 %v271, %v270
  %v321 = vpack.c.b16 %v273, %v272
  %v322 = vpack.c.b16 %v275, %v274
  %v323 = vpack.c.b16 %v277, %v276
  %v324 = vpack.c.b16 %v279, %v278
  %v325 = vpack.c.b16 %v281, %v280
  %v326 = vpack.c.b16 %v283, %v282
  %v327 = vpack.c.b16 %v285, %v284
  %v328 = vpack.c.b16 %v287, %v286
  %v329 = vpack.c.b16 %v289, %v288
  %370 = vmatprep.subr.bf16.mxu0 0
  %371 = vmatpush1.bf16.msra.mxu0 %v290
  %372 = vmatprep.subr.bf16.mxu0 0
  %373 = vmatpush1.bf16.msra.mxu0 %v291
  %374 = vmatprep.subr.bf16.mxu0 0
  %375 = vmatpush1.bf16.msra.mxu0 %v292
  %376 = vmatprep.subr.bf16.mxu0 0
  %377 = vmatpush1.bf16.msra.mxu0 %v293
  %378 = vmatprep.subr.bf16.mxu0 0
  %379 = vmatpush1.bf16.msra.mxu0 %v294
  %380 = vmatprep.subr.bf16.mxu0 0
  %381 = vmatpush1.bf16.msra.mxu0 %v295
  %382 = vmatprep.subr.bf16.mxu0 0
  %383 = vmatpush1.bf16.msra.mxu0 %v296
  %384 = vmatprep.subr.bf16.mxu0 0
  %385 = vmatpush1.bf16.msra.mxu0 %v297
  %386 = vmatprep.subr.bf16.mxu0 0
  %387 = vmatpush1.bf16.msra.mxu0 %v298
  %388 = vmatprep.subr.bf16.mxu0 0
  %389 = vmatpush1.bf16.msra.mxu0 %v299
  %390 = vmatprep.subr.bf16.mxu0 0
  %391 = vmatpush1.bf16.msra.mxu0 %v300
  %392 = vmatprep.subr.bf16.mxu0 0
  %393 = vmatpush1.bf16.msra.mxu0 %v301
  %394 = vmatprep.subr.bf16.mxu0 0
  %395 = vmatpush1.bf16.msra.mxu0 %v302
  %396 = vmatprep.subr.bf16.mxu0 0
  %397 = vmatpush1.bf16.msra.mxu0 %v303
  %398 = vmatprep.subr.bf16.mxu0 0
  %399 = vmatpush1.bf16.msra.mxu0 %v304
  %400 = vmatprep.subr.bf16.mxu0 0
  %401 = vmatpush1.bf16.msra.mxu0 %v305
  %402 = vmatprep.mubr.bf16.mxu0 %v121
  %403 = vmatmul.mubr.bf16.gmra.mrb[0].mxu0 %v120
  %v404 = vpop.f32.mrb[0].mxu0
  %v405 = vadd.f32 0.0, %v404
  %v406 = vpop.f32.mrb[0].mxu0
  %v407 = vpop.f32.mrb[0].mxu0
  %v408 = vadd.f32 0.0, %v407
  %v409 = vpop.f32.mrb[0].mxu0
  %410 = vdwg.mxu0
  %411 = vmatprep.subr.bf16.mxu0 0
  %412 = vmatpush1.bf16.msra.mxu0 %v306
  %413 = vmatprep.subr.bf16.mxu0 0
  %414 = vmatpush1.bf16.msra.mxu0 %v307
  %415 = vmatprep.subr.bf16.mxu0 0
  %416 = vmatpush1.bf16.msra.mxu0 %v308
  %417 = vmatprep.subr.bf16.mxu0 0
  %418 = vmatpush1.bf16.msra.mxu0 %v309
  %419 = vmatprep.subr.bf16.mxu0 0
  %420 = vmatpush1.bf16.msra.mxu0 %v310
  %421 = vmatprep.subr.bf16.mxu0 0
  %422 = vmatpush1.bf16.msra.mxu0 %v311
  %423 = vmatprep.subr.bf16.mxu0 0
  %424 = vmatpush1.bf16.msra.mxu0 %v312
  %425 = vmatprep.subr.bf16.mxu0 0
  %426 = vmatpush1.bf16.msra.mxu0 %v313
  %427 = vmatprep.subr.bf16.mxu0 0
  %428 = vmatpush1.bf16.msra.mxu0 %v314
  %429 = vmatprep.subr.bf16.mxu0 0
  %430 = vmatpush1.bf16.msra.mxu0 %v315
  %431 = vmatprep.subr.bf16.mxu0 0
  %432 = vmatpush1.bf16.msra.mxu0 %v316
  %433 = vmatprep.subr.bf16.mxu0 0
  %434 = vmatpush1.bf16.msra.mxu0 %v317
  %435 = vmatprep.subr.bf16.mxu0 0
  %436 = vmatpush1.bf16.msra.mxu0 %v318
  %437 = vmatprep.subr.bf16.mxu0 0
  %438 = vmatpush1.bf16.msra.mxu0 %v319
  %439 = vmatprep.subr.bf16.mxu0 0
  %440 = vmatpush1.bf16.msra.mxu0 %v320
  %441 = vmatprep.subr.bf16.mxu0 0
  %442 = vmatpush1.bf16.msra.mxu0 %v321
  %443 = vmatprep.mubr.bf16.mxu0 %v123
  %444 = vmatmul.mubr.bf16.gmra.mrb[0].mxu0 %v122
  %v445 = vpop.f32.mrb[0].mxu0
  %v446 = vadd.f32 %v405, %v445
  %v447 = vpop.f32.mrb[0].mxu0
  %v448 = vpop.f32.mrb[0].mxu0
  %v449 = vadd.f32 %v408, %v448
  %v450 = vpop.f32.mrb[0].mxu0
  %451 = vdwg.mxu0
  %452 = vmatprep.subr.bf16.mxu0 0
  %453 = vmatpush1.bf16.msra.mxu0 %v322
  %454 = vmatprep.subr.bf16.mxu0 0
  %455 = vmatpush1.bf16.msra.mxu0 %v323
  %456 = vmatprep.subr.bf16.mxu0 0
  %457 = vmatpush1.bf16.msra.mxu0 %v324
  %458 = vmatprep.subr.bf16.mxu0 0
  %459 = vmatpush1.bf16.msra.mxu0 %v325
  %460 = vmatprep.subr.bf16.mxu0 0
  %461 = vmatpush1.bf16.msra.mxu0 %v326
  %462 = vmatprep.subr.bf16.mxu0 0
  %463 = vmatpush1.bf16.msra.mxu0 %v327
  %464 = vmatprep.subr.bf16.mxu0 0
  %465 = vmatpush1.bf16.msra.mxu0 %v328
  %466 = vmatprep.subr.bf16.mxu0 0
  %467 = vmatpush1.bf16.msra.mxu0 %v329
  %468 = vmatprep.subr.bf16.mxu0 0
  %469 = vmatpush1.bf16.msra.mxu0 0
  %470 = vmatprep.subr.bf16.mxu0 0
  %471 = vmatpush1.bf16.msra.mxu0 0
  %472 = vmatprep.subr.bf16.mxu0 0
  %473 = vmatpush1.bf16.msra.mxu0 0
  %474 = vmatprep.subr.bf16.mxu0 0
  %475 = vmatpush1.bf16.msra.mxu0 0
  %476 = vmatprep.subr.bf16.mxu0 0
  %477 = vmatpush1.bf16.msra.mxu0 0
  %478 = vmatprep.subr.bf16.mxu0 0
  %479 = vmatpush1.bf16.msra.mxu0 0
  %480 = vmatprep.subr.bf16.mxu0 0
  %481 = vmatpush1.bf16.msra.mxu0 0
  %482 = vmatprep.subr.bf16.mxu0 0
  %483 = vmatpush1.bf16.msra.mxu0 0
  %484 = vmatprep.mubr.bf16.mxu0 0
  %485 = vmatmul.mubr.bf16.gmra.mrb[0].mxu0 %v124
  %v486 = vpop.f32.mrb[0].mxu0
  %v487 = vadd.f32 %v446, %v486
  %v488 = vpop.f32.mrb[0].mxu0
  %v489 = vpop.f32.mrb[0].mxu0
  %v490 = vadd.f32 %v449, %v489
  %v491 = vpop.f32.mrb[0].mxu0
  %492 = vdwg.mxu0
  %v493 = vld [vmem:[%s2] sm:$0x1]
  %v495 = vlaneseq
  %v496 = vshrl.u32 %v495, 7
  %v497 = vsub.s32 0, %v496
  %v498 = vrot.slane %v493, %v497
  %v500 = vmul.f32 %v487, %v498
  %v501 = vmul.f32 %v490, %v498
  %v502 = vld [vmem:[%s3] sm:$0x1]
  %v504 = vlaneseq
  %v505 = vshrl.u32 %v504, 7
  %v506 = vsub.s32 0, %v505
  %v507 = vrot.slane %v502, %v506
  %v509 = vadd.f32 %v500, %v507
  %v510 = vadd.f32 %v501, %v507
  %v511 = vmax.f32 %v509, 0.0
  %v512 = vmax.f32 %v510, 0.0
  %v513 = vpack.c.bf16 %v512, %v511
  %v515 = vunpack.c.l.b16 %v513
  %v516 = vunpack.c.h.b16 %v513
  %v517 = vpack.c.b16 %v515, %v515
  %v518 = vpack.c.b16 %v516, %v516
  %521 = vst [vmem:[%s4] sm:$0xf] %v517
  %522 = vst [vmem:[%s4 + $0x4] sm:$0xf] %v518
  // Predicated region
  $region18: #{dense_grasp_forward.41} parent=0 // pred_check
    _
  $region19: #{dense_grasp_forward.41} parent=0 // pred_check_branch
    %524 = sbr.rel (0) target = $region21
  $region20: #{dense_grasp_forward.41} parent=0 // pred_region
    _
  $region21: #{dense_grasp_forward.41} parent=0 // pred_fallthru
    _
  // Predicated region
  $region22: #{dense_grasp_forward.41} parent=0 // pred_check
    _
  $region23: #{dense_grasp_forward.41} parent=0 // pred_check_branch
    %526 = sbr.rel (0) target = $region25
  $region24: #{dense_grasp_forward.41} parent=0 // pred_region
    _
  $region25: #{dense_grasp_forward.41} parent=0 // pred_fallthru
    _

// kernel: dense_grasp_forward.43
$region0: #{dense_grasp_forward.43}
  #allocation0 [shape = 'u32[]', space=smem, size = 0x4, offset = 0x4, fixed_abs, tag = 'smem constant byte address 0x4 - core index']
  #allocation1 [shape = 'u32[144,128]{1,0:T(1,128)}', space=vmem, size = 0x12000, scoped, tag = 'internal scratch']
  %s0 = inlined_call_operand.vmem [shape: bf16[16,896], index: 0, kind: input, shape index: {}]
  %s1 = inlined_call_operand.vmem [shape: bf16[896,128], index: 1, kind: input, shape index: {}]
  %s2 = inlined_call_operand.vmem [shape: f32[1,128], index: 2, kind: input, shape index: {}]
  %s3 = inlined_call_operand.vmem [shape: f32[1,128], index: 3, kind: input, shape index: {}]
  %s4 = inlined_call_operand.vmem [shape: bf16[16,128], index: 4, kind: output, shape index: {}]
  %s5 = sld [smem:[#allocation0]]
  $region26: #{dense_grasp_forward.43} parent=0
    _
  %s7 = ssub.s32 1, %s5
  %s8 = scalar_select 0, %s7, %s5
  // Predicated region
  $region2: #{dense_grasp_forward.43} parent=0 // pred_check
    _
  $region3: #{dense_grasp_forward.43} parent=0 // pred_check_branch
    %10 = sbr.rel (0) target = $region5
  $region4: #{dense_grasp_forward.43} parent=0 // pred_region
    _
  $region5: #{dense_grasp_forward.43} parent=0 // pred_fallthru
    _
  // Predicated region
  $region6: #{dense_grasp_forward.43} parent=0 // pred_check
    _
  $region7: #{dense_grasp_forward.43} parent=0 // pred_check_branch
    %12 = sbr.rel (0) target = $region9
  $region8: #{dense_grasp_forward.43} parent=0 // pred_region
    _
  $region9: #{dense_grasp_forward.43} parent=0 // pred_fallthru
    _
  // Predicated region
  $region10: #{dense_grasp_forward.43} parent=0 // pred_check
    _
  $region11: #{dense_grasp_forward.43} parent=0 // pred_check_branch
    %14 = sbr.rel (0) target = $region13
  $region12: #{dense_grasp_forward.43} parent=0 // pred_region
    _
  $region13: #{dense_grasp_forward.43} parent=0 // pred_fallthru
    _
  // Predicated region
  $region14: #{dense_grasp_forward.43} parent=0 // pred_check
    _
  $region15: #{dense_grasp_forward.43} parent=0 // pred_check_branch
    %16 = sbr.rel (0) target = $region17
  $region16: #{dense_grasp_forward.43} parent=0 // pred_region
    _
  $region17: #{dense_grasp_forward.43} parent=0 // pred_fallthru
    _
  %v18 = vld [vmem:[%s0] sm:$0xff]
  %v19 = vld [vmem:[%s0 + $0x8] sm:$0xff]
  %v20 = vld [vmem:[%s0 + $0x10] sm:$0xff]
  %v21 = vld [vmem:[%s0 + $0x18] sm:$0xf]
  %v22 = vld [vmem:[%s0 + $0x1c] sm:$0xff]
  %v23 = vld [vmem:[%s0 + $0x24] sm:$0xff]
  %v24 = vld [vmem:[%s0 + $0x2c] sm:$0xff]
  %v25 = vld [vmem:[%s0 + $0x34] sm:$0xf]
  %v26 = vld [vmem:[%s1] sm:$0xf]
  %v27 = vld [vmem:[%s1 + $0x4] sm:$0xf]
  %v28 = vld [vmem:[%s1 + $0x8] sm:$0xf]
  %v29 = vld [vmem:[%s1 + $0xc] sm:$0xf]
  %v30 = vld [vmem:[%s1 + $0x10] sm:$0xf]
  %v31 = vld [vmem:[%s1 + $0x14] sm:$0xf]
  %v32 = vld [vmem:[%s1 + $0x18] sm:$0xf]
  %v33 = vld [vmem:[%s1 + $0x1c] sm:$0xf]
  %v34 = vld [vmem:[%s1 + $0x20] sm:$0xf]
  %v35 = vld [vmem:[%s1 + $0x24] sm:$0xf]
  %v36 = vld [vmem:[%s1 + $0x28] sm:$0xf]
  %v37 = vld [vmem:[%s1 + $0x2c] sm:$0xf]
  %v38 = vld [vmem:[%s1 + $0x30] sm:$0xf]
  %v39 = vld [vmem:[%s1 + $0x34] sm:$0xf]
  %v40 = vld [vmem:[%s1 + $0x38] sm:$0xf]
  %v41 = vld [vmem:[%s1 + $0x3c] sm:$0xf]
  %v42 = vld [vmem:[%s1 + $0x40] sm:$0xf]
  %v43 = vld [vmem:[%s1 + $0x44] sm:$0xf]
  %v44 = vld [vmem:[%s1 + $0x48] sm:$0xf]
  %v45 = vld [vmem:[%s1 + $0x4c] sm:$0xf]
  %v46 = vld [vmem:[%s1 + $0x50] sm:$0xf]
  %v47 = vld [vmem:[%s1 + $0x54] sm:$0xf]
  %v48 = vld [vmem:[%s1 + $0x58] sm:$0xf]
  %v49 = vld [vmem:[%s1 + $0x5c] sm:$0xf]
  %v50 = vld [vmem:[%s1 + $0x60] sm:$0xf]
  %v51 = vld [vmem:[%s1 + $0x64] sm:$0xf]
  %v52 = vld [vmem:[%s1 + $0x68] sm:$0xf]
  %v53 = vld [vmem:[%s1 + $0x6c] sm:$0xf]
  %v54 = vld [vmem:[%s1 + $0x70] sm:$0xf]
  %v55 = vld [vmem:[%s1 + $0x74] sm:$0xf]
  %v56 = vld [vmem:[%s1 + $0x78] sm:$0xf]
  %v57 = vld [vmem:[%s1 + $0x7c] sm:$0xf]
  %v58 = vld [vmem:[%s1 + $0x80] sm:$0xf]
  %v59 = vld [vmem:[%s1 + $0x84] sm:$0xf]
  %v60 = vld [vmem:[%s1 + $0x88] sm:$0xf]
  %v61 = vld [vmem:[%s1 + $0x8c] sm:$0xf]
  %v62 = vld [vmem:[%s1 + $0x90] sm:$0xf]
  %v63 = vld [vmem:[%s1 + $0x94] sm:$0xf]
  %v64 = vld [vmem:[%s1 + $0x98] sm:$0xf]
  %v65 = vld [vmem:[%s1 + $0x9c] sm:$0xf]
  %v66 = vld [vmem:[%s1 + $0xa0] sm:$0xf]
  %v67 = vld [vmem:[%s1 + $0xa4] sm:$0xf]
  %v68 = vld [vmem:[%s1 + $0xa8] sm:$0xf]
  %v69 = vld [vmem:[%s1 + $0xac] sm:$0xf]
  %v70 = vld [vmem:[%s1 + $0xb0] sm:$0xf]
  %v71 = vld [vmem:[%s1 + $0xb4] sm:$0xf]
  %v72 = vld [vmem:[%s1 + $0xb8] sm:$0xf]
  %v73 = vld [vmem:[%s1 + $0xbc] sm:$0xf]
  %v74 = vld [vmem:[%s1 + $0xc0] sm:$0xf]
  %v75 = vld [vmem:[%s1 + $0xc4] sm:$0xf]
  %v76 = vld [vmem:[%s1 + $0xc8] sm:$0xf]
  %v77 = vld [vmem:[%s1 + $0xcc] sm:$0xf]
  %v78 = vld [vmem:[%s1 + $0xd0] sm:$0xf]
  %v79 = vld [vmem:[%s1 + $0xd4] sm:$0xf]
  %v80 = vld [vmem:[%s1 + $0xd8] sm:$0xf]
  %v81 = vld [vmem:[%s1 + $0xdc] sm:$0xf]
  %v82 = vld [vmem:[%s1 + $0xe0] sm:$0xf]
  %v83 = vld [vmem:[%s1 + $0xe4] sm:$0xf]
  %v84 = vld [vmem:[%s1 + $0xe8] sm:$0xf]
  %v85 = vld [vmem:[%s1 + $0xec] sm:$0xf]
  %v86 = vld [vmem:[%s1 + $0xf0] sm:$0xf]
  %v87 = vld [vmem:[%s1 + $0xf4] sm:$0xf]
  %v88 = vld [vmem:[%s1 + $0xf8] sm:$0xf]
  %v89 = vld [vmem:[%s1 + $0xfc] sm:$0xf]
  %v90 = vld [vmem:[%s1 + $0x100] sm:$0xf]
  %v91 = vld [vmem:[%s1 + $0x104] sm:$0xf]
  %v92 = vld [vmem:[%s1 + $0x108] sm:$0xf]
  %v93 = vld [vmem:[%s1 + $0x10c] sm:$0xf]
  %v94 = vld [vmem:[%s1 + $0x110] sm:$0xf]
  %v95 = vld [vmem:[%s1 + $0x114] sm:$0xf]
  %v96 = vld [vmem:[%s1 + $0x118] sm:$0xf]
  %v97 = vld [vmem:[%s1 + $0x11c] sm:$0xf]
  %v98 = vld [vmem:[%s1 + $0x120] sm:$0xf]
  %v99 = vld [vmem:[%s1 + $0x124] sm:$0xf]
  %v100 = vld [vmem:[%s1 + $0x128] sm:$0xf]
  %v101 = vld [vmem:[%s1 + $0x12c] sm:$0xf]
  %v102 = vld [vmem:[%s1 + $0x130] sm:$0xf]
  %v103 = vld [vmem:[%s1 + $0x134] sm:$0xf]
  %v104 = vld [vmem:[%s1 + $0x138] sm:$0xf]
  %v105 = vld [vmem:[%s1 + $0x13c] sm:$0xf]
  %v106 = vld [vmem:[%s1 + $0x140] sm:$0xf]
  %v107 = vld [vmem:[%s1 + $0x144] sm:$0xf]
  %v108 = vld [vmem:[%s1 + $0x148] sm:$0xf]
  %v109 = vld [vmem:[%s1 + $0x14c] sm:$0xf]
  %v110 = vld [vmem:[%s1 + $0x150] sm:$0xf]
  %v111 = vld [vmem:[%s1 + $0x154] sm:$0xf]
  %v112 = vld [vmem:[%s1 + $0x158] sm:$0xf]
  %v113 = vld [vmem:[%s1 + $0x15c] sm:$0xf]
  %v114 = vld [vmem:[%s1 + $0x160] sm:$0xf]
  %v115 = vld [vmem:[%s1 + $0x164] sm:$0xf]
  %v116 = vld [vmem:[%s1 + $0x168] sm:$0xf]
  %v117 = vld [vmem:[%s1 + $0x16c] sm:$0xf]
  %v118 = vld [vmem:[%s1 + $0x170] sm:$0xf]
  %v119 = vld [vmem:[%s1 + $0x174] sm:$0xf]
  %v120 = vld [vmem:[%s1 + $0x178] sm:$0xf]
  %v121 = vld [vmem:[%s1 + $0x17c] sm:$0xf]
  %v122 = vld [vmem:[%s1 + $0x180] sm:$0xf]
  %v123 = vld [vmem:[%s1 + $0x184] sm:$0xf]
  %v124 = vld [vmem:[%s1 + $0x188] sm:$0xf]
  %v125 = vld [vmem:[%s1 + $0x18c] sm:$0xf]
  %v126 = vld [vmem:[%s1 + $0x190] sm:$0xf]
  %v127 = vld [vmem:[%s1 + $0x194] sm:$0xf]
  %v128 = vld [vmem:[%s1 + $0x198] sm:$0xf]
  %v129 = vld [vmem:[%s1 + $0x19c] sm:$0xf]
  %v130 = vld [vmem:[%s1 + $0x1a0] sm:$0xf]
  %v131 = vld [vmem:[%s1 + $0x1a4] sm:$0xf]
  %v132 = vld [vmem:[%s1 + $0x1a8] sm:$0xf]
  %v133 = vld [vmem:[%s1 + $0x1ac] sm:$0xf]
  %v134 = vld [vmem:[%s1 + $0x1b0] sm:$0xf]
  %v135 = vld [vmem:[%s1 + $0x1b4] sm:$0xf]
  %v136 = vld [vmem:[%s1 + $0x1b8] sm:$0xf]
  %v137 = vld [vmem:[%s1 + $0x1bc] sm:$0xf]
  %v146 = vunpack.c.l.b16 %v18
  %v147 = vunpack.c.h.b16 %v18
  %v148 = vunpack.c.l.b16 %v19
  %v149 = vunpack.c.h.b16 %v19
  %v150 = vunpack.c.l.b16 %v20
  %v151 = vunpack.c.h.b16 %v20
  %v152 = vunpack.c.l.b16 %v21
  %v153 = vunpack.c.l.b16 %v22
  %v154 = vunpack.c.h.b16 %v22
  %v155 = vunpack.c.l.b16 %v23
  %v156 = vunpack.c.h.b16 %v23
  %v157 = vunpack.c.l.b16 %v24
  %v158 = vunpack.c.h.b16 %v24
  %v159 = vunpack.c.l.b16 %v25
  %v160 = vpack.c.b16 %v153, %v146
  %v161 = vpack.c.b16 %v154, %v147
  %v162 = vpack.c.b16 %v155, %v148
  %v163 = vpack.c.b16 %v156, %v149
  %v164 = vpack.c.b16 %v157, %v150
  %v165 = vpack.c.b16 %v158, %v151
  %v166 = vpack.c.b16 %v159, %v152
  %v286 = vunpack.c.l.b16 %v26
  %v287 = vunpack.c.l.b16 %v27
  %v288 = vunpack.c.l.b16 %v28
  %v289 = vunpack.c.l.b16 %v29
  %v290 = vunpack.c.l.b16 %v30
  %v291 = vunpack.c.l.b16 %v31
  %v292 = vunpack.c.l.b16 %v32
  %v293 = vunpack.c.l.b16 %v33
  %v294 = vunpack.c.l.b16 %v34
  %v295 = vunpack.c.l.b16 %v35
  %v296 = vunpack.c.l.b16 %v36
  %v297 = vunpack.c.l.b16 %v37
  %v298 = vunpack.c.l.b16 %v38
  %v299 = vunpack.c.l.b16 %v39
  %v300 = vunpack.c.l.b16 %v40
  %v301 = vunpack.c.l.b16 %v41
  %v302 = vunpack.c.l.b16 %v42
  %v303 = vunpack.c.l.b16 %v43
  %v304 = vunpack.c.l.b16 %v44
  %v305 = vunpack.c.l.b16 %v45
  %v306 = vunpack.c.l.b16 %v46
  %v307 = vunpack.c.l.b16 %v47
  %v308 = vunpack.c.l.b16 %v48
  %v309 = vunpack.c.l.b16 %v49
  %v310 = vunpack.c.l.b16 %v50
  %v311 = vunpack.c.l.b16 %v51
  %v312 = vunpack.c.l.b16 %v52
  %v313 = vunpack.c.l.b16 %v53
  %v314 = vunpack.c.l.b16 %v54
  %v315 = vunpack.c.l.b16 %v55
  %v316 = vunpack.c.l.b16 %v56
  %v317 = vunpack.c.l.b16 %v57
  %v318 = vunpack.c.l.b16 %v58
  %v319 = vunpack.c.l.b16 %v59
  %v320 = vunpack.c.l.b16 %v60
  %v321 = vunpack.c.l.b16 %v61
  %v322 = vunpack.c.l.b16 %v62
  %v323 = vunpack.c.l.b16 %v63
  %v324 = vunpack.c.l.b16 %v64
  %v325 = vunpack.c.l.b16 %v65
  %v326 = vunpack.c.l.b16 %v66
  %v327 = vunpack.c.l.b16 %v67
  %v328 = vunpack.c.l.b16 %v68
  %v329 = vunpack.c.l.b16 %v69
  %v330 = vunpack.c.l.b16 %v70
  %v331 = vunpack.c.l.b16 %v71
  %v332 = vunpack.c.l.b16 %v72
  %v333 = vunpack.c.l.b16 %v73
  %v334 = vunpack.c.l.b16 %v74
  %v335 = vunpack.c.l.b16 %v75
  %v336 = vunpack.c.l.b16 %v76
  %v337 = vunpack.c.l.b16 %v77
  %v338 = vunpack.c.l.b16 %v78
  %v339 = vunpack.c.l.b16 %v79
  %v340 = vunpack.c.l.b16 %v80
  %v341 = vunpack.c.l.b16 %v81
  %v342 = vunpack.c.l.b16 %v82
  %v343 = vunpack.c.l.b16 %v83
  %v344 = vunpack.c.l.b16 %v84
  %v345 = vunpack.c.l.b16 %v85
  %v346 = vunpack.c.l.b16 %v86
  %v347 = vunpack.c.l.b16 %v87
  %v348 = vunpack.c.l.b16 %v88
  %v349 = vunpack.c.l.b16 %v89
  %v350 = vunpack.c.l.b16 %v90
  %v351 = vunpack.c.l.b16 %v91
  %v352 = vunpack.c.l.b16 %v92
  %v353 = vunpack.c.l.b16 %v93
  %v354 = vunpack.c.l.b16 %v94
  %v355 = vunpack.c.l.b16 %v95
  %v356 = vunpack.c.l.b16 %v96
  %v357 = vunpack.c.l.b16 %v97
  %v358 = vunpack.c.l.b16 %v98
  %v359 = vunpack.c.l.b16 %v99
  %v360 = vunpack.c.l.b16 %v100
  %v361 = vunpack.c.l.b16 %v101
  %v362 = vunpack.c.l.b16 %v102
  %v363 = vunpack.c.l.b16 %v103
  %v364 = vunpack.c.l.b16 %v104
  %v365 = vunpack.c.l.b16 %v105
  %v366 = vunpack.c.l.b16 %v106
  %v367 = vunpack.c.l.b16 %v107
  %v368 = vunpack.c.l.b16 %v108
  %v369 = vunpack.c.l.b16 %v109
  %v370 = vunpack.c.l.b16 %v110
  %v371 = vunpack.c.l.b16 %v111
  %v372 = vunpack.c.l.b16 %v112
  %v373 = vunpack.c.l.b16 %v113
  %v374 = vunpack.c.l.b16 %v114
  %v375 = vunpack.c.l.b16 %v115
  %v376 = vunpack.c.l.b16 %v116
  %v377 = vunpack.c.l.b16 %v117
  %v378 = vunpack.c.l.b16 %v118
  %v379 = vunpack.c.l.b16 %v119
  %v380 = vunpack.c.l.b16 %v120
  %v381 = vunpack.c.l.b16 %v121
  %v382 = vunpack.c.l.b16 %v122
  %v383 = vunpack.c.l.b16 %v123
  %v384 = vunpack.c.l.b16 %v124
  %v385 = vunpack.c.l.b16 %v125
  %v386 = vunpack.c.l.b16 %v126
  %v387 = vunpack.c.l.b16 %v127
  %v388 = vunpack.c.l.b16 %v128
  %v389 = vunpack.c.l.b16 %v129
  %v390 = vunpack.c.l.b16 %v130
  %v391 = vunpack.c.l.b16 %v131
  %v392 = vunpack.c.l.b16 %v132
  %v393 = vunpack.c.l.b16 %v133
  %v394 = vunpack.c.l.b16 %v134
  %v395 = vunpack.c.l.b16 %v135
  %v396 = vunpack.c.l.b16 %v136
  %v397 = vunpack.c.l.b16 %v137
  %v398 = vpack.c.b16 %v287, %v286
  %v399 = vpack.c.b16 %v289, %v288
  %v400 = vpack.c.b16 %v291, %v290
  %v401 = vpack.c.b16 %v293, %v292
  %v402 = vpack.c.b16 %v295, %v294
  %v403 = vpack.c.b16 %v297, %v296
  %v404 = vpack.c.b16 %v299, %v298
  %v405 = vpack.c.b16 %v301, %v300
  %v406 = vpack.c.b16 %v303, %v302
  %v407 = vpack.c.b16 %v305, %v304
  %v408 = vpack.c.b16 %v307, %v306
  %v409 = vpack.c.b16 %v309, %v308
  %v410 = vpack.c.b16 %v311, %v310
  %v411 = vpack.c.b16 %v313, %v312
  %v412 = vpack.c.b16 %v315, %v314
  %v413 = vpack.c.b16 %v317, %v316
  %v414 = vpack.c.b16 %v319, %v318
  %v415 = vpack.c.b16 %v321, %v320
  %v416 = vpack.c.b16 %v323, %v322
  %v417 = vpack.c.b16 %v325, %v324
  %v418 = vpack.c.b16 %v327, %v326
  %v419 = vpack.c.b16 %v329, %v328
  %v420 = vpack.c.b16 %v331, %v330
  %v421 = vpack.c.b16 %v333, %v332
  %v422 = vpack.c.b16 %v335, %v334
  %v423 = vpack.c.b16 %v337, %v336
  %v424 = vpack.c.b16 %v339, %v338
  %v425 = vpack.c.b16 %v341, %v340
  %v426 = vpack.c.b16 %v343, %v342
  %v427 = vpack.c.b16 %v345, %v344
  %v428 = vpack.c.b16 %v347, %v346
  %v429 = vpack.c.b16 %v349, %v348
  %v430 = vpack.c.b16 %v351, %v350
  %v431 = vpack.c.b16 %v353, %v352
  %v432 = vpack.c.b16 %v355, %v354
  %v433 = vpack.c.b16 %v357, %v356
  %v434 = vpack.c.b16 %v359, %v358
  %v435 = vpack.c.b16 %v361, %v360
  %v436 = vpack.c.b16 %v363, %v362
  %v437 = vpack.c.b16 %v365, %v364
  %v438 = vpack.c.b16 %v367, %v366
  %v439 = vpack.c.b16 %v369, %v368
  %v440 = vpack.c.b16 %v371, %v370
  %v441 = vpack.c.b16 %v373, %v372
  %v442 = vpack.c.b16 %v375, %v374
  %v443 = vpack.c.b16 %v377, %v376
  %v444 = vpack.c.b16 %v379, %v378
  %v445 = vpack.c.b16 %v381, %v380
  %v446 = vpack.c.b16 %v383, %v382
  %v447 = vpack.c.b16 %v385, %v384
  %v448 = vpack.c.b16 %v387, %v386
  %v449 = vpack.c.b16 %v389, %v388
  %v450 = vpack.c.b16 %v391, %v390
  %v451 = vpack.c.b16 %v393, %v392
  %v452 = vpack.c.b16 %v395, %v394
  %v453 = vpack.c.b16 %v397, %v396
  %510 = vmatprep.subr.bf16.mxu0 0
  %511 = vmatpush1.bf16.msra.mxu0 %v398
  %512 = vmatprep.subr.bf16.mxu0 0
  %513 = vmatpush1.bf16.msra.mxu0 %v399
  %514 = vmatprep.subr.bf16.mxu0 0
  %515 = vmatpush1.bf16.msra.mxu0 %v400
  %516 = vmatprep.subr.bf16.mxu0 0
  %517 = vmatpush1.bf16.msra.mxu0 %v401
  %518 = vmatprep.subr.bf16.mxu0 0
  %519 = vmatpush1.bf16.msra.mxu0 %v402
  %520 = vmatprep.subr.bf16.mxu0 0
  %521 = vmatpush1.bf16.msra.mxu0 %v403
  %522 = vmatprep.subr.bf16.mxu0 0
  %523 = vmatpush1.bf16.msra.mxu0 %v404
  %524 = vmatprep.subr.bf16.mxu0 0
  %525 = vmatpush1.bf16.msra.mxu0 %v405
  %526 = vmatprep.subr.bf16.mxu0 0
  %527 = vmatpush1.bf16.msra.mxu0 %v406
  %528 = vmatprep.subr.bf16.mxu0 0
  %529 = vmatpush1.bf16.msra.mxu0 %v407
  %530 = vmatprep.subr.bf16.mxu0 0
  %531 = vmatpush1.bf16.msra.mxu0 %v408
  %532 = vmatprep.subr.bf16.mxu0 0
  %533 = vmatpush1.bf16.msra.mxu0 %v409
  %534 = vmatprep.subr.bf16.mxu0 0
  %535 = vmatpush1.bf16.msra.mxu0 %v410
  %536 = vmatprep.subr.bf16.mxu0 0
  %537 = vmatpush1.bf16.msra.mxu0 %v411
  %538 = vmatprep.subr.bf16.mxu0 0
  %539 = vmatpush1.bf16.msra.mxu0 %v412
  %540 = vmatprep.subr.bf16.mxu0 0
  %541 = vmatpush1.bf16.msra.mxu0 %v413
  %542 = vmatprep.mubr.bf16.mxu0 %v161
  %543 = vmatmul.mubr.bf16.gmra.mrb[0].mxu0 %v160
  %v544 = vpop.f32.mrb[0].mxu0
  %v545 = vadd.f32 0.0, %v544
  %v546 = vpop.f32.mrb[0].mxu0
  %v547 = vpop.f32.mrb[0].mxu0
  %v548 = vadd.f32 0.0, %v547
  %v549 = vpop.f32.mrb[0].mxu0
  %550 = vdwg.mxu0
  %551 = vmatprep.subr.bf16.mxu0 0
  %552 = vmatpush1.bf16.msra.mxu0 %v414
  %553 = vmatprep.subr.bf16.mxu0 0
  %554 = vmatpush1.bf16.msra.mxu0 %v415
  %555 = vmatprep.subr.bf16.mxu0 0
  %556 = vmatpush1.bf16.msra.mxu0 %v416
  %557 = vmatprep.subr.bf16.mxu0 0
  %558 = vmatpush1.bf16.msra.mxu0 %v417
  %559 = vmatprep.subr.bf16.mxu0 0
  %560 = vmatpush1.bf16.msra.mxu0 %v418
  %561 = vmatprep.subr.bf16.mxu0 0
  %562 = vmatpush1.bf16.msra.mxu0 %v419
  %563 = vmatprep.subr.bf16.mxu0 0
  %564 = vmatpush1.bf16.msra.mxu0 %v420
  %565 = vmatprep.subr.bf16.mxu0 0
  %566 = vmatpush1.bf16.msra.mxu0 %v421
  %567 = vmatprep.subr.bf16.mxu0 0
  %568 = vmatpush1.bf16.msra.mxu0 %v422
  %569 = vmatprep.subr.bf16.mxu0 0
  %570 = vmatpush1.bf16.msra.mxu0 %v423
  %571 = vmatprep.subr.bf16.mxu0 0
  %572 = vmatpush1.bf16.msra.mxu0 %v424
  %573 = vmatprep.subr.bf16.mxu0 0
  %574 = vmatpush1.bf16.msra.mxu0 %v425
  %575 = vmatprep.subr.bf16.mxu0 0
  %576 = vmatpush1.bf16.msra.mxu0 %v426
  %577 = vmatprep.subr.bf16.mxu0 0
  %578 = vmatpush1.bf16.msra.mxu0 %v427
  %579 = vmatprep.subr.bf16.mxu0 0
  %580 = vmatpush1.bf16.msra.mxu0 %v428
  %581 = vmatprep.subr.bf16.mxu0 0
  %582 = vmatpush1.bf16.msra.mxu0 %v429
  %583 = vmatprep.mubr.bf16.mxu0 %v163
  %584 = vmatmul.mubr.bf16.gmra.mrb[0].mxu0 %v162
  %v585 = vpop.f32.mrb[0].mxu0
  %v586 = vadd.f32 %v545, %v585
  %v587 = vpop.f32.mrb[0].mxu0
  %v588 = vpop.f32.mrb[0].mxu0
  %v589 = vadd.f32 %v548, %v588
  %v590 = vpop.f32.mrb[0].mxu0
  %591 = vdwg.mxu0
  %592 = vmatprep.subr.bf16.mxu0 0
  %593 = vmatpush1.bf16.msra.mxu0 %v430
  %594 = vmatprep.subr.bf16.mxu0 0
  %595 = vmatpush1.bf16.msra.mxu0 %v431
  %596 = vmatprep.subr.bf16.mxu0 0
  %597 = vmatpush1.bf16.msra.mxu0 %v432
  %598 = vmatprep.subr.bf16.mxu0 0
  %599 = vmatpush1.bf16.msra.mxu0 %v433
  %600 = vmatprep.subr.bf16.mxu0 0
  %601 = vmatpush1.bf16.msra.mxu0 %v434
  %602 = vmatprep.subr.bf16.mxu0 0
  %603 = vmatpush1.bf16.msra.mxu0 %v435
  %604 = vmatprep.subr.bf16.mxu0 0
  %605 = vmatpush1.bf16.msra.mxu0 %v436
  %606 = vmatprep.subr.bf16.mxu0 0
  %607 = vmatpush1.bf16.msra.mxu0 %v437
  %608 = vmatprep.subr.bf16.mxu0 0
  %609 = vmatpush1.bf16.msra.mxu0 %v438
  %610 = vmatprep.subr.bf16.mxu0 0
  %611 = vmatpush1.bf16.msra.mxu0 %v439
  %612 = vmatprep.subr.bf16.mxu0 0
  %613 = vmatpush1.bf16.msra.mxu0 %v440
  %614 = vmatprep.subr.bf16.mxu0 0
  %615 = vmatpush1.bf16.msra.mxu0 %v441
  %616 = vmatprep.subr.bf16.mxu0 0
  %617 = vmatpush1.bf16.msra.mxu0 %v442
  %618 = vmatprep.subr.bf16.mxu0 0
  %619 = vmatpush1.bf16.msra.mxu0 %v443
  %620 = vmatprep.subr.bf16.mxu0 0
  %621 = vmatpush1.bf16.msra.mxu0 %v444
  %622 = vmatprep.subr.bf16.mxu0 0
  %623 = vmatpush1.bf16.msra.mxu0 %v445
  %624 = vmatprep.mubr.bf16.mxu0 %v165
  %625 = vmatmul.mubr.bf16.gmra.mrb[0].mxu0 %v164
  %v626 = vpop.f32.mrb[0].mxu0
  %v627 = vadd.f32 %v586, %v626
  %v628 = vpop.f32.mrb[0].mxu0
  %v629 = vpop.f32.mrb[0].mxu0
  %v630 = vadd.f32 %v589, %v629
  %v631 = vpop.f32.mrb[0].mxu0
  %632 = vdwg.mxu0
  %633 = vmatprep.subr.bf16.mxu0 0
  %634 = vmatpush1.bf16.msra.mxu0 %v446
  %635 = vmatprep.subr.bf16.mxu0 0
  %636 = vmatpush1.bf16.msra.mxu0 %v447
  %637 = vmatprep.subr.bf16.mxu0 0
  %638 = vmatpush1.bf16.msra.mxu0 %v448
  %639 = vmatprep.subr.bf16.mxu0 0
  %640 = vmatpush1.bf16.msra.mxu0 %v449
  %641 = vmatprep.subr.bf16.mxu0 0
  %642 = vmatpush1.bf16.msra.mxu0 %v450
  %643 = vmatprep.subr.bf16.mxu0 0
  %644 = vmatpush1.bf16.msra.mxu0 %v451
  %645 = vmatprep.subr.bf16.mxu0 0
  %646 = vmatpush1.bf16.msra.mxu0 %v452
  %647 = vmatprep.subr.bf16.mxu0 0
  %648 = vmatpush1.bf16.msra.mxu0 %v453
  %649 = vmatprep.subr.bf16.mxu0 0
  %650 = vmatpush1.bf16.msra.mxu0 0
  %651 = vmatprep.subr.bf16.mxu0 0
  %652 = vmatpush1.bf16.msra.mxu0 0
  %653 = vmatprep.subr.bf16.mxu0 0
  %654 = vmatpush1.bf16.msra.mxu0 0
  %655 = vmatprep.subr.bf16.mxu0 0
  %656 = vmatpush1.bf16.msra.mxu0 0
  %657 = vmatprep.subr.bf16.mxu0 0
  %658 = vmatpush1.bf16.msra.mxu0 0
  %659 = vmatprep.subr.bf16.mxu0 0
  %660 = vmatpush1.bf16.msra.mxu0 0
  %661 = vmatprep.subr.bf16.mxu0 0
  %662 = vmatpush1.bf16.msra.mxu0 0
  %663 = vmatprep.subr.bf16.mxu0 0
  %664 = vmatpush1.bf16.msra.mxu0 0
  %665 = vmatprep.mubr.bf16.mxu0 0
  %666 = vmatmul.mubr.bf16.gmra.mrb[0].mxu0 %v166
  %v667 = vpop.f32.mrb[0].mxu0
  %v668 = vadd.f32 %v627, %v667
  %v669 = vpop.f32.mrb[0].mxu0
  %v670 = vpop.f32.mrb[0].mxu0
  %v671 = vadd.f32 %v630, %v670
  %v672 = vpop.f32.mrb[0].mxu0
  %673 = vdwg.mxu0
  %v674 = vld [vmem:[%s2] sm:$0x1]
  %v676 = vlaneseq
  %v677 = vshrl.u32 %v676, 7
  %v678 = vsub.s32 0, %v677
  %v679 = vrot.slane %v674, %v678
  %v681 = vmul.f32 %v668, %v679
  %v682 = vmul.f32 %v671, %v679
  %v683 = vld [vmem:[%s3] sm:$0x1]
  %v685 = vlaneseq
  %v686 = vshrl.u32 %v685, 7
  %v687 = vsub.s32 0, %v686
  %v688 = vrot.slane %v683, %v687
  %v690 = vadd.f32 %v681, %v688
  %v691 = vadd.f32 %v682, %v688
  %v692 = vmax.f32 %v690, 0.0
  %v693 = vmax.f32 %v691, 0.0
  %v694 = vpack.c.bf16 %v693, %v692
  %v696 = vunpack.c.l.b16 %v694
  %v697 = vunpack.c.h.b16 %v694
  %v698 = vpack.c.b16 %v696, %v696
  %v699 = vpack.c.b16 %v697, %v697
  %702 = vst [vmem:[%s4] sm:$0xf] %v698
  %703 = vst [vmem:[%s4 + $0x4] sm:$0xf] %v699
  // Predicated region
  $region18: #{dense_grasp_forward.43} parent=0 // pred_check
    _
  $region19: #{dense_grasp_forward.43} parent=0 // pred_check_branch
    %705 = sbr.rel (0) target = $region21
  $region20: #{dense_grasp_forward.43} parent=0 // pred_region
    _
  $region21: #{dense_grasp_forward.43} parent=0 // pred_fallthru
    _
  // Predicated region
  $region22: #{dense_grasp_forward.43} parent=0 // pred_check
    _
  $region23: #{dense_grasp_forward.43} parent=0 // pred_check_branch
    %707 = sbr.rel (0) target = $region25
  $region24: #{dense_grasp_forward.43} parent=0 // pred_region
    _
  $region25: #{dense_grasp_forward.43} parent=0 // pred_fallthru
    _

// kernel: tile.22
$region0: #{tile.22}
  #allocation0 [shape = 's32[1]{0}', space=sflag, size = 0x4, scoped, tag = 'scoped memory for tile.22']
  %s0 = inlined_call_operand.vmem [shape: f32[64], index: 0, kind: input, shape index: {}]
  %s1 = inlined_call_operand.vmem [shape: f32[4,64], index: 1, kind: output, shape index: {}]
  // Predicated region
  $region2: #{tile.22} parent=0 // pred_check
    _
  $region3: #{tile.22} parent=0 // pred_check_branch
    %3 = sbr.rel (0) target = $region5
  $region4: #{tile.22} parent=0 // pred_region
    _
  $region5: #{tile.22} parent=0 // pred_fallthru
    _
  %v4 = vld [vmem:[%s0] ss:$0 sm:$0xff]
  %5 = vst [vmem:[%s1] sm:$0xf] %v4

// kernel: tile.23
$region0: #{tile.23}
  %s0 = inlined_call_operand.vmem [shape: f32[4,64], index: 0, kind: input, shape index: {}]
  %s1 = inlined_call_operand.vmem [shape: f32[1,256], index: 1, kind: output, shape index: {}]
  $region1: #{tile.23} parent=0
    #allocation0 [shape = 'u8[8192]{0}', space=vmem, size = 0x2000, scoped, tag = 'scoped mem for output reshape']
    #allocation1 [shape = 'u8[4096]{0}', space=vmem, size = 0x1000, scoped, tag = 'scoped mem for input reshape']
    %s3 = sshllo.u32 0, 4
    %v4 = vld [vmem:[%s0] sm:%s3]
    %5 = vst [vmem:[#allocation1] sm:%s3] %v4
    %s6 = smov 3
    %v7 = vld [vmem:[#allocation1] ss:$2 sm:%s6]
    %vm8 = vcmask 523264
    %9 = vst.msk [vmem:[#allocation0] ss:$8 sm:$0x3] %vm8, %v7
    %s10 = scalar_lea.vmem [#allocation1], 1
    %s11 = smov 3
    %v12 = vld [vmem:[%s10] ss:$2 sm:%s11]
    %13 = vrot.lane.b32.xlu0 %v12, 64
    %v14 = vpop.permute.xlu0 %13
    %vm15 = vcmask 1048064
    %16 = vst.msk [vmem:[#allocation0] ss:$8 sm:$0x3] %vm15, %v14
    %s18 = sshllo.u32 0, 1
    %v20 = vld [vmem:[#allocation0] sm:%s18]
    %s21 = sshllo.u32 0, 1
    %22 = vst [vmem:[%s1] sm:%s21] %v20
    %s23 = scalar_lea.vmem [#allocation0], 8
    %v24 = vld [vmem:[%s23] sm:%s18]
    %s25 = sshllo.u32 0, 1
    %s26 = scalar_lea.vmem %s1, 1
    %27 = vst [vmem:[%s26] sm:%s25] %v24

// kernel: tile.18
$region0: #{tile.18}
  #allocation0 [shape = 's32[1]{0}', space=sflag, size = 0x4, scoped, tag = 'scoped memory for tile.18']
  %s0 = inlined_call_operand.<no memory space> [shape: f32[], index: 0, kind: input, shape index: {}]
  %s1 = inlined_call_operand.vmem [shape: f32[1,256], index: 1, kind: output, shape index: {}]
  %v2 = vstv %s0
  %3 = vst [vmem:[%s1] sm:$0x1] %v2
  %s4 = scalar_lea.vmem %s1, 1
  %5 = vst [vmem:[%s4] sm:$0x1] %v2

// kernel: dense_grasp_forward.74
$region0: #{dense_grasp_forward.74}
  #allocation0 [shape = 'u32[]', space=smem, size = 0x4, offset = 0x4, fixed_abs, tag = 'smem constant byte address 0x4 - core index']
  #allocation1 [shape = 'u32[144,128]{1,0:T(1,128)}', space=vmem, size = 0x12000, scoped, tag = 'internal scratch']
  %s0 = inlined_call_operand.vmem [shape: bf16[16,2048], index: 0, kind: input, shape index: {}]
  %s1 = inlined_call_operand.vmem [shape: bf16[2048,256], index: 1, kind: input, shape index: {}]
  %s2 = inlined_call_operand.vmem [shape: f32[1,256], index: 2, kind: input, shape index: {}]
  %s3 = inlined_call_operand.vmem [shape: f32[1,256], index: 3, kind: input, shape index: {}]
  %s4 = inlined_call_operand.vmem [shape: bf16[16,256], index: 4, kind: output, shape index: {}]
  %s5 = sld [smem:[#allocation0]]
  $region26: #{dense_grasp_forward.74} parent=0
    _
  %s7 = ssub.s32 1, %s5
  %s8 = scalar_select 0, %s7, %s5
  // Predicated region
  $region2: #{dense_grasp_forward.74} parent=0 // pred_check
    _
  $region3: #{dense_grasp_forward.74} parent=0 // pred_check_branch
    %10 = sbr.rel (0) target = $region5
  $region4: #{dense_grasp_forward.74} parent=0 // pred_region
    _
  $region5: #{dense_grasp_forward.74} parent=0 // pred_fallthru
    _
  // Predicated region
  $region6: #{dense_grasp_forward.74} parent=0 // pred_check
    _
  $region7: #{dense_grasp_forward.74} parent=0 // pred_check_branch
    %12 = sbr.rel (0) target = $region9
  $region8: #{dense_grasp_forward.74} parent=0 // pred_region
    _
  $region9: #{dense_grasp_forward.74} parent=0 // pred_fallthru
    _
  // Predicated region
  $region10: #{dense_grasp_forward.74} parent=0 // pred_check
    _
  $region11: #{dense_grasp_forward.74} parent=0 // pred_check_branch
    %14 = sbr.rel (0) target = $region13
  $region12: #{dense_grasp_forward.74} parent=0 // pred_region
    _
  $region13: #{dense_grasp_forward.74} parent=0 // pred_fallthru
    _
  // Predicated region
  $region14: #{dense_grasp_forward.74} parent=0 // pred_check
    _
  $region15: #{dense_grasp_forward.74} parent=0 // pred_check_branch
    %16 = sbr.rel (0) target = $region17
  $region16: #{dense_grasp_forward.74} parent=0 // pred_region
    _
  $region17: #{dense_grasp_forward.74} parent=0 // pred_fallthru
    _
  %v17 = vld [vmem:[%s0] sm:$0xff]
  %v18 = vld [vmem:[%s0 + $0x8] sm:$0xff]
  %v19 = vld [vmem:[%s0 + $0x10] sm:$0xff]
  %v20 = vld [vmem:[%s0 + $0x18] sm:$0xff]
  %v21 = vld [vmem:[%s0 + $0x20] sm:$0xff]
  %v22 = vld [vmem:[%s0 + $0x28] sm:$0xff]
  %v23 = vld [vmem:[%s0 + $0x30] sm:$0xff]
  %v24 = vld [vmem:[%s0 + $0x38] sm:$0xff]
  %v25 = vld [vmem:[%s0 + $0x40] sm:$0xff]
  %v26 = vld [vmem:[%s0 + $0x48] sm:$0xff]
  %v27 = vld [vmem:[%s0 + $0x50] sm:$0xff]
  %v28 = vld [vmem:[%s0 + $0x58] sm:$0xff]
  %v29 = vld [vmem:[%s0 + $0x60] sm:$0xff]
  %v30 = vld [vmem:[%s0 + $0x68] sm:$0xff]
  %v31 = vld [vmem:[%s0 + $0x70] sm:$0xff]
  %v32 = vld [vmem:[%s0 + $0x78] sm:$0xff]
  %v33 = vld [vmem:[%s1] sm:$0xff]
  %v34 = vld [vmem:[%s1 + $0x8] sm:$0xff]
  %v35 = vld [vmem:[%s1 + $0x10] sm:$0xff]
  %v36 = vld [vmem:[%s1 + $0x18] sm:$0xff]
  %v37 = vld [vmem:[%s1 + $0x20] sm:$0xff]
  %v38 = vld [vmem:[%s1 + $0x28] sm:$0xff]
  %v39 = vld [vmem:[%s1 + $0x30] sm:$0xff]
  %v40 = vld [vmem:[%s1 + $0x38] sm:$0xff]
  %v41 = vld [vmem:[%s1 + $0x40] sm:$0xff]
  %v42 = vld [vmem:[%s1 + $0x48] sm:$0xff]
  %v43 = vld [vmem:[%s1 + $0x50] sm:$0xff]
  %v44 = vld [vmem:[%s1 + $0x58] sm:$0xff]
  %v45 = vld [vmem:[%s1 + $0x60] sm:$0xff]
  %v46 = vld [vmem:[%s1 + $0x68] sm:$0xff]
  %v47 = vld [vmem:[%s1 + $0x70] sm:$0xff]
  %v48 = vld [vmem:[%s1 + $0x78] sm:$0xff]
  %v49 = vld [vmem:[%s1 + $0x80] sm:$0xff]
  %v50 = vld [vmem:[%s1 + $0x88] sm:$0xff]
  %v51 = vld [vmem:[%s1 + $0x90] sm:$0xff]
  %v52 = vld [vmem:[%s1 + $0x98] sm:$0xff]
  %v53 = vld [vmem:[%s1 + $0xa0] sm:$0xff]
  %v54 = vld [vmem:[%s1 + $0xa8] sm:$0xff]
  %v55 = vld [vmem:[%s1 + $0xb0] sm:$0xff]
  %v56 = vld [vmem:[%s1 + $0xb8] sm:$0xff]
  %v57 = vld [vmem:[%s1 + $0xc0] sm:$0xff]
  %v58 = vld [vmem:[%s1 + $0xc8] sm:$0xff]
  %v59 = vld [vmem:[%s1 + $0xd0] sm:$0xff]
  %v60 = vld [vmem:[%s1 + $0xd8] sm:$0xff]
  %v61 = vld [vmem:[%s1 + $0xe0] sm:$0xff]
  %v62 = vld [vmem:[%s1 + $0xe8] sm:$0xff]
  %v63 = vld [vmem:[%s1 + $0xf0] sm:$0xff]
  %v64 = vld [vmem:[%s1 + $0xf8] sm:$0xff]
  %v65 = vld [vmem:[%s1 + $0x100] sm:$0xff]
  %v66 = vld [vmem:[%s1 + $0x108] sm:$0xff]
  %v67 = vld [vmem:[%s1 + $0x110] sm:$0xff]
  %v68 = vld [vmem:[%s1 + $0x118] sm:$0xff]
  %v69 = vld [vmem:[%s1 + $0x120] sm:$0xff]
  %v70 = vld [vmem:[%s1 + $0x128] sm:$0xff]
  %v71 = vld [vmem:[%s1 + $0x130] sm:$0xff]
  %v72 = vld [vmem:[%s1 + $0x138] sm:$0xff]
  %v73 = vld [vmem:[%s1 + $0x140] sm:$0xff]
  %v74 = vld [vmem:[%s1 + $0x148] sm:$0xff]
  %v75 = vld [vmem:[%s1 + $0x150] sm:$0xff]
  %v76 = vld [vmem:[%s1 + $0x158] sm:$0xff]
  %v77 = vld [vmem:[%s1 + $0x160] sm:$0xff]
  %v78 = vld [vmem:[%s1 + $0x168] sm:$0xff]
  %v79 = vld [vmem:[%s1 + $0x170] sm:$0xff]
  %v80 = vld [vmem:[%s1 + $0x178] sm:$0xff]
  %v81 = vld [vmem:[%s1 + $0x180] sm:$0xff]
  %v82 = vld [vmem:[%s1 + $0x188] sm:$0xff]
  %v83 = vld [vmem:[%s1 + $0x190] sm:$0xff]
  %v84 = vld [vmem:[%s1 + $0x198] sm:$0xff]
  %v85 = vld [vmem:[%s1 + $0x1a0] sm:$0xff]
  %v86 = vld [vmem:[%s1 + $0x1a8] sm:$0xff]
  %v87 = vld [vmem:[%s1 + $0x1b0] sm:$0xff]
  %v88 = vld [vmem:[%s1 + $0x1b8] sm:$0xff]
  %v89 = vld [vmem:[%s1 + $0x1c0] sm:$0xff]
  %v90 = vld [vmem:[%s1 + $0x1c8] sm:$0xff]
  %v91 = vld [vmem:[%s1 + $0x1d0] sm:$0xff]
  %v92 = vld [vmem:[%s1 + $0x1d8] sm:$0xff]
  %v93 = vld [vmem:[%s1 + $0x1e0] sm:$0xff]
  %v94 = vld [vmem:[%s1 + $0x1e8] sm:$0xff]
  %v95 = vld [vmem:[%s1 + $0x1f0] sm:$0xff]
  %v96 = vld [vmem:[%s1 + $0x1f8] sm:$0xff]
  %v97 = vld [vmem:[%s1 + $0x200] sm:$0xff]
  %v98 = vld [vmem:[%s1 + $0x208] sm:$0xff]
  %v99 = vld [vmem:[%s1 + $0x210] sm:$0xff]
  %v100 = vld [vmem:[%s1 + $0x218] sm:$0xff]
  %v101 = vld [vmem:[%s1 + $0x220] sm:$0xff]
  %v102 = vld [vmem:[%s1 + $0x228] sm:$0xff]
  %v103 = vld [vmem:[%s1 + $0x230] sm:$0xff]
  %v104 = vld [vmem:[%s1 + $0x238] sm:$0xff]
  %v105 = vld [vmem:[%s1 + $0x240] sm:$0xff]
  %v106 = vld [vmem:[%s1 + $0x248] sm:$0xff]
  %v107 = vld [vmem:[%s1 + $0x250] sm:$0xff]
  %v108 = vld [vmem:[%s1 + $0x258] sm:$0xff]
  %v109 = vld [vmem:[%s1 + $0x260] sm:$0xff]
  %v110 = vld [vmem:[%s1 + $0x268] sm:$0xff]
  %v111 = vld [vmem:[%s1 + $0x270] sm:$0xff]
  %v112 = vld [vmem:[%s1 + $0x278] sm:$0xff]
  %v113 = vld [vmem:[%s1 + $0x280] sm:$0xff]
  %v114 = vld [vmem:[%s1 + $0x288] sm:$0xff]
  %v115 = vld [vmem:[%s1 + $0x290] sm:$0xff]
  %v116 = vld [vmem:[%s1 + $0x298] sm:$0xff]
  %v117 = vld [vmem:[%s1 + $0x2a0] sm:$0xff]
  %v118 = vld [vmem:[%s1 + $0x2a8] sm:$0xff]
  %v119 = vld [vmem:[%s1 + $0x2b0] sm:$0xff]
  %v120 = vld [vmem:[%s1 + $0x2b8] sm:$0xff]
  %v121 = vld [vmem:[%s1 + $0x2c0] sm:$0xff]
  %v122 = vld [vmem:[%s1 + $0x2c8] sm:$0xff]
  %v123 = vld [vmem:[%s1 + $0x2d0] sm:$0xff]
  %v124 = vld [vmem:[%s1 + $0x2d8] sm:$0xff]
  %v125 = vld [vmem:[%s1 + $0x2e0] sm:$0xff]
  %v126 = vld [vmem:[%s1 + $0x2e8] sm:$0xff]
  %v127 = vld [vmem:[%s1 + $0x2f0] sm:$0xff]
  %v128 = vld [vmem:[%s1 + $0x2f8] sm:$0xff]
  %v129 = vld [vmem:[%s1 + $0x300] sm:$0xff]
  %v130 = vld [vmem:[%s1 + $0x308] sm:$0xff]
  %v131 = vld [vmem:[%s1 + $0x310] sm:$0xff]
  %v132 = vld [vmem:[%s1 + $0x318] sm:$0xff]
  %v133 = vld [vmem:[%s1 + $0x320] sm:$0xff]
  %v134 = vld [vmem:[%s1 + $0x328] sm:$0xff]
  %v135 = vld [vmem:[%s1 + $0x330] sm:$0xff]
  %v136 = vld [vmem:[%s1 + $0x338] sm:$0xff]
  %v137 = vld [vmem:[%s1 + $0x340] sm:$0xff]
  %v138 = vld [vmem:[%s1 + $0x348] sm:$0xff]
  %v139 = vld [vmem:[%s1 + $0x350] sm:$0xff]
  %v140 = vld [vmem:[%s1 + $0x358] sm:$0xff]
  %v141 = vld [vmem:[%s1 + $0x360] sm:$0xff]
  %v142 = vld [vmem:[%s1 + $0x368] sm:$0xff]
  %v143 = vld [vmem:[%s1 + $0x370] sm:$0xff]
  %v144 = vld [vmem:[%s1 + $0x378] sm:$0xff]
  %v145 = vld [vmem:[%s1 + $0x380] sm:$0xff]
  %v146 = vld [vmem:[%s1 + $0x388] sm:$0xff]
  %v147 = vld [vmem:[%s1 + $0x390] sm:$0xff]
  %v148 = vld [vmem:[%s1 + $0x398] sm:$0xff]
  %v149 = vld [vmem:[%s1 + $0x3a0] sm:$0xff]
  %v150 = vld [vmem:[%s1 + $0x3a8] sm:$0xff]
  %v151 = vld [vmem:[%s1 + $0x3b0] sm:$0xff]
  %v152 = vld [vmem:[%s1 + $0x3b8] sm:$0xff]
  %v153 = vld [vmem:[%s1 + $0x3c0] sm:$0xff]
  %v154 = vld [vmem:[%s1 + $0x3c8] sm:$0xff]
  %v155 = vld [vmem:[%s1 + $0x3d0] sm:$0xff]
  %v156 = vld [vmem:[%s1 + $0x3d8] sm:$0xff]
  %v157 = vld [vmem:[%s1 + $0x3e0] sm:$0xff]
  %v158 = vld [vmem:[%s1 + $0x3e8] sm:$0xff]
  %v159 = vld [vmem:[%s1 + $0x3f0] sm:$0xff]
  %v160 = vld [vmem:[%s1 + $0x3f8] sm:$0xff]
  %v161 = vld [vmem:[%s1 + $0x400] sm:$0xff]
  %v162 = vld [vmem:[%s1 + $0x408] sm:$0xff]
  %v163 = vld [vmem:[%s1 + $0x410] sm:$0xff]
  %v164 = vld [vmem:[%s1 + $0x418] sm:$0xff]
  %v165 = vld [vmem:[%s1 + $0x420] sm:$0xff]
  %v166 = vld [vmem:[%s1 + $0x428] sm:$0xff]
  %v167 = vld [vmem:[%s1 + $0x430] sm:$0xff]
  %v168 = vld [vmem:[%s1 + $0x438] sm:$0xff]
  %v169 = vld [vmem:[%s1 + $0x440] sm:$0xff]
  %v170 = vld [vmem:[%s1 + $0x448] sm:$0xff]
  %v171 = vld [vmem:[%s1 + $0x450] sm:$0xff]
  %v172 = vld [vmem:[%s1 + $0x458] sm:$0xff]
  %v173 = vld [vmem:[%s1 + $0x460] sm:$0xff]
  %v174 = vld [vmem:[%s1 + $0x468] sm:$0xff]
  %v175 = vld [vmem:[%s1 + $0x470] sm:$0xff]
  %v176 = vld [vmem:[%s1 + $0x478] sm:$0xff]
  %v177 = vld [vmem:[%s1 + $0x480] sm:$0xff]
  %v178 = vld [vmem:[%s1 + $0x488] sm:$0xff]
  %v179 = vld [vmem:[%s1 + $0x490] sm:$0xff]
  %v180 = vld [vmem:[%s1 + $0x498] sm:$0xff]
  %v181 = vld [vmem:[%s1 + $0x4a0] sm:$0xff]
  %v182 = vld [vmem:[%s1 + $0x4a8] sm:$0xff]
  %v183 = vld [vmem:[%s1 + $0x4b0] sm:$0xff]
  %v184 = vld [vmem:[%s1 + $0x4b8] sm:$0xff]
  %v185 = vld [vmem:[%s1 + $0x4c0] sm:$0xff]
  %v186 = vld [vmem:[%s1 + $0x4c8] sm:$0xff]
  %v187 = vld [vmem:[%s1 + $0x4d0] sm:$0xff]
  %v188 = vld [vmem:[%s1 + $0x4d8] sm:$0xff]
  %v189 = vld [vmem:[%s1 + $0x4e0] sm:$0xff]
  %v190 = vld [vmem:[%s1 + $0x4e8] sm:$0xff]
  %v191 = vld [vmem:[%s1 + $0x4f0] sm:$0xff]
  %v192 = vld [vmem:[%s1 + $0x4f8] sm:$0xff]
  %v193 = vld [vmem:[%s1 + $0x500] sm:$0xff]
  %v194 = vld [vmem:[%s1 + $0x508] sm:$0xff]
  %v195 = vld [vmem:[%s1 + $0x510] sm:$0xff]
  %v196 = vld [vmem:[%s1 + $0x518] sm:$0xff]
  %v197 = vld [vmem:[%s1 + $0x520] sm:$0xff]
  %v198 = vld [vmem:[%s1 + $0x528] sm:$0xff]
  %v199 = vld [vmem:[%s1 + $0x530] sm:$0xff]
  %v200 = vld [vmem:[%s1 + $0x538] sm:$0xff]
  %v201 = vld [vmem:[%s1 + $0x540] sm:$0xff]
  %v202 = vld [vmem:[%s1 + $0x548] sm:$0xff]
  %v203 = vld [vmem:[%s1 + $0x550] sm:$0xff]
  %v204 = vld [vmem:[%s1 + $0x558] sm:$0xff]
  %v205 = vld [vmem:[%s1 + $0x560] sm:$0xff]
  %v206 = vld [vmem:[%s1 + $0x568] sm:$0xff]
  %v207 = vld [vmem:[%s1 + $0x570] sm:$0xff]
  %v208 = vld [vmem:[%s1 + $0x578] sm:$0xff]
  %v209 = vld [vmem:[%s1 + $0x580] sm:$0xff]
  %v210 = vld [vmem:[%s1 + $0x588] sm:$0xff]
  %v211 = vld [vmem:[%s1 + $0x590] sm:$0xff]
  %v212 = vld [vmem:[%s1 + $0x598] sm:$0xff]
  %v213 = vld [vmem:[%s1 + $0x5a0] sm:$0xff]
  %v214 = vld [vmem:[%s1 + $0x5a8] sm:$0xff]
  %v215 = vld [vmem:[%s1 + $0x5b0] sm:$0xff]
  %v216 = vld [vmem:[%s1 + $0x5b8] sm:$0xff]
  %v217 = vld [vmem:[%s1 + $0x5c0] sm:$0xff]
  %v218 = vld [vmem:[%s1 + $0x5c8] sm:$0xff]
  %v219 = vld [vmem:[%s1 + $0x5d0] sm:$0xff]
  %v220 = vld [vmem:[%s1 + $0x5d8] sm:$0xff]
  %v221 = vld [vmem:[%s1 + $0x5e0] sm:$0xff]
  %v222 = vld [vmem:[%s1 + $0x5e8] sm:$0xff]
  %v223 = vld [vmem:[%s1 + $0x5f0] sm:$0xff]
  %v224 = vld [vmem:[%s1 + $0x5f8] sm:$0xff]
  %v225 = vld [vmem:[%s1 + $0x600] sm:$0xff]
  %v226 = vld [vmem:[%s1 + $0x608] sm:$0xff]
  %v227 = vld [vmem:[%s1 + $0x610] sm:$0xff]
  %v228 = vld [vmem:[%s1 + $0x618] sm:$0xff]
  %v229 = vld [vmem:[%s1 + $0x620] sm:$0xff]
  %v230 = vld [vmem:[%s1 + $0x628] sm:$0xff]
  %v231 = vld [vmem:[%s1 + $0x630] sm:$0xff]
  %v232 = vld [vmem:[%s1 + $0x638] sm:$0xff]
  %v233 = vld [vmem:[%s1 + $0x640] sm:$0xff]
  %v234 = vld [vmem:[%s1 + $0x648] sm:$0xff]
  %v235 = vld [vmem:[%s1 + $0x650] sm:$0xff]
  %v236 = vld [vmem:[%s1 + $0x658] sm:$0xff]
  %v237 = vld [vmem:[%s1 + $0x660] sm:$0xff]
  %v238 = vld [vmem:[%s1 + $0x668] sm:$0xff]
  %v239 = vld [vmem:[%s1 + $0x670] sm:$0xff]
  %v240 = vld [vmem:[%s1 + $0x678] sm:$0xff]
  %v241 = vld [vmem:[%s1 + $0x680] sm:$0xff]
  %v242 = vld [vmem:[%s1 + $0x688] sm:$0xff]
  %v243 = vld [vmem:[%s1 + $0x690] sm:$0xff]
  %v244 = vld [vmem:[%s1 + $0x698] sm:$0xff]
  %v245 = vld [vmem:[%s1 + $0x6a0] sm:$0xff]
  %v246 = vld [vmem:[%s1 + $0x6a8] sm:$0xff]
  %v247 = vld [vmem:[%s1 + $0x6b0] sm:$0xff]
  %v248 = vld [vmem:[%s1 + $0x6b8] sm:$0xff]
  %v249 = vld [vmem:[%s1 + $0x6c0] sm:$0xff]
  %v250 = vld [vmem:[%s1 + $0x6c8] sm:$0xff]
  %v251 = vld [vmem:[%s1 + $0x6d0] sm:$0xff]
  %v252 = vld [vmem:[%s1 + $0x6d8] sm:$0xff]
  %v253 = vld [vmem:[%s1 + $0x6e0] sm:$0xff]
  %v254 = vld [vmem:[%s1 + $0x6e8] sm:$0xff]
  %v255 = vld [vmem:[%s1 + $0x6f0] sm:$0xff]
  %v256 = vld [vmem:[%s1 + $0x6f8] sm:$0xff]
  %v257 = vld [vmem:[%s1 + $0x700] sm:$0xff]
  %v258 = vld [vmem:[%s1 + $0x708] sm:$0xff]
  %v259 = vld [vmem:[%s1 + $0x710] sm:$0xff]
  %v260 = vld [vmem:[%s1 + $0x718] sm:$0xff]
  %v261 = vld [vmem:[%s1 + $0x720] sm:$0xff]
  %v262 = vld [vmem:[%s1 + $0x728] sm:$0xff]
  %v263 = vld [vmem:[%s1 + $0x730] sm:$0xff]
  %v264 = vld [vmem:[%s1 + $0x738] sm:$0xff]
  %v265 = vld [vmem:[%s1 + $0x740] sm:$0xff]
  %v266 = vld [vmem:[%s1 + $0x748] sm:$0xff]
  %v267 = vld [vmem:[%s1 + $0x750] sm:$0xff]
  %v268 = vld [vmem:[%s1 + $0x758] sm:$0xff]
  %v269 = vld [vmem:[%s1 + $0x760] sm:$0xff]
  %v270 = vld [vmem:[%s1 + $0x768] sm:$0xff]
  %v271 = vld [vmem:[%s1 + $0x770] sm:$0xff]
  %v272 = vld [vmem:[%s1 + $0x778] sm:$0xff]
  %v273 = vld [vmem:[%s1 + $0x780] sm:$0xff]
  %v274 = vld [vmem:[%s1 + $0x788] sm:$0xff]
  %v275 = vld [vmem:[%s1 + $0x790] sm:$0xff]
  %v276 = vld [vmem:[%s1 + $0x798] sm:$0xff]
  %v277 = vld [vmem:[%s1 + $0x7a0] sm:$0xff]
  %v278 = vld [vmem:[%s1 + $0x7a8] sm:$0xff]
  %v279 = vld [vmem:[%s1 + $0x7b0] sm:$0xff]
  %v280 = vld [vmem:[%s1 + $0x7b8] sm:$0xff]
  %v281 = vld [vmem:[%s1 + $0x7c0] sm:$0xff]
  %v282 = vld [vmem:[%s1 + $0x7c8] sm:$0xff]
  %v283 = vld [vmem:[%s1 + $0x7d0] sm:$0xff]
  %v284 = vld [vmem:[%s1 + $0x7d8] sm:$0xff]
  %v285 = vld [vmem:[%s1 + $0x7e0] sm:$0xff]
  %v286 = vld [vmem:[%s1 + $0x7e8] sm:$0xff]
  %v287 = vld [vmem:[%s1 + $0x7f0] sm:$0xff]
  %v288 = vld [vmem:[%s1 + $0x7f8] sm:$0xff]
  %v305 = vunpack.c.l.b16 %v17
  %v306 = vunpack.c.h.b16 %v17
  %v307 = vunpack.c.l.b16 %v18
  %v308 = vunpack.c.h.b16 %v18
  %v309 = vunpack.c.l.b16 %v19
  %v310 = vunpack.c.h.b16 %v19
  %v311 = vunpack.c.l.b16 %v20
  %v312 = vunpack.c.h.b16 %v20
  %v313 = vunpack.c.l.b16 %v21
  %v314 = vunpack.c.h.b16 %v21
  %v315 = vunpack.c.l.b16 %v22
  %v316 = vunpack.c.h.b16 %v22
  %v317 = vunpack.c.l.b16 %v23
  %v318 = vunpack.c.h.b16 %v23
  %v319 = vunpack.c.l.b16 %v24
  %v320 = vunpack.c.h.b16 %v24
  %v321 = vunpack.c.l.b16 %v25
  %v322 = vunpack.c.h.b16 %v25
  %v323 = vunpack.c.l.b16 %v26
  %v324 = vunpack.c.h.b16 %v26
  %v325 = vunpack.c.l.b16 %v27
  %v326 = vunpack.c.h.b16 %v27
  %v327 = vunpack.c.l.b16 %v28
  %v328 = vunpack.c.h.b16 %v28
  %v329 = vunpack.c.l.b16 %v29
  %v330 = vunpack.c.h.b16 %v29
  %v331 = vunpack.c.l.b16 %v30
  %v332 = vunpack.c.h.b16 %v30
  %v333 = vunpack.c.l.b16 %v31
  %v334 = vunpack.c.h.b16 %v31
  %v335 = vunpack.c.l.b16 %v32
  %v336 = vunpack.c.h.b16 %v32
  %v337 = vpack.c.b16 %v321, %v305
  %v338 = vpack.c.b16 %v322, %v306
  %v339 = vpack.c.b16 %v323, %v307
  %v340 = vpack.c.b16 %v324, %v308
  %v341 = vpack.c.b16 %v325, %v309
  %v342 = vpack.c.b16 %v326, %v310
  %v343 = vpack.c.b16 %v327, %v311
  %v344 = vpack.c.b16 %v328, %v312
  %v345 = vpack.c.b16 %v329, %v313
  %v346 = vpack.c.b16 %v330, %v314
  %v347 = vpack.c.b16 %v331, %v315
  %v348 = vpack.c.b16 %v332, %v316
  %v349 = vpack.c.b16 %v333, %v317
  %v350 = vpack.c.b16 %v334, %v318
  %v351 = vpack.c.b16 %v335, %v319
  %v352 = vpack.c.b16 %v336, %v320
  %v625 = vunpack.c.l.b16 %v33
  %v626 = vunpack.c.h.b16 %v33
  %v627 = vunpack.c.l.b16 %v34
  %v628 = vunpack.c.h.b16 %v34
  %v629 = vunpack.c.l.b16 %v35
  %v630 = vunpack.c.h.b16 %v35
  %v631 = vunpack.c.l.b16 %v36
  %v632 = vunpack.c.h.b16 %v36
  %v633 = vunpack.c.l.b16 %v37
  %v634 = vunpack.c.h.b16 %v37
  %v635 = vunpack.c.l.b16 %v38
  %v636 = vunpack.c.h.b16 %v38
  %v637 = vunpack.c.l.b16 %v39
  %v638 = vunpack.c.h.b16 %v39
  %v639 = vunpack.c.l.b16 %v40
  %v640 = vunpack.c.h.b16 %v40
  %v641 = vunpack.c.l.b16 %v41
  %v642 = vunpack.c.h.b16 %v41
  %v643 = vunpack.c.l.b16 %v42
  %v644 = vunpack.c.h.b16 %v42
  %v645 = vunpack.c.l.b16 %v43
  %v646 = vunpack.c.h.b16 %v43
  %v647 = vunpack.c.l.b16 %v44
  %v648 = vunpack.c.h.b16 %v44
  %v649 = vunpack.c.l.b16 %v45
  %v650 = vunpack.c.h.b16 %v45
  %v651 = vunpack.c.l.b16 %v46
  %v652 = vunpack.c.h.b16 %v46
  %v653 = vunpack.c.l.b16 %v47
  %v654 = vunpack.c.h.b16 %v47
  %v655 = vunpack.c.l.b16 %v48
  %v656 = vunpack.c.h.b16 %v48
  %v657 = vunpack.c.l.b16 %v49
  %v658 = vunpack.c.h.b16 %v49
  %v659 = vunpack.c.l.b16 %v50
  %v660 = vunpack.c.h.b16 %v50
  %v661 = vunpack.c.l.b16 %v51
  %v662 = vunpack.c.h.b16 %v51
  %v663 = vunpack.c.l.b16 %v52
  %v664 = vunpack.c.h.b16 %v52
  %v665 = vunpack.c.l.b16 %v53
  %v666 = vunpack.c.h.b16 %v53
  %v667 = vunpack.c.l.b16 %v54
  %v668 = vunpack.c.h.b16 %v54
  %v669 = vunpack.c.l.b16 %v55
  %v670 = vunpack.c.h.b16 %v55
  %v671 = vunpack.c.l.b16 %v56
  %v672 = vunpack.c.h.b16 %v56
  %v673 = vunpack.c.l.b16 %v57
  %v674 = vunpack.c.h.b16 %v57
  %v675 = vunpack.c.l.b16 %v58
  %v676 = vunpack.c.h.b16 %v58
  %v677 = vunpack.c.l.b16 %v59
  %v678 = vunpack.c.h.b16 %v59
  %v679 = vunpack.c.l.b16 %v60
  %v680 = vunpack.c.h.b16 %v60
  %v681 = vunpack.c.l.b16 %v61
  %v682 = vunpack.c.h.b16 %v61
  %v683 = vunpack.c.l.b16 %v62
  %v684 = vunpack.c.h.b16 %v62
  %v685 = vunpack.c.l.b16 %v63
  %v686 = vunpack.c.h.b16 %v63
  %v687 = vunpack.c.l.b16 %v64
  %v688 = vunpack.c.h.b16 %v64
  %v689 = vunpack.c.l.b16 %v65
  %v690 = vunpack.c.h.b16 %v65
  %v691 = vunpack.c.l.b16 %v66
  %v692 = vunpack.c.h.b16 %v66
  %v693 = vunpack.c.l.b16 %v67
  %v694 = vunpack.c.h.b16 %v67
  %v695 = vunpack.c.l.b16 %v68
  %v696 = vunpack.c.h.b16 %v68
  %v697 = vunpack.c.l.b16 %v69
  %v698 = vunpack.c.h.b16 %v69
  %v699 = vunpack.c.l.b16 %v70
  %v700 = vunpack.c.h.b16 %v70
  %v701 = vunpack.c.l.b16 %v71
  %v702 = vunpack.c.h.b16 %v71
  %v703 = vunpack.c.l.b16 %v72
  %v704 = vunpack.c.h.b16 %v72
  %v705 = vunpack.c.l.b16 %v73
  %v706 = vunpack.c.h.b16 %v73
  %v707 = vunpack.c.l.b16 %v74
  %v708 = vunpack.c.h.b16 %v74
  %v709 = vunpack.c.l.b16 %v75
  %v710 = vunpack.c.h.b16 %v75
  %v711 = vunpack.c.l.b16 %v76
  %v712 = vunpack.c.h.b16 %v76
  %v713 = vunpack.c.l.b16 %v77
  %v714 = vunpack.c.h.b16 %v77
  %v715 = vunpack.c.l.b16 %v78
  %v716 = vunpack.c.h.b16 %v78
  %v717 = vunpack.c.l.b16 %v79
  %v718 = vunpack.c.h.b16 %v79
  %v719 = vunpack.c.l.b16 %v80
  %v720 = vunpack.c.h.b16 %v80
  %v721 = vunpack.c.l.b16 %v81
  %v722 = vunpack.c.h.b16 %v81
  %v723 = vunpack.c.l.b16 %v82
  %v724 = vunpack.c.h.b16 %v82
  %v725 = vunpack.c.l.b16 %v83
  %v726 = vunpack.c.h.b16 %v83
  %v727 = vunpack.c.l.b16 %v84
  %v728 = vunpack.c.h.b16 %v84
  %v729 = vunpack.c.l.b16 %v85
  %v730 = vunpack.c.h.b16 %v85
  %v731 = vunpack.c.l.b16 %v86
  %v732 = vunpack.c.h.b16 %v86
  %v733 = vunpack.c.l.b16 %v87
  %v734 = vunpack.c.h.b16 %v87
  %v735 = vunpack.c.l.b16 %v88
  %v736 = vunpack.c.h.b16 %v88
  %v737 = vunpack.c.l.b16 %v89
  %v738 = vunpack.c.h.b16 %v89
  %v739 = vunpack.c.l.b16 %v90
  %v740 = vunpack.c.h.b16 %v90
  %v741 = vunpack.c.l.b16 %v91
  %v742 = vunpack.c.h.b16 %v91
  %v743 = vunpack.c.l.b16 %v92
  %v744 = vunpack.c.h.b16 %v92
  %v745 = vunpack.c.l.b16 %v93
  %v746 = vunpack.c.h.b16 %v93
  %v747 = vunpack.c.l.b16 %v94
  %v748 = vunpack.c.h.b16 %v94
  %v749 = vunpack.c.l.b16 %v95
  %v750 = vunpack.c.h.b16 %v95
  %v751 = vunpack.c.l.b16 %v96
  %v752 = vunpack.c.h.b16 %v96
  %v753 = vunpack.c.l.b16 %v97
  %v754 = vunpack.c.h.b16 %v97
  %v755 = vunpack.c.l.b16 %v98
  %v756 = vunpack.c.h.b16 %v98
  %v757 = vunpack.c.l.b16 %v99
  %v758 = vunpack.c.h.b16 %v99
  %v759 = vunpack.c.l.b16 %v100
  %v760 = vunpack.c.h.b16 %v100
  %v761 = vunpack.c.l.b16 %v101
  %v762 = vunpack.c.h.b16 %v101
  %v763 = vunpack.c.l.b16 %v102
  %v764 = vunpack.c.h.b16 %v102
  %v765 = vunpack.c.l.b16 %v103
  %v766 = vunpack.c.h.b16 %v103
  %v767 = vunpack.c.l.b16 %v104
  %v768 = vunpack.c.h.b16 %v104
  %v769 = vunpack.c.l.b16 %v105
  %v770 = vunpack.c.h.b16 %v105
  %v771 = vunpack.c.l.b16 %v106
  %v772 = vunpack.c.h.b16 %v106
  %v773 = vunpack.c.l.b16 %v107
  %v774 = vunpack.c.h.b16 %v107
  %v775 = vunpack.c.l.b16 %v108
  %v776 = vunpack.c.h.b16 %v108
  %v777 = vunpack.c.l.b16 %v109
  %v778 = vunpack.c.h.b16 %v109
  %v779 = vunpack.c.l.b16 %v110
  %v780 = vunpack.c.h.b16 %v110
  %v781 = vunpack.c.l.b16 %v111
  %v782 = vunpack.c.h.b16 %v111
  %v783 = vunpack.c.l.b16 %v112
  %v784 = vunpack.c.h.b16 %v112
  %v785 = vunpack.c.l.b16 %v113
  %v786 = vunpack.c.h.b16 %v113
  %v787 = vunpack.c.l.b16 %v114
  %v788 = vunpack.c.h.b16 %v114
  %v789 = vunpack.c.l.b16 %v115
  %v790 = vunpack.c.h.b16 %v115
  %v791 = vunpack.c.l.b16 %v116
  %v792 = vunpack.c.h.b16 %v116
  %v793 = vunpack.c.l.b16 %v117
  %v794 = vunpack.c.h.b16 %v117
  %v795 = vunpack.c.l.b16 %v118
  %v796 = vunpack.c.h.b16 %v118
  %v797 = vunpack.c.l.b16 %v119
  %v798 = vunpack.c.h.b16 %v119
  %v799 = vunpack.c.l.b16 %v120
  %v800 = vunpack.c.h.b16 %v120
  %v801 = vunpack.c.l.b16 %v121
  %v802 = vunpack.c.h.b16 %v121
  %v803 = vunpack.c.l.b16 %v122
  %v804 = vunpack.c.h.b16 %v122
  %v805 = vunpack.c.l.b16 %v123
  %v806 = vunpack.c.h.b16 %v123
  %v807 = vunpack.c.l.b16 %v124
  %v808 = vunpack.c.h.b16 %v124
  %v809 = vunpack.c.l.b16 %v125
  %v810 = vunpack.c.h.b16 %v125
  %v811 = vunpack.c.l.b16 %v126
  %v812 = vunpack.c.h.b16 %v126
  %v813 = vunpack.c.l.b16 %v127
  %v814 = vunpack.c.h.b16 %v127
  %v815 = vunpack.c.l.b16 %v128
  %v816 = vunpack.c.h.b16 %v128
  %v817 = vunpack.c.l.b16 %v129
  %v818 = vunpack.c.h.b16 %v129
  %v819 = vunpack.c.l.b16 %v130
  %v820 = vunpack.c.h.b16 %v130
  %v821 = vunpack.c.l.b16 %v131
  %v822 = vunpack.c.h.b16 %v131
  %v823 = vunpack.c.l.b16 %v132
  %v824 = vunpack.c.h.b16 %v132
  %v825 = vunpack.c.l.b16 %v133
  %v826 = vunpack.c.h.b16 %v133
  %v827 = vunpack.c.l.b16 %v134
  %v828 = vunpack.c.h.b16 %v134
  %v829 = vunpack.c.l.b16 %v135
  %v830 = vunpack.c.h.b16 %v135
  %v831 = vunpack.c.l.b16 %v136
  %v832 = vunpack.c.h.b16 %v136
  %v833 = vunpack.c.l.b16 %v137
  %v834 = vunpack.c.h.b16 %v137
  %v835 = vunpack.c.l.b16 %v138
  %v836 = vunpack.c.h.b16 %v138
  %v837 = vunpack.c.l.b16 %v139
  %v838 = vunpack.c.h.b16 %v139
  %v839 = vunpack.c.l.b16 %v140
  %v840 = vunpack.c.h.b16 %v140
  %v841 = vunpack.c.l.b16 %v141
  %v842 = vunpack.c.h.b16 %v141
  %v843 = vunpack.c.l.b16 %v142
  %v844 = vunpack.c.h.b16 %v142
  %v845 = vunpack.c.l.b16 %v143
  %v846 = vunpack.c.h.b16 %v143
  %v847 = vunpack.c.l.b16 %v144
  %v848 = vunpack.c.h.b16 %v144
  %v849 = vunpack.c.l.b16 %v145
  %v850 = vunpack.c.h.b16 %v145
  %v851 = vunpack.c.l.b16 %v146
  %v852 = vunpack.c.h.b16 %v146
  %v853 = vunpack.c.l.b16 %v147
  %v854 = vunpack.c.h.b16 %v147
  %v855 = vunpack.c.l.b16 %v148
  %v856 = vunpack.c.h.b16 %v148
  %v857 = vunpack.c.l.b16 %v149
  %v858 = vunpack.c.h.b16 %v149
  %v859 = vunpack.c.l.b16 %v150
  %v860 = vunpack.c.h.b16 %v150
  %v861 = vunpack.c.l.b16 %v151
  %v862 = vunpack.c.h.b16 %v151
  %v863 = vunpack.c.l.b16 %v152
  %v864 = vunpack.c.h.b16 %v152
  %v865 = vunpack.c.l.b16 %v153
  %v866 = vunpack.c.h.b16 %v153
  %v867 = vunpack.c.l.b16 %v154
  %v868 = vunpack.c.h.b16 %v154
  %v869 = vunpack.c.l.b16 %v155
  %v870 = vunpack.c.h.b16 %v155
  %v871 = vunpack.c.l.b16 %v156
  %v872 = vunpack.c.h.b16 %v156
  %v873 = vunpack.c.l.b16 %v157
  %v874 = vunpack.c.h.b16 %v157
  %v875 = vunpack.c.l.b16 %v158
  %v876 = vunpack.c.h.b16 %v158
  %v877 = vunpack.c.l.b16 %v159
  %v878 = vunpack.c.h.b16 %v159
  %v879 = vunpack.c.l.b16 %v160
  %v880 = vunpack.c.h.b16 %v160
  %v881 = vunpack.c.l.b16 %v161
  %v882 = vunpack.c.h.b16 %v161
  %v883 = vunpack.c.l.b16 %v162
  %v884 = vunpack.c.h.b16 %v162
  %v885 = vunpack.c.l.b16 %v163
  %v886 = vunpack.c.h.b16 %v163
  %v887 = vunpack.c.l.b16 %v164
  %v888 = vunpack.c.h.b16 %v164
  %v889 = vunpack.c.l.b16 %v165
  %v890 = vunpack.c.h.b16 %v165
  %v891 = vunpack.c.l.b16 %v166
  %v892 = vunpack.c.h.b16 %v166
  %v893 = vunpack.c.l.b16 %v167
  %v894 = vunpack.c.h.b16 %v167
  %v895 = vunpack.c.l.b16 %v168
  %v896 = vunpack.c.h.b16 %v168
  %v897 = vunpack.c.l.b16 %v169
  %v898 = vunpack.c.h.b16 %v169
  %v899 = vunpack.c.l.b16 %v170
  %v900 = vunpack.c.h.b16 %v170
  %v901 = vunpack.c.l.b16 %v171
  %v902 = vunpack.c.h.b16 %v171
  %v903 = vunpack.c.l.b16 %v172
  %v904 = vunpack.c.h.b16 %v172
  %v905 = vunpack.c.l.b16 %v173
  %v906 = vunpack.c.h.b16 %v173
  %v907 = vunpack.c.l.b16 %v174
  %v908 = vunpack.c.h.b16 %v174
  %v909 = vunpack.c.l.b16 %v175
  %v910 = vunpack.c.h.b16 %v175
  %v911 = vunpack.c.l.b16 %v176
  %v912 = vunpack.c.h.b16 %v176
  %v913 = vunpack.c.l.b16 %v177
  %v914 = vunpack.c.h.b16 %v177
  %v915 = vunpack.c.l.b16 %v178
  %v916 = vunpack.c.h.b16 %v178
  %v917 = vunpack.c.l.b16 %v179
  %v918 = vunpack.c.h.b16 %v179
  %v919 = vunpack.c.l.b16 %v180
  %v920 = vunpack.c.h.b16 %v180
  %v921 = vunpack.c.l.b16 %v181
  %v922 = vunpack.c.h.b16 %v181
  %v923 = vunpack.c.l.b16 %v182
  %v924 = vunpack.c.h.b16 %v182
  %v925 = vunpack.c.l.b16 %v183
  %v926 = vunpack.c.h.b16 %v183
  %v927 = vunpack.c.l.b16 %v184
  %v928 = vunpack.c.h.b16 %v184
  %v929 = vunpack.c.l.b16 %v185
  %v930 = vunpack.c.h.b16 %v185
  %v931 = vunpack.c.l.b16 %v186
  %v932 = vunpack.c.h.b16 %v186
  %v933 = vunpack.c.l.b16 %v187
  %v934 = vunpack.c.h.b16 %v187
  %v935 = vunpack.c.l.b16 %v188
  %v936 = vunpack.c.h.b16 %v188
  %v937 = vunpack.c.l.b16 %v189
  %v938 = vunpack.c.h.b16 %v189
  %v939 = vunpack.c.l.b16 %v190
  %v940 = vunpack.c.h.b16 %v190
  %v941 = vunpack.c.l.b16 %v191
  %v942 = vunpack.c.h.b16 %v191
  %v943 = vunpack.c.l.b16 %v192
  %v944 = vunpack.c.h.b16 %v192
  %v945 = vunpack.c.l.b16 %v193
  %v946 = vunpack.c.h.b16 %v193
  %v947 = vunpack.c.l.b16 %v194
  %v948 = vunpack.c.h.b16 %v194
  %v949 = vunpack.c.l.b16 %v195
  %v950 = vunpack.c.h.b16 %v195
  %v951 = vunpack.c.l.b16 %v196
  %v952 = vunpack.c.h.b16 %v196
  %v953 = vunpack.c.l.b16 %v197
  %v954 = vunpack.c.h.b16 %v197
  %v955 = vunpack.c.l.b16 %v198
  %v956 = vunpack.c.h.b16 %v198
  %v957 = vunpack.c.l.b16 %v199
  %v958 = vunpack.c.h.b16 %v199
  %v959 = vunpack.c.l.b16 %v200
  %v960 = vunpack.c.h.b16 %v200
  %v961 = vunpack.c.l.b16 %v201
  %v962 = vunpack.c.h.b16 %v201
  %v963 = vunpack.c.l.b16 %v202
  %v964 = vunpack.c.h.b16 %v202
  %v965 = vunpack.c.l.b16 %v203
  %v966 = vunpack.c.h.b16 %v203
  %v967 = vunpack.c.l.b16 %v204
  %v968 = vunpack.c.h.b16 %v204
  %v969 = vunpack.c.l.b16 %v205
  %v970 = vunpack.c.h.b16 %v205
  %v971 = vunpack.c.l.b16 %v206
  %v972 = vunpack.c.h.b16 %v206
  %v973 = vunpack.c.l.b16 %v207
  %v974 = vunpack.c.h.b16 %v207
  %v975 = vunpack.c.l.b16 %v208
  %v976 = vunpack.c.h.b16 %v208
  %v977 = vunpack.c.l.b16 %v209
  %v978 = vunpack.c.h.b16 %v209
  %v979 = vunpack.c.l.b16 %v210
  %v980 = vunpack.c.h.b16 %v210
  %v981 = vunpack.c.l.b16 %v211
  %v982 = vunpack.c.h.b16 %v211
  %v983 = vunpack.c.l.b16 %v212
  %v984 = vunpack.c.h.b16 %v212
  %v985 = vunpack.c.l.b16 %v213
  %v986 = vunpack.c.h.b16 %v213
  %v987 = vunpack.c.l.b16 %v214
  %v988 = vunpack.c.h.b16 %v214
  %v989 = vunpack.c.l.b16 %v215
  %v990 = vunpack.c.h.b16 %v215
  %v991 = vunpack.c.l.b16 %v216
  %v992 = vunpack.c.h.b16 %v216
  %v993 = vunpack.c.l.b16 %v217
  %v994 = vunpack.c.h.b16 %v217
  %v995 = vunpack.c.l.b16 %v218
  %v996 = vunpack.c.h.b16 %v218
  %v997 = vunpack.c.l.b16 %v219
  %v998 = vunpack.c.h.b16 %v219
  %v999 = vunpack.c.l.b16 %v220
  %v1000 = vunpack.c.h.b16 %v220
  %v1001 = vunpack.c.l.b16 %v221
  %v1002 = vunpack.c.h.b16 %v221
  %v1003 = vunpack.c.l.b16 %v222
  %v1004 = vunpack.c.h.b16 %v222
  %v1005 = vunpack.c.l.b16 %v223
  %v1006 = vunpack.c.h.b16 %v223
  %v1007 = vunpack.c.l.b16 %v224
  %v1008 = vunpack.c.h.b16 %v224
  %v1009 = vunpack.c.l.b16 %v225
  %v1010 = vunpack.c.h.b16 %v225
  %v1011 = vunpack.c.l.b16 %v226
  %v1012 = vunpack.c.h.b16 %v226
  %v1013 = vunpack.c.l.b16 %v227
  %v1014 = vunpack.c.h.b16 %v227
  %v1015 = vunpack.c.l.b16 %v228
  %v1016 = vunpack.c.h.b16 %v228
  %v1017 = vunpack.c.l.b16 %v229
  %v1018 = vunpack.c.h.b16 %v229
  %v1019 = vunpack.c.l.b16 %v230
  %v1020 = vunpack.c.h.b16 %v230
  %v1021 = vunpack.c.l.b16 %v231
  %v1022 = vunpack.c.h.b16 %v231
  %v1023 = vunpack.c.l.b16 %v232
  %v1024 = vunpack.c.h.b16 %v232
  %v1025 = vunpack.c.l.b16 %v233
  %v1026 = vunpack.c.h.b16 %v233
  %v1027 = vunpack.c.l.b16 %v234
  %v1028 = vunpack.c.h.b16 %v234
  %v1029 = vunpack.c.l.b16 %v235
  %v1030 = vunpack.c.h.b16 %v235
  %v1031 = vunpack.c.l.b16 %v236
  %v1032 = vunpack.c.h.b16 %v236
  %v1033 = vunpack.c.l.b16 %v237
  %v1034 = vunpack.c.h.b16 %v237
  %v1035 = vunpack.c.l.b16 %v238
  %v1036 = vunpack.c.h.b16 %v238
  %v1037 = vunpack.c.l.b16 %v239
  %v1038 = vunpack.c.h.b16 %v239
  %v1039 = vunpack.c.l.b16 %v240
  %v1040 = vunpack.c.h.b16 %v240
  %v1041 = vunpack.c.l.b16 %v241
  %v1042 = vunpack.c.h.b16 %v241
  %v1043 = vunpack.c.l.b16 %v242
  %v1044 = vunpack.c.h.b16 %v242
  %v1045 = vunpack.c.l.b16 %v243
  %v1046 = vunpack.c.h.b16 %v243
  %v1047 = vunpack.c.l.b16 %v244
  %v1048 = vunpack.c.h.b16 %v244
  %v1049 = vunpack.c.l.b16 %v245
  %v1050 = vunpack.c.h.b16 %v245
  %v1051 = vunpack.c.l.b16 %v246
  %v1052 = vunpack.c.h.b16 %v246
  %v1053 = vunpack.c.l.b16 %v247
  %v1054 = vunpack.c.h.b16 %v247
  %v1055 = vunpack.c.l.b16 %v248
  %v1056 = vunpack.c.h.b16 %v248
  %v1057 = vunpack.c.l.b16 %v249
  %v1058 = vunpack.c.h.b16 %v249
  %v1059 = vunpack.c.l.b16 %v250
  %v1060 = vunpack.c.h.b16 %v250
  %v1061 = vunpack.c.l.b16 %v251
  %v1062 = vunpack.c.h.b16 %v251
  %v1063 = vunpack.c.l.b16 %v252
  %v1064 = vunpack.c.h.b16 %v252
  %v1065 = vunpack.c.l.b16 %v253
  %v1066 = vunpack.c.h.b16 %v253
  %v1067 = vunpack.c.l.b16 %v254
  %v1068 = vunpack.c.h.b16 %v254
  %v1069 = vunpack.c.l.b16 %v255
  %v1070 = vunpack.c.h.b16 %v255
  %v1071 = vunpack.c.l.b16 %v256
  %v1072 = vunpack.c.h.b16 %v256
  %v1073 = vunpack.c.l.b16 %v257
  %v1074 = vunpack.c.h.b16 %v257
  %v1075 = vunpack.c.l.b16 %v258
  %v1076 = vunpack.c.h.b16 %v258
  %v1077 = vunpack.c.l.b16 %v259
  %v1078 = vunpack.c.h.b16 %v259
  %v1079 = vunpack.c.l.b16 %v260
  %v1080 = vunpack.c.h.b16 %v260
  %v1081 = vunpack.c.l.b16 %v261
  %v1082 = vunpack.c.h.b16 %v261
  %v1083 = vunpack.c.l.b16 %v262
  %v1084 = vunpack.c.h.b16 %v262
  %v1085 = vunpack.c.l.b16 %v263
  %v1086 = vunpack.c.h.b16 %v263
  %v1087 = vunpack.c.l.b16 %v264
  %v1088 = vunpack.c.h.b16 %v264
  %v1089 = vunpack.c.l.b16 %v265
  %v1090 = vunpack.c.h.b16 %v265
  %v1091 = vunpack.c.l.b16 %v266
  %v1092 = vunpack.c.h.b16 %v266
  %v1093 = vunpack.c.l.b16 %v267
  %v1094 = vunpack.c.h.b16 %v267
  %v1095 = vunpack.c.l.b16 %v268
  %v1096 = vunpack.c.h.b16 %v268
  %v1097 = vunpack.c.l.b16 %v269
  %v1098 = vunpack.c.h.b16 %v269
  %v1099 = vunpack.c.l.b16 %v270
  %v1100 = vunpack.c.h.b16 %v270
  %v1101 = vunpack.c.l.b16 %v271
  %v1102 = vunpack.c.h.b16 %v271
  %v1103 = vunpack.c.l.b16 %v272
  %v1104 = vunpack.c.h.b16 %v272
  %v1105 = vunpack.c.l.b16 %v273
  %v1106 = vunpack.c.h.b16 %v273
  %v1107 = vunpack.c.l.b16 %v274
  %v1108 = vunpack.c.h.b16 %v274
  %v1109 = vunpack.c.l.b16 %v275
  %v1110 = vunpack.c.h.b16 %v275
  %v1111 = vunpack.c.l.b16 %v276
  %v1112 = vunpack.c.h.b16 %v276
  %v1113 = vunpack.c.l.b16 %v277
  %v1114 = vunpack.c.h.b16 %v277
  %v1115 = vunpack.c.l.b16 %v278
  %v1116 = vunpack.c.h.b16 %v278
  %v1117 = vunpack.c.l.b16 %v279
  %v1118 = vunpack.c.h.b16 %v279
  %v1119 = vunpack.c.l.b16 %v280
  %v1120 = vunpack.c.h.b16 %v280
  %v1121 = vunpack.c.l.b16 %v281
  %v1122 = vunpack.c.h.b16 %v281
  %v1123 = vunpack.c.l.b16 %v282
  %v1124 = vunpack.c.h.b16 %v282
  %v1125 = vunpack.c.l.b16 %v283
  %v1126 = vunpack.c.h.b16 %v283
  %v1127 = vunpack.c.l.b16 %v284
  %v1128 = vunpack.c.h.b16 %v284
  %v1129 = vunpack.c.l.b16 %v285
  %v1130 = vunpack.c.h.b16 %v285
  %v1131 = vunpack.c.l.b16 %v286
  %v1132 = vunpack.c.h.b16 %v286
  %v1133 = vunpack.c.l.b16 %v287
  %v1134 = vunpack.c.h.b16 %v287
  %v1135 = vunpack.c.l.b16 %v288
  %v1136 = vunpack.c.h.b16 %v288
  %v1137 = vpack.c.b16 %v627, %v625
  %v1138 = vpack.c.b16 %v628, %v626
  %v1139 = vpack.c.b16 %v631, %v629
  %v1140 = vpack.c.b16 %v632, %v630
  %v1141 = vpack.c.b16 %v635, %v633
  %v1142 = vpack.c.b16 %v636, %v634
  %v1143 = vpack.c.b16 %v639, %v637
  %v1144 = vpack.c.b16 %v640, %v638
  %v1145 = vpack.c.b16 %v643, %v641
  %v1146 = vpack.c.b16 %v644, %v642
  %v1147 = vpack.c.b16 %v647, %v645
  %v1148 = vpack.c.b16 %v648, %v646
  %v1149 = vpack.c.b16 %v651, %v649
  %v1150 = vpack.c.b16 %v652, %v650
  %v1151 = vpack.c.b16 %v655, %v653
  %v1152 = vpack.c.b16 %v656, %v654
  %v1153 = vpack.c.b16 %v659, %v657
  %v1154 = vpack.c.b16 %v660, %v658
  %v1155 = vpack.c.b16 %v663, %v661
  %v1156 = vpack.c.b16 %v664, %v662
  %v1157 = vpack.c.b16 %v667, %v665
  %v1158 = vpack.c.b16 %v668, %v666
  %v1159 = vpack.c.b16 %v671, %v669
  %v1160 = vpack.c.b16 %v672, %v670
  %v1161 = vpack.c.b16 %v675, %v673
  %v1162 = vpack.c.b16 %v676, %v674
  %v1163 = vpack.c.b16 %v679, %v677
  %v1164 = vpack.c.b16 %v680, %v678
  %v1165 = vpack.c.b16 %v683, %v681
  %v1166 = vpack.c.b16 %v684, %v682
  %v1167 = vpack.c.b16 %v687, %v685
  %v1168 = vpack.c.b16 %v688, %v686
  %v1169 = vpack.c.b16 %v691, %v689
  %v1170 = vpack.c.b16 %v692, %v690
  %v1171 = vpack.c.b16 %v695, %v693
  %v1172 = vpack.c.b16 %v696, %v694
  %v1173 = vpack.c.b16 %v699, %v697
  %v1174 = vpack.c.b16 %v700, %v698
  %v1175 = vpack.c.b16 %v703, %v701
  %v1176 = vpack.c.b16 %v704, %v702
  %v1177 = vpack.c.b16 %v707, %v705
  %v1178 = vpack.c.b16 %v708, %v706
  %v1179 = vpack.c.b16 %v711, %v709
  %v1180 = vpack.c.b16 %v712, %v710
  %v1181 = vpack.c.b16 %v715, %v713
  %v1182 = vpack.c.b16 %v716, %v714
  %v1183 = vpack.c.b16 %v719, %v717
  %v1184 = vpack.c.b16 %v720, %v718
  %v1185 = vpack.c.b16 %v723, %v721
  %v1186 = vpack.c.b16 %v724, %v722
  %v1187 = vpack.c.b16 %v727, %v725
  %v1188 = vpack.c.b16 %v728, %v726
  %v1189 = vpack.c.b16 %v731, %v729
  %v1190 = vpack.c.b16 %v732, %v730
  %v1191 = vpack.c.b16 %v735, %v733
  %v1192 = vpack.c.b16 %v736, %v734
  %v1193 = vpack.c.b16 %v739, %v737
  %v1194 = vpack.c.b16 %v740, %v738
  %v1195 = vpack.c.b16 %v743, %v741
  %v1196 = vpack.c.b16 %v744, %v742
  %v1197 = vpack.c.b16 %v747, %v745
  %v1198 = vpack.c.b16 %v748, %v746
  %v1199 = vpack.c.b16 %v751, %v749
  %v1200 = vpack.c.b16 %v752, %v750
  %v1201 = vpack.c.b16 %v755, %v753
  %v1202 = vpack.c.b16 %v756, %v754
  %v1203 = vpack.c.b16 %v759, %v757
  %v1204 = vpack.c.b16 %v760, %v758
  %v1205 = vpack.c.b16 %v763, %v761
  %v1206 = vpack.c.b16 %v764, %v762
  %v1207 = vpack.c.b16 %v767, %v765
  %v1208 = vpack.c.b16 %v768, %v766
  %v1209 = vpack.c.b16 %v771, %v769
  %v1210 = vpack.c.b16 %v772, %v770
  %v1211 = vpack.c.b16 %v775, %v773
  %v1212 = vpack.c.b16 %v776, %v774
  %v1213 = vpack.c.b16 %v779, %v777
  %v1214 = vpack.c.b16 %v780, %v778
  %v1215 = vpack.c.b16 %v783, %v781
  %v1216 = vpack.c.b16 %v784, %v782
  %v1217 = vpack.c.b16 %v787, %v785
  %v1218 = vpack.c.b16 %v788, %v786
  %v1219 = vpack.c.b16 %v791, %v789
  %v1220 = vpack.c.b16 %v792, %v790
  %v1221 = vpack.c.b16 %v795, %v793
  %v1222 = vpack.c.b16 %v796, %v794
  %v1223 = vpack.c.b16 %v799, %v797
  %v1224 = vpack.c.b16 %v800, %v798
  %v1225 = vpack.c.b16 %v803, %v801
  %v1226 = vpack.c.b16 %v804, %v802
  %v1227 = vpack.c.b16 %v807, %v805
  %v1228 = vpack.c.b16 %v808, %v806
  %v1229 = vpack.c.b16 %v811, %v809
  %v1230 = vpack.c.b16 %v812, %v810
  %v1231 = vpack.c.b16 %v815, %v813
  %v1232 = vpack.c.b16 %v816, %v814
  %v1233 = vpack.c.b16 %v819, %v817
  %v1234 = vpack.c.b16 %v820, %v818
  %v1235 = vpack.c.b16 %v823, %v821
  %v1236 = vpack.c.b16 %v824, %v822
  %v1237 = vpack.c.b16 %v827, %v825
  %v1238 = vpack.c.b16 %v828, %v826
  %v1239 = vpack.c.b16 %v831, %v829
  %v1240 = vpack.c.b16 %v832, %v830
  %v1241 = vpack.c.b16 %v835, %v833
  %v1242 = vpack.c.b16 %v836, %v834
  %v1243 = vpack.c.b16 %v839, %v837
  %v1244 = vpack.c.b16 %v840, %v838
  %v1245 = vpack.c.b16 %v843, %v841
  %v1246 = vpack.c.b16 %v844, %v842
  %v1247 = vpack.c.b16 %v847, %v845
  %v1248 = vpack.c.b16 %v848, %v846
  %v1249 = vpack.c.b16 %v851, %v849
  %v1250 = vpack.c.b16 %v852, %v850
  %v1251 = vpack.c.b16 %v855, %v853
  %v1252 = vpack.c.b16 %v856, %v854
  %v1253 = vpack.c.b16 %v859, %v857
  %v1254 = vpack.c.b16 %v860, %v858
  %v1255 = vpack.c.b16 %v863, %v861
  %v1256 = vpack.c.b16 %v864, %v862
  %v1257 = vpack.c.b16 %v867, %v865
  %v1258 = vpack.c.b16 %v868, %v866
  %v1259 = vpack.c.b16 %v871, %v869
  %v1260 = vpack.c.b16 %v872, %v870
  %v1261 = vpack.c.b16 %v875, %v873
  %v1262 = vpack.c.b16 %v876, %v874
  %v1263 = vpack.c.b16 %v879, %v877
  %v1264 = vpack.c.b16 %v880, %v878
  %v1265 = vpack.c.b16 %v883, %v881
  %v1266 = vpack.c.b16 %v884, %v882
  %v1267 = vpack.c.b16 %v887, %v885
  %v1268 = vpack.c.b16 %v888, %v886
  %v1269 = vpack.c.b16 %v891, %v889
  %v1270 = vpack.c.b16 %v892, %v890
  %v1271 = vpack.c.b16 %v895, %v893
  %v1272 = vpack.c.b16 %v896, %v894
  %v1273 = vpack.c.b16 %v899, %v897
  %v1274 = vpack.c.b16 %v900, %v898
  %v1275 = vpack.c.b16 %v903, %v901
  %v1276 = vpack.c.b16 %v904, %v902
  %v1277 = vpack.c.b16 %v907, %v905
  %v1278 = vpack.c.b16 %v908, %v906
  %v1279 = vpack.c.b16 %v911, %v909
  %v1280 = vpack.c.b16 %v912, %v910
  %v1281 = vpack.c.b16 %v915, %v913
  %v1282 = vpack.c.b16 %v916, %v914
  %v1283 = vpack.c.b16 %v919, %v917
  %v1284 = vpack.c.b16 %v920, %v918
  %v1285 = vpack.c.b16 %v923, %v921
  %v1286 = vpack.c.b16 %v924, %v922
  %v1287 = vpack.c.b16 %v927, %v925
  %v1288 = vpack.c.b16 %v928, %v926
  %v1289 = vpack.c.b16 %v931, %v929
  %v1290 = vpack.c.b16 %v932, %v930
  %v1291 = vpack.c.b16 %v935, %v933
  %v1292 = vpack.c.b16 %v936, %v934
  %v1293 = vpack.c.b16 %v939, %v937
  %v1294 = vpack.c.b16 %v940, %v938
  %v1295 = vpack.c.b16 %v943, %v941
  %v1296 = vpack.c.b16 %v944, %v942
  %v1297 = vpack.c.b16 %v947, %v945
  %v1298 = vpack.c.b16 %v948, %v946
  %v1299 = vpack.c.b16 %v951, %v949
  %v1300 = vpack.c.b16 %v952, %v950
  %v1301 = vpack.c.b16 %v955, %v953
  %v1302 = vpack.c.b16 %v956, %v954
  %v1303 = vpack.c.b16 %v959, %v957
  %v1304 = vpack.c.b16 %v960, %v958
  %v1305 = vpack.c.b16 %v963, %v961
  %v1306 = vpack.c.b16 %v964, %v962
  %v1307 = vpack.c.b16 %v967, %v965
  %v1308 = vpack.c.b16 %v968, %v966
  %v1309 = vpack.c.b16 %v971, %v969
  %v1310 = vpack.c.b16 %v972, %v970
  %v1311 = vpack.c.b16 %v975, %v973
  %v1312 = vpack.c.b16 %v976, %v974
  %v1313 = vpack.c.b16 %v979, %v977
  %v1314 = vpack.c.b16 %v980, %v978
  %v1315 = vpack.c.b16 %v983, %v981
  %v1316 = vpack.c.b16 %v984, %v982
  %v1317 = vpack.c.b16 %v987, %v985
  %v1318 = vpack.c.b16 %v988, %v986
  %v1319 = vpack.c.b16 %v991, %v989
  %v1320 = vpack.c.b16 %v992, %v990
  %v1321 = vpack.c.b16 %v995, %v993
  %v1322 = vpack.c.b16 %v996, %v994
  %v1323 = vpack.c.b16 %v999, %v997
  %v1324 = vpack.c.b16 %v1000, %v998
  %v1325 = vpack.c.b16 %v1003, %v1001
  %v1326 = vpack.c.b16 %v1004, %v1002
  %v1327 = vpack.c.b16 %v1007, %v1005
  %v1328 = vpack.c.b16 %v1008, %v1006
  %v1329 = vpack.c.b16 %v1011, %v1009
  %v1330 = vpack.c.b16 %v1012, %v1010
  %v1331 = vpack.c.b16 %v1015, %v1013
  %v1332 = vpack.c.b16 %v1016, %v1014
  %v1333 = vpack.c.b16 %v1019, %v1017
  %v1334 = vpack.c.b16 %v1020, %v1018
  %v1335 = vpack.c.b16 %v1023, %v1021
  %v1336 = vpack.c.b16 %v1024, %v1022
  %v1337 = vpack.c.b16 %v1027, %v1025
  %v1338 = vpack.c.b16 %v1028, %v1026
  %v1339 = vpack.c.b16 %v1031, %v1029
  %v1340 = vpack.c.b16 %v1032, %v1030
  %v1341 = vpack.c.b16 %v1035, %v1033
  %v1342 = vpack.c.b16 %v1036, %v1034
  %v1343 = vpack.c.b16 %v1039, %v1037
  %v1344 = vpack.c.b16 %v1040, %v1038
  %v1345 = vpack.c.b16 %v1043, %v1041
  %v1346 = vpack.c.b16 %v1044, %v1042
  %v1347 = vpack.c.b16 %v1047, %v1045
  %v1348 = vpack.c.b16 %v1048, %v1046
  %v1349 = vpack.c.b16 %v1051, %v1049
  %v1350 = vpack.c.b16 %v1052, %v1050
  %v1351 = vpack.c.b16 %v1055, %v1053
  %v1352 = vpack.c.b16 %v1056, %v1054
  %v1353 = vpack.c.b16 %v1059, %v1057
  %v1354 = vpack.c.b16 %v1060, %v1058
  %v1355 = vpack.c.b16 %v1063, %v1061
  %v1356 = vpack.c.b16 %v1064, %v1062
  %v1357 = vpack.c.b16 %v1067, %v1065
  %v1358 = vpack.c.b16 %v1068, %v1066
  %v1359 = vpack.c.b16 %v1071, %v1069
  %v1360 = vpack.c.b16 %v1072, %v1070
  %v1361 = vpack.c.b16 %v1075, %v1073
  %v1362 = vpack.c.b16 %v1076, %v1074
  %v1363 = vpack.c.b16 %v1079, %v1077
  %v1364 = vpack.c.b16 %v1080, %v1078
  %v1365 = vpack.c.b16 %v1083, %v1081
  %v1366 = vpack.c.b16 %v1084, %v1082
  %v1367 = vpack.c.b16 %v1087, %v1085
  %v1368 = vpack.c.b16 %v1088, %v1086
  %v1369 = vpack.c.b16 %v1091, %v1089
  %v1370 = vpack.c.b16 %v1092, %v1090
  %v1371 = vpack.c.b16 %v1095, %v1093
  %v1372 = vpack.c.b16 %v1096, %v1094
  %v1373 = vpack.c.b16 %v1099, %v1097
  %v1374 = vpack.c.b16 %v1100, %v1098
  %v1375 = vpack.c.b16 %v1103, %v1101
  %v1376 = vpack.c.b16 %v1104, %v1102
  %v1377 = vpack.c.b16 %v1107, %v1105
  %v1378 = vpack.c.b16 %v1108, %v1106
  %v1379 = vpack.c.b16 %v1111, %v1109
  %v1380 = vpack.c.b16 %v1112, %v1110
  %v1381 = vpack.c.b16 %v1115, %v1113
  %v1382 = vpack.c.b16 %v1116, %v1114
  %v1383 = vpack.c.b16 %v1119, %v1117
  %v1384 = vpack.c.b16 %v1120, %v1118
  %v1385 = vpack.c.b16 %v1123, %v1121
  %v1386 = vpack.c.b16 %v1124, %v1122
  %v1387 = vpack.c.b16 %v1127, %v1125
  %v1388 = vpack.c.b16 %v1128, %v1126
  %v1389 = vpack.c.b16 %v1131, %v1129
  %v1390 = vpack.c.b16 %v1132, %v1130
  %v1391 = vpack.c.b16 %v1135, %v1133
  %v1392 = vpack.c.b16 %v1136, %v1134
  %1649 = vmatprep.subr.bf16.mxu0 %v1138
  %1650 = vmatpush1.bf16.msra.mxu0 %v1137
  %1651 = vmatprep.subr.bf16.mxu0 %v1140
  %1652 = vmatpush1.bf16.msra.mxu0 %v1139
  %1653 = vmatprep.subr.bf16.mxu0 %v1142
  %1654 = vmatpush1.bf16.msra.mxu0 %v1141
  %1655 = vmatprep.subr.bf16.mxu0 %v1144
  %1656 = vmatpush1.bf16.msra.mxu0 %v1143
  %1657 = vmatprep.subr.bf16.mxu0 %v1146
  %1658 = vmatpush1.bf16.msra.mxu0 %v1145
  %1659 = vmatprep.subr.bf16.mxu0 %v1148
  %1660 = vmatpush1.bf16.msra.mxu0 %v1147
  %1661 = vmatprep.subr.bf16.mxu0 %v1150
  %1662 = vmatpush1.bf16.msra.mxu0 %v1149
  %1663 = vmatprep.subr.bf16.mxu0 %v1152
  %1664 = vmatpush1.bf16.msra.mxu0 %v1151
  %1665 = vmatprep.subr.bf16.mxu0 %v1154
  %1666 = vmatpush1.bf16.msra.mxu0 %v1153
  %1667 = vmatprep.subr.bf16.mxu0 %v1156
  %1668 = vmatpush1.bf16.msra.mxu0 %v1155
  %1669 = vmatprep.subr.bf16.mxu0 %v1158
  %1670 = vmatpush1.bf16.msra.mxu0 %v1157
  %1671 = vmatprep.subr.bf16.mxu0 %v1160
  %1672 = vmatpush1.bf16.msra.mxu0 %v1159
  %1673 = vmatprep.subr.bf16.mxu0 %v1162
  %1674 = vmatpush1.bf16.msra.mxu0 %v1161
  %1675 = vmatprep.subr.bf16.mxu0 %v1164
  %1676 = vmatpush1.bf16.msra.mxu0 %v1163
  %1677 = vmatprep.subr.bf16.mxu0 %v1166
  %1678 = vmatpush1.bf16.msra.mxu0 %v1165
  %1679 = vmatprep.subr.bf16.mxu0 %v1168
  %1680 = vmatpush1.bf16.msra.mxu0 %v1167
  %1681 = vmatprep.mubr.bf16.mxu0 %v338
  %1682 = vmatmul.mubr.bf16.gmra.mrb[0].mxu0 %v337
  %v1683 = vpop.f32.mrb[0].mxu0
  %v1684 = vadd.f32 0.0, %v1683
  %v1685 = vpop.f32.mrb[0].mxu0
  %v1686 = vadd.f32 0.0, %v1685
  %v1687 = vpop.f32.mrb[0].mxu0
  %v1688 = vadd.f32 0.0, %v1687
  %v1689 = vpop.f32.mrb[0].mxu0
  %v1690 = vadd.f32 0.0, %v1689
  %1691 = vdwg.mxu0
  %1692 = vmatprep.subr.bf16.mxu0 %v1170
  %1693 = vmatpush1.bf16.msra.mxu0 %v1169
  %1694 = vmatprep.subr.bf16.mxu0 %v1172
  %1695 = vmatpush1.bf16.msra.mxu0 %v1171
  %1696 = vmatprep.subr.bf16.mxu0 %v1174
  %1697 = vmatpush1.bf16.msra.mxu0 %v1173
  %1698 = vmatprep.subr.bf16.mxu0 %v1176
  %1699 = vmatpush1.bf16.msra.mxu0 %v1175
  %1700 = vmatprep.subr.bf16.mxu0 %v1178
  %1701 = vmatpush1.bf16.msra.mxu0 %v1177
  %1702 = vmatprep.subr.bf16.mxu0 %v1180
  %1703 = vmatpush1.bf16.msra.mxu0 %v1179
  %1704 = vmatprep.subr.bf16.mxu0 %v1182
  %1705 = vmatpush1.bf16.msra.mxu0 %v1181
  %1706 = vmatprep.subr.bf16.mxu0 %v1184
  %1707 = vmatpush1.bf16.msra.mxu0 %v1183
  %1708 = vmatprep.subr.bf16.mxu0 %v1186
  %1709 = vmatpush1.bf16.msra.mxu0 %v1185
  %1710 = vmatprep.subr.bf16.mxu0 %v1188
  %1711 = vmatpush1.bf16.msra.mxu0 %v1187
  %1712 = vmatprep.subr.bf16.mxu0 %v1190
  %1713 = vmatpush1.bf16.msra.mxu0 %v1189
  %1714 = vmatprep.subr.bf16.mxu0 %v1192
  %1715 = vmatpush1.bf16.msra.mxu0 %v1191
  %1716 = vmatprep.subr.bf16.mxu0 %v1194
  %1717 = vmatpush1.bf16.msra.mxu0 %v1193
  %1718 = vmatprep.subr.bf16.mxu0 %v1196
  %1719 = vmatpush1.bf16.msra.mxu0 %v1195
  %1720 = vmatprep.subr.bf16.mxu0 %v1198
  %1721 = vmatpush1.bf16.msra.mxu0 %v1197
  %1722 = vmatprep.subr.bf16.mxu0 %v1200
  %1723 = vmatpush1.bf16.msra.mxu0 %v1199
  %1724 = vmatprep.mubr.bf16.mxu0 %v340
  %1725 = vmatmul.mubr.bf16.gmra.mrb[0].mxu0 %v339
  %v1726 = vpop.f32.mrb[0].mxu0
  %v1727 = vadd.f32 %v1684, %v1726
  %v1728 = vpop.f32.mrb[0].mxu0
  %v1729 = vadd.f32 %v1686, %v1728
  %v1730 = vpop.f32.mrb[0].mxu0
  %v1731 = vadd.f32 %v1688, %v1730
  %v1732 = vpop.f32.mrb[0].mxu0
  %v1733 = vadd.f32 %v1690, %v1732
  %1734 = vdwg.mxu0
  %1735 = vmatprep.subr.bf16.mxu0 %v1202
  %1736 = vmatpush1.bf16.msra.mxu0 %v1201
  %1737 = vmatprep.subr.bf16.mxu0 %v1204
  %1738 = vmatpush1.bf16.msra.mxu0 %v1203
  %1739 = vmatprep.subr.bf16.mxu0 %v1206
  %1740 = vmatpush1.bf16.msra.mxu0 %v1205
  %1741 = vmatprep.subr.bf16.mxu0 %v1208
  %1742 = vmatpush1.bf16.msra.mxu0 %v1207
  %1743 = vmatprep.subr.bf16.mxu0 %v1210
  %1744 = vmatpush1.bf16.msra.mxu0 %v1209
  %1745 = vmatprep.subr.bf16.mxu0 %v1212
  %1746 = vmatpush1.bf16.msra.mxu0 %v1211
  %1747 = vmatprep.subr.bf16.mxu0 %v1214
  %1748 = vmatpush1.bf16.msra.mxu0 %v1213
  %1749 = vmatprep.subr.bf16.mxu0 %v1216
  %1750 = vmatpush1.bf16.msra.mxu0 %v1215
  %1751 = vmatprep.subr.bf16.mxu0 %v1218
  %1752 = vmatpush1.bf16.msra.mxu0 %v1217
  %1753 = vmatprep.subr.bf16.mxu0 %v1220
  %1754 = vmatpush1.bf16.msra.mxu0 %v1219
  %1755 = vmatprep.subr.bf16.mxu0 %v1222
  %1756 = vmatpush1.bf16.msra.mxu0 %v1221
  %1757 = vmatprep.subr.bf16.mxu0 %v1224
  %1758 = vmatpush1.bf16.msra.mxu0 %v1223
  %1759 = vmatprep.subr.bf16.mxu0 %v1226
  %1760 = vmatpush1.bf16.msra.mxu0 %v1225
  %1761 = vmatprep.subr.bf16.mxu0 %v1228
  %1762 = vmatpush1.bf16.msra.mxu0 %v1227
  %1763 = vmatprep.subr.bf16.mxu0 %v1230
  %1764 = vmatpush1.bf16.msra.mxu0 %v1229
  %1765 = vmatprep.subr.bf16.mxu0 %v1232
  %1766 = vmatpush1.bf16.msra.mxu0 %v1231
  %1767 = vmatprep.mubr.bf16.mxu0 %v342
  %1768 = vmatmul.mubr.bf16.gmra.mrb[0].mxu0 %v341
  %v1769 = vpop.f32.mrb[0].mxu0
  %v1770 = vadd.f32 %v1727, %v1769
  %v1771 = vpop.f32.mrb[0].mxu0
  %v1772 = vadd.f32 %v1729, %v1771
  %v1773 = vpop.f32.mrb[0].mxu0
  %v1774 = vadd.f32 %v1731, %v1773
  %v1775 = vpop.f32.mrb[0].mxu0
  %v1776 = vadd.f32 %v1733, %v1775
  %1777 = vdwg.mxu0
  %1778 = vmatprep.subr.bf16.mxu0 %v1234
  %1779 = vmatpush1.bf16.msra.mxu0 %v1233
  %1780 = vmatprep.subr.bf16.mxu0 %v1236
  %1781 = vmatpush1.bf16.msra.mxu0 %v1235
  %1782 = vmatprep.subr.bf16.mxu0 %v1238
  %1783 = vmatpush1.bf16.msra.mxu0 %v1237
  %1784 = vmatprep.subr.bf16.mxu0 %v1240
  %1785 = vmatpush1.bf16.msra.mxu0 %v1239
  %1786 = vmatprep.subr.bf16.mxu0 %v1242
  %1787 = vmatpush1.bf16.msra.mxu0 %v1241
  %1788 = vmatprep.subr.bf16.mxu0 %v1244
  %1789 = vmatpush1.bf16.msra.mxu0 %v1243
  %1790 = vmatprep.subr.bf16.mxu0 %v1246
  %1791 = vmatpush1.bf16.msra.mxu0 %v1245
  %1792 = vmatprep.subr.bf16.mxu0 %v1248
  %1793 = vmatpush1.bf16.msra.mxu0 %v1247
  %1794 = vmatprep.subr.bf16.mxu0 %v1250
  %1795 = vmatpush1.bf16.msra.mxu0 %v1249
  %1796 = vmatprep.subr.bf16.mxu0 %v1252
  %1797 = vmatpush1.bf16.msra.mxu0 %v1251
  %1798 = vmatprep.subr.bf16.mxu0 %v1254
  %1799 = vmatpush1.bf16.msra.mxu0 %v1253
  %1800 = vmatprep.subr.bf16.mxu0 %v1256
  %1801 = vmatpush1.bf16.msra.mxu0 %v1255
  %1802 = vmatprep.subr.bf16.mxu0 %v1258
  %1803 = vmatpush1.bf16.msra.mxu0 %v1257
  %1804 = vmatprep.subr.bf16.mxu0 %v1260
  %1805 = vmatpush1.bf16.msra.mxu0 %v1259
  %1806 = vmatprep.subr.bf16.mxu0 %v1262
  %1807 = vmatpush1.bf16.msra.mxu0 %v1261
  %1808 = vmatprep.subr.bf16.mxu0 %v1264
  %1809 = vmatpush1.bf16.msra.mxu0 %v1263
  %1810 = vmatprep.mubr.bf16.mxu0 %v344
  %1811 = vmatmul.mubr.bf16.gmra.mrb[0].mxu0 %v343
  %v1812 = vpop.f32.mrb[0].mxu0
  %v1813 = vadd.f32 %v1770, %v1812
  %v1814 = vpop.f32.mrb[0].mxu0
  %v1815 = vadd.f32 %v1772, %v1814
  %v1816 = vpop.f32.mrb[0].mxu0
  %v1817 = vadd.f32 %v1774, %v1816
  %v1818 = vpop.f32.mrb[0].mxu0
  %v1819 = vadd.f32 %v1776, %v1818
  %1820 = vdwg.mxu0
  %1821 = vmatprep.subr.bf16.mxu0 %v1266
  %1822 = vmatpush1.bf16.msra.mxu0 %v1265
  %1823 = vmatprep.subr.bf16.mxu0 %v1268
  %1824 = vmatpush1.bf16.msra.mxu0 %v1267
  %1825 = vmatprep.subr.bf16.mxu0 %v1270
  %1826 = vmatpush1.bf16.msra.mxu0 %v1269
  %1827 = vmatprep.subr.bf16.mxu0 %v1272
  %1828 = vmatpush1.bf16.msra.mxu0 %v1271
  %1829 = vmatprep.subr.bf16.mxu0 %v1274
  %1830 = vmatpush1.bf16.msra.mxu0 %v1273
  %1831 = vmatprep.subr.bf16.mxu0 %v1276
  %1832 = vmatpush1.bf16.msra.mxu0 %v1275
  %1833 = vmatprep.subr.bf16.mxu0 %v1278
  %1834 = vmatpush1.bf16.msra.mxu0 %v1277
  %1835 = vmatprep.subr.bf16.mxu0 %v1280
  %1836 = vmatpush1.bf16.msra.mxu0 %v1279
  %1837 = vmatprep.subr.bf16.mxu0 %v1282
  %1838 = vmatpush1.bf16.msra.mxu0 %v1281
  %1839 = vmatprep.subr.bf16.mxu0 %v1284
  %1840 = vmatpush1.bf16.msra.mxu0 %v1283
  %1841 = vmatprep.subr.bf16.mxu0 %v1286
  %1842 = vmatpush1.bf16.msra.mxu0 %v1285
  %1843 = vmatprep.subr.bf16.mxu0 %v1288
  %1844 = vmatpush1.bf16.msra.mxu0 %v1287
  %1845 = vmatprep.subr.bf16.mxu0 %v1290
  %1846 = vmatpush1.bf16.msra.mxu0 %v1289
  %1847 = vmatprep.subr.bf16.mxu0 %v1292
  %1848 = vmatpush1.bf16.msra.mxu0 %v1291
  %1849 = vmatprep.subr.bf16.mxu0 %v1294
  %1850 = vmatpush1.bf16.msra.mxu0 %v1293
  %1851 = vmatprep.subr.bf16.mxu0 %v1296
  %1852 = vmatpush1.bf16.msra.mxu0 %v1295
  %1853 = vmatprep.mubr.bf16.mxu0 %v346
  %1854 = vmatmul.mubr.bf16.gmra.mrb[0].mxu0 %v345
  %v1855 = vpop.f32.mrb[0].mxu0
  %v1856 = vadd.f32 %v1813, %v1855
  %v1857 = vpop.f32.mrb[0].mxu0
  %v1858 = vadd.f32 %v1815, %v1857
  %v1859 = vpop.f32.mrb[0].mxu0
  %v1860 = vadd.f32 %v1817, %v1859
  %v1861 = vpop.f32.mrb[0].mxu0
  %v1862 = vadd.f32 %v1819, %v1861
  %1863 = vdwg.mxu0
  %1864 = vmatprep.subr.bf16.mxu0 %v1298
  %1865 = vmatpush1.bf16.msra.mxu0 %v1297
  %1866 = vmatprep.subr.bf16.mxu0 %v1300
  %1867 = vmatpush1.bf16.msra.mxu0 %v1299
  %1868 = vmatprep.subr.bf16.mxu0 %v1302
  %1869 = vmatpush1.bf16.msra.mxu0 %v1301
  %1870 = vmatprep.subr.bf16.mxu0 %v1304
  %1871 = vmatpush1.bf16.msra.mxu0 %v1303
  %1872 = vmatprep.subr.bf16.mxu0 %v1306
  %1873 = vmatpush1.bf16.msra.mxu0 %v1305
  %1874 = vmatprep.subr.bf16.mxu0 %v1308
  %1875 = vmatpush1.bf16.msra.mxu0 %v1307
  %1876 = vmatprep.subr.bf16.mxu0 %v1310
  %1877 = vmatpush1.bf16.msra.mxu0 %v1309
  %1878 = vmatprep.subr.bf16.mxu0 %v1312
  %1879 = vmatpush1.bf16.msra.mxu0 %v1311
  %1880 = vmatprep.subr.bf16.mxu0 %v1314
  %1881 = vmatpush1.bf16.msra.mxu0 %v1313
  %1882 = vmatprep.subr.bf16.mxu0 %v1316
  %1883 = vmatpush1.bf16.msra.mxu0 %v1315
  %1884 = vmatprep.subr.bf16.mxu0 %v1318
  %1885 = vmatpush1.bf16.msra.mxu0 %v1317
  %1886 = vmatprep.subr.bf16.mxu0 %v1320
  %1887 = vmatpush1.bf16.msra.mxu0 %v1319
  %1888 = vmatprep.subr.bf16.mxu0 %v1322
  %1889 = vmatpush1.bf16.msra.mxu0 %v1321
  %1890 = vmatprep.subr.bf16.mxu0 %v1324
  %1891 = vmatpush1.bf16.msra.mxu0 %v1323
  %1892 = vmatprep.subr.bf16.mxu0 %v1326
  %1893 = vmatpush1.bf16.msra.mxu0 %v1325
  %1894 = vmatprep.subr.bf16.mxu0 %v1328
  %1895 = vmatpush1.bf16.msra.mxu0 %v1327
  %1896 = vmatprep.mubr.bf16.mxu0 %v348
  %1897 = vmatmul.mubr.bf16.gmra.mrb[0].mxu0 %v347
  %v1898 = vpop.f32.mrb[0].mxu0
  %v1899 = vadd.f32 %v1856, %v1898
  %v1900 = vpop.f32.mrb[0].mxu0
  %v1901 = vadd.f32 %v1858, %v1900
  %v1902 = vpop.f32.mrb[0].mxu0
  %v1903 = vadd.f32 %v1860, %v1902
  %v1904 = vpop.f32.mrb[0].mxu0
  %v1905 = vadd.f32 %v1862, %v1904
  %1906 = vdwg.mxu0
  %1907 = vmatprep.subr.bf16.mxu0 %v1330
  %1908 = vmatpush1.bf16.msra.mxu0 %v1329
  %1909 = vmatprep.subr.bf16.mxu0 %v1332
  %1910 = vmatpush1.bf16.msra.mxu0 %v1331
  %1911 = vmatprep.subr.bf16.mxu0 %v1334
  %1912 = vmatpush1.bf16.msra.mxu0 %v1333
  %1913 = vmatprep.subr.bf16.mxu0 %v1336
  %1914 = vmatpush1.bf16.msra.mxu0 %v1335
  %1915 = vmatprep.subr.bf16.mxu0 %v1338
  %1916 = vmatpush1.bf16.msra.mxu0 %v1337
  %1917 = vmatprep.subr.bf16.mxu0 %v1340
  %1918 = vmatpush1.bf16.msra.mxu0 %v1339
  %1919 = vmatprep.subr.bf16.mxu0 %v1342
  %1920 = vmatpush1.bf16.msra.mxu0 %v1341
  %1921 = vmatprep.subr.bf16.mxu0 %v1344
  %1922 = vmatpush1.bf16.msra.mxu0 %v1343
  %1923 = vmatprep.subr.bf16.mxu0 %v1346
  %1924 = vmatpush1.bf16.msra.mxu0 %v1345
  %1925 = vmatprep.subr.bf16.mxu0 %v1348
  %1926 = vmatpush1.bf16.msra.mxu0 %v1347
  %1927 = vmatprep.subr.bf16.mxu0 %v1350
  %1928 = vmatpush1.bf16.msra.mxu0 %v1349
  %1929 = vmatprep.subr.bf16.mxu0 %v1352
  %1930 = vmatpush1.bf16.msra.mxu0 %v1351
  %1931 = vmatprep.subr.bf16.mxu0 %v1354
  %1932 = vmatpush1.bf16.msra.mxu0 %v1353
  %1933 = vmatprep.subr.bf16.mxu0 %v1356
  %1934 = vmatpush1.bf16.msra.mxu0 %v1355
  %1935 = vmatprep.subr.bf16.mxu0 %v1358
  %1936 = vmatpush1.bf16.msra.mxu0 %v1357
  %1937 = vmatprep.subr.bf16.mxu0 %v1360
  %1938 = vmatpush1.bf16.msra.mxu0 %v1359
  %1939 = vmatprep.mubr.bf16.mxu0 %v350
  %1940 = vmatmul.mubr.bf16.gmra.mrb[0].mxu0 %v349
  %v1941 = vpop.f32.mrb[0].mxu0
  %v1942 = vadd.f32 %v1899, %v1941
  %v1943 = vpop.f32.mrb[0].mxu0
  %v1944 = vadd.f32 %v1901, %v1943
  %v1945 = vpop.f32.mrb[0].mxu0
  %v1946 = vadd.f32 %v1903, %v1945
  %v1947 = vpop.f32.mrb[0].mxu0
  %v1948 = vadd.f32 %v1905, %v1947
  %1949 = vdwg.mxu0
  %1950 = vmatprep.subr.bf16.mxu0 %v1362
  %1951 = vmatpush1.bf16.msra.mxu0 %v1361
  %1952 = vmatprep.subr.bf16.mxu0 %v1364
  %1953 = vmatpush1.bf16.msra.mxu0 %v1363
  %1954 = vmatprep.subr.bf16.mxu0 %v1366
  %1955 = vmatpush1.bf16.msra.mxu0 %v1365
  %1956 = vmatprep.subr.bf16.mxu0 %v1368
  %1957 = vmatpush1.bf16.msra.mxu0 %v1367
  %1958 = vmatprep.subr.bf16.mxu0 %v1370
  %1959 = vmatpush1.bf16.msra.mxu0 %v1369
  %1960 = vmatprep.subr.bf16.mxu0 %v1372
  %1961 = vmatpush1.bf16.msra.mxu0 %v1371
  %1962 = vmatprep.subr.bf16.mxu0 %v1374
  %1963 = vmatpush1.bf16.msra.mxu0 %v1373
  %1964 = vmatprep.subr.bf16.mxu0 %v1376
  %1965 = vmatpush1.bf16.msra.mxu0 %v1375
  %1966 = vmatprep.subr.bf16.mxu0 %v1378
  %1967 = vmatpush1.bf16.msra.mxu0 %v1377
  %1968 = vmatprep.subr.bf16.mxu0 %v1380
  %1969 = vmatpush1.bf16.msra.mxu0 %v1379
  %1970 = vmatprep.subr.bf16.mxu0 %v1382
  %1971 = vmatpush1.bf16.msra.mxu0 %v1381
  %1972 = vmatprep.subr.bf16.mxu0 %v1384
  %1973 = vmatpush1.bf16.msra.mxu0 %v1383
  %1974 = vmatprep.subr.bf16.mxu0 %v1386
  %1975 = vmatpush1.bf16.msra.mxu0 %v1385
  %1976 = vmatprep.subr.bf16.mxu0 %v1388
  %1977 = vmatpush1.bf16.msra.mxu0 %v1387
  %1978 = vmatprep.subr.bf16.mxu0 %v1390
  %1979 = vmatpush1.bf16.msra.mxu0 %v1389
  %1980 = vmatprep.subr.bf16.mxu0 %v1392
  %1981 = vmatpush1.bf16.msra.mxu0 %v1391
  %1982 = vmatprep.mubr.bf16.mxu0 %v352
  %1983 = vmatmul.mubr.bf16.gmra.mrb[0].mxu0 %v351
  %v1984 = vpop.f32.mrb[0].mxu0
  %v1985 = vadd.f32 %v1942, %v1984
  %v1986 = vpop.f32.mrb[0].mxu0
  %v1987 = vadd.f32 %v1944, %v1986
  %v1988 = vpop.f32.mrb[0].mxu0
  %v1989 = vadd.f32 %v1946, %v1988
  %v1990 = vpop.f32.mrb[0].mxu0
  %v1991 = vadd.f32 %v1948, %v1990
  %1992 = vdwg.mxu0
  %v1993 = vld [vmem:[%s2] sm:$0x3]
  %v1995 = vlaneseq
  %v1996 = vshrl.u32 %v1995, 7
  %v1997 = vsub.s32 0, %v1996
  %v1998 = vrot.slane %v1993, %v1997
  %v1999 = vlaneseq
  %v2000 = vshrl.u32 %v1999, 7
  %v2001 = vsub.s32 1, %v2000
  %v2002 = vrot.slane %v1993, %v2001
  %v2005 = vmul.f32 %v1985, %v1998
  %v2006 = vmul.f32 %v1987, %v2002
  %v2007 = vmul.f32 %v1989, %v1998
  %v2008 = vmul.f32 %v1991, %v2002
  %v2009 = vld [vmem:[%s3] sm:$0x3]
  %v2011 = vlaneseq
  %v2012 = vshrl.u32 %v2011, 7
  %v2013 = vsub.s32 0, %v2012
  %v2014 = vrot.slane %v2009, %v2013
  %v2015 = vlaneseq
  %v2016 = vshrl.u32 %v2015, 7
  %v2017 = vsub.s32 1, %v2016
  %v2018 = vrot.slane %v2009, %v2017
  %v2021 = vadd.f32 %v2005, %v2014
  %v2022 = vadd.f32 %v2006, %v2018
  %v2023 = vadd.f32 %v2007, %v2014
  %v2024 = vadd.f32 %v2008, %v2018
  %v2025 = vmax.f32 %v2021, 0.0
  %v2026 = vmax.f32 %v2022, 0.0
  %v2027 = vmax.f32 %v2023, 0.0
  %v2028 = vmax.f32 %v2024, 0.0
  %v2029 = vpack.c.bf16 %v2027, %v2025
  %v2030 = vpack.c.bf16 %v2028, %v2026
  %v2033 = vunpack.c.l.b16 %v2029
  %v2034 = vunpack.c.l.b16 %v2030
  %v2035 = vunpack.c.h.b16 %v2029
  %v2036 = vunpack.c.h.b16 %v2030
  %v2037 = vpack.c.b16 %v2034, %v2033
  %v2038 = vpack.c.b16 %v2036, %v2035
  %2041 = vst [vmem:[%s4] sm:$0xff] %v2037
  %2042 = vst [vmem:[%s4 + $0x8] sm:$0xff] %v2038
  // Predicated region
  $region18: #{dense_grasp_forward.74} parent=0 // pred_check
    _
  $region19: #{dense_grasp_forward.74} parent=0 // pred_check_branch
    %2044 = sbr.rel (0) target = $region21
  $region20: #{dense_grasp_forward.74} parent=0 // pred_region
    _
  $region21: #{dense_grasp_forward.74} parent=0 // pred_fallthru
    _
  // Predicated region
  $region22: #{dense_grasp_forward.74} parent=0 // pred_check
    _
  $region23: #{dense_grasp_forward.74} parent=0 // pred_check_branch
    %2046 = sbr.rel (0) target = $region25
  $region24: #{dense_grasp_forward.74} parent=0 // pred_region
    _
  $region25: #{dense_grasp_forward.74} parent=0 // pred_fallthru
    _

// kernel: tile.27
$region0: #{tile.27}
  #allocation0 [shape = 's32[1]{0}', space=sflag, size = 0x4, scoped, tag = 'scoped memory for tile.27']
  %s0 = inlined_call_operand.vmem [shape: f32[32], index: 0, kind: input, shape index: {}]
  %s1 = inlined_call_operand.vmem [shape: f32[4,32], index: 1, kind: output, shape index: {}]
  // Predicated region
  $region2: #{tile.27} parent=0 // pred_check
    _
  $region3: #{tile.27} parent=0 // pred_check_branch
    %3 = sbr.rel (0) target = $region5
  $region4: #{tile.27} parent=0 // pred_region
    _
  $region5: #{tile.27} parent=0 // pred_fallthru
    _
  %v4 = vld [vmem:[%s0] ss:$0 sm:$0xff]
  %5 = vst [vmem:[%s1] sm:$0xf] %v4

// kernel: tile.28
$region0: #{tile.28}
  %s0 = inlined_call_operand.vmem [shape: f32[4,32], index: 0, kind: input, shape index: {}]
  %s1 = inlined_call_operand.vmem [shape: f32[1,128], index: 1, kind: output, shape index: {}]
  $region1: #{tile.28} parent=0
    #allocation0 [shape = 'u8[4096]{0}', space=vmem, size = 0x1000, scoped, tag = 'scoped mem for output reshape']
    #allocation1 [shape = 'u8[4096]{0}', space=vmem, size = 0x1000, scoped, tag = 'scoped mem for input reshape']
    %s3 = sshllo.u32 0, 4
    %v4 = vld [vmem:[%s0] sm:%s3]
    %5 = vst [vmem:[#allocation1] sm:%s3] %v4
    %v6 = vld [vmem:[#allocation1] sm:$0x1]
    %vm7 = vcmask 261120
    %8 = vst.msk [vmem:[#allocation0] sm:$0x1] %vm7, %v6
    %s9 = scalar_lea.vmem [#allocation1], 3
    %v10 = vld [vmem:[%s9] sm:$0x1]
    %11 = vrot.lane.b32.xlu0 %v10, 96
    %v12 = vpop.permute.xlu0 %11
    %vm13 = vcmask 1048320
    %14 = vst.msk [vmem:[#allocation0] sm:$0x1] %vm13, %v12
    %s15 = scalar_lea.vmem [#allocation1], 2
    %v16 = vld [vmem:[%s15] sm:$0x1]
    %17 = vrot.lane.b32.xlu0 %v16, 64
    %v18 = vpop.permute.xlu0 %17
    %vm19 = vcmask 785920
    %20 = vst.msk [vmem:[#allocation0] sm:$0x1] %vm19, %v18
    %s21 = scalar_lea.vmem [#allocation1], 1
    %v22 = vld [vmem:[%s21] sm:$0x1]
    %23 = vrot.lane.b32.xlu0 %v22, 32
    %v24 = vpop.permute.xlu0 %23
    %vm25 = vcmask 523520
    %26 = vst.msk [vmem:[#allocation0] sm:$0x1] %vm25, %v24
    %s28 = sshllo.u32 0, 1
    %v30 = vld [vmem:[#allocation0] sm:%s28]
    %s31 = sshllo.u32 0, 1
    %32 = vst [vmem:[%s1] sm:%s31] %v30

// kernel: dense_grasp_forward.75
$region0: #{dense_grasp_forward.75}
  #allocation0 [shape = 'u32[]', space=smem, size = 0x4, offset = 0x4, fixed_abs, tag = 'smem constant byte address 0x4 - core index']
  #allocation1 [shape = 'u32[144,128]{1,0:T(1,128)}', space=vmem, size = 0x12000, scoped, tag = 'internal scratch']
  %s0 = inlined_call_operand.vmem [shape: bf16[32,640], index: 0, kind: input, shape index: {}]
  %s1 = inlined_call_operand.vmem [shape: bf16[640,128], index: 1, kind: input, shape index: {}]
  %s2 = inlined_call_operand.vmem [shape: f32[1,128], index: 2, kind: input, shape index: {}]
  %s3 = inlined_call_operand.vmem [shape: f32[1,128], index: 3, kind: input, shape index: {}]
  %s4 = inlined_call_operand.vmem [shape: bf16[32,128], index: 4, kind: output, shape index: {}]
  %s5 = sld [smem:[#allocation0]]
  $region26: #{dense_grasp_forward.75} parent=0
    _
  %s7 = ssub.s32 1, %s5
  %s8 = scalar_select 0, %s7, %s5
  // Predicated region
  $region2: #{dense_grasp_forward.75} parent=0 // pred_check
    _
  $region3: #{dense_grasp_forward.75} parent=0 // pred_check_branch
    %10 = sbr.rel (0) target = $region5
  $region4: #{dense_grasp_forward.75} parent=0 // pred_region
    _
  $region5: #{dense_grasp_forward.75} parent=0 // pred_fallthru
    _
  // Predicated region
  $region6: #{dense_grasp_forward.75} parent=0 // pred_check
    _
  $region7: #{dense_grasp_forward.75} parent=0 // pred_check_branch
    %12 = sbr.rel (0) target = $region9
  $region8: #{dense_grasp_forward.75} parent=0 // pred_region
    _
  $region9: #{dense_grasp_forward.75} parent=0 // pred_fallthru
    _
  // Predicated region
  $region10: #{dense_grasp_forward.75} parent=0 // pred_check
    _
  $region11: #{dense_grasp_forward.75} parent=0 // pred_check_branch
    %14 = sbr.rel (0) target = $region13
  $region12: #{dense_grasp_forward.75} parent=0 // pred_region
    _
  $region13: #{dense_grasp_forward.75} parent=0 // pred_fallthru
    _
  // Predicated region
  $region14: #{dense_grasp_forward.75} parent=0 // pred_check
    _
  $region15: #{dense_grasp_forward.75} parent=0 // pred_check_branch
    %16 = sbr.rel (0) target = $region17
  $region16: #{dense_grasp_forward.75} parent=0 // pred_region
    _
  $region17: #{dense_grasp_forward.75} parent=0 // pred_fallthru
    _
  %v18 = vld [vmem:[%s0] sm:$0xff]
  %v19 = vld [vmem:[%s0 + $0x8] sm:$0xff]
  %v20 = vld [vmem:[%s0 + $0x10] sm:$0xf]
  %v21 = vld [vmem:[%s0 + $0x14] sm:$0xff]
  %v22 = vld [vmem:[%s0 + $0x1c] sm:$0xff]
  %v23 = vld [vmem:[%s0 + $0x24] sm:$0xf]
  %v24 = vld [vmem:[%s0 + $0x28] sm:$0xff]
  %v25 = vld [vmem:[%s0 + $0x30] sm:$0xff]
  %v26 = vld [vmem:[%s0 + $0x38] sm:$0xf]
  %v27 = vld [vmem:[%s0 + $0x3c] sm:$0xff]
  %v28 = vld [vmem:[%s0 + $0x44] sm:$0xff]
  %v29 = vld [vmem:[%s0 + $0x4c] sm:$0xf]
  %v30 = vld [vmem:[%s1] sm:$0xf]
  %v31 = vld [vmem:[%s1 + $0x4] sm:$0xf]
  %v32 = vld [vmem:[%s1 + $0x8] sm:$0xf]
  %v33 = vld [vmem:[%s1 + $0xc] sm:$0xf]
  %v34 = vld [vmem:[%s1 + $0x10] sm:$0xf]
  %v35 = vld [vmem:[%s1 + $0x14] sm:$0xf]
  %v36 = vld [vmem:[%s1 + $0x18] sm:$0xf]
  %v37 = vld [vmem:[%s1 + $0x1c] sm:$0xf]
  %v38 = vld [vmem:[%s1 + $0x20] sm:$0xf]
  %v39 = vld [vmem:[%s1 + $0x24] sm:$0xf]
  %v40 = vld [vmem:[%s1 + $0x28] sm:$0xf]
  %v41 = vld [vmem:[%s1 + $0x2c] sm:$0xf]
  %v42 = vld [vmem:[%s1 + $0x30] sm:$0xf]
  %v43 = vld [vmem:[%s1 + $0x34] sm:$0xf]
  %v44 = vld [vmem:[%s1 + $0x38] sm:$0xf]
  %v45 = vld [vmem:[%s1 + $0x3c] sm:$0xf]
  %v46 = vld [vmem:[%s1 + $0x40] sm:$0xf]
  %v47 = vld [vmem:[%s1 + $0x44] sm:$0xf]
  %v48 = vld [vmem:[%s1 + $0x48] sm:$0xf]
  %v49 = vld [vmem:[%s1 + $0x4c] sm:$0xf]
  %v50 = vld [vmem:[%s1 + $0x50] sm:$0xf]
  %v51 = vld [vmem:[%s1 + $0x54] sm:$0xf]
  %v52 = vld [vmem:[%s1 + $0x58] sm:$0xf]
  %v53 = vld [vmem:[%s1 + $0x5c] sm:$0xf]
  %v54 = vld [vmem:[%s1 + $0x60] sm:$0xf]
  %v55 = vld [vmem:[%s1 + $0x64] sm:$0xf]
  %v56 = vld [vmem:[%s1 + $0x68] sm:$0xf]
  %v57 = vld [vmem:[%s1 + $0x6c] sm:$0xf]
  %v58 = vld [vmem:[%s1 + $0x70] sm:$0xf]
  %v59 = vld [vmem:[%s1 + $0x74] sm:$0xf]
  %v60 = vld [vmem:[%s1 + $0x78] sm:$0xf]
  %v61 = vld [vmem:[%s1 + $0x7c] sm:$0xf]
  %v62 = vld [vmem:[%s1 + $0x80] sm:$0xf]
  %v63 = vld [vmem:[%s1 + $0x84] sm:$0xf]
  %v64 = vld [vmem:[%s1 + $0x88] sm:$0xf]
  %v65 = vld [vmem:[%s1 + $0x8c] sm:$0xf]
  %v66 = vld [vmem:[%s1 + $0x90] sm:$0xf]
  %v67 = vld [vmem:[%s1 + $0x94] sm:$0xf]
  %v68 = vld [vmem:[%s1 + $0x98] sm:$0xf]
  %v69 = vld [vmem:[%s1 + $0x9c] sm:$0xf]
  %v70 = vld [vmem:[%s1 + $0xa0] sm:$0xf]
  %v71 = vld [vmem:[%s1 + $0xa4] sm:$0xf]
  %v72 = vld [vmem:[%s1 + $0xa8] sm:$0xf]
  %v73 = vld [vmem:[%s1 + $0xac] sm:$0xf]
  %v74 = vld [vmem:[%s1 + $0xb0] sm:$0xf]
  %v75 = vld [vmem:[%s1 + $0xb4] sm:$0xf]
  %v76 = vld [vmem:[%s1 + $0xb8] sm:$0xf]
  %v77 = vld [vmem:[%s1 + $0xbc] sm:$0xf]
  %v78 = vld [vmem:[%s1 + $0xc0] sm:$0xf]
  %v79 = vld [vmem:[%s1 + $0xc4] sm:$0xf]
  %v80 = vld [vmem:[%s1 + $0xc8] sm:$0xf]
  %v81 = vld [vmem:[%s1 + $0xcc] sm:$0xf]
  %v82 = vld [vmem:[%s1 + $0xd0] sm:$0xf]
  %v83 = vld [vmem:[%s1 + $0xd4] sm:$0xf]
  %v84 = vld [vmem:[%s1 + $0xd8] sm:$0xf]
  %v85 = vld [vmem:[%s1 + $0xdc] sm:$0xf]
  %v86 = vld [vmem:[%s1 + $0xe0] sm:$0xf]
  %v87 = vld [vmem:[%s1 + $0xe4] sm:$0xf]
  %v88 = vld [vmem:[%s1 + $0xe8] sm:$0xf]
  %v89 = vld [vmem:[%s1 + $0xec] sm:$0xf]
  %v90 = vld [vmem:[%s1 + $0xf0] sm:$0xf]
  %v91 = vld [vmem:[%s1 + $0xf4] sm:$0xf]
  %v92 = vld [vmem:[%s1 + $0xf8] sm:$0xf]
  %v93 = vld [vmem:[%s1 + $0xfc] sm:$0xf]
  %v94 = vld [vmem:[%s1 + $0x100] sm:$0xf]
  %v95 = vld [vmem:[%s1 + $0x104] sm:$0xf]
  %v96 = vld [vmem:[%s1 + $0x108] sm:$0xf]
  %v97 = vld [vmem:[%s1 + $0x10c] sm:$0xf]
  %v98 = vld [vmem:[%s1 + $0x110] sm:$0xf]
  %v99 = vld [vmem:[%s1 + $0x114] sm:$0xf]
  %v100 = vld [vmem:[%s1 + $0x118] sm:$0xf]
  %v101 = vld [vmem:[%s1 + $0x11c] sm:$0xf]
  %v102 = vld [vmem:[%s1 + $0x120] sm:$0xf]
  %v103 = vld [vmem:[%s1 + $0x124] sm:$0xf]
  %v104 = vld [vmem:[%s1 + $0x128] sm:$0xf]
  %v105 = vld [vmem:[%s1 + $0x12c] sm:$0xf]
  %v106 = vld [vmem:[%s1 + $0x130] sm:$0xf]
  %v107 = vld [vmem:[%s1 + $0x134] sm:$0xf]
  %v108 = vld [vmem:[%s1 + $0x138] sm:$0xf]
  %v109 = vld [vmem:[%s1 + $0x13c] sm:$0xf]
  %v122 = vunpack.c.l.b16 %v18
  %v123 = vunpack.c.h.b16 %v18
  %v124 = vunpack.c.l.b16 %v19
  %v125 = vunpack.c.h.b16 %v19
  %v126 = vunpack.c.l.b16 %v20
  %v127 = vunpack.c.l.b16 %v21
  %v128 = vunpack.c.h.b16 %v21
  %v129 = vunpack.c.l.b16 %v22
  %v130 = vunpack.c.h.b16 %v22
  %v131 = vunpack.c.l.b16 %v23
  %v132 = vunpack.c.l.b16 %v24
  %v133 = vunpack.c.h.b16 %v24
  %v134 = vunpack.c.l.b16 %v25
  %v135 = vunpack.c.h.b16 %v25
  %v136 = vunpack.c.l.b16 %v26
  %v137 = vunpack.c.l.b16 %v27
  %v138 = vunpack.c.h.b16 %v27
  %v139 = vunpack.c.l.b16 %v28
  %v140 = vunpack.c.h.b16 %v28
  %v141 = vunpack.c.l.b16 %v29
  %v142 = vpack.c.b16 %v127, %v122
  %v143 = vpack.c.b16 %v128, %v123
  %v144 = vpack.c.b16 %v129, %v124
  %v145 = vpack.c.b16 %v130, %v125
  %v146 = vpack.c.b16 %v131, %v126
  %v147 = vpack.c.b16 %v137, %v132
  %v148 = vpack.c.b16 %v138, %v133
  %v149 = vpack.c.b16 %v139, %v134
  %v150 = vpack.c.b16 %v140, %v135
  %v151 = vpack.c.b16 %v141, %v136
  %v242 = vunpack.c.l.b16 %v30
  %v243 = vunpack.c.l.b16 %v31
  %v244 = vunpack.c.l.b16 %v32
  %v245 = vunpack.c.l.b16 %v33
  %v246 = vunpack.c.l.b16 %v34
  %v247 = vunpack.c.l.b16 %v35
  %v248 = vunpack.c.l.b16 %v36
  %v249 = vunpack.c.l.b16 %v37
  %v250 = vunpack.c.l.b16 %v38
  %v251 = vunpack.c.l.b16 %v39
  %v252 = vunpack.c.l.b16 %v40
  %v253 = vunpack.c.l.b16 %v41
  %v254 = vunpack.c.l.b16 %v42
  %v255 = vunpack.c.l.b16 %v43
  %v256 = vunpack.c.l.b16 %v44
  %v257 = vunpack.c.l.b16 %v45
  %v258 = vunpack.c.l.b16 %v46
  %v259 = vunpack.c.l.b16 %v47
  %v260 = vunpack.c.l.b16 %v48
  %v261 = vunpack.c.l.b16 %v49
  %v262 = vunpack.c.l.b16 %v50
  %v263 = vunpack.c.l.b16 %v51
  %v264 = vunpack.c.l.b16 %v52
  %v265 = vunpack.c.l.b16 %v53
  %v266 = vunpack.c.l.b16 %v54
  %v267 = vunpack.c.l.b16 %v55
  %v268 = vunpack.c.l.b16 %v56
  %v269 = vunpack.c.l.b16 %v57
  %v270 = vunpack.c.l.b16 %v58
  %v271 = vunpack.c.l.b16 %v59
  %v272 = vunpack.c.l.b16 %v60
  %v273 = vunpack.c.l.b16 %v61
  %v274 = vunpack.c.l.b16 %v62
  %v275 = vunpack.c.l.b16 %v63
  %v276 = vunpack.c.l.b16 %v64
  %v277 = vunpack.c.l.b16 %v65
  %v278 = vunpack.c.l.b16 %v66
  %v279 = vunpack.c.l.b16 %v67
  %v280 = vunpack.c.l.b16 %v68
  %v281 = vunpack.c.l.b16 %v69
  %v282 = vunpack.c.l.b16 %v70
  %v283 = vunpack.c.l.b16 %v71
  %v284 = vunpack.c.l.b16 %v72
  %v285 = vunpack.c.l.b16 %v73
  %v286 = vunpack.c.l.b16 %v74
  %v287 = vunpack.c.l.b16 %v75
  %v288 = vunpack.c.l.b16 %v76
  %v289 = vunpack.c.l.b16 %v77
  %v290 = vunpack.c.l.b16 %v78
  %v291 = vunpack.c.l.b16 %v79
  %v292 = vunpack.c.l.b16 %v80
  %v293 = vunpack.c.l.b16 %v81
  %v294 = vunpack.c.l.b16 %v82
  %v295 = vunpack.c.l.b16 %v83
  %v296 = vunpack.c.l.b16 %v84
  %v297 = vunpack.c.l.b16 %v85
  %v298 = vunpack.c.l.b16 %v86
  %v299 = vunpack.c.l.b16 %v87
  %v300 = vunpack.c.l.b16 %v88
  %v301 = vunpack.c.l.b16 %v89
  %v302 = vunpack.c.l.b16 %v90
  %v303 = vunpack.c.l.b16 %v91
  %v304 = vunpack.c.l.b16 %v92
  %v305 = vunpack.c.l.b16 %v93
  %v306 = vunpack.c.l.b16 %v94
  %v307 = vunpack.c.l.b16 %v95
  %v308 = vunpack.c.l.b16 %v96
  %v309 = vunpack.c.l.b16 %v97
  %v310 = vunpack.c.l.b16 %v98
  %v311 = vunpack.c.l.b16 %v99
  %v312 = vunpack.c.l.b16 %v100
  %v313 = vunpack.c.l.b16 %v101
  %v314 = vunpack.c.l.b16 %v102
  %v315 = vunpack.c.l.b16 %v103
  %v316 = vunpack.c.l.b16 %v104
  %v317 = vunpack.c.l.b16 %v105
  %v318 = vunpack.c.l.b16 %v106
  %v319 = vunpack.c.l.b16 %v107
  %v320 = vunpack.c.l.b16 %v108
  %v321 = vunpack.c.l.b16 %v109
  %v322 = vpack.c.b16 %v243, %v242
  %v323 = vpack.c.b16 %v245, %v244
  %v324 = vpack.c.b16 %v247, %v246
  %v325 = vpack.c.b16 %v249, %v248
  %v326 = vpack.c.b16 %v251, %v250
  %v327 = vpack.c.b16 %v253, %v252
  %v328 = vpack.c.b16 %v255, %v254
  %v329 = vpack.c.b16 %v257, %v256
  %v330 = vpack.c.b16 %v259, %v258
  %v331 = vpack.c.b16 %v261, %v260
  %v332 = vpack.c.b16 %v263, %v262
  %v333 = vpack.c.b16 %v265, %v264
  %v334 = vpack.c.b16 %v267, %v266
  %v335 = vpack.c.b16 %v269, %v268
  %v336 = vpack.c.b16 %v271, %v270
  %v337 = vpack.c.b16 %v273, %v272
  %v338 = vpack.c.b16 %v275, %v274
  %v339 = vpack.c.b16 %v277, %v276
  %v340 = vpack.c.b16 %v279, %v278
  %v341 = vpack.c.b16 %v281, %v280
  %v342 = vpack.c.b16 %v283, %v282
  %v343 = vpack.c.b16 %v285, %v284
  %v344 = vpack.c.b16 %v287, %v286
  %v345 = vpack.c.b16 %v289, %v288
  %v346 = vpack.c.b16 %v291, %v290
  %v347 = vpack.c.b16 %v293, %v292
  %v348 = vpack.c.b16 %v295, %v294
  %v349 = vpack.c.b16 %v297, %v296
  %v350 = vpack.c.b16 %v299, %v298
  %v351 = vpack.c.b16 %v301, %v300
  %v352 = vpack.c.b16 %v303, %v302
  %v353 = vpack.c.b16 %v305, %v304
  %v354 = vpack.c.b16 %v307, %v306
  %v355 = vpack.c.b16 %v309, %v308
  %v356 = vpack.c.b16 %v311, %v310
  %v357 = vpack.c.b16 %v313, %v312
  %v358 = vpack.c.b16 %v315, %v314
  %v359 = vpack.c.b16 %v317, %v316
  %v360 = vpack.c.b16 %v319, %v318
  %v361 = vpack.c.b16 %v321, %v320
  %402 = vmatprep.subr.bf16.mxu0 0
  %403 = vmatpush1.bf16.msra.mxu0 %v322
  %404 = vmatprep.subr.bf16.mxu0 0
  %405 = vmatpush1.bf16.msra.mxu0 %v323
  %406 = vmatprep.subr.bf16.mxu0 0
  %407 = vmatpush1.bf16.msra.mxu0 %v324
  %408 = vmatprep.subr.bf16.mxu0 0
  %409 = vmatpush1.bf16.msra.mxu0 %v325
  %410 = vmatprep.subr.bf16.mxu0 0
  %411 = vmatpush1.bf16.msra.mxu0 %v326
  %412 = vmatprep.subr.bf16.mxu0 0
  %413 = vmatpush1.bf16.msra.mxu0 %v327
  %414 = vmatprep.subr.bf16.mxu0 0
  %415 = vmatpush1.bf16.msra.mxu0 %v328
  %416 = vmatprep.subr.bf16.mxu0 0
  %417 = vmatpush1.bf16.msra.mxu0 %v329
  %418 = vmatprep.subr.bf16.mxu0 0
  %419 = vmatpush1.bf16.msra.mxu0 %v330
  %420 = vmatprep.subr.bf16.mxu0 0
  %421 = vmatpush1.bf16.msra.mxu0 %v331
  %422 = vmatprep.subr.bf16.mxu0 0
  %423 = vmatpush1.bf16.msra.mxu0 %v332
  %424 = vmatprep.subr.bf16.mxu0 0
  %425 = vmatpush1.bf16.msra.mxu0 %v333
  %426 = vmatprep.subr.bf16.mxu0 0
  %427 = vmatpush1.bf16.msra.mxu0 %v334
  %428 = vmatprep.subr.bf16.mxu0 0
  %429 = vmatpush1.bf16.msra.mxu0 %v335
  %430 = vmatprep.subr.bf16.mxu0 0
  %431 = vmatpush1.bf16.msra.mxu0 %v336
  %432 = vmatprep.subr.bf16.mxu0 0
  %433 = vmatpush1.bf16.msra.mxu0 %v337
  %434 = vmatprep.mubr.bf16.mxu0 %v143
  %435 = vmatmul.mubr.bf16.gmra.mrb[0].mxu0 %v142
  %v436 = vpop.f32.mrb[0].mxu0
  %v437 = vadd.f32 0.0, %v436
  %v438 = vpop.f32.mrb[0].mxu0
  %v439 = vpop.f32.mrb[0].mxu0
  %v440 = vadd.f32 0.0, %v439
  %v441 = vpop.f32.mrb[0].mxu0
  %442 = vmatprep.mubr.bf16.mxu0 %v148
  %443 = vmatmul.mubr.bf16.gmra.mrb[0].mxu0 %v147
  %v444 = vpop.f32.mrb[0].mxu0
  %v445 = vadd.f32 0.0, %v444
  %v446 = vpop.f32.mrb[0].mxu0
  %v447 = vpop.f32.mrb[0].mxu0
  %v448 = vadd.f32 0.0, %v447
  %v449 = vpop.f32.mrb[0].mxu0
  %450 = vdwg.mxu0
  %451 = vmatprep.subr.bf16.mxu0 0
  %452 = vmatpush1.bf16.msra.mxu0 %v338
  %453 = vmatprep.subr.bf16.mxu0 0
  %454 = vmatpush1.bf16.msra.mxu0 %v339
  %455 = vmatprep.subr.bf16.mxu0 0
  %456 = vmatpush1.bf16.msra.mxu0 %v340
  %457 = vmatprep.subr.bf16.mxu0 0
  %458 = vmatpush1.bf16.msra.mxu0 %v341
  %459 = vmatprep.subr.bf16.mxu0 0
  %460 = vmatpush1.bf16.msra.mxu0 %v342
  %461 = vmatprep.subr.bf16.mxu0 0
  %462 = vmatpush1.bf16.msra.mxu0 %v343
  %463 = vmatprep.subr.bf16.mxu0 0
  %464 = vmatpush1.bf16.msra.mxu0 %v344
  %465 = vmatprep.subr.bf16.mxu0 0
  %466 = vmatpush1.bf16.msra.mxu0 %v345
  %467 = vmatprep.subr.bf16.mxu0 0
  %468 = vmatpush1.bf16.msra.mxu0 %v346
  %469 = vmatprep.subr.bf16.mxu0 0
  %470 = vmatpush1.bf16.msra.mxu0 %v347
  %471 = vmatprep.subr.bf16.mxu0 0
  %472 = vmatpush1.bf16.msra.mxu0 %v348
  %473 = vmatprep.subr.bf16.mxu0 0
  %474 = vmatpush1.bf16.msra.mxu0 %v349
  %475 = vmatprep.subr.bf16.mxu0 0
  %476 = vmatpush1.bf16.msra.mxu0 %v350
  %477 = vmatprep.subr.bf16.mxu0 0
  %478 = vmatpush1.bf16.msra.mxu0 %v351
  %479 = vmatprep.subr.bf16.mxu0 0
  %480 = vmatpush1.bf16.msra.mxu0 %v352
  %481 = vmatprep.subr.bf16.mxu0 0
  %482 = vmatpush1.bf16.msra.mxu0 %v353
  %483 = vmatprep.mubr.bf16.mxu0 %v145
  %484 = vmatmul.mubr.bf16.gmra.mrb[0].mxu0 %v144
  %v485 = vpop.f32.mrb[0].mxu0
  %v486 = vadd.f32 %v437, %v485
  %v487 = vpop.f32.mrb[0].mxu0
  %v488 = vpop.f32.mrb[0].mxu0
  %v489 = vadd.f32 %v440, %v488
  %v490 = vpop.f32.mrb[0].mxu0
  %491 = vmatprep.mubr.bf16.mxu0 %v150
  %492 = vmatmul.mubr.bf16.gmra.mrb[0].mxu0 %v149
  %v493 = vpop.f32.mrb[0].mxu0
  %v494 = vadd.f32 %v445, %v493
  %v495 = vpop.f32.mrb[0].mxu0
  %v496 = vpop.f32.mrb[0].mxu0
  %v497 = vadd.f32 %v448, %v496
  %v498 = vpop.f32.mrb[0].mxu0
  %499 = vdwg.mxu0
  %500 = vmatprep.subr.bf16.mxu0 0
  %501 = vmatpush1.bf16.msra.mxu0 %v354
  %502 = vmatprep.subr.bf16.mxu0 0
  %503 = vmatpush1.bf16.msra.mxu0 %v355
  %504 = vmatprep.subr.bf16.mxu0 0
  %505 = vmatpush1.bf16.msra.mxu0 %v356
  %506 = vmatprep.subr.bf16.mxu0 0
  %507 = vmatpush1.bf16.msra.mxu0 %v357
  %508 = vmatprep.subr.bf16.mxu0 0
  %509 = vmatpush1.bf16.msra.mxu0 %v358
  %510 = vmatprep.subr.bf16.mxu0 0
  %511 = vmatpush1.bf16.msra.mxu0 %v359
  %512 = vmatprep.subr.bf16.mxu0 0
  %513 = vmatpush1.bf16.msra.mxu0 %v360
  %514 = vmatprep.subr.bf16.mxu0 0
  %515 = vmatpush1.bf16.msra.mxu0 %v361
  %516 = vmatprep.subr.bf16.mxu0 0
  %517 = vmatpush1.bf16.msra.mxu0 0
  %518 = vmatprep.subr.bf16.mxu0 0
  %519 = vmatpush1.bf16.msra.mxu0 0
  %520 = vmatprep.subr.bf16.mxu0 0
  %521 = vmatpush1.bf16.msra.mxu0 0
  %522 = vmatprep.subr.bf16.mxu0 0
  %523 = vmatpush1.bf16.msra.mxu0 0
  %524 = vmatprep.subr.bf16.mxu0 0
  %525 = vmatpush1.bf16.msra.mxu0 0
  %526 = vmatprep.subr.bf16.mxu0 0
  %527 = vmatpush1.bf16.msra.mxu0 0
  %528 = vmatprep.subr.bf16.mxu0 0
  %529 = vmatpush1.bf16.msra.mxu0 0
  %530 = vmatprep.subr.bf16.mxu0 0
  %531 = vmatpush1.bf16.msra.mxu0 0
  %532 = vmatprep.mubr.bf16.mxu0 0
  %533 = vmatmul.mubr.bf16.gmra.mrb[0].mxu0 %v146
  %v534 = vpop.f32.mrb[0].mxu0
  %v535 = vadd.f32 %v486, %v534
  %v536 = vpop.f32.mrb[0].mxu0
  %v537 = vpop.f32.mrb[0].mxu0
  %v538 = vadd.f32 %v489, %v537
  %v539 = vpop.f32.mrb[0].mxu0
  %540 = vmatprep.mubr.bf16.mxu0 0
  %541 = vmatmul.mubr.bf16.gmra.mrb[0].mxu0 %v151
  %v542 = vpop.f32.mrb[0].mxu0
  %v543 = vadd.f32 %v494, %v542
  %v544 = vpop.f32.mrb[0].mxu0
  %v545 = vpop.f32.mrb[0].mxu0
  %v546 = vadd.f32 %v497, %v545
  %v547 = vpop.f32.mrb[0].mxu0
  %548 = vdwg.mxu0
  %v549 = vld [vmem:[%s2] sm:$0x1]
  %v551 = vlaneseq
  %v552 = vshrl.u32 %v551, 7
  %v553 = vsub.s32 0, %v552
  %v554 = vrot.slane %v549, %v553
  %v556 = vmul.f32 %v535, %v554
  %v557 = vmul.f32 %v538, %v554
  %v558 = vmul.f32 %v543, %v554
  %v559 = vmul.f32 %v546, %v554
  %v560 = vld [vmem:[%s3] sm:$0x1]
  %v562 = vlaneseq
  %v563 = vshrl.u32 %v562, 7
  %v564 = vsub.s32 0, %v563
  %v565 = vrot.slane %v560, %v564
  %v567 = vadd.f32 %v556, %v565
  %v568 = vadd.f32 %v557, %v565
  %v569 = vadd.f32 %v558, %v565
  %v570 = vadd.f32 %v559, %v565
  %v571 = vmax.f32 %v567, 0.0
  %v572 = vmax.f32 %v568, 0.0
  %v573 = vmax.f32 %v569, 0.0
  %v574 = vmax.f32 %v570, 0.0
  %v575 = vpack.c.bf16 %v572, %v571
  %v576 = vpack.c.bf16 %v574, %v573
  %v579 = vunpack.c.l.b16 %v575
  %v580 = vunpack.c.h.b16 %v575
  %v581 = vunpack.c.l.b16 %v576
  %v582 = vunpack.c.h.b16 %v576
  %v583 = vpack.c.b16 %v579, %v579
  %v584 = vpack.c.b16 %v580, %v580
  %v585 = vpack.c.b16 %v581, %v581
  %v586 = vpack.c.b16 %v582, %v582
  %591 = vst [vmem:[%s4] sm:$0xf] %v583
  %592 = vst [vmem:[%s4 + $0x4] sm:$0xf] %v584
  %593 = vst [vmem:[%s4 + $0x8] sm:$0xf] %v585
  %594 = vst [vmem:[%s4 + $0xc] sm:$0xf] %v586
  // Predicated region
  $region18: #{dense_grasp_forward.75} parent=0 // pred_check
    _
  $region19: #{dense_grasp_forward.75} parent=0 // pred_check_branch
    %596 = sbr.rel (0) target = $region21
  $region20: #{dense_grasp_forward.75} parent=0 // pred_region
    _
  $region21: #{dense_grasp_forward.75} parent=0 // pred_fallthru
    _
  // Predicated region
  $region22: #{dense_grasp_forward.75} parent=0 // pred_check
    _
  $region23: #{dense_grasp_forward.75} parent=0 // pred_check_branch
    %598 = sbr.rel (0) target = $region25
  $region24: #{dense_grasp_forward.75} parent=0 // pred_region
    _
  $region25: #{dense_grasp_forward.75} parent=0 // pred_fallthru
    _

// kernel: tile.32
$region0: #{tile.32}
  #allocation0 [shape = 's32[1]{0}', space=sflag, size = 0x4, scoped, tag = 'scoped memory for tile.32']
  %s0 = inlined_call_operand.vmem [shape: f32[32], index: 0, kind: input, shape index: {}]
  %s1 = inlined_call_operand.vmem [shape: f32[9,32], index: 1, kind: output, shape index: {}]
  // Predicated region
  $region2: #{tile.32} parent=0 // pred_check
    _
  $region3: #{tile.32} parent=0 // pred_check_branch
    %3 = sbr.rel (0) target = $region5
  $region4: #{tile.32} parent=0 // pred_region
    _
  $region5: #{tile.32} parent=0 // pred_fallthru
    _
  %v4 = vld [vmem:[%s0] ss:$0 sm:$0xff]
  %5 = vst [vmem:[%s1] sm:$0xff] %v4
  %s6 = scalar_lea.vmem %s1, 8
  %7 = vst [vmem:[%s6] sm:$0xff] %v4

// kernel: tile.33
$region0: #{tile.33}
  %s0 = inlined_call_operand.vmem [shape: f32[9,32], index: 0, kind: input, shape index: {}]
  %s1 = inlined_call_operand.vmem [shape: f32[1,288], index: 1, kind: output, shape index: {}]
  $region1: #{tile.33} parent=0
    #allocation0 [shape = 'u8[12288]{0}', space=vmem, size = 0x3000, scoped, tag = 'scoped mem for output reshape']
    %v2 = vld [vmem:[%s0] ss:$4 sm:$0x7]
    %vm3 = vcmask 261120
    %4 = vst.msk [vmem:[#allocation0] ss:$8 sm:$0x7] %vm3, %v2
    %s5 = scalar_lea.vmem %s0, 3
    %s6 = smov 3
    %v7 = vld [vmem:[%s5] ss:$4 sm:%s6]
    %8 = vrot.lane.b32.xlu0 %v7, 96
    %v9 = vpop.permute.xlu0 %8
    %vm10 = vcmask 1048320
    %11 = vst.msk [vmem:[#allocation0] ss:$8 sm:$0x3] %vm10, %v9
    %s12 = scalar_lea.vmem %s0, 2
    %s13 = smov 3
    %v14 = vld [vmem:[%s12] ss:$4 sm:%s13]
    %15 = vrot.lane.b32.xlu0 %v14, 64
    %v16 = vpop.permute.xlu0 %15
    %vm17 = vcmask 785920
    %18 = vst.msk [vmem:[#allocation0] ss:$8 sm:$0x3] %vm17, %v16
    %s19 = scalar_lea.vmem %s0, 1
    %s20 = smov 3
    %v21 = vld [vmem:[%s19] ss:$4 sm:%s20]
    %22 = vrot.lane.b32.xlu0 %v21, 32
    %v23 = vpop.permute.xlu0 %22
    %vm24 = vcmask 523520
    %25 = vst.msk [vmem:[#allocation0] ss:$8 sm:$0x3] %vm24, %v23
    %s27 = sshllo.u32 0, 1
    %v29 = vld [vmem:[#allocation0] sm:%s27]
    %s30 = sshllo.u32 0, 1
    %31 = vst [vmem:[%s1] sm:%s30] %v29
    %s32 = scalar_lea.vmem [#allocation0], 8
    %v33 = vld [vmem:[%s32] sm:%s27]
    %s34 = sshllo.u32 0, 1
    %s35 = scalar_lea.vmem %s1, 1
    %36 = vst [vmem:[%s35] sm:%s34] %v33
    %s37 = scalar_lea.vmem [#allocation0], 16
    %v38 = vld [vmem:[%s37] sm:%s27]
    %s39 = sshllo.u32 0, 1
    %s40 = smul.addr 1, 2
    %s41 = scalar_lea.vmem %s1, %s40
    %42 = vst [vmem:[%s41] sm:%s39] %v38

// kernel: tile.17
$region0: #{tile.17}
  #allocation0 [shape = 's32[1]{0}', space=sflag, size = 0x4, scoped, tag = 'scoped memory for tile.17']
  %s0 = inlined_call_operand.<no memory space> [shape: f32[], index: 0, kind: input, shape index: {}]
  %s1 = inlined_call_operand.vmem [shape: f32[288], index: 1, kind: output, shape index: {}]
  %v2 = vstv %s0
  %3 = vst [vmem:[%s1] sm:$0xf] %v2

// kernel: dense_grasp_forward.76
$region0: #{dense_grasp_forward.76}
  #allocation0 [shape = 'u32[]', space=smem, size = 0x4, offset = 0x4, fixed_abs, tag = 'smem constant byte address 0x4 - core index']
  #allocation1 [shape = 'u32[144,128]{1,0:T(1,128)}', space=vmem, size = 0x12000, scoped, tag = 'internal scratch']
  %s0 = inlined_call_operand.vmem [shape: bf16[176,384], index: 0, kind: input, shape index: {}]
  %s1 = inlined_call_operand.vmem [shape: bf16[384,384], index: 1, kind: input, shape index: {}]
  %s2 = inlined_call_operand.vmem [shape: f32[1,384], index: 2, kind: input, shape index: {}]
  %s3 = inlined_call_operand.vmem [shape: f32[1,384], index: 3, kind: input, shape index: {}]
  %s4 = inlined_call_operand.vmem [shape: bf16[176,384], index: 4, kind: output, shape index: {}]
  %s5 = sld [smem:[#allocation0]]
  $region26: #{dense_grasp_forward.76} parent=0
    _
  %s7 = ssub.s32 1, %s5
  %s8 = scalar_select 0, %s7, %s5
  // Predicated region
  $region2: #{dense_grasp_forward.76} parent=0 // pred_check
    _
  $region3: #{dense_grasp_forward.76} parent=0 // pred_check_branch
    %10 = sbr.rel (0) target = $region5
  $region4: #{dense_grasp_forward.76} parent=0 // pred_region
    _
  $region5: #{dense_grasp_forward.76} parent=0 // pred_fallthru
    _
  // Predicated region
  $region6: #{dense_grasp_forward.76} parent=0 // pred_check
    _
  $region7: #{dense_grasp_forward.76} parent=0 // pred_check_branch
    %12 = sbr.rel (0) target = $region9
  $region8: #{dense_grasp_forward.76} parent=0 // pred_region
    _
  $region9: #{dense_grasp_forward.76} parent=0 // pred_fallthru
    _
  // Predicated region
  $region10: #{dense_grasp_forward.76} parent=0 // pred_check
    _
  $region11: #{dense_grasp_forward.76} parent=0 // pred_check_branch
    %14 = sbr.rel (0) target = $region13
  $region12: #{dense_grasp_forward.76} parent=0 // pred_region
    _
  $region13: #{dense_grasp_forward.76} parent=0 // pred_fallthru
    _
  // Predicated region
  $region14: #{dense_grasp_forward.76} parent=0 // pred_check
    _
  $region15: #{dense_grasp_forward.76} parent=0 // pred_check_branch
    %16 = sbr.rel (0) target = $region17
  $region16: #{dense_grasp_forward.76} parent=0 // pred_region
    _
  $region17: #{dense_grasp_forward.76} parent=0 // pred_fallthru
    _
  %v18 = vld [vmem:[%s0] sm:$0xff]
  %v19 = vld [vmem:[%s0 + $0x8] sm:$0xf]
  %v20 = vld [vmem:[%s0 + $0xc] sm:$0xff]
  %v21 = vld [vmem:[%s0 + $0x14] sm:$0xf]
  %v22 = vld [vmem:[%s0 + $0x18] sm:$0xff]
  %v23 = vld [vmem:[%s0 + $0x20] sm:$0xf]
  %v24 = vld [vmem:[%s0 + $0x24] sm:$0xff]
  %v25 = vld [vmem:[%s0 + $0x2c] sm:$0xf]
  %v26 = vld [vmem:[%s0 + $0x30] sm:$0xff]
  %v27 = vld [vmem:[%s0 + $0x38] sm:$0xf]
  %v28 = vld [vmem:[%s0 + $0x3c] sm:$0xff]
  %v29 = vld [vmem:[%s0 + $0x44] sm:$0xf]
  %v30 = vld [vmem:[%s0 + $0x48] sm:$0xff]
  %v31 = vld [vmem:[%s0 + $0x50] sm:$0xf]
  %v32 = vld [vmem:[%s0 + $0x54] sm:$0xff]
  %v33 = vld [vmem:[%s0 + $0x5c] sm:$0xf]
  %v34 = vld [vmem:[%s0 + $0x60] sm:$0xff]
  %v35 = vld [vmem:[%s0 + $0x68] sm:$0xf]
  %v36 = vld [vmem:[%s0 + $0x6c] sm:$0xff]
  %v37 = vld [vmem:[%s0 + $0x74] sm:$0xf]
  %v38 = vld [vmem:[%s0 + $0x78] sm:$0xff]
  %v39 = vld [vmem:[%s0 + $0x80] sm:$0xf]
  %v40 = vld [vmem:[%s0 + $0x84] sm:$0xff]
  %v41 = vld [vmem:[%s0 + $0x8c] sm:$0xf]
  %v42 = vld [vmem:[%s0 + $0x90] sm:$0xff]
  %v43 = vld [vmem:[%s0 + $0x98] sm:$0xf]
  %v44 = vld [vmem:[%s0 + $0x9c] sm:$0xff]
  %v45 = vld [vmem:[%s0 + $0xa4] sm:$0xf]
  %v46 = vld [vmem:[%s0 + $0xa8] sm:$0xff]
  %v47 = vld [vmem:[%s0 + $0xb0] sm:$0xf]
  %v48 = vld [vmem:[%s0 + $0xb4] sm:$0xff]
  %v49 = vld [vmem:[%s0 + $0xbc] sm:$0xf]
  %v50 = vld [vmem:[%s0 + $0xc0] sm:$0xff]
  %v51 = vld [vmem:[%s0 + $0xc8] sm:$0xf]
  %v52 = vld [vmem:[%s0 + $0xcc] sm:$0xff]
  %v53 = vld [vmem:[%s0 + $0xd4] sm:$0xf]
  %v54 = vld [vmem:[%s0 + $0xd8] sm:$0xff]
  %v55 = vld [vmem:[%s0 + $0xe0] sm:$0xf]
  %v56 = vld [vmem:[%s0 + $0xe4] sm:$0xff]
  %v57 = vld [vmem:[%s0 + $0xec] sm:$0xf]
  %v58 = vld [vmem:[%s0 + $0xf0] sm:$0xff]
  %v59 = vld [vmem:[%s0 + $0xf8] sm:$0xf]
  %v60 = vld [vmem:[%s0 + $0xfc] sm:$0xff]
  %v61 = vld [vmem:[%s0 + $0x104] sm:$0xf]
  %v62 = vld [vmem:[%s1] sm:$0xff]
  %v63 = vld [vmem:[%s1 + $0x8] sm:$0xf]
  %v64 = vld [vmem:[%s1 + $0xc] sm:$0xff]
  %v65 = vld [vmem:[%s1 + $0x14] sm:$0xf]
  %v66 = vld [vmem:[%s1 + $0x18] sm:$0xff]
  %v67 = vld [vmem:[%s1 + $0x20] sm:$0xf]
  %v68 = vld [vmem:[%s1 + $0x24] sm:$0xff]
  %v69 = vld [vmem:[%s1 + $0x2c] sm:$0xf]
  %v70 = vld [vmem:[%s1 + $0x30] sm:$0xff]
  %v71 = vld [vmem:[%s1 + $0x38] sm:$0xf]
  %v72 = vld [vmem:[%s1 + $0x3c] sm:$0xff]
  %v73 = vld [vmem:[%s1 + $0x44] sm:$0xf]
  %v74 = vld [vmem:[%s1 + $0x48] sm:$0xff]
  %v75 = vld [vmem:[%s1 + $0x50] sm:$0xf]
  %v76 = vld [vmem:[%s1 + $0x54] sm:$0xff]
  %v77 = vld [vmem:[%s1 + $0x5c] sm:$0xf]
  %v78 = vld [vmem:[%s1 + $0x60] sm:$0xff]
  %v79 = vld [vmem:[%s1 + $0x68] sm:$0xf]
  %v80 = vld [vmem:[%s1 + $0x6c] sm:$0xff]
  %v81 = vld [vmem:[%s1 + $0x74] sm:$0xf]
  %v82 = vld [vmem:[%s1 + $0x78] sm:$0xff]
  %v83 = vld [vmem:[%s1 + $0x80] sm:$0xf]
  %v84 = vld [vmem:[%s1 + $0x84] sm:$0xff]
  %v85 = vld [vmem:[%s1 + $0x8c] sm:$0xf]
  %v86 = vld [vmem:[%s1 + $0x90] sm:$0xff]
  %v87 = vld [vmem:[%s1 + $0x98] sm:$0xf]
  %v88 = vld [vmem:[%s1 + $0x9c] sm:$0xff]
  %v89 = vld [vmem:[%s1 + $0xa4] sm:$0xf]
  %v90 = vld [vmem:[%s1 + $0xa8] sm:$0xff]
  %v91 = vld [vmem:[%s1 + $0xb0] sm:$0xf]
  %v92 = vld [vmem:[%s1 + $0xb4] sm:$0xff]
  %v93 = vld [vmem:[%s1 + $0xbc] sm:$0xf]
  %v94 = vld [vmem:[%s1 + $0xc0] sm:$0xff]
  %v95 = vld [vmem:[%s1 + $0xc8] sm:$0xf]
  %v96 = vld [vmem:[%s1 + $0xcc] sm:$0xff]
  %v97 = vld [vmem:[%s1 + $0xd4] sm:$0xf]
  %v98 = vld [vmem:[%s1 + $0xd8] sm:$0xff]
  %v99 = vld [vmem:[%s1 + $0xe0] sm:$0xf]
  %v100 = vld [vmem:[%s1 + $0xe4] sm:$0xff]
  %v101 = vld [vmem:[%s1 + $0xec] sm:$0xf]
  %v102 = vld [vmem:[%s1 + $0xf0] sm:$0xff]
  %v103 = vld [vmem:[%s1 + $0xf8] sm:$0xf]
  %v104 = vld [vmem:[%s1 + $0xfc] sm:$0xff]
  %v105 = vld [vmem:[%s1 + $0x104] sm:$0xf]
  %v106 = vld [vmem:[%s1 + $0x108] sm:$0xff]
  %v107 = vld [vmem:[%s1 + $0x110] sm:$0xf]
  %v108 = vld [vmem:[%s1 + $0x114] sm:$0xff]
  %v109 = vld [vmem:[%s1 + $0x11c] sm:$0xf]
  %v110 = vld [vmem:[%s1 + $0x120] sm:$0xff]
  %v111 = vld [vmem:[%s1 + $0x128] sm:$0xf]
  %v112 = vld [vmem:[%s1 + $0x12c] sm:$0xff]
  %v113 = vld [vmem:[%s1 + $0x134] sm:$0xf]
  %v114 = vld [vmem:[%s1 + $0x138] sm:$0xff]
  %v115 = vld [vmem:[%s1 + $0x140] sm:$0xf]
  %v116 = vld [vmem:[%s1 + $0x144] sm:$0xff]
  %v117 = vld [vmem:[%s1 + $0x14c] sm:$0xf]
  %v118 = vld [vmem:[%s1 + $0x150] sm:$0xff]
  %v119 = vld [vmem:[%s1 + $0x158] sm:$0xf]
  %v120 = vld [vmem:[%s1 + $0x15c] sm:$0xff]
  %v121 = vld [vmem:[%s1 + $0x164] sm:$0xf]
  %v122 = vld [vmem:[%s1 + $0x168] sm:$0xff]
  %v123 = vld [vmem:[%s1 + $0x170] sm:$0xf]
  %v124 = vld [vmem:[%s1 + $0x174] sm:$0xff]
  %v125 = vld [vmem:[%s1 + $0x17c] sm:$0xf]
  %v126 = vld [vmem:[%s1 + $0x180] sm:$0xff]
  %v127 = vld [vmem:[%s1 + $0x188] sm:$0xf]
  %v128 = vld [vmem:[%s1 + $0x18c] sm:$0xff]
  %v129 = vld [vmem:[%s1 + $0x194] sm:$0xf]
  %v130 = vld [vmem:[%s1 + $0x198] sm:$0xff]
  %v131 = vld [vmem:[%s1 + $0x1a0] sm:$0xf]
  %v132 = vld [vmem:[%s1 + $0x1a4] sm:$0xff]
  %v133 = vld [vmem:[%s1 + $0x1ac] sm:$0xf]
  %v134 = vld [vmem:[%s1 + $0x1b0] sm:$0xff]
  %v135 = vld [vmem:[%s1 + $0x1b8] sm:$0xf]
  %v136 = vld [vmem:[%s1 + $0x1bc] sm:$0xff]
  %v137 = vld [vmem:[%s1 + $0x1c4] sm:$0xf]
  %v138 = vld [vmem:[%s1 + $0x1c8] sm:$0xff]
  %v139 = vld [vmem:[%s1 + $0x1d0] sm:$0xf]
  %v140 = vld [vmem:[%s1 + $0x1d4] sm:$0xff]
  %v141 = vld [vmem:[%s1 + $0x1dc] sm:$0xf]
  %v142 = vld [vmem:[%s1 + $0x1e0] sm:$0xff]
  %v143 = vld [vmem:[%s1 + $0x1e8] sm:$0xf]
  %v144 = vld [vmem:[%s1 + $0x1ec] sm:$0xff]
  %v145 = vld [vmem:[%s1 + $0x1f4] sm:$0xf]
  %v146 = vld [vmem:[%s1 + $0x1f8] sm:$0xff]
  %v147 = vld [vmem:[%s1 + $0x200] sm:$0xf]
  %v148 = vld [vmem:[%s1 + $0x204] sm:$0xff]
  %v149 = vld [vmem:[%s1 + $0x20c] sm:$0xf]
  %v150 = vld [vmem:[%s1 + $0x210] sm:$0xff]
  %v151 = vld [vmem:[%s1 + $0x218] sm:$0xf]
  %v152 = vld [vmem:[%s1 + $0x21c] sm:$0xff]
  %v153 = vld [vmem:[%s1 + $0x224] sm:$0xf]
  %v154 = vld [vmem:[%s1 + $0x228] sm:$0xff]
  %v155 = vld [vmem:[%s1 + $0x230] sm:$0xf]
  %v156 = vld [vmem:[%s1 + $0x234] sm:$0xff]
  %v157 = vld [vmem:[%s1 + $0x23c] sm:$0xf]
  %v202 = vunpack.c.l.b16 %v18
  %v203 = vunpack.c.h.b16 %v18
  %v204 = vunpack.c.l.b16 %v19
  %v205 = vunpack.c.l.b16 %v20
  %v206 = vunpack.c.h.b16 %v20
  %v207 = vunpack.c.l.b16 %v21
  %v208 = vunpack.c.l.b16 %v22
  %v209 = vunpack.c.h.b16 %v22
  %v210 = vunpack.c.l.b16 %v23
  %v211 = vunpack.c.l.b16 %v24
  %v212 = vunpack.c.h.b16 %v24
  %v213 = vunpack.c.l.b16 %v25
  %v214 = vunpack.c.l.b16 %v26
  %v215 = vunpack.c.h.b16 %v26
  %v216 = vunpack.c.l.b16 %v27
  %v217 = vunpack.c.l.b16 %v28
  %v218 = vunpack.c.h.b16 %v28
  %v219 = vunpack.c.l.b16 %v29
  %v220 = vunpack.c.l.b16 %v30
  %v221 = vunpack.c.h.b16 %v30
  %v222 = vunpack.c.l.b16 %v31
  %v223 = vunpack.c.l.b16 %v32
  %v224 = vunpack.c.h.b16 %v32
  %v225 = vunpack.c.l.b16 %v33
  %v226 = vunpack.c.l.b16 %v34
  %v227 = vunpack.c.h.b16 %v34
  %v228 = vunpack.c.l.b16 %v35
  %v229 = vunpack.c.l.b16 %v36
  %v230 = vunpack.c.h.b16 %v36
  %v231 = vunpack.c.l.b16 %v37
  %v232 = vunpack.c.l.b16 %v38
  %v233 = vunpack.c.h.b16 %v38
  %v234 = vunpack.c.l.b16 %v39
  %v235 = vunpack.c.l.b16 %v40
  %v236 = vunpack.c.h.b16 %v40
  %v237 = vunpack.c.l.b16 %v41
  %v238 = vunpack.c.l.b16 %v42
  %v239 = vunpack.c.h.b16 %v42
  %v240 = vunpack.c.l.b16 %v43
  %v241 = vunpack.c.l.b16 %v44
  %v242 = vunpack.c.h.b16 %v44
  %v243 = vunpack.c.l.b16 %v45
  %v244 = vunpack.c.l.b16 %v46
  %v245 = vunpack.c.h.b16 %v46
  %v246 = vunpack.c.l.b16 %v47
  %v247 = vunpack.c.l.b16 %v48
  %v248 = vunpack.c.h.b16 %v48
  %v249 = vunpack.c.l.b16 %v49
  %v250 = vunpack.c.l.b16 %v50
  %v251 = vunpack.c.h.b16 %v50
  %v252 = vunpack.c.l.b16 %v51
  %v253 = vunpack.c.l.b16 %v52
  %v254 = vunpack.c.h.b16 %v52
  %v255 = vunpack.c.l.b16 %v53
  %v256 = vunpack.c.l.b16 %v54
  %v257 = vunpack.c.h.b16 %v54
  %v258 = vunpack.c.l.b16 %v55
  %v259 = vunpack.c.l.b16 %v56
  %v260 = vunpack.c.h.b16 %v56
  %v261 = vunpack.c.l.b16 %v57
  %v262 = vunpack.c.l.b16 %v58
  %v263 = vunpack.c.h.b16 %v58
  %v264 = vunpack.c.l.b16 %v59
  %v265 = vunpack.c.l.b16 %v60
  %v266 = vunpack.c.h.b16 %v60
  %v267 = vunpack.c.l.b16 %v61
  %v268 = vpack.c.b16 %v205, %v202
  %v269 = vpack.c.b16 %v206, %v203
  %v270 = vpack.c.b16 %v207, %v204
  %v271 = vpack.c.b16 %v211, %v208
  %v272 = vpack.c.b16 %v212, %v209
  %v273 = vpack.c.b16 %v213, %v210
  %v274 = vpack.c.b16 %v217, %v214
  %v275 = vpack.c.b16 %v218, %v215
  %v276 = vpack.c.b16 %v219, %v216
  %v277 = vpack.c.b16 %v223, %v220
  %v278 = vpack.c.b16 %v224, %v221
  %v279 = vpack.c.b16 %v225, %v222
  %v280 = vpack.c.b16 %v229, %v226
  %v281 = vpack.c.b16 %v230, %v227
  %v282 = vpack.c.b16 %v231, %v228
  %v283 = vpack.c.b16 %v235, %v232
  %v284 = vpack.c.b16 %v236, %v233
  %v285 = vpack.c.b16 %v237, %v234
  %v286 = vpack.c.b16 %v241, %v238
  %v287 = vpack.c.b16 %v242, %v239
  %v288 = vpack.c.b16 %v243, %v240
  %v289 = vpack.c.b16 %v247, %v244
  %v290 = vpack.c.b16 %v248, %v245
  %v291 = vpack.c.b16 %v249, %v246
  %v292 = vpack.c.b16 %v253, %v250
  %v293 = vpack.c.b16 %v254, %v251
  %v294 = vpack.c.b16 %v255, %v252
  %v295 = vpack.c.b16 %v259, %v256
  %v296 = vpack.c.b16 %v260, %v257
  %v297 = vpack.c.b16 %v261, %v258
  %v298 = vpack.c.b16 %v265, %v262
  %v299 = vpack.c.b16 %v266, %v263
  %v300 = vpack.c.b16 %v267, %v264
  %v430 = vunpack.c.l.b16 %v62
  %v431 = vunpack.c.h.b16 %v62
  %v432 = vunpack.c.l.b16 %v63
  %v433 = vunpack.c.l.b16 %v64
  %v434 = vunpack.c.h.b16 %v64
  %v435 = vunpack.c.l.b16 %v65
  %v436 = vunpack.c.l.b16 %v66
  %v437 = vunpack.c.h.b16 %v66
  %v438 = vunpack.c.l.b16 %v67
  %v439 = vunpack.c.l.b16 %v68
  %v440 = vunpack.c.h.b16 %v68
  %v441 = vunpack.c.l.b16 %v69
  %v442 = vunpack.c.l.b16 %v70
  %v443 = vunpack.c.h.b16 %v70
  %v444 = vunpack.c.l.b16 %v71
  %v445 = vunpack.c.l.b16 %v72
  %v446 = vunpack.c.h.b16 %v72
  %v447 = vunpack.c.l.b16 %v73
  %v448 = vunpack.c.l.b16 %v74
  %v449 = vunpack.c.h.b16 %v74
  %v450 = vunpack.c.l.b16 %v75
  %v451 = vunpack.c.l.b16 %v76
  %v452 = vunpack.c.h.b16 %v76
  %v453 = vunpack.c.l.b16 %v77
  %v454 = vunpack.c.l.b16 %v78
  %v455 = vunpack.c.h.b16 %v78
  %v456 = vunpack.c.l.b16 %v79
  %v457 = vunpack.c.l.b16 %v80
  %v458 = vunpack.c.h.b16 %v80
  %v459 = vunpack.c.l.b16 %v81
  %v460 = vunpack.c.l.b16 %v82
  %v461 = vunpack.c.h.b16 %v82
  %v462 = vunpack.c.l.b16 %v83
  %v463 = vunpack.c.l.b16 %v84
  %v464 = vunpack.c.h.b16 %v84
  %v465 = vunpack.c.l.b16 %v85
  %v466 = vunpack.c.l.b16 %v86
  %v467 = vunpack.c.h.b16 %v86
  %v468 = vunpack.c.l.b16 %v87
  %v469 = vunpack.c.l.b16 %v88
  %v470 = vunpack.c.h.b16 %v88
  %v471 = vunpack.c.l.b16 %v89
  %v472 = vunpack.c.l.b16 %v90
  %v473 = vunpack.c.h.b16 %v90
  %v474 = vunpack.c.l.b16 %v91
  %v475 = vunpack.c.l.b16 %v92
  %v476 = vunpack.c.h.b16 %v92
  %v477 = vunpack.c.l.b16 %v93
  %v478 = vunpack.c.l.b16 %v94
  %v479 = vunpack.c.h.b16 %v94
  %v480 = vunpack.c.l.b16 %v95
  %v481 = vunpack.c.l.b16 %v96
  %v482 = vunpack.c.h.b16 %v96
  %v483 = vunpack.c.l.b16 %v97
  %v484 = vunpack.c.l.b16 %v98
  %v485 = vunpack.c.h.b16 %v98
  %v486 = vunpack.c.l.b16 %v99
  %v487 = vunpack.c.l.b16 %v100
  %v488 = vunpack.c.h.b16 %v100
  %v489 = vunpack.c.l.b16 %v101
  %v490 = vunpack.c.l.b16 %v102
  %v491 = vunpack.c.h.b16 %v102
  %v492 = vunpack.c.l.b16 %v103
  %v493 = vunpack.c.l.b16 %v104
  %v494 = vunpack.c.h.b16 %v104
  %v495 = vunpack.c.l.b16 %v105
  %v496 = vunpack.c.l.b16 %v106
  %v497 = vunpack.c.h.b16 %v106
  %v498 = vunpack.c.l.b16 %v107
  %v499 = vunpack.c.l.b16 %v108
  %v500 = vunpack.c.h.b16 %v108
  %v501 = vunpack.c.l.b16 %v109
  %v502 = vunpack.c.l.b16 %v110
  %v503 = vunpack.c.h.b16 %v110
  %v504 = vunpack.c.l.b16 %v111
  %v505 = vunpack.c.l.b16 %v112
  %v506 = vunpack.c.h.b16 %v112
  %v507 = vunpack.c.l.b16 %v113
  %v508 = vunpack.c.l.b16 %v114
  %v509 = vunpack.c.h.b16 %v114
  %v510 = vunpack.c.l.b16 %v115
  %v511 = vunpack.c.l.b16 %v116
  %v512 = vunpack.c.h.b16 %v116
  %v513 = vunpack.c.l.b16 %v117
  %v514 = vunpack.c.l.b16 %v118
  %v515 = vunpack.c.h.b16 %v118
  %v516 = vunpack.c.l.b16 %v119
  %v517 = vunpack.c.l.b16 %v120
  %v518 = vunpack.c.h.b16 %v120
  %v519 = vunpack.c.l.b16 %v121
  %v520 = vunpack.c.l.b16 %v122
  %v521 = vunpack.c.h.b16 %v122
  %v522 = vunpack.c.l.b16 %v123
  %v523 = vunpack.c.l.b16 %v124
  %v524 = vunpack.c.h.b16 %v124
  %v525 = vunpack.c.l.b16 %v125
  %v526 = vunpack.c.l.b16 %v126
  %v527 = vunpack.c.h.b16 %v126
  %v528 = vunpack.c.l.b16 %v127
  %v529 = vunpack.c.l.b16 %v128
  %v530 = vunpack.c.h.b16 %v128
  %v531 = vunpack.c.l.b16 %v129
  %v532 = vunpack.c.l.b16 %v130
  %v533 = vunpack.c.h.b16 %v130
  %v534 = vunpack.c.l.b16 %v131
  %v535 = vunpack.c.l.b16 %v132
  %v536 = vunpack.c.h.b16 %v132
  %v537 = vunpack.c.l.b16 %v133
  %v538 = vunpack.c.l.b16 %v134
  %v539 = vunpack.c.h.b16 %v134
  %v540 = vunpack.c.l.b16 %v135
  %v541 = vunpack.c.l.b16 %v136
  %v542 = vunpack.c.h.b16 %v136
  %v543 = vunpack.c.l.b16 %v137
  %v544 = vunpack.c.l.b16 %v138
  %v545 = vunpack.c.h.b16 %v138
  %v546 = vunpack.c.l.b16 %v139
  %v547 = vunpack.c.l.b16 %v140
  %v548 = vunpack.c.h.b16 %v140
  %v549 = vunpack.c.l.b16 %v141
  %v550 = vunpack.c.l.b16 %v142
  %v551 = vunpack.c.h.b16 %v142
  %v552 = vunpack.c.l.b16 %v143
  %v553 = vunpack.c.l.b16 %v144
  %v554 = vunpack.c.h.b16 %v144
  %v555 = vunpack.c.l.b16 %v145
  %v556 = vunpack.c.l.b16 %v146
  %v557 = vunpack.c.h.b16 %v146
  %v558 = vunpack.c.l.b16 %v147
  %v559 = vunpack.c.l.b16 %v148
  %v560 = vunpack.c.h.b16 %v148
  %v561 = vunpack.c.l.b16 %v149
  %v562 = vunpack.c.l.b16 %v150
  %v563 = vunpack.c.h.b16 %v150
  %v564 = vunpack.c.l.b16 %v151
  %v565 = vunpack.c.l.b16 %v152
  %v566 = vunpack.c.h.b16 %v152
  %v567 = vunpack.c.l.b16 %v153
  %v568 = vunpack.c.l.b16 %v154
  %v569 = vunpack.c.h.b16 %v154
  %v570 = vunpack.c.l.b16 %v155
  %v571 = vunpack.c.l.b16 %v156
  %v572 = vunpack.c.h.b16 %v156
  %v573 = vunpack.c.l.b16 %v157
  %v574 = vpack.c.b16 %v433, %v430
  %v575 = vpack.c.b16 %v434, %v431
  %v576 = vpack.c.b16 %v435, %v432
  %v577 = vpack.c.b16 %v439, %v436
  %v578 = vpack.c.b16 %v440, %v437
  %v579 = vpack.c.b16 %v441, %v438
  %v580 = vpack.c.b16 %v445, %v442
  %v581 = vpack.c.b16 %v446, %v443
  %v582 = vpack.c.b16 %v447, %v444
  %v583 = vpack.c.b16 %v451, %v448
  %v584 = vpack.c.b16 %v452, %v449
  %v585 = vpack.c.b16 %v453, %v450
  %v586 = vpack.c.b16 %v457, %v454
  %v587 = vpack.c.b16 %v458, %v455
  %v588 = vpack.c.b16 %v459, %v456
  %v589 = vpack.c.b16 %v463, %v460
  %v590 = vpack.c.b16 %v464, %v461
  %v591 = vpack.c.b16 %v465, %v462
  %v592 = vpack.c.b16 %v469, %v466
  %v593 = vpack.c.b16 %v470, %v467
  %v594 = vpack.c.b16 %v471, %v468
  %v595 = vpack.c.b16 %v475, %v472
  %v596 = vpack.c.b16 %v476, %v473
  %v597 = vpack.c.b16 %v477, %v474
  %v598 = vpack.c.b16 %v481, %v478
  %v599 = vpack.c.b16 %v482, %v479
  %v600 = vpack.c.b16 %v483, %v480
  %v601 = vpack.c.b16 %v487, %v484
  %v602 = vpack.c.b16 %v488, %v485
  %v603 = vpack.c.b16 %v489, %v486
  %v604 = vpack.c.b16 %v493, %v490
  %v605 = vpack.c.b16 %v494, %v491
  %v606 = vpack.c.b16 %v495, %v492
  %v607 = vpack.c.b16 %v499, %v496
  %v608 = vpack.c.b16 %v500, %v497
  %v609 = vpack.c.b16 %v501, %v498
  %v610 = vpack.c.b16 %v505, %v502
  %v611 = vpack.c.b16 %v506, %v503
  %v612 = vpack.c.b16 %v507, %v504
  %v613 = vpack.c.b16 %v511, %v508
  %v614 = vpack.c.b16 %v512, %v509
  %v615 = vpack.c.b16 %v513, %v510
  %v616 = vpack.c.b16 %v517, %v514
  %v617 = vpack.c.b16 %v518, %v515
  %v618 = vpack.c.b16 %v519, %v516
  %v619 = vpack.c.b16 %v523, %v520
  %v620 = vpack.c.b16 %v524, %v521
  %v621 = vpack.c.b16 %v525, %v522
  %v622 = vpack.c.b16 %v529, %v526
  %v623 = vpack.c.b16 %v530, %v527
  %v624 = vpack.c.b16 %v531, %v528
  %v625 = vpack.c.b16 %v535, %v532
  %v626 = vpack.c.b16 %v536, %v533
  %v627 = vpack.c.b16 %v537, %v534
  %v628 = vpack.c.b16 %v541, %v538
  %v629 = vpack.c.b16 %v542, %v539
  %v630 = vpack.c.b16 %v543, %v540
  %v631 = vpack.c.b16 %v547, %v544
  %v632 = vpack.c.b16 %v548, %v545
  %v633 = vpack.c.b16 %v549, %v546
  %v634 = vpack.c.b16 %v553, %v550
  %v635 = vpack.c.b16 %v554, %v551
  %v636 = vpack.c.b16 %v555, %v552
  %v637 = vpack.c.b16 %v559, %v556
  %v638 = vpack.c.b16 %v560, %v557
  %v639 = vpack.c.b16 %v561, %v558
  %v640 = vpack.c.b16 %v565, %v562
  %v641 = vpack.c.b16 %v566, %v563
  %v642 = vpack.c.b16 %v567, %v564
  %v643 = vpack.c.b16 %v571, %v568
  %v644 = vpack.c.b16 %v572, %v569
  %v645 = vpack.c.b16 %v573, %v570
  %718 = vmatprep.subr.bf16.mxu0 %v575
  %719 = vmatpush1.bf16.msra.mxu0 %v574
  %720 = vmatprep.subr.bf16.mxu0 %v578
  %721 = vmatpush1.bf16.msra.mxu0 %v577
  %722 = vmatprep.subr.bf16.mxu0 %v581
  %723 = vmatpush1.bf16.msra.mxu0 %v580
  %724 = vmatprep.subr.bf16.mxu0 %v584
  %725 = vmatpush1.bf16.msra.mxu0 %v583
  %726 = vmatprep.subr.bf16.mxu0 %v587
  %727 = vmatpush1.bf16.msra.mxu0 %v586
  %728 = vmatprep.subr.bf16.mxu0 %v590
  %729 = vmatpush1.bf16.msra.mxu0 %v589
  %730 = vmatprep.subr.bf16.mxu0 %v593
  %731 = vmatpush1.bf16.msra.mxu0 %v592
  %732 = vmatprep.subr.bf16.mxu0 %v596
  %733 = vmatpush1.bf16.msra.mxu0 %v595
  %734 = vmatprep.subr.bf16.mxu0 %v599
  %735 = vmatpush1.bf16.msra.mxu0 %v598
  %736 = vmatprep.subr.bf16.mxu0 %v602
  %737 = vmatpush1.bf16.msra.mxu0 %v601
  %738 = vmatprep.subr.bf16.mxu0 %v605
  %739 = vmatpush1.bf16.msra.mxu0 %v604
  %740 = vmatprep.subr.bf16.mxu0 %v608
  %741 = vmatpush1.bf16.msra.mxu0 %v607
  %742 = vmatprep.subr.bf16.mxu0 %v611
  %743 = vmatpush1.bf16.msra.mxu0 %v610
  %744 = vmatprep.subr.bf16.mxu0 %v614
  %745 = vmatpush1.bf16.msra.mxu0 %v613
  %746 = vmatprep.subr.bf16.mxu0 %v617
  %747 = vmatpush1.bf16.msra.mxu0 %v616
  %748 = vmatprep.subr.bf16.mxu0 %v620
  %749 = vmatpush1.bf16.msra.mxu0 %v619
  %750 = vmatprep.mubr.bf16.mxu0 %v269
  %751 = vmatmul.mubr.bf16.gmra.mrb[0].mxu0 %v268
  %v752 = vpop.f32.mrb[0].mxu0
  %v753 = vadd.f32 0.0, %v752
  %v754 = vpop.f32.mrb[0].mxu0
  %v755 = vadd.f32 0.0, %v754
  %v756 = vpop.f32.mrb[0].mxu0
  %v757 = vadd.f32 0.0, %v756
  %v758 = vpop.f32.mrb[0].mxu0
  %v759 = vadd.f32 0.0, %v758
  %760 = vmatprep.mubr.bf16.mxu0 %v272
  %761 = vmatmul.mubr.bf16.gmra.mrb[0].mxu0 %v271
  %v762 = vpop.f32.mrb[0].mxu0
  %v763 = vadd.f32 0.0, %v762
  %v764 = vpop.f32.mrb[0].mxu0
  %v765 = vadd.f32 0.0, %v764
  %v766 = vpop.f32.mrb[0].mxu0
  %v767 = vadd.f32 0.0, %v766
  %v768 = vpop.f32.mrb[0].mxu0
  %v769 = vadd.f32 0.0, %v768
  %770 = vmatprep.mubr.bf16.mxu0 %v275
  %771 = vmatmul.mubr.bf16.gmra.mrb[0].mxu0 %v274
  %v772 = vpop.f32.mrb[0].mxu0
  %v773 = vadd.f32 0.0, %v772
  %v774 = vpop.f32.mrb[0].mxu0
  %v775 = vadd.f32 0.0, %v774
  %v776 = vpop.f32.mrb[0].mxu0
  %v777 = vadd.f32 0.0, %v776
  %v778 = vpop.f32.mrb[0].mxu0
  %v779 = vadd.f32 0.0, %v778
  %780 = vmatprep.mubr.bf16.mxu0 %v278
  %781 = vmatmul.mubr.bf16.gmra.mrb[0].mxu0 %v277
  %v782 = vpop.f32.mrb[0].mxu0
  %v783 = vadd.f32 0.0, %v782
  %v784 = vpop.f32.mrb[0].mxu0
  %v785 = vadd.f32 0.0, %v784
  %v786 = vpop.f32.mrb[0].mxu0
  %v787 = vadd.f32 0.0, %v786
  %v788 = vpop.f32.mrb[0].mxu0
  %v789 = vadd.f32 0.0, %v788
  %790 = vmatprep.mubr.bf16.mxu0 %v281
  %791 = vmatmul.mubr.bf16.gmra.mrb[0].mxu0 %v280
  %v792 = vpop.f32.mrb[0].mxu0
  %v793 = vadd.f32 0.0, %v792
  %v794 = vpop.f32.mrb[0].mxu0
  %v795 = vadd.f32 0.0, %v794
  %v796 = vpop.f32.mrb[0].mxu0
  %v797 = vadd.f32 0.0, %v796
  %v798 = vpop.f32.mrb[0].mxu0
  %v799 = vadd.f32 0.0, %v798
  %800 = vmatprep.mubr.bf16.mxu0 %v284
  %801 = vmatmul.mubr.bf16.gmra.mrb[0].mxu0 %v283
  %v802 = vpop.f32.mrb[0].mxu0
  %v803 = vadd.f32 0.0, %v802
  %v804 = vpop.f32.mrb[0].mxu0
  %v805 = vadd.f32 0.0, %v804
  %v806 = vpop.f32.mrb[0].mxu0
  %v807 = vadd.f32 0.0, %v806
  %v808 = vpop.f32.mrb[0].mxu0
  %v809 = vadd.f32 0.0, %v808
  %810 = vmatprep.mubr.bf16.mxu0 %v287
  %811 = vmatmul.mubr.bf16.gmra.mrb[0].mxu0 %v286
  %v812 = vpop.f32.mrb[0].mxu0
  %v813 = vadd.f32 0.0, %v812
  %v814 = vpop.f32.mrb[0].mxu0
  %v815 = vadd.f32 0.0, %v814
  %v816 = vpop.f32.mrb[0].mxu0
  %v817 = vadd.f32 0.0, %v816
  %v818 = vpop.f32.mrb[0].mxu0
  %v819 = vadd.f32 0.0, %v818
  %820 = vmatprep.mubr.bf16.mxu0 %v290
  %821 = vmatmul.mubr.bf16.gmra.mrb[0].mxu0 %v289
  %v822 = vpop.f32.mrb[0].mxu0
  %v823 = vadd.f32 0.0, %v822
  %v824 = vpop.f32.mrb[0].mxu0
  %v825 = vadd.f32 0.0, %v824
  %v826 = vpop.f32.mrb[0].mxu0
  %v827 = vadd.f32 0.0, %v826
  %v828 = vpop.f32.mrb[0].mxu0
  %v829 = vadd.f32 0.0, %v828
  %830 = vmatprep.mubr.bf16.mxu0 %v293
  %831 = vmatmul.mubr.bf16.gmra.mrb[0].mxu0 %v292
  %v832 = vpop.f32.mrb[0].mxu0
  %v833 = vadd.f32 0.0, %v832
  %v834 = vpop.f32.mrb[0].mxu0
  %v835 = vadd.f32 0.0, %v834
  %v836 = vpop.f32.mrb[0].mxu0
  %v837 = vadd.f32 0.0, %v836
  %v838 = vpop.f32.mrb[0].mxu0
  %v839 = vadd.f32 0.0, %v838
  %840 = vmatprep.mubr.bf16.mxu0 %v296
  %841 = vmatmul.mubr.bf16.gmra.mrb[0].mxu0 %v295
  %v842 = vpop.f32.mrb[0].mxu0
  %v843 = vadd.f32 0.0, %v842
  %v844 = vpop.f32.mrb[0].mxu0
  %v845 = vadd.f32 0.0, %v844
  %v846 = vpop.f32.mrb[0].mxu0
  %v847 = vadd.f32 0.0, %v846
  %v848 = vpop.f32.mrb[0].mxu0
  %v849 = vadd.f32 0.0, %v848
  %850 = vmatprep.mubr.bf16.mxu0 %v299
  %851 = vmatmul.mubr.bf16.gmra.mrb[0].mxu0 %v298
  %v852 = vpop.f32.mrb[0].mxu0
  %v853 = vadd.f32 0.0, %v852
  %v854 = vpop.f32.mrb[0].mxu0
  %v855 = vadd.f32 0.0, %v854
  %v856 = vpop.f32.mrb[0].mxu0
  %v857 = vadd.f32 0.0, %v856
  %v858 = vpop.f32.mrb[0].mxu0
  %v859 = vadd.f32 0.0, %v858
  %860 = vdwg.mxu0
  %861 = vmatprep.subr.bf16.mxu0 %v623
  %862 = vmatpush1.bf16.msra.mxu0 %v622
  %863 = vmatprep.subr.bf16.mxu0 %v626
  %864 = vmatpush1.bf16.msra.mxu0 %v625
  %865 = vmatprep.subr.bf16.mxu0 %v629
  %866 = vmatpush1.bf16.msra.mxu0 %v628
  %867 = vmatprep.subr.bf16.mxu0 %v632
  %868 = vmatpush1.bf16.msra.mxu0 %v631
  %869 = vmatprep.subr.bf16.mxu0 %v635
  %870 = vmatpush1.bf16.msra.mxu0 %v634
  %871 = vmatprep.subr.bf16.mxu0 %v638
  %872 = vmatpush1.bf16.msra.mxu0 %v637
  %873 = vmatprep.subr.bf16.mxu0 %v641
  %874 = vmatpush1.bf16.msra.mxu0 %v640
  %875 = vmatprep.subr.bf16.mxu0 %v644
  %876 = vmatpush1.bf16.msra.mxu0 %v643
  %877 = vmatprep.subr.bf16.mxu0 0
  %878 = vmatpush1.bf16.msra.mxu0 0
  %879 = vmatprep.subr.bf16.mxu0 0
  %880 = vmatpush1.bf16.msra.mxu0 0
  %881 = vmatprep.subr.bf16.mxu0 0
  %882 = vmatpush1.bf16.msra.mxu0 0
  %883 = vmatprep.subr.bf16.mxu0 0
  %884 = vmatpush1.bf16.msra.mxu0 0
  %885 = vmatprep.subr.bf16.mxu0 0
  %886 = vmatpush1.bf16.msra.mxu0 0
  %887 = vmatprep.subr.bf16.mxu0 0
  %888 = vmatpush1.bf16.msra.mxu0 0
  %889 = vmatprep.subr.bf16.mxu0 0
  %890 = vmatpush1.bf16.msra.mxu0 0
  %891 = vmatprep.subr.bf16.mxu0 0
  %892 = vmatpush1.bf16.msra.mxu0 0
  %893 = vmatprep.mubr.bf16.mxu0 0
  %894 = vmatmul.mubr.bf16.gmra.mrb[0].mxu0 %v270
  %v895 = vpop.f32.mrb[0].mxu0
  %v896 = vadd.f32 %v753, %v895
  %v897 = vpop.f32.mrb[0].mxu0
  %v898 = vadd.f32 %v755, %v897
  %v899 = vpop.f32.mrb[0].mxu0
  %v900 = vadd.f32 %v757, %v899
  %v901 = vpop.f32.mrb[0].mxu0
  %v902 = vadd.f32 %v759, %v901
  %903 = vmatprep.mubr.bf16.mxu0 0
  %904 = vmatmul.mubr.bf16.gmra.mrb[0].mxu0 %v273
  %v905 = vpop.f32.mrb[0].mxu0
  %v906 = vadd.f32 %v763, %v905
  %v907 = vpop.f32.mrb[0].mxu0
  %v908 = vadd.f32 %v765, %v907
  %v909 = vpop.f32.mrb[0].mxu0
  %v910 = vadd.f32 %v767, %v909
  %v911 = vpop.f32.mrb[0].mxu0
  %v912 = vadd.f32 %v769, %v911
  %913 = vmatprep.mubr.bf16.mxu0 0
  %914 = vmatmul.mubr.bf16.gmra.mrb[0].mxu0 %v276
  %v915 = vpop.f32.mrb[0].mxu0
  %v916 = vadd.f32 %v773, %v915
  %v917 = vpop.f32.mrb[0].mxu0
  %v918 = vadd.f32 %v775, %v917
  %v919 = vpop.f32.mrb[0].mxu0
  %v920 = vadd.f32 %v777, %v919
  %v921 = vpop.f32.mrb[0].mxu0
  %v922 = vadd.f32 %v779, %v921
  %923 = vmatprep.mubr.bf16.mxu0 0
  %924 = vmatmul.mubr.bf16.gmra.mrb[0].mxu0 %v279
  %v925 = vpop.f32.mrb[0].mxu0
  %v926 = vadd.f32 %v783, %v925
  %v927 = vpop.f32.mrb[0].mxu0
  %v928 = vadd.f32 %v785, %v927
  %v929 = vpop.f32.mrb[0].mxu0
  %v930 = vadd.f32 %v787, %v929
  %v931 = vpop.f32.mrb[0].mxu0
  %v932 = vadd.f32 %v789, %v931
  %933 = vmatprep.mubr.bf16.mxu0 0
  %934 = vmatmul.mubr.bf16.gmra.mrb[0].mxu0 %v282
  %v935 = vpop.f32.mrb[0].mxu0
  %v936 = vadd.f32 %v793, %v935
  %v937 = vpop.f32.mrb[0].mxu0
  %v938 = vadd.f32 %v795, %v937
  %v939 = vpop.f32.mrb[0].mxu0
  %v940 = vadd.f32 %v797, %v939
  %v941 = vpop.f32.mrb[0].mxu0
  %v942 = vadd.f32 %v799, %v941
  %943 = vmatprep.mubr.bf16.mxu0 0
  %944 = vmatmul.mubr.bf16.gmra.mrb[0].mxu0 %v285
  %v945 = vpop.f32.mrb[0].mxu0
  %v946 = vadd.f32 %v803, %v945
  %v947 = vpop.f32.mrb[0].mxu0
  %v948 = vadd.f32 %v805, %v947
  %v949 = vpop.f32.mrb[0].mxu0
  %v950 = vadd.f32 %v807, %v949
  %v951 = vpop.f32.mrb[0].mxu0
  %v952 = vadd.f32 %v809, %v951
  %953 = vmatprep.mubr.bf16.mxu0 0
  %954 = vmatmul.mubr.bf16.gmra.mrb[0].mxu0 %v288
  %v955 = vpop.f32.mrb[0].mxu0
  %v956 = vadd.f32 %v813, %v955
  %v957 = vpop.f32.mrb[0].mxu0
  %v958 = vadd.f32 %v815, %v957
  %v959 = vpop.f32.mrb[0].mxu0
  %v960 = vadd.f32 %v817, %v959
  %v961 = vpop.f32.mrb[0].mxu0
  %v962 = vadd.f32 %v819, %v961
  %963 = vmatprep.mubr.bf16.mxu0 0
  %964 = vmatmul.mubr.bf16.gmra.mrb[0].mxu0 %v291
  %v965 = vpop.f32.mrb[0].mxu0
  %v966 = vadd.f32 %v823, %v965
  %v967 = vpop.f32.mrb[0].mxu0
  %v968 = vadd.f32 %v825, %v967
  %v969 = vpop.f32.mrb[0].mxu0
  %v970 = vadd.f32 %v827, %v969
  %v971 = vpop.f32.mrb[0].mxu0
  %v972 = vadd.f32 %v829, %v971
  %973 = vmatprep.mubr.bf16.mxu0 0
  %974 = vmatmul.mubr.bf16.gmra.mrb[0].mxu0 %v294
  %v975 = vpop.f32.mrb[0].mxu0
  %v976 = vadd.f32 %v833, %v975
  %v977 = vpop.f32.mrb[0].mxu0
  %v978 = vadd.f32 %v835, %v977
  %v979 = vpop.f32.mrb[0].mxu0
  %v980 = vadd.f32 %v837, %v979
  %v981 = vpop.f32.mrb[0].mxu0
  %v982 = vadd.f32 %v839, %v981
  %983 = vmatprep.mubr.bf16.mxu0 0
  %984 = vmatmul.mubr.bf16.gmra.mrb[0].mxu0 %v297
  %v985 = vpop.f32.mrb[0].mxu0
  %v986 = vadd.f32 %v843, %v985
  %v987 = vpop.f32.mrb[0].mxu0
  %v988 = vadd.f32 %v845, %v987
  %v989 = vpop.f32.mrb[0].mxu0
  %v990 = vadd.f32 %v847, %v989
  %v991 = vpop.f32.mrb[0].mxu0
  %v992 = vadd.f32 %v849, %v991
  %993 = vmatprep.mubr.bf16.mxu0 0
  %994 = vmatmul.mubr.bf16.gmra.mrb[0].mxu0 %v300
  %v995 = vpop.f32.mrb[0].mxu0
  %v996 = vadd.f32 %v853, %v995
  %v997 = vpop.f32.mrb[0].mxu0
  %v998 = vadd.f32 %v855, %v997
  %v999 = vpop.f32.mrb[0].mxu0
  %v1000 = vadd.f32 %v857, %v999
  %v1001 = vpop.f32.mrb[0].mxu0
  %v1002 = vadd.f32 %v859, %v1001
  %1003 = vdwg.mxu0
  %1004 = vmatprep.subr.bf16.mxu0 0
  %1005 = vmatpush1.bf16.msra.mxu0 %v576
  %1006 = vmatprep.subr.bf16.mxu0 0
  %1007 = vmatpush1.bf16.msra.mxu0 %v579
  %1008 = vmatprep.subr.bf16.mxu0 0
  %1009 = vmatpush1.bf16.msra.mxu0 %v582
  %1010 = vmatprep.subr.bf16.mxu0 0
  %1011 = vmatpush1.bf16.msra.mxu0 %v585
  %1012 = vmatprep.subr.bf16.mxu0 0
  %1013 = vmatpush1.bf16.msra.mxu0 %v588
  %1014 = vmatprep.subr.bf16.mxu0 0
  %1015 = vmatpush1.bf16.msra.mxu0 %v591
  %1016 = vmatprep.subr.bf16.mxu0 0
  %1017 = vmatpush1.bf16.msra.mxu0 %v594
  %1018 = vmatprep.subr.bf16.mxu0 0
  %1019 = vmatpush1.bf16.msra.mxu0 %v597
  %1020 = vmatprep.subr.bf16.mxu0 0
  %1021 = vmatpush1.bf16.msra.mxu0 %v600
  %1022 = vmatprep.subr.bf16.mxu0 0
  %1023 = vmatpush1.bf16.msra.mxu0 %v603
  %1024 = vmatprep.subr.bf16.mxu0 0
  %1025 = vmatpush1.bf16.msra.mxu0 %v606
  %1026 = vmatprep.subr.bf16.mxu0 0
  %1027 = vmatpush1.bf16.msra.mxu0 %v609
  %1028 = vmatprep.subr.bf16.mxu0 0
  %1029 = vmatpush1.bf16.msra.mxu0 %v612
  %1030 = vmatprep.subr.bf16.mxu0 0
  %1031 = vmatpush1.bf16.msra.mxu0 %v615
  %1032 = vmatprep.subr.bf16.mxu0 0
  %1033 = vmatpush1.bf16.msra.mxu0 %v618
  %1034 = vmatprep.subr.bf16.mxu0 0
  %1035 = vmatpush1.bf16.msra.mxu0 %v621
  %1036 = vmatprep.mubr.bf16.mxu0 %v269
  %1037 = vmatmul.mubr.bf16.gmra.mrb[0].mxu0 %v268
  %v1038 = vpop.f32.mrb[0].mxu0
  %v1039 = vadd.f32 0.0, %v1038
  %v1040 = vpop.f32.mrb[0].mxu0
  %v1041 = vpop.f32.mrb[0].mxu0
  %v1042 = vadd.f32 0.0, %v1041
  %v1043 = vpop.f32.mrb[0].mxu0
  %1044 = vmatprep.mubr.bf16.mxu0 %v272
  %1045 = vmatmul.mubr.bf16.gmra.mrb[0].mxu0 %v271
  %v1046 = vpop.f32.mrb[0].mxu0
  %v1047 = vadd.f32 0.0, %v1046
  %v1048 = vpop.f32.mrb[0].mxu0
  %v1049 = vpop.f32.mrb[0].mxu0
  %v1050 = vadd.f32 0.0, %v1049
  %v1051 = vpop.f32.mrb[0].mxu0
  %1052 = vmatprep.mubr.bf16.mxu0 %v275
  %1053 = vmatmul.mubr.bf16.gmra.mrb[0].mxu0 %v274
  %v1054 = vpop.f32.mrb[0].mxu0
  %v1055 = vadd.f32 0.0, %v1054
  %v1056 = vpop.f32.mrb[0].mxu0
  %v1057 = vpop.f32.mrb[0].mxu0
  %v1058 = vadd.f32 0.0, %v1057
  %v1059 = vpop.f32.mrb[0].mxu0
  %1060 = vmatprep.mubr.bf16.mxu0 %v278
  %1061 = vmatmul.mubr.bf16.gmra.mrb[0].mxu0 %v277
  %v1062 = vpop.f32.mrb[0].mxu0
  %v1063 = vadd.f32 0.0, %v1062
  %v1064 = vpop.f32.mrb[0].mxu0
  %v1065 = vpop.f32.mrb[0].mxu0
  %v1066 = vadd.f32 0.0, %v1065
  %v1067 = vpop.f32.mrb[0].mxu0
  %1068 = vmatprep.mubr.bf16.mxu0 %v281
  %1069 = vmatmul.mubr.bf16.gmra.mrb[0].mxu0 %v280
  %v1070 = vpop.f32.mrb[0].mxu0
  %v1071 = vadd.f32 0.0, %v1070
  %v1072 = vpop.f32.mrb[0].mxu0
  %v1073 = vpop.f32.mrb[0].mxu0
  %v1074 = vadd.f32 0.0, %v1073
  %v1075 = vpop.f32.mrb[0].mxu0
  %1076 = vmatprep.mubr.bf16.mxu0 %v284
  %1077 = vmatmul.mubr.bf16.gmra.mrb[0].mxu0 %v283
  %v1078 = vpop.f32.mrb[0].mxu0
  %v1079 = vadd.f32 0.0, %v1078
  %v1080 = vpop.f32.mrb[0].mxu0
  %v1081 = vpop.f32.mrb[0].mxu0
  %v1082 = vadd.f32 0.0, %v1081
  %v1083 = vpop.f32.mrb[0].mxu0
  %1084 = vmatprep.mubr.bf16.mxu0 %v287
  %1085 = vmatmul.mubr.bf16.gmra.mrb[0].mxu0 %v286
  %v1086 = vpop.f32.mrb[0].mxu0
  %v1087 = vadd.f32 0.0, %v1086
  %v1088 = vpop.f32.mrb[0].mxu0
  %v1089 = vpop.f32.mrb[0].mxu0
  %v1090 = vadd.f32 0.0, %v1089
  %v1091 = vpop.f32.mrb[0].mxu0
  %1092 = vmatprep.mubr.bf16.mxu0 %v290
  %1093 = vmatmul.mubr.bf16.gmra.mrb[0].mxu0 %v289
  %v1094 = vpop.f32.mrb[0].mxu0
  %v1095 = vadd.f32 0.0, %v1094
  %v1096 = vpop.f32.mrb[0].mxu0
  %v1097 = vpop.f32.mrb[0].mxu0
  %v1098 = vadd.f32 0.0, %v1097
  %v1099 = vpop.f32.mrb[0].mxu0
  %1100 = vmatprep.mubr.bf16.mxu0 %v293
  %1101 = vmatmul.mubr.bf16.gmra.mrb[0].mxu0 %v292
  %v1102 = vpop.f32.mrb[0].mxu0
  %v1103 = vadd.f32 0.0, %v1102
  %v1104 = vpop.f32.mrb[0].mxu0
  %v1105 = vpop.f32.mrb[0].mxu0
  %v1106 = vadd.f32 0.0, %v1105
  %v1107 = vpop.f32.mrb[0].mxu0
  %1108 = vmatprep.mubr.bf16.mxu0 %v296
  %1109 = vmatmul.mubr.bf16.gmra.mrb[0].mxu0 %v295
  %v1110 = vpop.f32.mrb[0].mxu0
  %v1111 = vadd.f32 0.0, %v1110
  %v1112 = vpop.f32.mrb[0].mxu0
  %v1113 = vpop.f32.mrb[0].mxu0
  %v1114 = vadd.f32 0.0, %v1113
  %v1115 = vpop.f32.mrb[0].mxu0
  %1116 = vmatprep.mubr.bf16.mxu0 %v299
  %1117 = vmatmul.mubr.bf16.gmra.mrb[0].mxu0 %v298
  %v1118 = vpop.f32.mrb[0].mxu0
  %v1119 = vadd.f32 0.0, %v1118
  %v1120 = vpop.f32.mrb[0].mxu0
  %v1121 = vpop.f32.mrb[0].mxu0
  %v1122 = vadd.f32 0.0, %v1121
  %v1123 = vpop.f32.mrb[0].mxu0
  %1124 = vdwg.mxu0
  %1125 = vmatprep.subr.bf16.mxu0 0
  %1126 = vmatpush1.bf16.msra.mxu0 %v624
  %1127 = vmatprep.subr.bf16.mxu0 0
  %1128 = vmatpush1.bf16.msra.mxu0 %v627
  %1129 = vmatprep.subr.bf16.mxu0 0
  %1130 = vmatpush1.bf16.msra.mxu0 %v630
  %1131 = vmatprep.subr.bf16.mxu0 0
  %1132 = vmatpush1.bf16.msra.mxu0 %v633
  %1133 = vmatprep.subr.bf16.mxu0 0
  %1134 = vmatpush1.bf16.msra.mxu0 %v636
  %1135 = vmatprep.subr.bf16.mxu0 0
  %1136 = vmatpush1.bf16.msra.mxu0 %v639
  %1137 = vmatprep.subr.bf16.mxu0 0
  %1138 = vmatpush1.bf16.msra.mxu0 %v642
  %1139 = vmatprep.subr.bf16.mxu0 0
  %1140 = vmatpush1.bf16.msra.mxu0 %v645
  %1141 = vmatprep.subr.bf16.mxu0 0
  %1142 = vmatpush1.bf16.msra.mxu0 0
  %1143 = vmatprep.subr.bf16.mxu0 0
  %1144 = vmatpush1.bf16.msra.mxu0 0
  %1145 = vmatprep.subr.bf16.mxu0 0
  %1146 = vmatpush1.bf16.msra.mxu0 0
  %1147 = vmatprep.subr.bf16.mxu0 0
  %1148 = vmatpush1.bf16.msra.mxu0 0
  %1149 = vmatprep.subr.bf16.mxu0 0
  %1150 = vmatpush1.bf16.msra.mxu0 0
  %1151 = vmatprep.subr.bf16.mxu0 0
  %1152 = vmatpush1.bf16.msra.mxu0 0
  %1153 = vmatprep.subr.bf16.mxu0 0
  %1154 = vmatpush1.bf16.msra.mxu0 0
  %1155 = vmatprep.subr.bf16.mxu0 0
  %1156 = vmatpush1.bf16.msra.mxu0 0
  %1157 = vmatprep.mubr.bf16.mxu0 0
  %1158 = vmatmul.mubr.bf16.gmra.mrb[0].mxu0 %v270
  %v1159 = vpop.f32.mrb[0].mxu0
  %v1160 = vadd.f32 %v1039, %v1159
  %v1161 = vpop.f32.mrb[0].mxu0
  %v1162 = vpop.f32.mrb[0].mxu0
  %v1163 = vadd.f32 %v1042, %v1162
  %v1164 = vpop.f32.mrb[0].mxu0
  %1165 = vmatprep.mubr.bf16.mxu0 0
  %1166 = vmatmul.mubr.bf16.gmra.mrb[0].mxu0 %v273
  %v1167 = vpop.f32.mrb[0].mxu0
  %v1168 = vadd.f32 %v1047, %v1167
  %v1169 = vpop.f32.mrb[0].mxu0
  %v1170 = vpop.f32.mrb[0].mxu0
  %v1171 = vadd.f32 %v1050, %v1170
  %v1172 = vpop.f32.mrb[0].mxu0
  %1173 = vmatprep.mubr.bf16.mxu0 0
  %1174 = vmatmul.mubr.bf16.gmra.mrb[0].mxu0 %v276
  %v1175 = vpop.f32.mrb[0].mxu0
  %v1176 = vadd.f32 %v1055, %v1175
  %v1177 = vpop.f32.mrb[0].mxu0
  %v1178 = vpop.f32.mrb[0].mxu0
  %v1179 = vadd.f32 %v1058, %v1178
  %v1180 = vpop.f32.mrb[0].mxu0
  %1181 = vmatprep.mubr.bf16.mxu0 0
  %1182 = vmatmul.mubr.bf16.gmra.mrb[0].mxu0 %v279
  %v1183 = vpop.f32.mrb[0].mxu0
  %v1184 = vadd.f32 %v1063, %v1183
  %v1185 = vpop.f32.mrb[0].mxu0
  %v1186 = vpop.f32.mrb[0].mxu0
  %v1187 = vadd.f32 %v1066, %v1186
  %v1188 = vpop.f32.mrb[0].mxu0
  %1189 = vmatprep.mubr.bf16.mxu0 0
  %1190 = vmatmul.mubr.bf16.gmra.mrb[0].mxu0 %v282
  %v1191 = vpop.f32.mrb[0].mxu0
  %v1192 = vadd.f32 %v1071, %v1191
  %v1193 = vpop.f32.mrb[0].mxu0
  %v1194 = vpop.f32.mrb[0].mxu0
  %v1195 = vadd.f32 %v1074, %v1194
  %v1196 = vpop.f32.mrb[0].mxu0
  %1197 = vmatprep.mubr.bf16.mxu0 0
  %1198 = vmatmul.mubr.bf16.gmra.mrb[0].mxu0 %v285
  %v1199 = vpop.f32.mrb[0].mxu0
  %v1200 = vadd.f32 %v1079, %v1199
  %v1201 = vpop.f32.mrb[0].mxu0
  %v1202 = vpop.f32.mrb[0].mxu0
  %v1203 = vadd.f32 %v1082, %v1202
  %v1204 = vpop.f32.mrb[0].mxu0
  %1205 = vmatprep.mubr.bf16.mxu0 0
  %1206 = vmatmul.mubr.bf16.gmra.mrb[0].mxu0 %v288
  %v1207 = vpop.f32.mrb[0].mxu0
  %v1208 = vadd.f32 %v1087, %v1207
  %v1209 = vpop.f32.mrb[0].mxu0
  %v1210 = vpop.f32.mrb[0].mxu0
  %v1211 = vadd.f32 %v1090, %v1210
  %v1212 = vpop.f32.mrb[0].mxu0
  %1213 = vmatprep.mubr.bf16.mxu0 0
  %1214 = vmatmul.mubr.bf16.gmra.mrb[0].mxu0 %v291
  %v1215 = vpop.f32.mrb[0].mxu0
  %v1216 = vadd.f32 %v1095, %v1215
  %v1217 = vpop.f32.mrb[0].mxu0
  %v1218 = vpop.f32.mrb[0].mxu0
  %v1219 = vadd.f32 %v1098, %v1218
  %v1220 = vpop.f32.mrb[0].mxu0
  %1221 = vmatprep.mubr.bf16.mxu0 0
  %1222 = vmatmul.mubr.bf16.gmra.mrb[0].mxu0 %v294
  %v1223 = vpop.f32.mrb[0].mxu0
  %v1224 = vadd.f32 %v1103, %v1223
  %v1225 = vpop.f32.mrb[0].mxu0
  %v1226 = vpop.f32.mrb[0].mxu0
  %v1227 = vadd.f32 %v1106, %v1226
  %v1228 = vpop.f32.mrb[0].mxu0
  %1229 = vmatprep.mubr.bf16.mxu0 0
  %1230 = vmatmul.mubr.bf16.gmra.mrb[0].mxu0 %v297
  %v1231 = vpop.f32.mrb[0].mxu0
  %v1232 = vadd.f32 %v1111, %v1231
  %v1233 = vpop.f32.mrb[0].mxu0
  %v1234 = vpop.f32.mrb[0].mxu0
  %v1235 = vadd.f32 %v1114, %v1234
  %v1236 = vpop.f32.mrb[0].mxu0
  %1237 = vmatprep.mubr.bf16.mxu0 0
  %1238 = vmatmul.mubr.bf16.gmra.mrb[0].mxu0 %v300
  %v1239 = vpop.f32.mrb[0].mxu0
  %v1240 = vadd.f32 %v1119, %v1239
  %v1241 = vpop.f32.mrb[0].mxu0
  %v1242 = vpop.f32.mrb[0].mxu0
  %v1243 = vadd.f32 %v1122, %v1242
  %v1244 = vpop.f32.mrb[0].mxu0
  %1245 = vdwg.mxu0
  %v1246 = vld [vmem:[%s2] sm:$0x7]
  %v1248 = vlaneseq
  %v1249 = vshrl.u32 %v1248, 7
  %v1250 = vsub.s32 0, %v1249
  %v1251 = vrot.slane %v1246, %v1250
  %v1252 = vlaneseq
  %v1253 = vshrl.u32 %v1252, 7
  %v1254 = vsub.s32 1, %v1253
  %v1255 = vrot.slane %v1246, %v1254
  %v1256 = vlaneseq
  %v1257 = vshrl.u32 %v1256, 7
  %v1258 = vsub.s32 2, %v1257
  %v1259 = vrot.slane %v1246, %v1258
  %v1263 = vmul.f32 %v896, %v1251
  %v1264 = vmul.f32 %v898, %v1255
  %v1265 = vmul.f32 %v1160, %v1259
  %v1266 = vmul.f32 %v900, %v1251
  %v1267 = vmul.f32 %v902, %v1255
  %v1268 = vmul.f32 %v1163, %v1259
  %v1269 = vmul.f32 %v906, %v1251
  %v1270 = vmul.f32 %v908, %v1255
  %v1271 = vmul.f32 %v1168, %v1259
  %v1272 = vmul.f32 %v910, %v1251
  %v1273 = vmul.f32 %v912, %v1255
  %v1274 = vmul.f32 %v1171, %v1259
  %v1275 = vmul.f32 %v916, %v1251
  %v1276 = vmul.f32 %v918, %v1255
  %v1277 = vmul.f32 %v1176, %v1259
  %v1278 = vmul.f32 %v920, %v1251
  %v1279 = vmul.f32 %v922, %v1255
  %v1280 = vmul.f32 %v1179, %v1259
  %v1281 = vmul.f32 %v926, %v1251
  %v1282 = vmul.f32 %v928, %v1255
  %v1283 = vmul.f32 %v1184, %v1259
  %v1284 = vmul.f32 %v930, %v1251
  %v1285 = vmul.f32 %v932, %v1255
  %v1286 = vmul.f32 %v1187, %v1259
  %v1287 = vmul.f32 %v936, %v1251
  %v1288 = vmul.f32 %v938, %v1255
  %v1289 = vmul.f32 %v1192, %v1259
  %v1290 = vmul.f32 %v940, %v1251
  %v1291 = vmul.f32 %v942, %v1255
  %v1292 = vmul.f32 %v1195, %v1259
  %v1293 = vmul.f32 %v946, %v1251
  %v1294 = vmul.f32 %v948, %v1255
  %v1295 = vmul.f32 %v1200, %v1259
  %v1296 = vmul.f32 %v950, %v1251
  %v1297 = vmul.f32 %v952, %v1255
  %v1298 = vmul.f32 %v1203, %v1259
  %v1299 = vmul.f32 %v956, %v1251
  %v1300 = vmul.f32 %v958, %v1255
  %v1301 = vmul.f32 %v1208, %v1259
  %v1302 = vmul.f32 %v960, %v1251
  %v1303 = vmul.f32 %v962, %v1255
  %v1304 = vmul.f32 %v1211, %v1259
  %v1305 = vmul.f32 %v966, %v1251
  %v1306 = vmul.f32 %v968, %v1255
  %v1307 = vmul.f32 %v1216, %v1259
  %v1308 = vmul.f32 %v970, %v1251
  %v1309 = vmul.f32 %v972, %v1255
  %v1310 = vmul.f32 %v1219, %v1259
  %v1311 = vmul.f32 %v976, %v1251
  %v1312 = vmul.f32 %v978, %v1255
  %v1313 = vmul.f32 %v1224, %v1259
  %v1314 = vmul.f32 %v980, %v1251
  %v1315 = vmul.f32 %v982, %v1255
  %v1316 = vmul.f32 %v1227, %v1259
  %v1317 = vmul.f32 %v986, %v1251
  %v1318 = vmul.f32 %v988, %v1255
  %v1319 = vmul.f32 %v1232, %v1259
  %v1320 = vmul.f32 %v990, %v1251
  %v1321 = vmul.f32 %v992, %v1255
  %v1322 = vmul.f32 %v1235, %v1259
  %v1323 = vmul.f32 %v996, %v1251
  %v1324 = vmul.f32 %v998, %v1255
  %v1325 = vmul.f32 %v1240, %v1259
  %v1326 = vmul.f32 %v1000, %v1251
  %v1327 = vmul.f32 %v1002, %v1255
  %v1328 = vmul.f32 %v1243, %v1259
  %v1329 = vld [vmem:[%s3] sm:$0x7]
  %v1331 = vlaneseq
  %v1332 = vshrl.u32 %v1331, 7
  %v1333 = vsub.s32 0, %v1332
  %v1334 = vrot.slane %v1329, %v1333
  %v1335 = vlaneseq
  %v1336 = vshrl.u32 %v1335, 7
  %v1337 = vsub.s32 1, %v1336
  %v1338 = vrot.slane %v1329, %v1337
  %v1339 = vlaneseq
  %v1340 = vshrl.u32 %v1339, 7
  %v1341 = vsub.s32 2, %v1340
  %v1342 = vrot.slane %v1329, %v1341
  %v1346 = vadd.f32 %v1263, %v1334
  %v1347 = vadd.f32 %v1264, %v1338
  %v1348 = vadd.f32 %v1265, %v1342
  %v1349 = vadd.f32 %v1266, %v1334
  %v1350 = vadd.f32 %v1267, %v1338
  %v1351 = vadd.f32 %v1268, %v1342
  %v1352 = vadd.f32 %v1269, %v1334
  %v1353 = vadd.f32 %v1270, %v1338
  %v1354 = vadd.f32 %v1271, %v1342
  %v1355 = vadd.f32 %v1272, %v1334
  %v1356 = vadd.f32 %v1273, %v1338
  %v1357 = vadd.f32 %v1274, %v1342
  %v1358 = vadd.f32 %v1275, %v1334
  %v1359 = vadd.f32 %v1276, %v1338
  %v1360 = vadd.f32 %v1277, %v1342
  %v1361 = vadd.f32 %v1278, %v1334
  %v1362 = vadd.f32 %v1279, %v1338
  %v1363 = vadd.f32 %v1280, %v1342
  %v1364 = vadd.f32 %v1281, %v1334
  %v1365 = vadd.f32 %v1282, %v1338
  %v1366 = vadd.f32 %v1283, %v1342
  %v1367 = vadd.f32 %v1284, %v1334
  %v1368 = vadd.f32 %v1285, %v1338
  %v1369 = vadd.f32 %v1286, %v1342
  %v1370 = vadd.f32 %v1287, %v1334
  %v1371 = vadd.f32 %v1288, %v1338
  %v1372 = vadd.f32 %v1289, %v1342
  %v1373 = vadd.f32 %v1290, %v1334
  %v1374 = vadd.f32 %v1291, %v1338
  %v1375 = vadd.f32 %v1292, %v1342
  %v1376 = vadd.f32 %v1293, %v1334
  %v1377 = vadd.f32 %v1294, %v1338
  %v1378 = vadd.f32 %v1295, %v1342
  %v1379 = vadd.f32 %v1296, %v1334
  %v1380 = vadd.f32 %v1297, %v1338
  %v1381 = vadd.f32 %v1298, %v1342
  %v1382 = vadd.f32 %v1299, %v1334
  %v1383 = vadd.f32 %v1300, %v1338
  %v1384 = vadd.f32 %v1301, %v1342
  %v1385 = vadd.f32 %v1302, %v1334
  %v1386 = vadd.f32 %v1303, %v1338
  %v1387 = vadd.f32 %v1304, %v1342
  %v1388 = vadd.f32 %v1305, %v1334
  %v1389 = vadd.f32 %v1306, %v1338
  %v1390 = vadd.f32 %v1307, %v1342
  %v1391 = vadd.f32 %v1308, %v1334
  %v1392 = vadd.f32 %v1309, %v1338
  %v1393 = vadd.f32 %v1310, %v1342
  %v1394 = vadd.f32 %v1311, %v1334
  %v1395 = vadd.f32 %v1312, %v1338
  %v1396 = vadd.f32 %v1313, %v1342
  %v1397 = vadd.f32 %v1314, %v1334
  %v1398 = vadd.f32 %v1315, %v1338
  %v1399 = vadd.f32 %v1316, %v1342
  %v1400 = vadd.f32 %v1317, %v1334
  %v1401 = vadd.f32 %v1318, %v1338
  %v1402 = vadd.f32 %v1319, %v1342
  %v1403 = vadd.f32 %v1320, %v1334
  %v1404 = vadd.f32 %v1321, %v1338
  %v1405 = vadd.f32 %v1322, %v1342
  %v1406 = vadd.f32 %v1323, %v1334
  %v1407 = vadd.f32 %v1324, %v1338
  %v1408 = vadd.f32 %v1325, %v1342
  %v1409 = vadd.f32 %v1326, %v1334
  %v1410 = vadd.f32 %v1327, %v1338
  %v1411 = vadd.f32 %v1328, %v1342
  %v1412 = vpack.c.bf16 %v1349, %v1346
  %v1413 = vpack.c.bf16 %v1350, %v1347
  %v1414 = vpack.c.bf16 %v1351, %v1348
  %v1415 = vpack.c.bf16 %v1355, %v1352
  %v1416 = vpack.c.bf16 %v1356, %v1353
  %v1417 = vpack.c.bf16 %v1357, %v1354
  %v1418 = vpack.c.bf16 %v1361, %v1358
  %v1419 = vpack.c.bf16 %v1362, %v1359
  %v1420 = vpack.c.bf16 %v1363, %v1360
  %v1421 = vpack.c.bf16 %v1367, %v1364
  %v1422 = vpack.c.bf16 %v1368, %v1365
  %v1423 = vpack.c.bf16 %v1369, %v1366
  %v1424 = vpack.c.bf16 %v1373, %v1370
  %v1425 = vpack.c.bf16 %v1374, %v1371
  %v1426 = vpack.c.bf16 %v1375, %v1372
  %v1427 = vpack.c.bf16 %v1379, %v1376
  %v1428 = vpack.c.bf16 %v1380, %v1377
  %v1429 = vpack.c.bf16 %v1381, %v1378
  %v1430 = vpack.c.bf16 %v1385, %v1382
  %v1431 = vpack.c.bf16 %v1386, %v1383
  %v1432 = vpack.c.bf16 %v1387, %v1384
  %v1433 = vpack.c.bf16 %v1391, %v1388
  %v1434 = vpack.c.bf16 %v1392, %v1389
  %v1435 = vpack.c.bf16 %v1393, %v1390
  %v1436 = vpack.c.bf16 %v1397, %v1394
  %v1437 = vpack.c.bf16 %v1398, %v1395
  %v1438 = vpack.c.bf16 %v1399, %v1396
  %v1439 = vpack.c.bf16 %v1403, %v1400
  %v1440 = vpack.c.bf16 %v1404, %v1401
  %v1441 = vpack.c.bf16 %v1405, %v1402
  %v1442 = vpack.c.bf16 %v1409, %v1406
  %v1443 = vpack.c.bf16 %v1410, %v1407
  %v1444 = vpack.c.bf16 %v1411, %v1408
  %v1478 = vunpack.c.l.b16 %v1412
  %v1479 = vunpack.c.l.b16 %v1413
  %v1480 = vunpack.c.l.b16 %v1414
  %v1481 = vunpack.c.h.b16 %v1412
  %v1482 = vunpack.c.h.b16 %v1413
  %v1483 = vunpack.c.h.b16 %v1414
  %v1484 = vunpack.c.l.b16 %v1415
  %v1485 = vunpack.c.l.b16 %v1416
  %v1486 = vunpack.c.l.b16 %v1417
  %v1487 = vunpack.c.h.b16 %v1415
  %v1488 = vunpack.c.h.b16 %v1416
  %v1489 = vunpack.c.h.b16 %v1417
  %v1490 = vunpack.c.l.b16 %v1418
  %v1491 = vunpack.c.l.b16 %v1419
  %v1492 = vunpack.c.l.b16 %v1420
  %v1493 = vunpack.c.h.b16 %v1418
  %v1494 = vunpack.c.h.b16 %v1419
  %v1495 = vunpack.c.h.b16 %v1420
  %v1496 = vunpack.c.l.b16 %v1421
  %v1497 = vunpack.c.l.b16 %v1422
  %v1498 = vunpack.c.l.b16 %v1423
  %v1499 = vunpack.c.h.b16 %v1421
  %v1500 = vunpack.c.h.b16 %v1422
  %v1501 = vunpack.c.h.b16 %v1423
  %v1502 = vunpack.c.l.b16 %v1424
  %v1503 = vunpack.c.l.b16 %v1425
  %v1504 = vunpack.c.l.b16 %v1426
  %v1505 = vunpack.c.h.b16 %v1424
  %v1506 = vunpack.c.h.b16 %v1425
  %v1507 = vunpack.c.h.b16 %v1426
  %v1508 = vunpack.c.l.b16 %v1427
  %v1509 = vunpack.c.l.b16 %v1428
  %v1510 = vunpack.c.l.b16 %v1429
  %v1511 = vunpack.c.h.b16 %v1427
  %v1512 = vunpack.c.h.b16 %v1428
  %v1513 = vunpack.c.h.b16 %v1429
  %v1514 = vunpack.c.l.b16 %v1430
  %v1515 = vunpack.c.l.b16 %v1431
  %v1516 = vunpack.c.l.b16 %v1432
  %v1517 = vunpack.c.h.b16 %v1430
  %v1518 = vunpack.c.h.b16 %v1431
  %v1519 = vunpack.c.h.b16 %v1432
  %v1520 = vunpack.c.l.b16 %v1433
  %v1521 = vunpack.c.l.b16 %v1434
  %v1522 = vunpack.c.l.b16 %v1435
  %v1523 = vunpack.c.h.b16 %v1433
  %v1524 = vunpack.c.h.b16 %v1434
  %v1525 = vunpack.c.h.b16 %v1435
  %v1526 = vunpack.c.l.b16 %v1436
  %v1527 = vunpack.c.l.b16 %v1437
  %v1528 = vunpack.c.l.b16 %v1438
  %v1529 = vunpack.c.h.b16 %v1436
  %v1530 = vunpack.c.h.b16 %v1437
  %v1531 = vunpack.c.h.b16 %v1438
  %v1532 = vunpack.c.l.b16 %v1439
  %v1533 = vunpack.c.l.b16 %v1440
  %v1534 = vunpack.c.l.b16 %v1441
  %v1535 = vunpack.c.h.b16 %v1439
  %v1536 = vunpack.c.h.b16 %v1440
  %v1537 = vunpack.c.h.b16 %v1441
  %v1538 = vunpack.c.l.b16 %v1442
  %v1539 = vunpack.c.l.b16 %v1443
  %v1540 = vunpack.c.l.b16 %v1444
  %v1541 = vunpack.c.h.b16 %v1442
  %v1542 = vunpack.c.h.b16 %v1443
  %v1543 = vunpack.c.h.b16 %v1444
  %v1544 = vpack.c.b16 %v1479, %v1478
  %v1545 = vpack.c.b16 %v1480, %v1480
  %v1546 = vpack.c.b16 %v1482, %v1481
  %v1547 = vpack.c.b16 %v1483, %v1483
  %v1548 = vpack.c.b16 %v1485, %v1484
  %v1549 = vpack.c.b16 %v1486, %v1486
  %v1550 = vpack.c.b16 %v1488, %v1487
  %v1551 = vpack.c.b16 %v1489, %v1489
  %v1552 = vpack.c.b16 %v1491, %v1490
  %v1553 = vpack.c.b16 %v1492, %v1492
  %v1554 = vpack.c.b16 %v1494, %v1493
  %v1555 = vpack.c.b16 %v1495, %v1495
  %v1556 = vpack.c.b16 %v1497, %v1496
  %v1557 = vpack.c.b16 %v1498, %v1498
  %v1558 = vpack.c.b16 %v1500, %v1499
  %v1559 = vpack.c.b16 %v1501, %v1501
  %v1560 = vpack.c.b16 %v1503, %v1502
  %v1561 = vpack.c.b16 %v1504, %v1504
  %v1562 = vpack.c.b16 %v1506, %v1505
  %v1563 = vpack.c.b16 %v1507, %v1507
  %v1564 = vpack.c.b16 %v1509, %v1508
  %v1565 = vpack.c.b16 %v1510, %v1510
  %v1566 = vpack.c.b16 %v1512, %v1511
  %v1567 = vpack.c.b16 %v1513, %v1513
  %v1568 = vpack.c.b16 %v1515, %v1514
  %v1569 = vpack.c.b16 %v1516, %v1516
  %v1570 = vpack.c.b16 %v1518, %v1517
  %v1571 = vpack.c.b16 %v1519, %v1519
  %v1572 = vpack.c.b16 %v1521, %v1520
  %v1573 = vpack.c.b16 %v1522, %v1522
  %v1574 = vpack.c.b16 %v1524, %v1523
  %v1575 = vpack.c.b16 %v1525, %v1525
  %v1576 = vpack.c.b16 %v1527, %v1526
  %v1577 = vpack.c.b16 %v1528, %v1528
  %v1578 = vpack.c.b16 %v1530, %v1529
  %v1579 = vpack.c.b16 %v1531, %v1531
  %v1580 = vpack.c.b16 %v1533, %v1532
  %v1581 = vpack.c.b16 %v1534, %v1534
  %v1582 = vpack.c.b16 %v1536, %v1535
  %v1583 = vpack.c.b16 %v1537, %v1537
  %v1584 = vpack.c.b16 %v1539, %v1538
  %v1585 = vpack.c.b16 %v1540, %v1540
  %v1586 = vpack.c.b16 %v1542, %v1541
  %v1587 = vpack.c.b16 %v1543, %v1543
  %1632 = vst [vmem:[%s4] sm:$0xff] %v1544
  %1633 = vst [vmem:[%s4 + $0x8] sm:$0xf] %v1545
  %1634 = vst [vmem:[%s4 + $0xc] sm:$0xff] %v1546
  %1635 = vst [vmem:[%s4 + $0x14] sm:$0xf] %v1547
  %1636 = vst [vmem:[%s4 + $0x18] sm:$0xff] %v1548
  %1637 = vst [vmem:[%s4 + $0x20] sm:$0xf] %v1549
  %1638 = vst [vmem:[%s4 + $0x24] sm:$0xff] %v1550
  %1639 = vst [vmem:[%s4 + $0x2c] sm:$0xf] %v1551
  %1640 = vst [vmem:[%s4 + $0x30] sm:$0xff] %v1552
  %1641 = vst [vmem:[%s4 + $0x38] sm:$0xf] %v1553
  %1642 = vst [vmem:[%s4 + $0x3c] sm:$0xff] %v1554
  %1643 = vst [vmem:[%s4 + $0x44] sm:$0xf] %v1555
  %1644 = vst [vmem:[%s4 + $0x48] sm:$0xff] %v1556
  %1645 = vst [vmem:[%s4 + $0x50] sm:$0xf] %v1557
  %1646 = vst [vmem:[%s4 + $0x54] sm:$0xff] %v1558
  %1647 = vst [vmem:[%s4 + $0x5c] sm:$0xf] %v1559
  %1648 = vst [vmem:[%s4 + $0x60] sm:$0xff] %v1560
  %1649 = vst [vmem:[%s4 + $0x68] sm:$0xf] %v1561
  %1650 = vst [vmem:[%s4 + $0x6c] sm:$0xff] %v1562
  %1651 = vst [vmem:[%s4 + $0x74] sm:$0xf] %v1563
  %1652 = vst [vmem:[%s4 + $0x78] sm:$0xff] %v1564
  %1653 = vst [vmem:[%s4 + $0x80] sm:$0xf] %v1565
  %1654 = vst [vmem:[%s4 + $0x84] sm:$0xff] %v1566
  %1655 = vst [vmem:[%s4 + $0x8c] sm:$0xf] %v1567
  %1656 = vst [vmem:[%s4 + $0x90] sm:$0xff] %v1568
  %1657 = vst [vmem:[%s4 + $0x98] sm:$0xf] %v1569
  %1658 = vst [vmem:[%s4 + $0x9c] sm:$0xff] %v1570
  %1659 = vst [vmem:[%s4 + $0xa4] sm:$0xf] %v1571
  %1660 = vst [vmem:[%s4 + $0xa8] sm:$0xff] %v1572
  %1661 = vst [vmem:[%s4 + $0xb0] sm:$0xf] %v1573
  %1662 = vst [vmem:[%s4 + $0xb4] sm:$0xff] %v1574
  %1663 = vst [vmem:[%s4 + $0xbc] sm:$0xf] %v1575
  %1664 = vst [vmem:[%s4 + $0xc0] sm:$0xff] %v1576
  %1665 = vst [vmem:[%s4 + $0xc8] sm:$0xf] %v1577
  %1666 = vst [vmem:[%s4 + $0xcc] sm:$0xff] %v1578
  %1667 = vst [vmem:[%s4 + $0xd4] sm:$0xf] %v1579
  %1668 = vst [vmem:[%s4 + $0xd8] sm:$0xff] %v1580
  %1669 = vst [vmem:[%s4 + $0xe0] sm:$0xf] %v1581
  %1670 = vst [vmem:[%s4 + $0xe4] sm:$0xff] %v1582
  %1671 = vst [vmem:[%s4 + $0xec] sm:$0xf] %v1583
  %1672 = vst [vmem:[%s4 + $0xf0] sm:$0xff] %v1584
  %1673 = vst [vmem:[%s4 + $0xf8] sm:$0xf] %v1585
  %1674 = vst [vmem:[%s4 + $0xfc] sm:$0xff] %v1586
  %1675 = vst [vmem:[%s4 + $0x104] sm:$0xf] %v1587
  // Predicated region
  $region18: #{dense_grasp_forward.76} parent=0 // pred_check
    _
  $region19: #{dense_grasp_forward.76} parent=0 // pred_check_branch
    %1677 = sbr.rel (0) target = $region21
  $region20: #{dense_grasp_forward.76} parent=0 // pred_region
    _
  $region21: #{dense_grasp_forward.76} parent=0 // pred_fallthru
    _
  // Predicated region
  $region22: #{dense_grasp_forward.76} parent=0 // pred_check
    _
  $region23: #{dense_grasp_forward.76} parent=0 // pred_check_branch
    %1679 = sbr.rel (0) target = $region25
  $region24: #{dense_grasp_forward.76} parent=0 // pred_region
    _
  $region25: #{dense_grasp_forward.76} parent=0 // pred_fallthru
    _

// kernel: dense_grasp_forward.77
$region0: #{dense_grasp_forward.77}
  #allocation0 [shape = 'u32[]', space=smem, size = 0x4, offset = 0x4, fixed_abs, tag = 'smem constant byte address 0x4 - core index']
  #allocation1 [shape = 'u32[144,128]{1,0:T(1,128)}', space=vmem, size = 0x12000, scoped, tag = 'internal scratch']
  %s0 = inlined_call_operand.vmem [shape: bf16[1200,128], index: 0, kind: input, shape index: {}]
  %s1 = inlined_call_operand.vmem [shape: bf16[128,128], index: 1, kind: input, shape index: {}]
  %s2 = inlined_call_operand.vmem [shape: f32[1,128], index: 2, kind: input, shape index: {}]
  %s3 = inlined_call_operand.vmem [shape: f32[1,128], index: 3, kind: input, shape index: {}]
  %s4 = inlined_call_operand.vmem [shape: f32[1200,128], index: 4, kind: output, shape index: {}]
  %s5 = sld [smem:[#allocation0]]
  $region49: #{dense_grasp_forward.77} parent=0
    _
  %s7 = ssub.s32 1, %s5
  %s8 = scalar_select 0, %s7, %s5
  loop: start=0, step=1, limit=7
  $region2: #{dense_grasp_forward.77} parent=0 // loop_pre_header
    _
  $region3: #{dense_grasp_forward.77} parent=0 // loop_header
    %s10 = sphi 0, %s14
    %p11 = scmp.ge.s32.totalorder %s10, 7
    %s17 = sphi 0, %s29
    %s18 = sphi 0, %s25
    %s19 = sphi 0, %s17
    %s20 = sphi 0, %s18
    %s21 = sphi 0, %s19
    %s22 = sphi 0, %s20
    %s32 = sphi 0, %s34
    %s35 = sphi 0, %s32
    %s36 = sphi 0, %s35
    %s52 = sphi 0, %s36
    %s58 = sphi 0, %s60
    %s61 = sphi 0, %s58
    %s62 = sphi 0, %s61
    %s78 = sphi 0, %s62
    %s84 = sphi 0, %s86
    %s87 = sphi 0, %s84
    %s88 = sphi 0, %s87
    %s104 = sphi 0, %s88
    %s110 = sphi 0, %s112
    %s113 = sphi 0, %s110
    %s114 = sphi 0, %s113
    %s130 = sphi 0, %s114
    %s138 = sphi 0, %s140
    %s141 = sphi 0, %s138
    %s142 = sphi 0, %s141
    %s158 = sphi 0, %s142
  $region4: #{dense_grasp_forward.77} parent=0 // loop_header_branch
    %13 = sbr.rel (%p11) target = $region8
  $region5: #{dense_grasp_forward.77} parent=0 // loop_body
    %s15 = ssub.s32 %s10, 1
    %s16 = ssub.s32 %s10, 2
    %s23 = sadd.s32 1, %s18
    %p24 = scmp.ge.s32.totalorder %s23, 1
    %s25 = scalar_select %p24, 0, %s23
    %s26 = sadd.s32 1, %s17
    %s27 = scalar_select %p24, %s26, %s17
    %p28 = scmp.ge.s32.totalorder %s27, 5
    %s29 = scalar_select %p28, 0, %s27
    %s30 = ssub.s32 %s17, %s29
    %p31 = scmp.eq.s32.totalorder %s30, 0
    %s33 = sadd.s32 %s32, 1
    %s34 = scalar_select %p31, %s32, %s33
    %p37 = pneg %p31
    %p38 = scmp.eq.s32.totalorder %s10, 4
    %p39 = por %p37, %p38
    %p40 = scmp.ne.s32.totalorder %s32, %s35
    %p41 = scmp.eq.s32.totalorder %s10, 0
    %p42 = por %p40, %p41
    %p43 = scmp.ne.s32.totalorder %s32, %s35
    %p44 = scmp.eq.s32.totalorder %s15, 4
    %p45 = por %p43, %p44
    %p46 = scmp.ne.s32.totalorder %s35, %s36
    %p47 = scmp.eq.s32.totalorder %s15, 0
    %p48 = por %p46, %p47
    %p49 = scmp.ne.s32.totalorder %s35, %s36
    %p50 = scmp.eq.s32.totalorder %s16, 4
    %p51 = por %p49, %p50
    %p53 = scmp.ne.s32.totalorder %s36, %s52
    %p54 = scmp.eq.s32.totalorder %s16, 0
    %p55 = por %p53, %p54
    %s56 = ssub.s32 %s18, %s25
    %p57 = scmp.eq.s32.totalorder %s56, 0
    %s59 = sadd.s32 %s58, 1
    %s60 = scalar_select %p57, %s58, %s59
    %p63 = pneg %p57
    %p64 = scmp.eq.s32.totalorder %s10, 4
    %p65 = por %p63, %p64
    %p66 = scmp.ne.s32.totalorder %s58, %s61
    %p67 = scmp.eq.s32.totalorder %s10, 0
    %p68 = por %p66, %p67
    %p69 = scmp.ne.s32.totalorder %s58, %s61
    %p70 = scmp.eq.s32.totalorder %s15, 4
    %p71 = por %p69, %p70
    %p72 = scmp.ne.s32.totalorder %s61, %s62
    %p73 = scmp.eq.s32.totalorder %s15, 0
    %p74 = por %p72, %p73
    %p75 = scmp.ne.s32.totalorder %s61, %s62
    %p76 = scmp.eq.s32.totalorder %s16, 4
    %p77 = por %p75, %p76
    %p79 = scmp.ne.s32.totalorder %s62, %s78
    %p80 = scmp.eq.s32.totalorder %s16, 0
    %p81 = por %p79, %p80
    %s82 = ssub.s32 %s18, %s25
    %p83 = scmp.eq.s32.totalorder %s82, 0
    %s85 = sadd.s32 %s84, 1
    %s86 = scalar_select %p83, %s84, %s85
    %p89 = pneg %p83
    %p90 = scmp.eq.s32.totalorder %s10, 4
    %p91 = por %p89, %p90
    %p92 = scmp.ne.s32.totalorder %s84, %s87
    %p93 = scmp.eq.s32.totalorder %s10, 0
    %p94 = por %p92, %p93
    %p95 = scmp.ne.s32.totalorder %s84, %s87
    %p96 = scmp.eq.s32.totalorder %s15, 4
    %p97 = por %p95, %p96
    %p98 = scmp.ne.s32.totalorder %s87, %s88
    %p99 = scmp.eq.s32.totalorder %s15, 0
    %p100 = por %p98, %p99
    %p101 = scmp.ne.s32.totalorder %s87, %s88
    %p102 = scmp.eq.s32.totalorder %s16, 4
    %p103 = por %p101, %p102
    %p105 = scmp.ne.s32.totalorder %s88, %s104
    %p106 = scmp.eq.s32.totalorder %s16, 0
    %p107 = por %p105, %p106
    %s108 = ssub.s32 %s18, %s25
    %p109 = scmp.eq.s32.totalorder %s108, 0
    %s111 = sadd.s32 %s110, 1
    %s112 = scalar_select %p109, %s110, %s111
    %p115 = pneg %p109
    %p116 = scmp.eq.s32.totalorder %s10, 4
    %p117 = por %p115, %p116
    %p118 = scmp.ne.s32.totalorder %s110, %s113
    %p119 = scmp.eq.s32.totalorder %s10, 0
    %p120 = por %p118, %p119
    %p121 = scmp.ne.s32.totalorder %s110, %s113
    %p122 = scmp.eq.s32.totalorder %s15, 4
    %p123 = por %p121, %p122
    %p124 = scmp.ne.s32.totalorder %s113, %s114
    %p125 = scmp.eq.s32.totalorder %s15, 0
    %p126 = por %p124, %p125
    %p127 = scmp.ne.s32.totalorder %s113, %s114
    %p128 = scmp.eq.s32.totalorder %s16, 4
    %p129 = por %p127, %p128
    %p131 = scmp.ne.s32.totalorder %s114, %s130
    %p132 = scmp.eq.s32.totalorder %s16, 0
    %p133 = por %p131, %p132
    %s134 = ssub.s32 %s17, %s29
    %s135 = ssub.s32 %s18, %s25
    %s136 = sor.u32 %s134, %s135
    %p137 = scmp.eq.s32.totalorder %s136, 0
    %s139 = sadd.s32 %s138, 1
    %s140 = scalar_select %p137, %s138, %s139
    %p143 = pneg %p137
    %p144 = scmp.eq.s32.totalorder %s10, 4
    %p145 = por %p143, %p144
    %p146 = scmp.ne.s32.totalorder %s138, %s141
    %p147 = scmp.eq.s32.totalorder %s10, 0
    %p148 = por %p146, %p147
    %p149 = scmp.ne.s32.totalorder %s138, %s141
    %p150 = scmp.eq.s32.totalorder %s15, 4
    %p151 = por %p149, %p150
    %p152 = scmp.ne.s32.totalorder %s141, %s142
    %p153 = scmp.eq.s32.totalorder %s15, 0
    %p154 = por %p152, %p153
    %p155 = scmp.ne.s32.totalorder %s141, %s142
    %p156 = scmp.eq.s32.totalorder %s16, 4
    %p157 = por %p155, %p156
    %p159 = scmp.ne.s32.totalorder %s142, %s158
    %p160 = scmp.eq.s32.totalorder %s16, 0
    %p161 = por %p159, %p160
    %p162 = scmp.le.s32.totalorder 1, %s10
    %p163 = scmp.lt.s32.totalorder %s10, 6
    %p164 = pnand %p162, %p163
    %p165 = pneg %p164
    // Predicated region
    $region9: #{dense_grasp_forward.77} parent=5 // pred_check
      _
    $region10: #{dense_grasp_forward.77} parent=5 // pred_check_branch
      %167 = sbr.rel (%p164) target = $region12
    $region11: #{dense_grasp_forward.77} parent=5 // pred_region
      %s168 = ssub.s32 %s10, 1
      // Predicated region
      $region13: #{dense_grasp_forward.77} parent=11 // pred_check
        %p169 = pneg %p74
      $region14: #{dense_grasp_forward.77} parent=11 // pred_check_branch
        %171 = sbr.rel (%p169) target = $region16
      $region15: #{dense_grasp_forward.77} parent=11 // pred_region
        %p172 = scmp.lt.s32.totalorder %s20, 0
        %s173 = scalar_select %p172, %s20, 0
        %s174 = smul.addr %s173, 4
        %s175 = scalar_lea.vmem %s1, %s174
      $region16: #{dense_grasp_forward.77} parent=11 // pred_fallthru
        _
      // Predicated region
      $region17: #{dense_grasp_forward.77} parent=11 // pred_check
        %p176 = pneg %p100
      $region18: #{dense_grasp_forward.77} parent=11 // pred_check_branch
        %178 = sbr.rel (%p176) target = $region20
      $region19: #{dense_grasp_forward.77} parent=11 // pred_region
        %p179 = scmp.lt.s32.totalorder %s20, 0
        %s180 = scalar_select %p179, %s20, 0
        %s181 = scalar_lea.vmem %s2, %s180
      $region20: #{dense_grasp_forward.77} parent=11 // pred_fallthru
        _
      // Predicated region
      $region21: #{dense_grasp_forward.77} parent=11 // pred_check
        %p182 = pneg %p126
      $region22: #{dense_grasp_forward.77} parent=11 // pred_check_branch
        %184 = sbr.rel (%p182) target = $region24
      $region23: #{dense_grasp_forward.77} parent=11 // pred_region
        %p185 = scmp.lt.s32.totalorder %s20, 0
        %s186 = scalar_select %p185, %s20, 0
        %s187 = scalar_lea.vmem %s3, %s186
      $region24: #{dense_grasp_forward.77} parent=11 // pred_fallthru
        _
    $region12: #{dense_grasp_forward.77} parent=5 // pred_fallthru
      _
    %p188 = scmp.lt.s32.totalorder %s10, 5
    // Predicated region
    $region25: #{dense_grasp_forward.77} parent=5 // pred_check
      %p189 = pneg %p188
    $region26: #{dense_grasp_forward.77} parent=5 // pred_check_branch
      %191 = sbr.rel (%p189) target = $region28
    $region27: #{dense_grasp_forward.77} parent=5 // pred_region
      // Predicated region
      $region29: #{dense_grasp_forward.77} parent=27 // pred_check
        %p192 = pneg %p42
      $region30: #{dense_grasp_forward.77} parent=27 // pred_check_branch
        %194 = sbr.rel (%p192) target = $region32
      $region31: #{dense_grasp_forward.77} parent=27 // pred_region
        %s195 = smul.u32 30, %s17
        %p196 = scmp.lt.s32.totalorder %s195, 149
        %s197 = scalar_select %p196, %s195, 149
        %s198 = smul.addr %s197, 4
        %s199 = scalar_lea.vmem %s0, %s198
        %s200 = smul.u32 30, %s17
      $region32: #{dense_grasp_forward.77} parent=27 // pred_fallthru
        _
    $region28: #{dense_grasp_forward.77} parent=5 // pred_fallthru
      _
    %p201 = scmp.le.s32.totalorder 1, %s10
    %p202 = scmp.lt.s32.totalorder %s10, 6
    %p203 = pnand %p201, %p202
    %p204 = pneg %p203
    // Predicated region
    $region33: #{dense_grasp_forward.77} parent=5 // pred_check
      _
    $region34: #{dense_grasp_forward.77} parent=5 // pred_check_branch
      %206 = sbr.rel (%p203) target = $region36
    $region35: #{dense_grasp_forward.77} parent=5 // pred_region
      %s207 = ssub.s32 %s10, 1
      %s208 = smul.u32 30, %s19
      %p209 = scmp.lt.s32.totalorder %s208, 149
      %s210 = scalar_select %p209, %s208, 149
      %s211 = smul.addr %s210, 4
      %s212 = scalar_lea.vmem %s0, %s211
      %p213 = pneg %p48
      %p214 = pneg %p45
      %p215 = scmp.lt.s32.totalorder %s20, 0
      %s216 = scalar_select %p215, %s20, 0
      %s217 = smul.addr %s216, 4
      %s218 = scalar_lea.vmem %s1, %s217
      %p219 = pneg %p74
      %p220 = pneg %p71
      %p221 = scmp.lt.s32.totalorder %s20, 0
      %s222 = scalar_select %p221, %s20, 0
      %s223 = scalar_lea.vmem %s2, %s222
      %p224 = pneg %p100
      %p225 = pneg %p97
      %p226 = scmp.lt.s32.totalorder %s20, 0
      %s227 = scalar_select %p226, %s20, 0
      %s228 = scalar_lea.vmem %s3, %s227
      %p229 = pneg %p126
      %p230 = pneg %p123
      %p231 = pneg %p154
      %p232 = pneg %p151
      %s233 = smul.u32 30, %s19
      %p234 = scmp.lt.s32.totalorder %s233, 149
      %s235 = scalar_select %p234, %s233, 149
      %p236 = scmp.lt.s32.totalorder %s20, 0
      %s237 = scalar_select %p236, %s20, 0
      %s238 = sadd.s32 %s237, %s235
      %s239 = smul.addr %s238, 8
      %s240 = scalar_lea.vmem %s4, %s239
      %s241 = smul.u32 30, %s19
      %p242 = scmp.lt.s32.totalorder %s241, 149
      %s243 = scalar_select %p242, %s241, 149
      %s244 = smul.addr %s243, 4
      %s245 = scalar_lea.vmem %s0, %s244
      %s246 = smul.u32 30, %s19
      %p247 = scmp.lt.s32.totalorder %s20, 0
      %s248 = scalar_select %p247, %s20, 0
      %s249 = smul.addr %s248, 4
      %s250 = scalar_lea.vmem %s1, %s249
      %p251 = scmp.lt.s32.totalorder %s20, 0
      %s252 = scalar_select %p251, %s20, 0
      %s253 = scalar_lea.vmem %s2, %s252
      %p254 = scmp.lt.s32.totalorder %s20, 0
      %s255 = scalar_select %p254, %s20, 0
      %s256 = scalar_lea.vmem %s3, %s255
      %s257 = smul.u32 30, %s19
      %p258 = scmp.lt.s32.totalorder %s257, 149
      %s259 = scalar_select %p258, %s257, 149
      %p260 = scmp.lt.s32.totalorder %s20, 0
      %s261 = scalar_select %p260, %s20, 0
      %s262 = sadd.s32 %s261, %s259
      %s263 = smul.addr %s262, 8
      %s264 = scalar_lea.vmem %s4, %s263
      %s265 = smul.u32 30, %s19
      %v267 = vld [vmem:[%s245] sm:$0xf]
      %v268 = vld [vmem:[%s245 + $0x4] sm:$0xf]
      %v269 = vld [vmem:[%s245 + $0x8] sm:$0xf]
      %v270 = vld [vmem:[%s245 + $0xc] sm:$0xf]
      %v271 = vld [vmem:[%s245 + $0x10] sm:$0xf]
      %v272 = vld [vmem:[%s245 + $0x14] sm:$0xf]
      %v273 = vld [vmem:[%s245 + $0x18] sm:$0xf]
      %v274 = vld [vmem:[%s245 + $0x1c] sm:$0xf]
      %v275 = vld [vmem:[%s245 + $0x20] sm:$0xf]
      %v276 = vld [vmem:[%s245 + $0x24] sm:$0xf]
      %v277 = vld [vmem:[%s245 + $0x28] sm:$0xf]
      %v278 = vld [vmem:[%s245 + $0x2c] sm:$0xf]
      %v279 = vld [vmem:[%s245 + $0x30] sm:$0xf]
      %v280 = vld [vmem:[%s245 + $0x34] sm:$0xf]
      %v281 = vld [vmem:[%s245 + $0x38] sm:$0xf]
      %v282 = vld [vmem:[%s245 + $0x3c] sm:$0xf]
      %v283 = vld [vmem:[%s245 + $0x40] sm:$0xf]
      %v284 = vld [vmem:[%s245 + $0x44] sm:$0xf]
      %v285 = vld [vmem:[%s245 + $0x48] sm:$0xf]
      %v286 = vld [vmem:[%s245 + $0x4c] sm:$0xf]
      %v287 = vld [vmem:[%s245 + $0x50] sm:$0xf]
      %v288 = vld [vmem:[%s245 + $0x54] sm:$0xf]
      %v289 = vld [vmem:[%s245 + $0x58] sm:$0xf]
      %v290 = vld [vmem:[%s245 + $0x5c] sm:$0xf]
      %v291 = vld [vmem:[%s245 + $0x60] sm:$0xf]
      %v292 = vld [vmem:[%s245 + $0x64] sm:$0xf]
      %v293 = vld [vmem:[%s245 + $0x68] sm:$0xf]
      %v294 = vld [vmem:[%s245 + $0x6c] sm:$0xf]
      %v295 = vld [vmem:[%s245 + $0x70] sm:$0xf]
      %v296 = vld [vmem:[%s245 + $0x74] sm:$0xf]
      %v297 = vld [vmem:[%s250] sm:$0xf]
      %v298 = vld [vmem:[%s250 + $0x4] sm:$0xf]
      %v299 = vld [vmem:[%s250 + $0x8] sm:$0xf]
      %v300 = vld [vmem:[%s250 + $0xc] sm:$0xf]
      %v301 = vld [vmem:[%s250 + $0x10] sm:$0xf]
      %v302 = vld [vmem:[%s250 + $0x14] sm:$0xf]
      %v303 = vld [vmem:[%s250 + $0x18] sm:$0xf]
      %v304 = vld [vmem:[%s250 + $0x1c] sm:$0xf]
      %v305 = vld [vmem:[%s250 + $0x20] sm:$0xf]
      %v306 = vld [vmem:[%s250 + $0x24] sm:$0xf]
      %v307 = vld [vmem:[%s250 + $0x28] sm:$0xf]
      %v308 = vld [vmem:[%s250 + $0x2c] sm:$0xf]
      %v309 = vld [vmem:[%s250 + $0x30] sm:$0xf]
      %v310 = vld [vmem:[%s250 + $0x34] sm:$0xf]
      %v311 = vld [vmem:[%s250 + $0x38] sm:$0xf]
      %v312 = vld [vmem:[%s250 + $0x3c] sm:$0xf]
      %v343 = vunpack.c.l.b16 %v267
      %v344 = vunpack.c.l.b16 %v268
      %v345 = vunpack.c.l.b16 %v269
      %v346 = vunpack.c.l.b16 %v270
      %v347 = vunpack.c.l.b16 %v271
      %v348 = vunpack.c.l.b16 %v272
      %v349 = vunpack.c.l.b16 %v273
      %v350 = vunpack.c.l.b16 %v274
      %v351 = vunpack.c.l.b16 %v275
      %v352 = vunpack.c.l.b16 %v276
      %v353 = vunpack.c.l.b16 %v277
      %v354 = vunpack.c.l.b16 %v278
      %v355 = vunpack.c.l.b16 %v279
      %v356 = vunpack.c.l.b16 %v280
      %v357 = vunpack.c.l.b16 %v281
      %v358 = vunpack.c.l.b16 %v282
      %v359 = vunpack.c.l.b16 %v283
      %v360 = vunpack.c.l.b16 %v284
      %v361 = vunpack.c.l.b16 %v285
      %v362 = vunpack.c.l.b16 %v286
      %v363 = vunpack.c.l.b16 %v287
      %v364 = vunpack.c.l.b16 %v288
      %v365 = vunpack.c.l.b16 %v289
      %v366 = vunpack.c.l.b16 %v290
      %v367 = vunpack.c.l.b16 %v291
      %v368 = vunpack.c.l.b16 %v292
      %v369 = vunpack.c.l.b16 %v293
      %v370 = vunpack.c.l.b16 %v294
      %v371 = vunpack.c.l.b16 %v295
      %v372 = vunpack.c.l.b16 %v296
      %v373 = vpack.c.b16 %v344, %v343
      %v374 = vpack.c.b16 %v346, %v345
      %v375 = vpack.c.b16 %v348, %v347
      %v376 = vpack.c.b16 %v350, %v349
      %v377 = vpack.c.b16 %v352, %v351
      %v378 = vpack.c.b16 %v354, %v353
      %v379 = vpack.c.b16 %v356, %v355
      %v380 = vpack.c.b16 %v358, %v357
      %v381 = vpack.c.b16 %v360, %v359
      %v382 = vpack.c.b16 %v362, %v361
      %v383 = vpack.c.b16 %v364, %v363
      %v384 = vpack.c.b16 %v366, %v365
      %v385 = vpack.c.b16 %v368, %v367
      %v386 = vpack.c.b16 %v370, %v369
      %v387 = vpack.c.b16 %v372, %v371
      %v419 = vunpack.c.l.b16 %v297
      %v420 = vunpack.c.l.b16 %v298
      %v421 = vunpack.c.l.b16 %v299
      %v422 = vunpack.c.l.b16 %v300
      %v423 = vunpack.c.l.b16 %v301
      %v424 = vunpack.c.l.b16 %v302
      %v425 = vunpack.c.l.b16 %v303
      %v426 = vunpack.c.l.b16 %v304
      %v427 = vunpack.c.l.b16 %v305
      %v428 = vunpack.c.l.b16 %v306
      %v429 = vunpack.c.l.b16 %v307
      %v430 = vunpack.c.l.b16 %v308
      %v431 = vunpack.c.l.b16 %v309
      %v432 = vunpack.c.l.b16 %v310
      %v433 = vunpack.c.l.b16 %v311
      %v434 = vunpack.c.l.b16 %v312
      %v435 = vpack.c.b16 %v420, %v419
      %v436 = vpack.c.b16 %v422, %v421
      %v437 = vpack.c.b16 %v424, %v423
      %v438 = vpack.c.b16 %v426, %v425
      %v439 = vpack.c.b16 %v428, %v427
      %v440 = vpack.c.b16 %v430, %v429
      %v441 = vpack.c.b16 %v432, %v431
      %v442 = vpack.c.b16 %v434, %v433
      %451 = vmatprep.subr.bf16.mxu0 0
      %452 = vmatpush1.bf16.msra.mxu0 %v435
      %453 = vmatprep.subr.bf16.mxu0 0
      %454 = vmatpush1.bf16.msra.mxu0 %v436
      %455 = vmatprep.subr.bf16.mxu0 0
      %456 = vmatpush1.bf16.msra.mxu0 %v437
      %457 = vmatprep.subr.bf16.mxu0 0
      %458 = vmatpush1.bf16.msra.mxu0 %v438
      %459 = vmatprep.subr.bf16.mxu0 0
      %460 = vmatpush1.bf16.msra.mxu0 %v439
      %461 = vmatprep.subr.bf16.mxu0 0
      %462 = vmatpush1.bf16.msra.mxu0 %v440
      %463 = vmatprep.subr.bf16.mxu0 0
      %464 = vmatpush1.bf16.msra.mxu0 %v441
      %465 = vmatprep.subr.bf16.mxu0 0
      %466 = vmatpush1.bf16.msra.mxu0 %v442
      %467 = vmatprep.subr.bf16.mxu0 0
      %468 = vmatpush1.bf16.msra.mxu0 0
      %469 = vmatprep.subr.bf16.mxu0 0
      %470 = vmatpush1.bf16.msra.mxu0 0
      %471 = vmatprep.subr.bf16.mxu0 0
      %472 = vmatpush1.bf16.msra.mxu0 0
      %473 = vmatprep.subr.bf16.mxu0 0
      %474 = vmatpush1.bf16.msra.mxu0 0
      %475 = vmatprep.subr.bf16.mxu0 0
      %476 = vmatpush1.bf16.msra.mxu0 0
      %477 = vmatprep.subr.bf16.mxu0 0
      %478 = vmatpush1.bf16.msra.mxu0 0
      %479 = vmatprep.subr.bf16.mxu0 0
      %480 = vmatpush1.bf16.msra.mxu0 0
      %481 = vmatprep.subr.bf16.mxu0 0
      %482 = vmatpush1.bf16.msra.mxu0 0
      %483 = vmatprep.mubr.bf16.mxu0 0
      %484 = vmatmul.mubr.bf16.gmra.mrb[0].mxu0 %v373
      %v485 = vpop.f32.mrb[0].mxu0
      %v486 = vadd.f32 0.0, %v485
      %v487 = vpop.f32.mrb[0].mxu0
      %v488 = vpop.f32.mrb[0].mxu0
      %v489 = vadd.f32 0.0, %v488
      %v490 = vpop.f32.mrb[0].mxu0
      %491 = vmatprep.mubr.bf16.mxu0 0
      %492 = vmatmul.mubr.bf16.gmra.mrb[0].mxu0 %v374
      %v493 = vpop.f32.mrb[0].mxu0
      %v494 = vadd.f32 0.0, %v493
      %v495 = vpop.f32.mrb[0].mxu0
      %v496 = vpop.f32.mrb[0].mxu0
      %v497 = vadd.f32 0.0, %v496
      %v498 = vpop.f32.mrb[0].mxu0
      %499 = vmatprep.mubr.bf16.mxu0 0
      %500 = vmatmul.mubr.bf16.gmra.mrb[0].mxu0 %v375
      %v501 = vpop.f32.mrb[0].mxu0
      %v502 = vadd.f32 0.0, %v501
      %v503 = vpop.f32.mrb[0].mxu0
      %v504 = vpop.f32.mrb[0].mxu0
      %v505 = vadd.f32 0.0, %v504
      %v506 = vpop.f32.mrb[0].mxu0
      %507 = vmatprep.mubr.bf16.mxu0 0
      %508 = vmatmul.mubr.bf16.gmra.mrb[0].mxu0 %v376
      %v509 = vpop.f32.mrb[0].mxu0
      %v510 = vadd.f32 0.0, %v509
      %v511 = vpop.f32.mrb[0].mxu0
      %v512 = vpop.f32.mrb[0].mxu0
      %v513 = vadd.f32 0.0, %v512
      %v514 = vpop.f32.mrb[0].mxu0
      %515 = vmatprep.mubr.bf16.mxu0 0
      %516 = vmatmul.mubr.bf16.gmra.mrb[0].mxu0 %v377
      %v517 = vpop.f32.mrb[0].mxu0
      %v518 = vadd.f32 0.0, %v517
      %v519 = vpop.f32.mrb[0].mxu0
      %v520 = vpop.f32.mrb[0].mxu0
      %v521 = vadd.f32 0.0, %v520
      %v522 = vpop.f32.mrb[0].mxu0
      %523 = vmatprep.mubr.bf16.mxu0 0
      %524 = vmatmul.mubr.bf16.gmra.mrb[0].mxu0 %v378
      %v525 = vpop.f32.mrb[0].mxu0
      %v526 = vadd.f32 0.0, %v525
      %v527 = vpop.f32.mrb[0].mxu0
      %v528 = vpop.f32.mrb[0].mxu0
      %v529 = vadd.f32 0.0, %v528
      %v530 = vpop.f32.mrb[0].mxu0
      %531 = vmatprep.mubr.bf16.mxu0 0
      %532 = vmatmul.mubr.bf16.gmra.mrb[0].mxu0 %v379
      %v533 = vpop.f32.mrb[0].mxu0
      %v534 = vadd.f32 0.0, %v533
      %v535 = vpop.f32.mrb[0].mxu0
      %v536 = vpop.f32.mrb[0].mxu0
      %v537 = vadd.f32 0.0, %v536
      %v538 = vpop.f32.mrb[0].mxu0
      %539 = vmatprep.mubr.bf16.mxu0 0
      %540 = vmatmul.mubr.bf16.gmra.mrb[0].mxu0 %v380
      %v541 = vpop.f32.mrb[0].mxu0
      %v542 = vadd.f32 0.0, %v541
      %v543 = vpop.f32.mrb[0].mxu0
      %v544 = vpop.f32.mrb[0].mxu0
      %v545 = vadd.f32 0.0, %v544
      %v546 = vpop.f32.mrb[0].mxu0
      %547 = vmatprep.mubr.bf16.mxu0 0
      %548 = vmatmul.mubr.bf16.gmra.mrb[0].mxu0 %v381
      %v549 = vpop.f32.mrb[0].mxu0
      %v550 = vadd.f32 0.0, %v549
      %v551 = vpop.f32.mrb[0].mxu0
      %v552 = vpop.f32.mrb[0].mxu0
      %v553 = vadd.f32 0.0, %v552
      %v554 = vpop.f32.mrb[0].mxu0
      %555 = vmatprep.mubr.bf16.mxu0 0
      %556 = vmatmul.mubr.bf16.gmra.mrb[0].mxu0 %v382
      %v557 = vpop.f32.mrb[0].mxu0
      %v558 = vadd.f32 0.0, %v557
      %v559 = vpop.f32.mrb[0].mxu0
      %v560 = vpop.f32.mrb[0].mxu0
      %v561 = vadd.f32 0.0, %v560
      %v562 = vpop.f32.mrb[0].mxu0
      %563 = vmatprep.mubr.bf16.mxu0 0
      %564 = vmatmul.mubr.bf16.gmra.mrb[0].mxu0 %v383
      %v565 = vpop.f32.mrb[0].mxu0
      %v566 = vadd.f32 0.0, %v565
      %v567 = vpop.f32.mrb[0].mxu0
      %v568 = vpop.f32.mrb[0].mxu0
      %v569 = vadd.f32 0.0, %v568
      %v570 = vpop.f32.mrb[0].mxu0
      %571 = vmatprep.mubr.bf16.mxu0 0
      %572 = vmatmul.mubr.bf16.gmra.mrb[0].mxu0 %v384
      %v573 = vpop.f32.mrb[0].mxu0
      %v574 = vadd.f32 0.0, %v573
      %v575 = vpop.f32.mrb[0].mxu0
      %v576 = vpop.f32.mrb[0].mxu0
      %v577 = vadd.f32 0.0, %v576
      %v578 = vpop.f32.mrb[0].mxu0
      %579 = vmatprep.mubr.bf16.mxu0 0
      %580 = vmatmul.mubr.bf16.gmra.mrb[0].mxu0 %v385
      %v581 = vpop.f32.mrb[0].mxu0
      %v582 = vadd.f32 0.0, %v581
      %v583 = vpop.f32.mrb[0].mxu0
      %v584 = vpop.f32.mrb[0].mxu0
      %v585 = vadd.f32 0.0, %v584
      %v586 = vpop.f32.mrb[0].mxu0
      %587 = vmatprep.mubr.bf16.mxu0 0
      %588 = vmatmul.mubr.bf16.gmra.mrb[0].mxu0 %v386
      %v589 = vpop.f32.mrb[0].mxu0
      %v590 = vadd.f32 0.0, %v589
      %v591 = vpop.f32.mrb[0].mxu0
      %v592 = vpop.f32.mrb[0].mxu0
      %v593 = vadd.f32 0.0, %v592
      %v594 = vpop.f32.mrb[0].mxu0
      %595 = vmatprep.mubr.bf16.mxu0 0
      %596 = vmatmul.mubr.bf16.gmra.mrb[0].mxu0 %v387
      %v597 = vpop.f32.mrb[0].mxu0
      %v598 = vadd.f32 0.0, %v597
      %v599 = vpop.f32.mrb[0].mxu0
      %v600 = vpop.f32.mrb[0].mxu0
      %v601 = vadd.f32 0.0, %v600
      %v602 = vpop.f32.mrb[0].mxu0
      %603 = vdwg.mxu0
      %v604 = vld [vmem:[%s253] sm:$0x1]
      %v606 = vlaneseq
      %v607 = vshrl.u32 %v606, 7
      %v608 = vsub.s32 0, %v607
      %v609 = vrot.slane %v604, %v608
      %v611 = vmul.f32 %v486, %v609
      %v612 = vmul.f32 %v489, %v609
      %v613 = vmul.f32 %v494, %v609
      %v614 = vmul.f32 %v497, %v609
      %v615 = vmul.f32 %v502, %v609
      %v616 = vmul.f32 %v505, %v609
      %v617 = vmul.f32 %v510, %v609
      %v618 = vmul.f32 %v513, %v609
      %v619 = vmul.f32 %v518, %v609
      %v620 = vmul.f32 %v521, %v609
      %v621 = vmul.f32 %v526, %v609
      %v622 = vmul.f32 %v529, %v609
      %v623 = vmul.f32 %v534, %v609
      %v624 = vmul.f32 %v537, %v609
      %v625 = vmul.f32 %v542, %v609
      %v626 = vmul.f32 %v545, %v609
      %v627 = vmul.f32 %v550, %v609
      %v628 = vmul.f32 %v553, %v609
      %v629 = vmul.f32 %v558, %v609
      %v630 = vmul.f32 %v561, %v609
      %v631 = vmul.f32 %v566, %v609
      %v632 = vmul.f32 %v569, %v609
      %v633 = vmul.f32 %v574, %v609
      %v634 = vmul.f32 %v577, %v609
      %v635 = vmul.f32 %v582, %v609
      %v636 = vmul.f32 %v585, %v609
      %v637 = vmul.f32 %v590, %v609
      %v638 = vmul.f32 %v593, %v609
      %v639 = vmul.f32 %v598, %v609
      %v640 = vmul.f32 %v601, %v609
      %v641 = vld [vmem:[%s256] sm:$0x1]
      %v643 = vlaneseq
      %v644 = vshrl.u32 %v643, 7
      %v645 = vsub.s32 0, %v644
      %v646 = vrot.slane %v641, %v645
      %v648 = vadd.f32 %v611, %v646
      %v649 = vadd.f32 %v612, %v646
      %v650 = vadd.f32 %v613, %v646
      %v651 = vadd.f32 %v614, %v646
      %v652 = vadd.f32 %v615, %v646
      %v653 = vadd.f32 %v616, %v646
      %v654 = vadd.f32 %v617, %v646
      %v655 = vadd.f32 %v618, %v646
      %v656 = vadd.f32 %v619, %v646
      %v657 = vadd.f32 %v620, %v646
      %v658 = vadd.f32 %v621, %v646
      %v659 = vadd.f32 %v622, %v646
      %v660 = vadd.f32 %v623, %v646
      %v661 = vadd.f32 %v624, %v646
      %v662 = vadd.f32 %v625, %v646
      %v663 = vadd.f32 %v626, %v646
      %v664 = vadd.f32 %v627, %v646
      %v665 = vadd.f32 %v628, %v646
      %v666 = vadd.f32 %v629, %v646
      %v667 = vadd.f32 %v630, %v646
      %v668 = vadd.f32 %v631, %v646
      %v669 = vadd.f32 %v632, %v646
      %v670 = vadd.f32 %v633, %v646
      %v671 = vadd.f32 %v634, %v646
      %v672 = vadd.f32 %v635, %v646
      %v673 = vadd.f32 %v636, %v646
      %v674 = vadd.f32 %v637, %v646
      %v675 = vadd.f32 %v638, %v646
      %v676 = vadd.f32 %v639, %v646
      %v677 = vadd.f32 %v640, %v646
      %678 = vst [vmem:[%s264] sm:$0xff] %v648
      %679 = vst [vmem:[%s264 + $0x8] sm:$0xff] %v649
      %680 = vst [vmem:[%s264 + $0x10] sm:$0xff] %v650
      %681 = vst [vmem:[%s264 + $0x18] sm:$0xff] %v651
      %682 = vst [vmem:[%s264 + $0x20] sm:$0xff] %v652
      %683 = vst [vmem:[%s264 + $0x28] sm:$0xff] %v653
      %684 = vst [vmem:[%s264 + $0x30] sm:$0xff] %v654
      %685 = vst [vmem:[%s264 + $0x38] sm:$0xff] %v655
      %686 = vst [vmem:[%s264 + $0x40] sm:$0xff] %v656
      %687 = vst [vmem:[%s264 + $0x48] sm:$0xff] %v657
      %688 = vst [vmem:[%s264 + $0x50] sm:$0xff] %v658
      %689 = vst [vmem:[%s264 + $0x58] sm:$0xff] %v659
      %690 = vst [vmem:[%s264 + $0x60] sm:$0xff] %v660
      %691 = vst [vmem:[%s264 + $0x68] sm:$0xff] %v661
      %692 = vst [vmem:[%s264 + $0x70] sm:$0xff] %v662
      %693 = vst [vmem:[%s264 + $0x78] sm:$0xff] %v663
      %694 = vst [vmem:[%s264 + $0x80] sm:$0xff] %v664
      %695 = vst [vmem:[%s264 + $0x88] sm:$0xff] %v665
      %696 = vst [vmem:[%s264 + $0x90] sm:$0xff] %v666
      %697 = vst [vmem:[%s264 + $0x98] sm:$0xff] %v667
      %698 = vst [vmem:[%s264 + $0xa0] sm:$0xff] %v668
      %699 = vst [vmem:[%s264 + $0xa8] sm:$0xff] %v669
      %700 = vst [vmem:[%s264 + $0xb0] sm:$0xff] %v670
      %701 = vst [vmem:[%s264 + $0xb8] sm:$0xff] %v671
      %702 = vst [vmem:[%s264 + $0xc0] sm:$0xff] %v672
      %703 = vst [vmem:[%s264 + $0xc8] sm:$0xff] %v673
      %704 = vst [vmem:[%s264 + $0xd0] sm:$0xff] %v674
      %705 = vst [vmem:[%s264 + $0xd8] sm:$0xff] %v675
      %706 = vst [vmem:[%s264 + $0xe0] sm:$0xff] %v676
      %707 = vst [vmem:[%s264 + $0xe8] sm:$0xff] %v677
      %s708 = smul.u32 30, %s19
      %p709 = scmp.lt.s32.totalorder %s708, 149
      %s710 = scalar_select %p709, %s708, 149
      %p711 = scmp.lt.s32.totalorder %s20, 0
      %s712 = scalar_select %p711, %s20, 0
      %s713 = sadd.s32 %s712, %s710
      %s714 = smul.addr %s713, 8
      %s715 = scalar_lea.vmem %s4, %s714
      // Predicated region
      $region37: #{dense_grasp_forward.77} parent=35 // pred_check
        %p716 = pneg %p151
      $region38: #{dense_grasp_forward.77} parent=35 // pred_check_branch
        %718 = sbr.rel (%p716) target = $region40
      $region39: #{dense_grasp_forward.77} parent=35 // pred_region
        %s719 = smul.u32 30, %s19
      $region40: #{dense_grasp_forward.77} parent=35 // pred_fallthru
        _
    $region36: #{dense_grasp_forward.77} parent=5 // pred_fallthru
      _
    %p720 = scmp.le.s32.totalorder 2, %s10
    // Predicated region
    $region41: #{dense_grasp_forward.77} parent=5 // pred_check
      %p721 = pneg %p720
    $region42: #{dense_grasp_forward.77} parent=5 // pred_check_branch
      %723 = sbr.rel (%p721) target = $region44
    $region43: #{dense_grasp_forward.77} parent=5 // pred_region
      %s724 = ssub.s32 %s10, 2
      // Predicated region
      $region45: #{dense_grasp_forward.77} parent=43 // pred_check
        %p725 = pneg %p157
      $region46: #{dense_grasp_forward.77} parent=43 // pred_check_branch
        %727 = sbr.rel (%p725) target = $region48
      $region47: #{dense_grasp_forward.77} parent=43 // pred_region
        %s728 = smul.u32 30, %s21
        %p729 = scmp.lt.s32.totalorder %s728, 149
        %s730 = scalar_select %p729, %s728, 149
        %p731 = scmp.lt.s32.totalorder %s22, 0
        %s732 = scalar_select %p731, %s22, 0
        %s733 = sadd.s32 %s732, %s730
        %s734 = smul.addr %s733, 8
        %s735 = scalar_lea.vmem %s4, %s734
      $region48: #{dense_grasp_forward.77} parent=43 // pred_fallthru
        _
    $region44: #{dense_grasp_forward.77} parent=5 // pred_fallthru
      _
  $region6: #{dense_grasp_forward.77} parent=0 // loop_footer
    %s14 = sadd.s32 1, %s10
  $region7: #{dense_grasp_forward.77} parent=0 // loop_footer_branch
    %9 = sbr.rel target = $region3
  $region8: #{dense_grasp_forward.77} parent=0 // loop_exit
    _

</llo_original>
